<compile_context>
chip_gen: v7x
topology: tpu7x:2x2x1
jax: 0.10.0
libtpu: 0.0.40
codegen_flags: <defaults>
</compile_context>

<pallas_src>
import functools

import jax
import jax.numpy as jnp
from jax.experimental import pallas as pl
from jax.experimental.pallas import tpu as pltpu


# ----------------------------------------------------------------------------
# Fused kernel: conv3x3 -> ReLU -> mean(H) -> (1x1 proj folded into GRU l0)
#               -> bidirectional L-layer GRU -> FC head.
# TODO(synk): resnet18(head_only=True, num_classes=1) internals are not given;
# the conv3x3 + ReLU + mean-over-H + 1x1 projection stand-in keeps the
# interface (one scalar per width position, W becomes the sequence axis).
# ----------------------------------------------------------------------------
def _rnn_kernel(*refs, Himg, W, Bp, H, L):
    G = 3 * H                      # gate width per direction
    SWB = W * Bp                   # lanes per image row == rows per timestep
    NPOS = Himg * SWB              # valid conv output positions
    T = W                          # sequence length

    it = iter(refs)
    xk_ref = next(it)              # (3C, Hp*W*Bp) bf16  padded / shift-stacked image
    wk_ref = next(it)              # (3, Cf, 3C)   bf16  conv weights per dh shift
    bconv_ref = next(it)           # (Cf, 1)       f32
    layer_refs = [tuple(next(it) for _ in range(6)) for _ in range(L)]
    fcw_ref = next(it)             # (2*H*L, NC)   bf16
    fcb_ref = next(it)             # (1, NC)       f32
    out_ref = next(it)             # (Bp, NC)      f32
    gi_ref = next(it)              # (T*Bp, 2G)    f32 scratch: staged input projections
    hseq_ref = next(it)            # (T*Bp, 2H)    f32 scratch: inter-layer hidden seq

    # ---- conv3x3 as 3 shifted-slice matmuls (width shifts are channel-stacked);
    #      positions (h, w, b) live on the lane axis, slices are 128-aligned ----
    acc = jnp.dot(wk_ref[0], xk_ref[:, 0:NPOS],
                  preferred_element_type=jnp.float32)
    for dh in range(1, 3):
        acc = acc + jnp.dot(wk_ref[dh], xk_ref[:, dh * SWB:dh * SWB + NPOS],
                            preferred_element_type=jnp.float32)
    acc = jnp.maximum(acc + bconv_ref[...], 0.0)           # (Cf, NPOS)

    # ---- mean over image H: lane-block-aligned slice adds (pure VPU) ----
    feat = acc[:, 0:SWB]
    for h in range(1, Himg):
        feat = feat + acc[:, h * SWB:(h + 1) * SWB]
    feat = feat * (1.0 / Himg)                             # (Cf, T*Bp)

    # One small (8,128) transpose: positions move from lanes to sublanes so the
    # recurrence runs batch-on-sublanes (MXU-friendly (Bp,H)@(H,3H) dots).
    featT = jnp.transpose(feat).astype(jnp.bfloat16)       # (T*Bp, Cf)

    def gru_cell(i_g, h_g, h_prev):
        r = jax.nn.sigmoid(i_g[:, 0:H] + h_g[:, 0:H])
        z = jax.nn.sigmoid(i_g[:, H:2 * H] + h_g[:, H:2 * H])
        n = jnp.tanh(i_g[:, 2 * H:3 * H] + r * h_g[:, 2 * H:3 * H])
        return (1.0 - z) * n + z * h_prev

    finals = []
    for l, (wih_ref, bih_ref, whhf_ref, bhhf_ref, whhb_ref, bhhb_ref) in \
            enumerate(layer_refs):
        # -- hoisted input-to-hidden projection for ALL T steps, staged in VMEM
        #    instead of being pinned in vregs across the unrolled recurrence --
        if l == 0:
            x_seq = featT                                  # (T*Bp, Cf): 1x1 proj folded in
        else:
            x_seq = hseq_ref[...].astype(jnp.bfloat16)     # (T*Bp, 2H)
        gi_ref[...] = (jnp.dot(x_seq, wih_ref[...],
                               preferred_element_type=jnp.float32)
                       + bih_ref[...])
        write_hseq = (l + 1) < L

        # -- recurrence: fwd+bwd interleaved, fully unrolled, per-direction
        #    K=H bf16 dots (no per-step lane concat, no zero block-diag) --
        h_f = jnp.zeros((Bp, H), jnp.float32)
        h_b = jnp.zeros((Bp, H), jnp.float32)
        for s in range(T):
            tb = T - 1 - s
            gi_f = gi_ref[s * Bp:(s + 1) * Bp, 0:G]
            gi_b = gi_ref[tb * Bp:(tb + 1) * Bp, G:2 * G]
            gh_f = (jnp.dot(h_f.astype(jnp.bfloat16), whhf_ref[...],
                            preferred_element_type=jnp.float32)
                    + bhhf_ref[...])
            gh_b = (jnp.dot(h_b.astype(jnp.bfloat16), whhb_ref[...],
                            preferred_element_type=jnp.float32)
                    + bhhb_ref[...])
            h_f = gru_cell(gi_f, gh_f, h_f)
            h_b = gru_cell(gi_b, gh_b, h_b)
            if write_hseq:
                hseq_ref[s * Bp:(s + 1) * Bp, 0:H] = h_f
                hseq_ref[tb * Bp:(tb + 1) * Bp, H:2 * H] = h_b
        finals += [h_f, h_b]           # torch h_n order: [l0_f, l0_b, l1_f, l1_b]

    # ---- FC head in the epilogue on the (Bp, 2*H*L) final-state slab ----
    feat_fc = jnp.concatenate(finals, axis=-1).astype(jnp.bfloat16)
    out_ref[...] = (jnp.dot(feat_fc, fcw_ref[...],
                            preferred_element_type=jnp.float32)
                    + fcb_ref[...])


# ----------------------------------------------------------------------------
# Host wrapper: light layout prep + one pallas_call.
# ----------------------------------------------------------------------------
def rnn_forward(x, prep):
    B, C, Himg, W = x.shape
    Bp = ((B + 7) // 8) * 8            # pad batch to a full sublane group
    Hp = Himg + 2

    # Layout prep (fuses into ~one XLA copy): zero-pad batch to Bp, pad H for
    # the 3x3 conv, stack the 3 width shifts on the channel axis, flatten
    # positions (h, w, b) onto lanes, cast to bf16 for the MXU.
    xp = jnp.pad(x, ((0, Bp - B), (0, 0), (1, 1), (1, 1)))           # (Bp,C,Hp,W+2)
    xw = jnp.concatenate([xp[:, :, :, dw:dw + W] for dw in range(3)],
                         axis=1)                                      # (Bp,3C,Hp,W)
    xk = jnp.transpose(xw, (1, 2, 3, 0)).reshape(3 * C, Hp * W * Bp)
    xk = xk.astype(jnp.bfloat16)

    layers = prep["gru"]
    L = len(layers)
    H = layers[0][2].shape[0]          # whh_f is (H, 3H)
    G = 3 * H
    NC = prep["fc_wT"].shape[1]

    kern = functools.partial(_rnn_kernel, Himg=Himg, W=W, Bp=Bp, H=H, L=L)
    flat_w = [w for layer in layers for w in layer]
    out = pl.pallas_call(
        kern,
        out_shape=jax.ShapeDtypeStruct((Bp, NC), jnp.float32),
        scratch_shapes=[
            pltpu.VMEM((W * Bp, 2 * G), jnp.float32),   # staged input projections
            pltpu.VMEM((W * Bp, 2 * H), jnp.float32),   # inter-layer hidden sequence
        ],
    )(xk, prep["wk"], prep["bconv"], *flat_w, prep["fc_wT"], prep["fc_b"])
    return out[:B]


# ----------------------------------------------------------------------------
# Parameter init (PyTorch-style layouts) + one-time kernel-ready repacking.
# ----------------------------------------------------------------------------
def init_params(key, *, C_in, C_feat, H_gru, num_layers, num_classes):
    keys = iter(jax.random.split(key, 64))

    def u(shape, bound):
        return jax.random.uniform(next(keys), shape, jnp.float32, -bound, bound)

    params = {}
    kb = 1.0 / (C_in * 9) ** 0.5
    params["wconv"] = u((C_feat, C_in, 3, 3), kb)
    params["bconv"] = u((C_feat,), kb)
    kp = 1.0 / C_feat ** 0.5
    params["wproj"] = u((1, C_feat), kp)
    params["bproj"] = u((1,), kp)

    kh = 1.0 / H_gru ** 0.5
    gru = []
    for layer in range(num_layers):
        d_in = 1 if layer == 0 else 2 * H_gru
        p = {}
        for d in ("f", "b"):
            p[f"w_ih_{d}"] = u((3 * H_gru, d_in), kh)
            p[f"w_hh_{d}"] = u((3 * H_gru, H_gru), kh)
            p[f"b_ih_{d}"] = u((3 * H_gru,), kh)
            p[f"b_hh_{d}"] = u((3 * H_gru,), kh)
        gru.append(p)
    params["gru"] = gru

    F = 2 * H_gru * num_layers
    kf = 1.0 / F ** 0.5
    params["fc_w"] = u((num_classes, F), kf)
    params["fc_b"] = u((num_classes,), kf)
    return params


def prepare_params(params):
    """One-time conversion of PyTorch-layout params into kernel-ready arrays."""
    wconv = params["wconv"]                                  # (Cf, C, 3, 3)
    Cf, C = wconv.shape[0], wconv.shape[1]
    prep = {
        # per-dh conv weight blocks, columns ordered (dw, c) to match the
        # width-shift channel stacking of the kernel input
        "wk": jnp.transpose(wconv, (2, 0, 3, 1))
                 .reshape(3, Cf, 3 * C).astype(jnp.bfloat16),
        "bconv": params["bconv"].reshape(Cf, 1),
        "fc_wT": params["fc_w"].T.astype(jnp.bfloat16),      # (2*H*L, NC)
        "fc_b": params["fc_b"].reshape(1, -1),
    }
    wproj = params["wproj"].reshape(Cf)                      # 1x1 proj: Cf -> 1
    bproj = params["bproj"].reshape(())
    layers = []
    for li, p in enumerate(params["gru"]):
        wih = jnp.concatenate([p["w_ih_f"].T, p["w_ih_b"].T], axis=1)   # (D_in, 6H)
        bih = jnp.concatenate([p["b_ih_f"], p["b_ih_b"]]).reshape(1, -1)
        if li == 0:
            # D_in == 1: fold the backbone 1x1 projection into layer-0's input
            # projection:  gi0 = featT @ (wproj ⊗ wih) + (bproj*wih + bih)
            wih_row = wih.reshape(1, -1)                     # (1, 6H)
            wih = wproj[:, None] * wih_row                   # (Cf, 6H)
            bih = bproj * wih_row + bih                      # (1, 6H)
        layers.append((
            wih.astype(jnp.bfloat16),                        # (D_in|Cf, 6H)
            bih,                                             # (1, 6H) f32
            p["w_hh_f"].T.astype(jnp.bfloat16),              # (H, 3H)
            p["b_hh_f"].reshape(1, -1),                      # (1, 3H) f32
            p["w_hh_b"].T.astype(jnp.bfloat16),              # (H, 3H)
            p["b_hh_b"].reshape(1, -1),                      # (1, 3H) f32
        ))
    prep["gru"] = layers
    return prep


if __name__ == "__main__":
    B, C, HIMG, W = 2, 4, 16, 16          # T == W == 16
    H_GRU, LAYERS, NUM_CLASSES, C_FEAT = 32, 2, 3, 8

    key = jax.random.PRNGKey(0)
    kx, kp = jax.random.split(key)
    x = jax.random.normal(kx, (B, C, HIMG, W), jnp.float32)
    params = init_params(kp, C_in=C, C_feat=C_FEAT, H_gru=H_GRU,
                         num_layers=LAYERS, num_classes=NUM_CLASSES)
    prep = prepare_params(params)          # one-time weight repacking

    fwd = jax.jit(rnn_forward)
    out = fwd(x, prep)
    jax.block_until_ready(out)
    assert out.shape == (B, NUM_CLASSES), out.shape
    assert bool(jnp.isfinite(out).all())
    print("KERNEL_OK")
</pallas_src>

<mosaic_0001>
module attributes {stable_mosaic.version = 11 : i64} {
  func.func @_rnn_kernel(%arg0: memref<12x2304xbf16, #tpu.memory_space<vmem>>, %arg1: memref<3x8x12xbf16, #tpu.memory_space<vmem>>, %arg2: memref<8x1xf32, #tpu.memory_space<vmem>>, %arg3: memref<8x192xbf16, #tpu.memory_space<vmem>>, %arg4: memref<1x192xf32, #tpu.memory_space<vmem>>, %arg5: memref<32x96xbf16, #tpu.memory_space<vmem>>, %arg6: memref<1x96xf32, #tpu.memory_space<vmem>>, %arg7: memref<32x96xbf16, #tpu.memory_space<vmem>>, %arg8: memref<1x96xf32, #tpu.memory_space<vmem>>, %arg9: memref<64x192xbf16, #tpu.memory_space<vmem>>, %arg10: memref<1x192xf32, #tpu.memory_space<vmem>>, %arg11: memref<32x96xbf16, #tpu.memory_space<vmem>>, %arg12: memref<1x96xf32, #tpu.memory_space<vmem>>, %arg13: memref<32x96xbf16, #tpu.memory_space<vmem>>, %arg14: memref<1x96xf32, #tpu.memory_space<vmem>>, %arg15: memref<128x3xbf16, #tpu.memory_space<vmem>>, %arg16: memref<1x3xf32, #tpu.memory_space<vmem>>, %arg17: memref<8x3xf32, #tpu.memory_space<vmem>>, %arg18: memref<128x192xf32, #tpu.memory_space<vmem>>, %arg19: memref<128x64xf32, #tpu.memory_space<vmem>>) attributes {dimension_semantics = [], scalar_prefetch = 0 : i64, scratch_operands = 2 : i64, tpu.core_type = #tpu.core_type<tc>} {
    %c0 = arith.constant 0 : index
    %c0_0 = arith.constant 0 : index
    %c0_1 = arith.constant 0 : index
    %0 = vector.load %arg1[%c0, %c0_0, %c0_1] : memref<3x8x12xbf16, #tpu.memory_space<vmem>>, vector<1x8x12xbf16>
    %1 = vector.shape_cast %0 : vector<1x8x12xbf16> to vector<8x12xbf16>
    %c0_2 = arith.constant 0 : index
    %c0_3 = arith.constant 0 : index
    %2 = vector.load %arg0[%c0_2, %c0_3] : memref<12x2304xbf16, #tpu.memory_space<vmem>>, vector<12x2048xbf16>
    %cst = arith.constant dense<0.000000e+00> : vector<8x2048xf32>
    %3 = tpu.matmul %1, %2, %cst {dimension_numbers = #tpu.dot_dimension_numbers<[1], [0], [0], [1], [0, 0, 1, 1], [], []>} : vector<8x12xbf16>, vector<12x2048xbf16>, vector<8x2048xf32> -> vector<8x2048xf32>
    %c1 = arith.constant 1 : index
    %c0_4 = arith.constant 0 : index
    %c0_5 = arith.constant 0 : index
    %4 = vector.load %arg1[%c1, %c0_4, %c0_5] : memref<3x8x12xbf16, #tpu.memory_space<vmem>>, vector<1x8x12xbf16>
    %5 = vector.shape_cast %4 : vector<1x8x12xbf16> to vector<8x12xbf16>
    %c0_6 = arith.constant 0 : index
    %c128 = arith.constant 128 : index
    %6 = vector.load %arg0[%c0_6, %c128] : memref<12x2304xbf16, #tpu.memory_space<vmem>>, vector<12x2048xbf16>
    %cst_7 = arith.constant dense<0.000000e+00> : vector<8x2048xf32>
    %7 = tpu.matmul %5, %6, %cst_7 {dimension_numbers = #tpu.dot_dimension_numbers<[1], [0], [0], [1], [0, 0, 1, 1], [], []>} : vector<8x12xbf16>, vector<12x2048xbf16>, vector<8x2048xf32> -> vector<8x2048xf32>
    %8 = arith.addf %3, %7 : vector<8x2048xf32>
    %c2 = arith.constant 2 : index
    %c0_8 = arith.constant 0 : index
    %c0_9 = arith.constant 0 : index
    %9 = vector.load %arg1[%c2, %c0_8, %c0_9] : memref<3x8x12xbf16, #tpu.memory_space<vmem>>, vector<1x8x12xbf16>
    %10 = vector.shape_cast %9 : vector<1x8x12xbf16> to vector<8x12xbf16>
    %c0_10 = arith.constant 0 : index
    %c256 = arith.constant 256 : index
    %11 = vector.load %arg0[%c0_10, %c256] : memref<12x2304xbf16, #tpu.memory_space<vmem>>, vector<12x2048xbf16>
    %cst_11 = arith.constant dense<0.000000e+00> : vector<8x2048xf32>
    %12 = tpu.matmul %10, %11, %cst_11 {dimension_numbers = #tpu.dot_dimension_numbers<[1], [0], [0], [1], [0, 0, 1, 1], [], []>} : vector<8x12xbf16>, vector<12x2048xbf16>, vector<8x2048xf32> -> vector<8x2048xf32>
    %13 = arith.addf %8, %12 : vector<8x2048xf32>
    %c0_12 = arith.constant 0 : index
    %c0_13 = arith.constant 0 : index
    %14 = vector.load %arg2[%c0_12, %c0_13] : memref<8x1xf32, #tpu.memory_space<vmem>>, vector<8x1xf32>
    %15 = vector.broadcast %14 : vector<8x1xf32> to vector<8x2048xf32>
    %16 = arith.addf %13, %15 : vector<8x2048xf32>
    %cst_14 = arith.constant 0.000000e+00 : f32
    %17 = vector.broadcast %cst_14 : f32 to vector<8x2048xf32>
    %18 = arith.maximumf %16, %17 : vector<8x2048xf32>
    %19 = vector.extract_strided_slice %18 {offsets = [0, 0], sizes = [8, 128], strides = [1, 1]} : vector<8x2048xf32> to vector<8x128xf32>
    %20 = vector.extract_strided_slice %18 {offsets = [0, 128], sizes = [8, 128], strides = [1, 1]} : vector<8x2048xf32> to vector<8x128xf32>
    %21 = arith.addf %19, %20 : vector<8x128xf32>
    %22 = vector.extract_strided_slice %18 {offsets = [0, 256], sizes = [8, 128], strides = [1, 1]} : vector<8x2048xf32> to vector<8x128xf32>
    %23 = arith.addf %21, %22 : vector<8x128xf32>
    %24 = vector.extract_strided_slice %18 {offsets = [0, 384], sizes = [8, 128], strides = [1, 1]} : vector<8x2048xf32> to vector<8x128xf32>
    %25 = arith.addf %23, %24 : vector<8x128xf32>
    %26 = vector.extract_strided_slice %18 {offsets = [0, 512], sizes = [8, 128], strides = [1, 1]} : vector<8x2048xf32> to vector<8x128xf32>
    %27 = arith.addf %25, %26 : vector<8x128xf32>
    %28 = vector.extract_strided_slice %18 {offsets = [0, 640], sizes = [8, 128], strides = [1, 1]} : vector<8x2048xf32> to vector<8x128xf32>
    %29 = arith.addf %27, %28 : vector<8x128xf32>
    %30 = vector.extract_strided_slice %18 {offsets = [0, 768], sizes = [8, 128], strides = [1, 1]} : vector<8x2048xf32> to vector<8x128xf32>
    %31 = arith.addf %29, %30 : vector<8x128xf32>
    %32 = vector.extract_strided_slice %18 {offsets = [0, 896], sizes = [8, 128], strides = [1, 1]} : vector<8x2048xf32> to vector<8x128xf32>
    %33 = arith.addf %31, %32 : vector<8x128xf32>
    %34 = vector.extract_strided_slice %18 {offsets = [0, 1024], sizes = [8, 128], strides = [1, 1]} : vector<8x2048xf32> to vector<8x128xf32>
    %35 = arith.addf %33, %34 : vector<8x128xf32>
    %36 = vector.extract_strided_slice %18 {offsets = [0, 1152], sizes = [8, 128], strides = [1, 1]} : vector<8x2048xf32> to vector<8x128xf32>
    %37 = arith.addf %35, %36 : vector<8x128xf32>
    %38 = vector.extract_strided_slice %18 {offsets = [0, 1280], sizes = [8, 128], strides = [1, 1]} : vector<8x2048xf32> to vector<8x128xf32>
    %39 = arith.addf %37, %38 : vector<8x128xf32>
    %40 = vector.extract_strided_slice %18 {offsets = [0, 1408], sizes = [8, 128], strides = [1, 1]} : vector<8x2048xf32> to vector<8x128xf32>
    %41 = arith.addf %39, %40 : vector<8x128xf32>
    %42 = vector.extract_strided_slice %18 {offsets = [0, 1536], sizes = [8, 128], strides = [1, 1]} : vector<8x2048xf32> to vector<8x128xf32>
    %43 = arith.addf %41, %42 : vector<8x128xf32>
    %44 = vector.extract_strided_slice %18 {offsets = [0, 1664], sizes = [8, 128], strides = [1, 1]} : vector<8x2048xf32> to vector<8x128xf32>
    %45 = arith.addf %43, %44 : vector<8x128xf32>
    %46 = vector.extract_strided_slice %18 {offsets = [0, 1792], sizes = [8, 128], strides = [1, 1]} : vector<8x2048xf32> to vector<8x128xf32>
    %47 = arith.addf %45, %46 : vector<8x128xf32>
    %48 = vector.extract_strided_slice %18 {offsets = [0, 1920], sizes = [8, 128], strides = [1, 1]} : vector<8x2048xf32> to vector<8x128xf32>
    %49 = arith.addf %47, %48 : vector<8x128xf32>
    %cst_15 = arith.constant 6.250000e-02 : f32
    %50 = vector.broadcast %cst_15 : f32 to vector<8x128xf32>
    %51 = arith.mulf %49, %50 : vector<8x128xf32>
    %52 = tpu.transpose %51, [1, 0] : vector<8x128xf32> -> vector<128x8xf32>
    %53 = arith.truncf %52 : vector<128x8xf32> to vector<128x8xbf16>
    %c0_16 = arith.constant 0 : index
    %c0_17 = arith.constant 0 : index
    %54 = vector.load %arg3[%c0_16, %c0_17] : memref<8x192xbf16, #tpu.memory_space<vmem>>, vector<8x192xbf16>
    %cst_18 = arith.constant dense<0.000000e+00> : vector<128x192xf32>
    %55 = tpu.matmul %53, %54, %cst_18 {dimension_numbers = #tpu.dot_dimension_numbers<[1], [0], [0], [1], [0, 0, 1, 1], [], []>} : vector<128x8xbf16>, vector<8x192xbf16>, vector<128x192xf32> -> vector<128x192xf32>
    %c0_19 = arith.constant 0 : index
    %c0_20 = arith.constant 0 : index
    %56 = vector.load %arg4[%c0_19, %c0_20] : memref<1x192xf32, #tpu.memory_space<vmem>>, vector<1x192xf32>
    %57 = vector.broadcast %56 : vector<1x192xf32> to vector<128x192xf32>
    %58 = arith.addf %55, %57 : vector<128x192xf32>
    %c0_21 = arith.constant 0 : index
    %c0_22 = arith.constant 0 : index
    %59 = vector.load %arg18[%c0_21, %c0_22] : memref<128x192xf32, #tpu.memory_space<vmem>>, vector<128x192xf32>
    tpu.vector_store %arg18[%c0_21, %c0_22], %58 {strides = array<i32>} : memref<128x192xf32, #tpu.memory_space<vmem>>, vector<128x192xf32>,
    %cst_23 = arith.constant 0.000000e+00 : f32
    %60 = vector.broadcast %cst_23 : f32 to vector<8x32xf32>
    %cst_24 = arith.constant 0.000000e+00 : f32
    %61 = vector.broadcast %cst_24 : f32 to vector<8x32xf32>
    %c0_25 = arith.constant 0 : index
    %c0_26 = arith.constant 0 : index
    %62 = vector.load %arg18[%c0_25, %c0_26] : memref<128x192xf32, #tpu.memory_space<vmem>>, vector<8x96xf32>
    %c120 = arith.constant 120 : index
    %c96 = arith.constant 96 : index
    %63 = vector.load %arg18[%c120, %c96] : memref<128x192xf32, #tpu.memory_space<vmem>>, vector<8x96xf32>
    %64 = arith.truncf %60 : vector<8x32xf32> to vector<8x32xbf16>
    %c0_27 = arith.constant 0 : index
    %c0_28 = arith.constant 0 : index
    %65 = vector.load %arg5[%c0_27, %c0_28] : memref<32x96xbf16, #tpu.memory_space<vmem>>, vector<32x96xbf16>
    %cst_29 = arith.constant dense<0.000000e+00> : vector<8x96xf32>
    %66 = tpu.matmul %64, %65, %cst_29 {dimension_numbers = #tpu.dot_dimension_numbers<[1], [0], [0], [1], [0, 0, 1, 1], [], []>} : vector<8x32xbf16>, vector<32x96xbf16>, vector<8x96xf32> -> vector<8x96xf32>
    %c0_30 = arith.constant 0 : index
    %c0_31 = arith.constant 0 : index
    %67 = vector.load %arg6[%c0_30, %c0_31] : memref<1x96xf32, #tpu.memory_space<vmem>>, vector<1x96xf32>
    %68 = vector.broadcast %67 : vector<1x96xf32> to vector<8x96xf32>
    %69 = arith.addf %66, %68 : vector<8x96xf32>
    %70 = arith.truncf %61 : vector<8x32xf32> to vector<8x32xbf16>
    %c0_32 = arith.constant 0 : index
    %c0_33 = arith.constant 0 : index
    %71 = vector.load %arg7[%c0_32, %c0_33] : memref<32x96xbf16, #tpu.memory_space<vmem>>, vector<32x96xbf16>
    %cst_34 = arith.constant dense<0.000000e+00> : vector<8x96xf32>
    %72 = tpu.matmul %70, %71, %cst_34 {dimension_numbers = #tpu.dot_dimension_numbers<[1], [0], [0], [1], [0, 0, 1, 1], [], []>} : vector<8x32xbf16>, vector<32x96xbf16>, vector<8x96xf32> -> vector<8x96xf32>
    %c0_35 = arith.constant 0 : index
    %c0_36 = arith.constant 0 : index
    %73 = vector.load %arg8[%c0_35, %c0_36] : memref<1x96xf32, #tpu.memory_space<vmem>>, vector<1x96xf32>
    %74 = vector.broadcast %73 : vector<1x96xf32> to vector<8x96xf32>
    %75 = arith.addf %72, %74 : vector<8x96xf32>
    %76 = vector.extract_strided_slice %62 {offsets = [0, 0], sizes = [8, 32], strides = [1, 1]} : vector<8x96xf32> to vector<8x32xf32>
    %77 = vector.extract_strided_slice %69 {offsets = [0, 0], sizes = [8, 32], strides = [1, 1]} : vector<8x96xf32> to vector<8x32xf32>
    %78 = arith.addf %76, %77 : vector<8x32xf32>
    %79 = arith.negf %78 : vector<8x32xf32>
    %80 = math.exp %79 : vector<8x32xf32>
    %cst_37 = arith.constant 1.000000e+00 : f32
    %81 = vector.broadcast %cst_37 : f32 to vector<8x32xf32>
    %82 = arith.addf %81, %80 : vector<8x32xf32>
    %83 = arith.divf %81, %82 : vector<8x32xf32>
    %84 = vector.extract_strided_slice %62 {offsets = [0, 32], sizes = [8, 32], strides = [1, 1]} : vector<8x96xf32> to vector<8x32xf32>
    %85 = vector.extract_strided_slice %69 {offsets = [0, 32], sizes = [8, 32], strides = [1, 1]} : vector<8x96xf32> to vector<8x32xf32>
    %86 = arith.addf %84, %85 : vector<8x32xf32>
    %87 = arith.negf %86 : vector<8x32xf32>
    %88 = math.exp %87 : vector<8x32xf32>
    %cst_38 = arith.constant 1.000000e+00 : f32
    %89 = vector.broadcast %cst_38 : f32 to vector<8x32xf32>
    %90 = arith.addf %89, %88 : vector<8x32xf32>
    %91 = arith.divf %89, %90 : vector<8x32xf32>
    %92 = vector.extract_strided_slice %62 {offsets = [0, 64], sizes = [8, 32], strides = [1, 1]} : vector<8x96xf32> to vector<8x32xf32>
    %93 = vector.extract_strided_slice %69 {offsets = [0, 64], sizes = [8, 32], strides = [1, 1]} : vector<8x96xf32> to vector<8x32xf32>
    %94 = arith.mulf %83, %93 : vector<8x32xf32>
    %95 = arith.addf %92, %94 : vector<8x32xf32>
    %96 = math.tanh %95 : vector<8x32xf32>
    %cst_39 = arith.constant 1.000000e+00 : f32
    %97 = vector.broadcast %cst_39 : f32 to vector<8x32xf32>
    %98 = arith.subf %97, %91 : vector<8x32xf32>
    %99 = arith.mulf %98, %96 : vector<8x32xf32>
    %100 = arith.mulf %91, %60 : vector<8x32xf32>
    %101 = arith.addf %99, %100 : vector<8x32xf32>
    %102 = vector.extract_strided_slice %63 {offsets = [0, 0], sizes = [8, 32], strides = [1, 1]} : vector<8x96xf32> to vector<8x32xf32>
    %103 = vector.extract_strided_slice %75 {offsets = [0, 0], sizes = [8, 32], strides = [1, 1]} : vector<8x96xf32> to vector<8x32xf32>
    %104 = arith.addf %102, %103 : vector<8x32xf32>
    %105 = arith.negf %104 : vector<8x32xf32>
    %106 = math.exp %105 : vector<8x32xf32>
    %cst_40 = arith.constant 1.000000e+00 : f32
    %107 = vector.broadcast %cst_40 : f32 to vector<8x32xf32>
    %108 = arith.addf %107, %106 : vector<8x32xf32>
    %109 = arith.divf %107, %108 : vector<8x32xf32>
    %110 = vector.extract_strided_slice %63 {offsets = [0, 32], sizes = [8, 32], strides = [1, 1]} : vector<8x96xf32> to vector<8x32xf32>
    %111 = vector.extract_strided_slice %75 {offsets = [0, 32], sizes = [8, 32], strides = [1, 1]} : vector<8x96xf32> to vector<8x32xf32>
    %112 = arith.addf %110, %111 : vector<8x32xf32>
    %113 = arith.negf %112 : vector<8x32xf32>
    %114 = math.exp %113 : vector<8x32xf32>
    %cst_41 = arith.constant 1.000000e+00 : f32
    %115 = vector.broadcast %cst_41 : f32 to vector<8x32xf32>
    %116 = arith.addf %115, %114 : vector<8x32xf32>
    %117 = arith.divf %115, %116 : vector<8x32xf32>
    %118 = vector.extract_strided_slice %63 {offsets = [0, 64], sizes = [8, 32], strides = [1, 1]} : vector<8x96xf32> to vector<8x32xf32>
    %119 = vector.extract_strided_slice %75 {offsets = [0, 64], sizes = [8, 32], strides = [1, 1]} : vector<8x96xf32> to vector<8x32xf32>
    %120 = arith.mulf %109, %119 : vector<8x32xf32>
    %121 = arith.addf %118, %120 : vector<8x32xf32>
    %122 = math.tanh %121 : vector<8x32xf32>
    %cst_42 = arith.constant 1.000000e+00 : f32
    %123 = vector.broadcast %cst_42 : f32 to vector<8x32xf32>
    %124 = arith.subf %123, %117 : vector<8x32xf32>
    %125 = arith.mulf %124, %122 : vector<8x32xf32>
    %126 = arith.mulf %117, %61 : vector<8x32xf32>
    %127 = arith.addf %125, %126 : vector<8x32xf32>
    %c0_43 = arith.constant 0 : index
    %c0_44 = arith.constant 0 : index
    %128 = vector.load %arg19[%c0_43, %c0_44] : memref<128x64xf32, #tpu.memory_space<vmem>>, vector<8x32xf32>
    tpu.vector_store %arg19[%c0_43, %c0_44], %101 {strides = array<i32>} : memref<128x64xf32, #tpu.memory_space<vmem>>, vector<8x32xf32>,
    %c120_45 = arith.constant 120 : index
    %c32 = arith.constant 32 : index
    %129 = vector.load %arg19[%c120_45, %c32] : memref<128x64xf32, #tpu.memory_space<vmem>>, vector<8x32xf32>
    tpu.vector_store %arg19[%c120_45, %c32], %127 {strides = array<i32>} : memref<128x64xf32, #tpu.memory_space<vmem>>, vector<8x32xf32>,
    %c8 = arith.constant 8 : index
    %c0_46 = arith.constant 0 : index
    %130 = vector.load %arg18[%c8, %c0_46] : memref<128x192xf32, #tpu.memory_space<vmem>>, vector<8x96xf32>
    %c112 = arith.constant 112 : index
    %c96_47 = arith.constant 96 : index
    %131 = vector.load %arg18[%c112, %c96_47] : memref<128x192xf32, #tpu.memory_space<vmem>>, vector<8x96xf32>
    %132 = arith.truncf %101 : vector<8x32xf32> to vector<8x32xbf16>
    %c0_48 = arith.constant 0 : index
    %c0_49 = arith.constant 0 : index
    %133 = vector.load %arg5[%c0_48, %c0_49] : memref<32x96xbf16, #tpu.memory_space<vmem>>, vector<32x96xbf16>
    %cst_50 = arith.constant dense<0.000000e+00> : vector<8x96xf32>
    %134 = tpu.matmul %132, %133, %cst_50 {dimension_numbers = #tpu.dot_dimension_numbers<[1], [0], [0], [1], [0, 0, 1, 1], [], []>} : vector<8x32xbf16>, vector<32x96xbf16>, vector<8x96xf32> -> vector<8x96xf32>
    %c0_51 = arith.constant 0 : index
    %c0_52 = arith.constant 0 : index
    %135 = vector.load %arg6[%c0_51, %c0_52] : memref<1x96xf32, #tpu.memory_space<vmem>>, vector<1x96xf32>
    %136 = vector.broadcast %135 : vector<1x96xf32> to vector<8x96xf32>
    %137 = arith.addf %134, %136 : vector<8x96xf32>
    %138 = arith.truncf %127 : vector<8x32xf32> to vector<8x32xbf16>
    %c0_53 = arith.constant 0 : index
    %c0_54 = arith.constant 0 : index
    %139 = vector.load %arg7[%c0_53, %c0_54] : memref<32x96xbf16, #tpu.memory_space<vmem>>, vector<32x96xbf16>
    %cst_55 = arith.constant dense<0.000000e+00> : vector<8x96xf32>
    %140 = tpu.matmul %138, %139, %cst_55 {dimension_numbers = #tpu.dot_dimension_numbers<[1], [0], [0], [1], [0, 0, 1, 1], [], []>} : vector<8x32xbf16>, vector<32x96xbf16>, vector<8x96xf32> -> vector<8x96xf32>
    %c0_56 = arith.constant 0 : index
    %c0_57 = arith.constant 0 : index
    %141 = vector.load %arg8[%c0_56, %c0_57] : memref<1x96xf32, #tpu.memory_space<vmem>>, vector<1x96xf32>
    %142 = vector.broadcast %141 : vector<1x96xf32> to vector<8x96xf32>
    %143 = arith.addf %140, %142 : vector<8x96xf32>
    %144 = vector.extract_strided_slice %130 {offsets = [0, 0], sizes = [8, 32], strides = [1, 1]} : vector<8x96xf32> to vector<8x32xf32>
    %145 = vector.extract_strided_slice %137 {offsets = [0, 0], sizes = [8, 32], strides = [1, 1]} : vector<8x96xf32> to vector<8x32xf32>
    %146 = arith.addf %144, %145 : vector<8x32xf32>
    %147 = arith.negf %146 : vector<8x32xf32>
    %148 = math.exp %147 : vector<8x32xf32>
    %cst_58 = arith.constant 1.000000e+00 : f32
    %149 = vector.broadcast %cst_58 : f32 to vector<8x32xf32>
    %150 = arith.addf %149, %148 : vector<8x32xf32>
    %151 = arith.divf %149, %150 : vector<8x32xf32>
    %152 = vector.extract_strided_slice %130 {offsets = [0, 32], sizes = [8, 32], strides = [1, 1]} : vector<8x96xf32> to vector<8x32xf32>
    %153 = vector.extract_strided_slice %137 {offsets = [0, 32], sizes = [8, 32], strides = [1, 1]} : vector<8x96xf32> to vector<8x32xf32>
    %154 = arith.addf %152, %153 : vector<8x32xf32>
    %155 = arith.negf %154 : vector<8x32xf32>
    %156 = math.exp %155 : vector<8x32xf32>
    %cst_59 = arith.constant 1.000000e+00 : f32
    %157 = vector.broadcast %cst_59 : f32 to vector<8x32xf32>
    %158 = arith.addf %157, %156 : vector<8x32xf32>
    %159 = arith.divf %157, %158 : vector<8x32xf32>
    %160 = vector.extract_strided_slice %130 {offsets = [0, 64], sizes = [8, 32], strides = [1, 1]} : vector<8x96xf32> to vector<8x32xf32>
    %161 = vector.extract_strided_slice %137 {offsets = [0, 64], sizes = [8, 32], strides = [1, 1]} : vector<8x96xf32> to vector<8x32xf32>
    %162 = arith.mulf %151, %161 : vector<8x32xf32>
    %163 = arith.addf %160, %162 : vector<8x32xf32>
    %164 = math.tanh %163 : vector<8x32xf32>
    %cst_60 = arith.constant 1.000000e+00 : f32
    %165 = vector.broadcast %cst_60 : f32 to vector<8x32xf32>
    %166 = arith.subf %165, %159 : vector<8x32xf32>
    %167 = arith.mulf %166, %164 : vector<8x32xf32>
    %168 = arith.mulf %159, %101 : vector<8x32xf32>
    %169 = arith.addf %167, %168 : vector<8x32xf32>
    %170 = vector.extract_strided_slice %131 {offsets = [0, 0], sizes = [8, 32], strides = [1, 1]} : vector<8x96xf32> to vector<8x32xf32>
    %171 = vector.extract_strided_slice %143 {offsets = [0, 0], sizes = [8, 32], strides = [1, 1]} : vector<8x96xf32> to vector<8x32xf32>
    %172 = arith.addf %170, %171 : vector<8x32xf32>
    %173 = arith.negf %172 : vector<8x32xf32>
    %174 = math.exp %173 : vector<8x32xf32>
    %cst_61 = arith.constant 1.000000e+00 : f32
    %175 = vector.broadcast %cst_61 : f32 to vector<8x32xf32>
    %176 = arith.addf %175, %174 : vector<8x32xf32>
    %177 = arith.divf %175, %176 : vector<8x32xf32>
    %178 = vector.extract_strided_slice %131 {offsets = [0, 32], sizes = [8, 32], strides = [1, 1]} : vector<8x96xf32> to vector<8x32xf32>
    %179 = vector.extract_strided_slice %143 {offsets = [0, 32], sizes = [8, 32], strides = [1, 1]} : vector<8x96xf32> to vector<8x32xf32>
    %180 = arith.addf %178, %179 : vector<8x32xf32>
    %181 = arith.negf %180 : vector<8x32xf32>
    %182 = math.exp %181 : vector<8x32xf32>
    %cst_62 = arith.constant 1.000000e+00 : f32
    %183 = vector.broadcast %cst_62 : f32 to vector<8x32xf32>
    %184 = arith.addf %183, %182 : vector<8x32xf32>
    %185 = arith.divf %183, %184 : vector<8x32xf32>
    %186 = vector.extract_strided_slice %131 {offsets = [0, 64], sizes = [8, 32], strides = [1, 1]} : vector<8x96xf32> to vector<8x32xf32>
    %187 = vector.extract_strided_slice %143 {offsets = [0, 64], sizes = [8, 32], strides = [1, 1]} : vector<8x96xf32> to vector<8x32xf32>
    %188 = arith.mulf %177, %187 : vector<8x32xf32>
    %189 = arith.addf %186, %188 : vector<8x32xf32>
    %190 = math.tanh %189 : vector<8x32xf32>
    %cst_63 = arith.constant 1.000000e+00 : f32
    %191 = vector.broadcast %cst_63 : f32 to vector<8x32xf32>
    %192 = arith.subf %191, %185 : vector<8x32xf32>
    %193 = arith.mulf %192, %190 : vector<8x32xf32>
    %194 = arith.mulf %185, %127 : vector<8x32xf32>
    %195 = arith.addf %193, %194 : vector<8x32xf32>
    %c8_64 = arith.constant 8 : index
    %c0_65 = arith.constant 0 : index
    %196 = vector.load %arg19[%c8_64, %c0_65] : memref<128x64xf32, #tpu.memory_space<vmem>>, vector<8x32xf32>
    tpu.vector_store %arg19[%c8_64, %c0_65], %169 {strides = array<i32>} : memref<128x64xf32, #tpu.memory_space<vmem>>, vector<8x32xf32>,
    %c112_66 = arith.constant 112 : index
    %c32_67 = arith.constant 32 : index
    %197 = vector.load %arg19[%c112_66, %c32_67] : memref<128x64xf32, #tpu.memory_space<vmem>>, vector<8x32xf32>
    tpu.vector_store %arg19[%c112_66, %c32_67], %195 {strides = array<i32>} : memref<128x64xf32, #tpu.memory_space<vmem>>, vector<8x32xf32>,
    %c16 = arith.constant 16 : index
    %c0_68 = arith.constant 0 : index
    %198 = vector.load %arg18[%c16, %c0_68] : memref<128x192xf32, #tpu.memory_space<vmem>>, vector<8x96xf32>
    %c104 = arith.constant 104 : index
    %c96_69 = arith.constant 96 : index
    %199 = vector.load %arg18[%c104, %c96_69] : memref<128x192xf32, #tpu.memory_space<vmem>>, vector<8x96xf32>
    %200 = arith.truncf %169 : vector<8x32xf32> to vector<8x32xbf16>
    %c0_70 = arith.constant 0 : index
    %c0_71 = arith.constant 0 : index
    %201 = vector.load %arg5[%c0_70, %c0_71] : memref<32x96xbf16, #tpu.memory_space<vmem>>, vector<32x96xbf16>
    %cst_72 = arith.constant dense<0.000000e+00> : vector<8x96xf32>
    %202 = tpu.matmul %200, %201, %cst_72 {dimension_numbers = #tpu.dot_dimension_numbers<[1], [0], [0], [1], [0, 0, 1, 1], [], []>} : vector<8x32xbf16>, vector<32x96xbf16>, vector<8x96xf32> -> vector<8x96xf32>
    %c0_73 = arith.constant 0 : index
    %c0_74 = arith.constant 0 : index
    %203 = vector.load %arg6[%c0_73, %c0_74] : memref<1x96xf32, #tpu.memory_space<vmem>>, vector<1x96xf32>
    %204 = vector.broadcast %203 : vector<1x96xf32> to vector<8x96xf32>
    %205 = arith.addf %202, %204 : vector<8x96xf32>
    %206 = arith.truncf %195 : vector<8x32xf32> to vector<8x32xbf16>
    %c0_75 = arith.constant 0 : index
    %c0_76 = arith.constant 0 : index
    %207 = vector.load %arg7[%c0_75, %c0_76] : memref<32x96xbf16, #tpu.memory_space<vmem>>, vector<32x96xbf16>
    %cst_77 = arith.constant dense<0.000000e+00> : vector<8x96xf32>
    %208 = tpu.matmul %206, %207, %cst_77 {dimension_numbers = #tpu.dot_dimension_numbers<[1], [0], [0], [1], [0, 0, 1, 1], [], []>} : vector<8x32xbf16>, vector<32x96xbf16>, vector<8x96xf32> -> vector<8x96xf32>
    %c0_78 = arith.constant 0 : index
    %c0_79 = arith.constant 0 : index
    %209 = vector.load %arg8[%c0_78, %c0_79] : memref<1x96xf32, #tpu.memory_space<vmem>>, vector<1x96xf32>
    %210 = vector.broadcast %209 : vector<1x96xf32> to vector<8x96xf32>
    %211 = arith.addf %208, %210 : vector<8x96xf32>
    %212 = vector.extract_strided_slice %198 {offsets = [0, 0], sizes = [8, 32], strides = [1, 1]} : vector<8x96xf32> to vector<8x32xf32>
    %213 = vector.extract_strided_slice %205 {offsets = [0, 0], sizes = [8, 32], strides = [1, 1]} : vector<8x96xf32> to vector<8x32xf32>
    %214 = arith.addf %212, %213 : vector<8x32xf32>
    %215 = arith.negf %214 : vector<8x32xf32>
    %216 = math.exp %215 : vector<8x32xf32>
    %cst_80 = arith.constant 1.000000e+00 : f32
    %217 = vector.broadcast %cst_80 : f32 to vector<8x32xf32>
    %218 = arith.addf %217, %216 : vector<8x32xf32>
    %219 = arith.divf %217, %218 : vector<8x32xf32>
    %220 = vector.extract_strided_slice %198 {offsets = [0, 32], sizes = [8, 32], strides = [1, 1]} : vector<8x96xf32> to vector<8x32xf32>
    %221 = vector.extract_strided_slice %205 {offsets = [0, 32], sizes = [8, 32], strides = [1, 1]} : vector<8x96xf32> to vector<8x32xf32>
    %222 = arith.addf %220, %221 : vector<8x32xf32>
    %223 = arith.negf %222 : vector<8x32xf32>
    %224 = math.exp %223 : vector<8x32xf32>
    %cst_81 = arith.constant 1.000000e+00 : f32
    %225 = vector.broadcast %cst_81 : f32 to vector<8x32xf32>
    %226 = arith.addf %225, %224 : vector<8x32xf32>
    %227 = arith.divf %225, %226 : vector<8x32xf32>
    %228 = vector.extract_strided_slice %198 {offsets = [0, 64], sizes = [8, 32], strides = [1, 1]} : vector<8x96xf32> to vector<8x32xf32>
    %229 = vector.extract_strided_slice %205 {offsets = [0, 64], sizes = [8, 32], strides = [1, 1]} : vector<8x96xf32> to vector<8x32xf32>
    %230 = arith.mulf %219, %229 : vector<8x32xf32>
    %231 = arith.addf %228, %230 : vector<8x32xf32>
    %232 = math.tanh %231 : vector<8x32xf32>
    %cst_82 = arith.constant 1.000000e+00 : f32
    %233 = vector.broadcast %cst_82 : f32 to vector<8x32xf32>
    %234 = arith.subf %233, %227 : vector<8x32xf32>
    %235 = arith.mulf %234, %232 : vector<8x32xf32>
    %236 = arith.mulf %227, %169 : vector<8x32xf32>
    %237 = arith.addf %235, %236 : vector<8x32xf32>
    %238 = vector.extract_strided_slice %199 {offsets = [0, 0], sizes = [8, 32], strides = [1, 1]} : vector<8x96xf32> to vector<8x32xf32>
    %239 = vector.extract_strided_slice %211 {offsets = [0, 0], sizes = [8, 32], strides = [1, 1]} : vector<8x96xf32> to vector<8x32xf32>
    %240 = arith.addf %238, %239 : vector<8x32xf32>
    %241 = arith.negf %240 : vector<8x32xf32>
    %242 = math.exp %241 : vector<8x32xf32>
    %cst_83 = arith.constant 1.000000e+00 : f32
    %243 = vector.broadcast %cst_83 : f32 to vector<8x32xf32>
    %244 = arith.addf %243, %242 : vector<8x32xf32>
    %245 = arith.divf %243, %244 : vector<8x32xf32>
    %246 = vector.extract_strided_slice %199 {offsets = [0, 32], sizes = [8, 32], strides = [1, 1]} : vector<8x96xf32> to vector<8x32xf32>
    %247 = vector.extract_strided_slice %211 {offsets = [0, 32], sizes = [8, 32], strides = [1, 1]} : vector<8x96xf32> to vector<8x32xf32>
    %248 = arith.addf %246, %247 : vector<8x32xf32>
    %249 = arith.negf %248 : vector<8x32xf32>
    %250 = math.exp %249 : vector<8x32xf32>
    %cst_84 = arith.constant 1.000000e+00 : f32
    %251 = vector.broadcast %cst_84 : f32 to vector<8x32xf32>
    %252 = arith.addf %251, %250 : vector<8x32xf32>
    %253 = arith.divf %251, %252 : vector<8x32xf32>
    %254 = vector.extract_strided_slice %199 {offsets = [0, 64], sizes = [8, 32], strides = [1, 1]} : vector<8x96xf32> to vector<8x32xf32>
    %255 = vector.extract_strided_slice %211 {offsets = [0, 64], sizes = [8, 32], strides = [1, 1]} : vector<8x96xf32> to vector<8x32xf32>
    %256 = arith.mulf %245, %255 : vector<8x32xf32>
    %257 = arith.addf %254, %256 : vector<8x32xf32>
    %258 = math.tanh %257 : vector<8x32xf32>
    %cst_85 = arith.constant 1.000000e+00 : f32
    %259 = vector.broadcast %cst_85 : f32 to vector<8x32xf32>
    %260 = arith.subf %259, %253 : vector<8x32xf32>
    %261 = arith.mulf %260, %258 : vector<8x32xf32>
    %262 = arith.mulf %253, %195 : vector<8x32xf32>
    %263 = arith.addf %261, %262 : vector<8x32xf32>
    %c16_86 = arith.constant 16 : index
    %c0_87 = arith.constant 0 : index
    %264 = vector.load %arg19[%c16_86, %c0_87] : memref<128x64xf32, #tpu.memory_space<vmem>>, vector<8x32xf32>
    tpu.vector_store %arg19[%c16_86, %c0_87], %237 {strides = array<i32>} : memref<128x64xf32, #tpu.memory_space<vmem>>, vector<8x32xf32>,
    %c104_88 = arith.constant 104 : index
    %c32_89 = arith.constant 32 : index
    %265 = vector.load %arg19[%c104_88, %c32_89] : memref<128x64xf32, #tpu.memory_space<vmem>>, vector<8x32xf32>
    tpu.vector_store %arg19[%c104_88, %c32_89], %263 {strides = array<i32>} : memref<128x64xf32, #tpu.memory_space<vmem>>, vector<8x32xf32>,
    %c24 = arith.constant 24 : index
    %c0_90 = arith.constant 0 : index
    %266 = vector.load %arg18[%c24, %c0_90] : memref<128x192xf32, #tpu.memory_space<vmem>>, vector<8x96xf32>
    %c96_91 = arith.constant 96 : index
    %c96_92 = arith.constant 96 : index
    %267 = vector.load %arg18[%c96_91, %c96_92] : memref<128x192xf32, #tpu.memory_space<vmem>>, vector<8x96xf32>
    %268 = arith.truncf %237 : vector<8x32xf32> to vector<8x32xbf16>
    %c0_93 = arith.constant 0 : index
    %c0_94 = arith.constant 0 : index
    %269 = vector.load %arg5[%c0_93, %c0_94] : memref<32x96xbf16, #tpu.memory_space<vmem>>, vector<32x96xbf16>
    %cst_95 = arith.constant dense<0.000000e+00> : vector<8x96xf32>
    %270 = tpu.matmul %268, %269, %cst_95 {dimension_numbers = #tpu.dot_dimension_numbers<[1], [0], [0], [1], [0, 0, 1, 1], [], []>} : vector<8x32xbf16>, vector<32x96xbf16>, vector<8x96xf32> -> vector<8x96xf32>
    %c0_96 = arith.constant 0 : index
    %c0_97 = arith.constant 0 : index
    %271 = vector.load %arg6[%c0_96, %c0_97] : memref<1x96xf32, #tpu.memory_space<vmem>>, vector<1x96xf32>
    %272 = vector.broadcast %271 : vector<1x96xf32> to vector<8x96xf32>
    %273 = arith.addf %270, %272 : vector<8x96xf32>
    %274 = arith.truncf %263 : vector<8x32xf32> to vector<8x32xbf16>
    %c0_98 = arith.constant 0 : index
    %c0_99 = arith.constant 0 : index
    %275 = vector.load %arg7[%c0_98, %c0_99] : memref<32x96xbf16, #tpu.memory_space<vmem>>, vector<32x96xbf16>
    %cst_100 = arith.constant dense<0.000000e+00> : vector<8x96xf32>
    %276 = tpu.matmul %274, %275, %cst_100 {dimension_numbers = #tpu.dot_dimension_numbers<[1], [0], [0], [1], [0, 0, 1, 1], [], []>} : vector<8x32xbf16>, vector<32x96xbf16>, vector<8x96xf32> -> vector<8x96xf32>
    %c0_101 = arith.constant 0 : index
    %c0_102 = arith.constant 0 : index
    %277 = vector.load %arg8[%c0_101, %c0_102] : memref<1x96xf32, #tpu.memory_space<vmem>>, vector<1x96xf32>
    %278 = vector.broadcast %277 : vector<1x96xf32> to vector<8x96xf32>
    %279 = arith.addf %276, %278 : vector<8x96xf32>
    %280 = vector.extract_strided_slice %266 {offsets = [0, 0], sizes = [8, 32], strides = [1, 1]} : vector<8x96xf32> to vector<8x32xf32>
    %281 = vector.extract_strided_slice %273 {offsets = [0, 0], sizes = [8, 32], strides = [1, 1]} : vector<8x96xf32> to vector<8x32xf32>
    %282 = arith.addf %280, %281 : vector<8x32xf32>
    %283 = arith.negf %282 : vector<8x32xf32>
    %284 = math.exp %283 : vector<8x32xf32>
    %cst_103 = arith.constant 1.000000e+00 : f32
    %285 = vector.broadcast %cst_103 : f32 to vector<8x32xf32>
    %286 = arith.addf %285, %284 : vector<8x32xf32>
    %287 = arith.divf %285, %286 : vector<8x32xf32>
    %288 = vector.extract_strided_slice %266 {offsets = [0, 32], sizes = [8, 32], strides = [1, 1]} : vector<8x96xf32> to vector<8x32xf32>
    %289 = vector.extract_strided_slice %273 {offsets = [0, 32], sizes = [8, 32], strides = [1, 1]} : vector<8x96xf32> to vector<8x32xf32>
    %290 = arith.addf %288, %289 : vector<8x32xf32>
    %291 = arith.negf %290 : vector<8x32xf32>
    %292 = math.exp %291 : vector<8x32xf32>
    %cst_104 = arith.constant 1.000000e+00 : f32
    %293 = vector.broadcast %cst_104 : f32 to vector<8x32xf32>
    %294 = arith.addf %293, %292 : vector<8x32xf32>
    %295 = arith.divf %293, %294 : vector<8x32xf32>
    %296 = vector.extract_strided_slice %266 {offsets = [0, 64], sizes = [8, 32], strides = [1, 1]} : vector<8x96xf32> to vector<8x32xf32>
    %297 = vector.extract_strided_slice %273 {offsets = [0, 64], sizes = [8, 32], strides = [1, 1]} : vector<8x96xf32> to vector<8x32xf32>
    %298 = arith.mulf %287, %297 : vector<8x32xf32>
    %299 = arith.addf %296, %298 : vector<8x32xf32>
    %300 = math.tanh %299 : vector<8x32xf32>
    %cst_105 = arith.constant 1.000000e+00 : f32
    %301 = vector.broadcast %cst_105 : f32 to vector<8x32xf32>
    %302 = arith.subf %301, %295 : vector<8x32xf32>
    %303 = arith.mulf %302, %300 : vector<8x32xf32>
    %304 = arith.mulf %295, %237 : vector<8x32xf32>
    %305 = arith.addf %303, %304 : vector<8x32xf32>
    %306 = vector.extract_strided_slice %267 {offsets = [0, 0], sizes = [8, 32], strides = [1, 1]} : vector<8x96xf32> to vector<8x32xf32>
    %307 = vector.extract_strided_slice %279 {offsets = [0, 0], sizes = [8, 32], strides = [1, 1]} : vector<8x96xf32> to vector<8x32xf32>
    %308 = arith.addf %306, %307 : vector<8x32xf32>
    %309 = arith.negf %308 : vector<8x32xf32>
    %310 = math.exp %309 : vector<8x32xf32>
    %cst_106 = arith.constant 1.000000e+00 : f32
    %311 = vector.broadcast %cst_106 : f32 to vector<8x32xf32>
    %312 = arith.addf %311, %310 : vector<8x32xf32>
    %313 = arith.divf %311, %312 : vector<8x32xf32>
    %314 = vector.extract_strided_slice %267 {offsets = [0, 32], sizes = [8, 32], strides = [1, 1]} : vector<8x96xf32> to vector<8x32xf32>
    %315 = vector.extract_strided_slice %279 {offsets = [0, 32], sizes = [8, 32], strides = [1, 1]} : vector<8x96xf32> to vector<8x32xf32>
    %316 = arith.addf %314, %315 : vector<8x32xf32>
    %317 = arith.negf %316 : vector<8x32xf32>
    %318 = math.exp %317 : vector<8x32xf32>
    %cst_107 = arith.constant 1.000000e+00 : f32
    %319 = vector.broadcast %cst_107 : f32 to vector<8x32xf32>
    %320 = arith.addf %319, %318 : vector<8x32xf32>
    %321 = arith.divf %319, %320 : vector<8x32xf32>
    %322 = vector.extract_strided_slice %267 {offsets = [0, 64], sizes = [8, 32], strides = [1, 1]} : vector<8x96xf32> to vector<8x32xf32>
    %323 = vector.extract_strided_slice %279 {offsets = [0, 64], sizes = [8, 32], strides = [1, 1]} : vector<8x96xf32> to vector<8x32xf32>
    %324 = arith.mulf %313, %323 : vector<8x32xf32>
    %325 = arith.addf %322, %324 : vector<8x32xf32>
    %326 = math.tanh %325 : vector<8x32xf32>
    %cst_108 = arith.constant 1.000000e+00 : f32
    %327 = vector.broadcast %cst_108 : f32 to vector<8x32xf32>
    %328 = arith.subf %327, %321 : vector<8x32xf32>
    %329 = arith.mulf %328, %326 : vector<8x32xf32>
    %330 = arith.mulf %321, %263 : vector<8x32xf32>
    %331 = arith.addf %329, %330 : vector<8x32xf32>
    %c24_109 = arith.constant 24 : index
    %c0_110 = arith.constant 0 : index
    %332 = vector.load %arg19[%c24_109, %c0_110] : memref<128x64xf32, #tpu.memory_space<vmem>>, vector<8x32xf32>
    tpu.vector_store %arg19[%c24_109, %c0_110], %305 {strides = array<i32>} : memref<128x64xf32, #tpu.memory_space<vmem>>, vector<8x32xf32>,
    %c96_111 = arith.constant 96 : index
    %c32_112 = arith.constant 32 : index
    %333 = vector.load %arg19[%c96_111, %c32_112] : memref<128x64xf32, #tpu.memory_space<vmem>>, vector<8x32xf32>
    tpu.vector_store %arg19[%c96_111, %c32_112], %331 {strides = array<i32>} : memref<128x64xf32, #tpu.memory_space<vmem>>, vector<8x32xf32>,
    %c32_113 = arith.constant 32 : index
    %c0_114 = arith.constant 0 : index
    %334 = vector.load %arg18[%c32_113, %c0_114] : memref<128x192xf32, #tpu.memory_space<vmem>>, vector<8x96xf32>
    %c88 = arith.constant 88 : index
    %c96_115 = arith.constant 96 : index
    %335 = vector.load %arg18[%c88, %c96_115] : memref<128x192xf32, #tpu.memory_space<vmem>>, vector<8x96xf32>
    %336 = arith.truncf %305 : vector<8x32xf32> to vector<8x32xbf16>
    %c0_116 = arith.constant 0 : index
    %c0_117 = arith.constant 0 : index
    %337 = vector.load %arg5[%c0_116, %c0_117] : memref<32x96xbf16, #tpu.memory_space<vmem>>, vector<32x96xbf16>
    %cst_118 = arith.constant dense<0.000000e+00> : vector<8x96xf32>
    %338 = tpu.matmul %336, %337, %cst_118 {dimension_numbers = #tpu.dot_dimension_numbers<[1], [0], [0], [1], [0, 0, 1, 1], [], []>} : vector<8x32xbf16>, vector<32x96xbf16>, vector<8x96xf32> -> vector<8x96xf32>
    %c0_119 = arith.constant 0 : index
    %c0_120 = arith.constant 0 : index
    %339 = vector.load %arg6[%c0_119, %c0_120] : memref<1x96xf32, #tpu.memory_space<vmem>>, vector<1x96xf32>
    %340 = vector.broadcast %339 : vector<1x96xf32> to vector<8x96xf32>
    %341 = arith.addf %338, %340 : vector<8x96xf32>
    %342 = arith.truncf %331 : vector<8x32xf32> to vector<8x32xbf16>
    %c0_121 = arith.constant 0 : index
    %c0_122 = arith.constant 0 : index
    %343 = vector.load %arg7[%c0_121, %c0_122] : memref<32x96xbf16, #tpu.memory_space<vmem>>, vector<32x96xbf16>
    %cst_123 = arith.constant dense<0.000000e+00> : vector<8x96xf32>
    %344 = tpu.matmul %342, %343, %cst_123 {dimension_numbers = #tpu.dot_dimension_numbers<[1], [0], [0], [1], [0, 0, 1, 1], [], []>} : vector<8x32xbf16>, vector<32x96xbf16>, vector<8x96xf32> -> vector<8x96xf32>
    %c0_124 = arith.constant 0 : index
    %c0_125 = arith.constant 0 : index
    %345 = vector.load %arg8[%c0_124, %c0_125] : memref<1x96xf32, #tpu.memory_space<vmem>>, vector<1x96xf32>
    %346 = vector.broadcast %345 : vector<1x96xf32> to vector<8x96xf32>
    %347 = arith.addf %344, %346 : vector<8x96xf32>
    %348 = vector.extract_strided_slice %334 {offsets = [0, 0], sizes = [8, 32], strides = [1, 1]} : vector<8x96xf32> to vector<8x32xf32>
    %349 = vector.extract_strided_slice %341 {offsets = [0, 0], sizes = [8, 32], strides = [1, 1]} : vector<8x96xf32> to vector<8x32xf32>
    %350 = arith.addf %348, %349 : vector<8x32xf32>
    %351 = arith.negf %350 : vector<8x32xf32>
    %352 = math.exp %351 : vector<8x32xf32>
    %cst_126 = arith.constant 1.000000e+00 : f32
    %353 = vector.broadcast %cst_126 : f32 to vector<8x32xf32>
    %354 = arith.addf %353, %352 : vector<8x32xf32>
    %355 = arith.divf %353, %354 : vector<8x32xf32>
    %356 = vector.extract_strided_slice %334 {offsets = [0, 32], sizes = [8, 32], strides = [1, 1]} : vector<8x96xf32> to vector<8x32xf32>
    %357 = vector.extract_strided_slice %341 {offsets = [0, 32], sizes = [8, 32], strides = [1, 1]} : vector<8x96xf32> to vector<8x32xf32>
    %358 = arith.addf %356, %357 : vector<8x32xf32>
    %359 = arith.negf %358 : vector<8x32xf32>
    %360 = math.exp %359 : vector<8x32xf32>
    %cst_127 = arith.constant 1.000000e+00 : f32
    %361 = vector.broadcast %cst_127 : f32 to vector<8x32xf32>
    %362 = arith.addf %361, %360 : vector<8x32xf32>
    %363 = arith.divf %361, %362 : vector<8x32xf32>
    %364 = vector.extract_strided_slice %334 {offsets = [0, 64], sizes = [8, 32], strides = [1, 1]} : vector<8x96xf32> to vector<8x32xf32>
    %365 = vector.extract_strided_slice %341 {offsets = [0, 64], sizes = [8, 32], strides = [1, 1]} : vector<8x96xf32> to vector<8x32xf32>
    %366 = arith.mulf %355, %365 : vector<8x32xf32>
    %367 = arith.addf %364, %366 : vector<8x32xf32>
    %368 = math.tanh %367 : vector<8x32xf32>
    %cst_128 = arith.constant 1.000000e+00 : f32
    %369 = vector.broadcast %cst_128 : f32 to vector<8x32xf32>
    %370 = arith.subf %369, %363 : vector<8x32xf32>
    %371 = arith.mulf %370, %368 : vector<8x32xf32>
    %372 = arith.mulf %363, %305 : vector<8x32xf32>
    %373 = arith.addf %371, %372 : vector<8x32xf32>
    %374 = vector.extract_strided_slice %335 {offsets = [0, 0], sizes = [8, 32], strides = [1, 1]} : vector<8x96xf32> to vector<8x32xf32>
    %375 = vector.extract_strided_slice %347 {offsets = [0, 0], sizes = [8, 32], strides = [1, 1]} : vector<8x96xf32> to vector<8x32xf32>
    %376 = arith.addf %374, %375 : vector<8x32xf32>
    %377 = arith.negf %376 : vector<8x32xf32>
    %378 = math.exp %377 : vector<8x32xf32>
    %cst_129 = arith.constant 1.000000e+00 : f32
    %379 = vector.broadcast %cst_129 : f32 to vector<8x32xf32>
    %380 = arith.addf %379, %378 : vector<8x32xf32>
    %381 = arith.divf %379, %380 : vector<8x32xf32>
    %382 = vector.extract_strided_slice %335 {offsets = [0, 32], sizes = [8, 32], strides = [1, 1]} : vector<8x96xf32> to vector<8x32xf32>
    %383 = vector.extract_strided_slice %347 {offsets = [0, 32], sizes = [8, 32], strides = [1, 1]} : vector<8x96xf32> to vector<8x32xf32>
    %384 = arith.addf %382, %383 : vector<8x32xf32>
    %385 = arith.negf %384 : vector<8x32xf32>
    %386 = math.exp %385 : vector<8x32xf32>
    %cst_130 = arith.constant 1.000000e+00 : f32
    %387 = vector.broadcast %cst_130 : f32 to vector<8x32xf32>
    %388 = arith.addf %387, %386 : vector<8x32xf32>
    %389 = arith.divf %387, %388 : vector<8x32xf32>
    %390 = vector.extract_strided_slice %335 {offsets = [0, 64], sizes = [8, 32], strides = [1, 1]} : vector<8x96xf32> to vector<8x32xf32>
    %391 = vector.extract_strided_slice %347 {offsets = [0, 64], sizes = [8, 32], strides = [1, 1]} : vector<8x96xf32> to vector<8x32xf32>
    %392 = arith.mulf %381, %391 : vector<8x32xf32>
    %393 = arith.addf %390, %392 : vector<8x32xf32>
    %394 = math.tanh %393 : vector<8x32xf32>
    %cst_131 = arith.constant 1.000000e+00 : f32
    %395 = vector.broadcast %cst_131 : f32 to vector<8x32xf32>
    %396 = arith.subf %395, %389 : vector<8x32xf32>
    %397 = arith.mulf %396, %394 : vector<8x32xf32>
    %398 = arith.mulf %389, %331 : vector<8x32xf32>
    %399 = arith.addf %397, %398 : vector<8x32xf32>
    %c32_132 = arith.constant 32 : index
    %c0_133 = arith.constant 0 : index
    %400 = vector.load %arg19[%c32_132, %c0_133] : memref<128x64xf32, #tpu.memory_space<vmem>>, vector<8x32xf32>
    tpu.vector_store %arg19[%c32_132, %c0_133], %373 {strides = array<i32>} : memref<128x64xf32, #tpu.memory_space<vmem>>, vector<8x32xf32>,
    %c88_134 = arith.constant 88 : index
    %c32_135 = arith.constant 32 : index
    %401 = vector.load %arg19[%c88_134, %c32_135] : memref<128x64xf32, #tpu.memory_space<vmem>>, vector<8x32xf32>
    tpu.vector_store %arg19[%c88_134, %c32_135], %399 {strides = array<i32>} : memref<128x64xf32, #tpu.memory_space<vmem>>, vector<8x32xf32>,
    %c40 = arith.constant 40 : index
    %c0_136 = arith.constant 0 : index
    %402 = vector.load %arg18[%c40, %c0_136] : memref<128x192xf32, #tpu.memory_space<vmem>>, vector<8x96xf32>
    %c80 = arith.constant 80 : index
    %c96_137 = arith.constant 96 : index
    %403 = vector.load %arg18[%c80, %c96_137] : memref<128x192xf32, #tpu.memory_space<vmem>>, vector<8x96xf32>
    %404 = arith.truncf %373 : vector<8x32xf32> to vector<8x32xbf16>
    %c0_138 = arith.constant 0 : index
    %c0_139 = arith.constant 0 : index
    %405 = vector.load %arg5[%c0_138, %c0_139] : memref<32x96xbf16, #tpu.memory_space<vmem>>, vector<32x96xbf16>
    %cst_140 = arith.constant dense<0.000000e+00> : vector<8x96xf32>
    %406 = tpu.matmul %404, %405, %cst_140 {dimension_numbers = #tpu.dot_dimension_numbers<[1], [0], [0], [1], [0, 0, 1, 1], [], []>} : vector<8x32xbf16>, vector<32x96xbf16>, vector<8x96xf32> -> vector<8x96xf32>
    %c0_141 = arith.constant 0 : index
    %c0_142 = arith.constant 0 : index
    %407 = vector.load %arg6[%c0_141, %c0_142] : memref<1x96xf32, #tpu.memory_space<vmem>>, vector<1x96xf32>
    %408 = vector.broadcast %407 : vector<1x96xf32> to vector<8x96xf32>
    %409 = arith.addf %406, %408 : vector<8x96xf32>
    %410 = arith.truncf %399 : vector<8x32xf32> to vector<8x32xbf16>
    %c0_143 = arith.constant 0 : index
    %c0_144 = arith.constant 0 : index
    %411 = vector.load %arg7[%c0_143, %c0_144] : memref<32x96xbf16, #tpu.memory_space<vmem>>, vector<32x96xbf16>
    %cst_145 = arith.constant dense<0.000000e+00> : vector<8x96xf32>
    %412 = tpu.matmul %410, %411, %cst_145 {dimension_numbers = #tpu.dot_dimension_numbers<[1], [0], [0], [1], [0, 0, 1, 1], [], []>} : vector<8x32xbf16>, vector<32x96xbf16>, vector<8x96xf32> -> vector<8x96xf32>
    %c0_146 = arith.constant 0 : index
    %c0_147 = arith.constant 0 : index
    %413 = vector.load %arg8[%c0_146, %c0_147] : memref<1x96xf32, #tpu.memory_space<vmem>>, vector<1x96xf32>
    %414 = vector.broadcast %413 : vector<1x96xf32> to vector<8x96xf32>
    %415 = arith.addf %412, %414 : vector<8x96xf32>
    %416 = vector.extract_strided_slice %402 {offsets = [0, 0], sizes = [8, 32], strides = [1, 1]} : vector<8x96xf32> to vector<8x32xf32>
    %417 = vector.extract_strided_slice %409 {offsets = [0, 0], sizes = [8, 32], strides = [1, 1]} : vector<8x96xf32> to vector<8x32xf32>
    %418 = arith.addf %416, %417 : vector<8x32xf32>
    %419 = arith.negf %418 : vector<8x32xf32>
    %420 = math.exp %419 : vector<8x32xf32>
    %cst_148 = arith.constant 1.000000e+00 : f32
    %421 = vector.broadcast %cst_148 : f32 to vector<8x32xf32>
    %422 = arith.addf %421, %420 : vector<8x32xf32>
    %423 = arith.divf %421, %422 : vector<8x32xf32>
    %424 = vector.extract_strided_slice %402 {offsets = [0, 32], sizes = [8, 32], strides = [1, 1]} : vector<8x96xf32> to vector<8x32xf32>
    %425 = vector.extract_strided_slice %409 {offsets = [0, 32], sizes = [8, 32], strides = [1, 1]} : vector<8x96xf32> to vector<8x32xf32>
    %426 = arith.addf %424, %425 : vector<8x32xf32>
    %427 = arith.negf %426 : vector<8x32xf32>
    %428 = math.exp %427 : vector<8x32xf32>
    %cst_149 = arith.constant 1.000000e+00 : f32
    %429 = vector.broadcast %cst_149 : f32 to vector<8x32xf32>
    %430 = arith.addf %429, %428 : vector<8x32xf32>
    %431 = arith.divf %429, %430 : vector<8x32xf32>
    %432 = vector.extract_strided_slice %402 {offsets = [0, 64], sizes = [8, 32], strides = [1, 1]} : vector<8x96xf32> to vector<8x32xf32>
    %433 = vector.extract_strided_slice %409 {offsets = [0, 64], sizes = [8, 32], strides = [1, 1]} : vector<8x96xf32> to vector<8x32xf32>
    %434 = arith.mulf %423, %433 : vector<8x32xf32>
    %435 = arith.addf %432, %434 : vector<8x32xf32>
    %436 = math.tanh %435 : vector<8x32xf32>
    %cst_150 = arith.constant 1.000000e+00 : f32
    %437 = vector.broadcast %cst_150 : f32 to vector<8x32xf32>
    %438 = arith.subf %437, %431 : vector<8x32xf32>
    %439 = arith.mulf %438, %436 : vector<8x32xf32>
    %440 = arith.mulf %431, %373 : vector<8x32xf32>
    %441 = arith.addf %439, %440 : vector<8x32xf32>
    %442 = vector.extract_strided_slice %403 {offsets = [0, 0], sizes = [8, 32], strides = [1, 1]} : vector<8x96xf32> to vector<8x32xf32>
    %443 = vector.extract_strided_slice %415 {offsets = [0, 0], sizes = [8, 32], strides = [1, 1]} : vector<8x96xf32> to vector<8x32xf32>
    %444 = arith.addf %442, %443 : vector<8x32xf32>
    %445 = arith.negf %444 : vector<8x32xf32>
    %446 = math.exp %445 : vector<8x32xf32>
    %cst_151 = arith.constant 1.000000e+00 : f32
    %447 = vector.broadcast %cst_151 : f32 to vector<8x32xf32>
    %448 = arith.addf %447, %446 : vector<8x32xf32>
    %449 = arith.divf %447, %448 : vector<8x32xf32>
    %450 = vector.extract_strided_slice %403 {offsets = [0, 32], sizes = [8, 32], strides = [1, 1]} : vector<8x96xf32> to vector<8x32xf32>
    %451 = vector.extract_strided_slice %415 {offsets = [0, 32], sizes = [8, 32], strides = [1, 1]} : vector<8x96xf32> to vector<8x32xf32>
    %452 = arith.addf %450, %451 : vector<8x32xf32>
    %453 = arith.negf %452 : vector<8x32xf32>
    %454 = math.exp %453 : vector<8x32xf32>
    %cst_152 = arith.constant 1.000000e+00 : f32
    %455 = vector.broadcast %cst_152 : f32 to vector<8x32xf32>
    %456 = arith.addf %455, %454 : vector<8x32xf32>
    %457 = arith.divf %455, %456 : vector<8x32xf32>
    %458 = vector.extract_strided_slice %403 {offsets = [0, 64], sizes = [8, 32], strides = [1, 1]} : vector<8x96xf32> to vector<8x32xf32>
    %459 = vector.extract_strided_slice %415 {offsets = [0, 64], sizes = [8, 32], strides = [1, 1]} : vector<8x96xf32> to vector<8x32xf32>
    %460 = arith.mulf %449, %459 : vector<8x32xf32>
    %461 = arith.addf %458, %460 : vector<8x32xf32>
    %462 = math.tanh %461 : vector<8x32xf32>
    %cst_153 = arith.constant 1.000000e+00 : f32
    %463 = vector.broadcast %cst_153 : f32 to vector<8x32xf32>
    %464 = arith.subf %463, %457 : vector<8x32xf32>
    %465 = arith.mulf %464, %462 : vector<8x32xf32>
    %466 = arith.mulf %457, %399 : vector<8x32xf32>
    %467 = arith.addf %465, %466 : vector<8x32xf32>
    %c40_154 = arith.constant 40 : index
    %c0_155 = arith.constant 0 : index
    %468 = vector.load %arg19[%c40_154, %c0_155] : memref<128x64xf32, #tpu.memory_space<vmem>>, vector<8x32xf32>
    tpu.vector_store %arg19[%c40_154, %c0_155], %441 {strides = array<i32>} : memref<128x64xf32, #tpu.memory_space<vmem>>, vector<8x32xf32>,
    %c80_156 = arith.constant 80 : index
    %c32_157 = arith.constant 32 : index
    %469 = vector.load %arg19[%c80_156, %c32_157] : memref<128x64xf32, #tpu.memory_space<vmem>>, vector<8x32xf32>
    tpu.vector_store %arg19[%c80_156, %c32_157], %467 {strides = array<i32>} : memref<128x64xf32, #tpu.memory_space<vmem>>, vector<8x32xf32>,
    %c48 = arith.constant 48 : index
    %c0_158 = arith.constant 0 : index
    %470 = vector.load %arg18[%c48, %c0_158] : memref<128x192xf32, #tpu.memory_space<vmem>>, vector<8x96xf32>
    %c72 = arith.constant 72 : index
    %c96_159 = arith.constant 96 : index
    %471 = vector.load %arg18[%c72, %c96_159] : memref<128x192xf32, #tpu.memory_space<vmem>>, vector<8x96xf32>
    %472 = arith.truncf %441 : vector<8x32xf32> to vector<8x32xbf16>
    %c0_160 = arith.constant 0 : index
    %c0_161 = arith.constant 0 : index
    %473 = vector.load %arg5[%c0_160, %c0_161] : memref<32x96xbf16, #tpu.memory_space<vmem>>, vector<32x96xbf16>
    %cst_162 = arith.constant dense<0.000000e+00> : vector<8x96xf32>
    %474 = tpu.matmul %472, %473, %cst_162 {dimension_numbers = #tpu.dot_dimension_numbers<[1], [0], [0], [1], [0, 0, 1, 1], [], []>} : vector<8x32xbf16>, vector<32x96xbf16>, vector<8x96xf32> -> vector<8x96xf32>
    %c0_163 = arith.constant 0 : index
    %c0_164 = arith.constant 0 : index
    %475 = vector.load %arg6[%c0_163, %c0_164] : memref<1x96xf32, #tpu.memory_space<vmem>>, vector<1x96xf32>
    %476 = vector.broadcast %475 : vector<1x96xf32> to vector<8x96xf32>
    %477 = arith.addf %474, %476 : vector<8x96xf32>
    %478 = arith.truncf %467 : vector<8x32xf32> to vector<8x32xbf16>
    %c0_165 = arith.constant 0 : index
    %c0_166 = arith.constant 0 : index
    %479 = vector.load %arg7[%c0_165, %c0_166] : memref<32x96xbf16, #tpu.memory_space<vmem>>, vector<32x96xbf16>
    %cst_167 = arith.constant dense<0.000000e+00> : vector<8x96xf32>
    %480 = tpu.matmul %478, %479, %cst_167 {dimension_numbers = #tpu.dot_dimension_numbers<[1], [0], [0], [1], [0, 0, 1, 1], [], []>} : vector<8x32xbf16>, vector<32x96xbf16>, vector<8x96xf32> -> vector<8x96xf32>
    %c0_168 = arith.constant 0 : index
    %c0_169 = arith.constant 0 : index
    %481 = vector.load %arg8[%c0_168, %c0_169] : memref<1x96xf32, #tpu.memory_space<vmem>>, vector<1x96xf32>
    %482 = vector.broadcast %481 : vector<1x96xf32> to vector<8x96xf32>
    %483 = arith.addf %480, %482 : vector<8x96xf32>
    %484 = vector.extract_strided_slice %470 {offsets = [0, 0], sizes = [8, 32], strides = [1, 1]} : vector<8x96xf32> to vector<8x32xf32>
    %485 = vector.extract_strided_slice %477 {offsets = [0, 0], sizes = [8, 32], strides = [1, 1]} : vector<8x96xf32> to vector<8x32xf32>
    %486 = arith.addf %484, %485 : vector<8x32xf32>
    %487 = arith.negf %486 : vector<8x32xf32>
    %488 = math.exp %487 : vector<8x32xf32>
    %cst_170 = arith.constant 1.000000e+00 : f32
    %489 = vector.broadcast %cst_170 : f32 to vector<8x32xf32>
    %490 = arith.addf %489, %488 : vector<8x32xf32>
    %491 = arith.divf %489, %490 : vector<8x32xf32>
    %492 = vector.extract_strided_slice %470 {offsets = [0, 32], sizes = [8, 32], strides = [1, 1]} : vector<8x96xf32> to vector<8x32xf32>
    %493 = vector.extract_strided_slice %477 {offsets = [0, 32], sizes = [8, 32], strides = [1, 1]} : vector<8x96xf32> to vector<8x32xf32>
    %494 = arith.addf %492, %493 : vector<8x32xf32>
    %495 = arith.negf %494 : vector<8x32xf32>
    %496 = math.exp %495 : vector<8x32xf32>
    %cst_171 = arith.constant 1.000000e+00 : f32
    %497 = vector.broadcast %cst_171 : f32 to vector<8x32xf32>
    %498 = arith.addf %497, %496 : vector<8x32xf32>
    %499 = arith.divf %497, %498 : vector<8x32xf32>
    %500 = vector.extract_strided_slice %470 {offsets = [0, 64], sizes = [8, 32], strides = [1, 1]} : vector<8x96xf32> to vector<8x32xf32>
    %501 = vector.extract_strided_slice %477 {offsets = [0, 64], sizes = [8, 32], strides = [1, 1]} : vector<8x96xf32> to vector<8x32xf32>
    %502 = arith.mulf %491, %501 : vector<8x32xf32>
    %503 = arith.addf %500, %502 : vector<8x32xf32>
    %504 = math.tanh %503 : vector<8x32xf32>
    %cst_172 = arith.constant 1.000000e+00 : f32
    %505 = vector.broadcast %cst_172 : f32 to vector<8x32xf32>
    %506 = arith.subf %505, %499 : vector<8x32xf32>
    %507 = arith.mulf %506, %504 : vector<8x32xf32>
    %508 = arith.mulf %499, %441 : vector<8x32xf32>
    %509 = arith.addf %507, %508 : vector<8x32xf32>
    %510 = vector.extract_strided_slice %471 {offsets = [0, 0], sizes = [8, 32], strides = [1, 1]} : vector<8x96xf32> to vector<8x32xf32>
    %511 = vector.extract_strided_slice %483 {offsets = [0, 0], sizes = [8, 32], strides = [1, 1]} : vector<8x96xf32> to vector<8x32xf32>
    %512 = arith.addf %510, %511 : vector<8x32xf32>
    %513 = arith.negf %512 : vector<8x32xf32>
    %514 = math.exp %513 : vector<8x32xf32>
    %cst_173 = arith.constant 1.000000e+00 : f32
    %515 = vector.broadcast %cst_173 : f32 to vector<8x32xf32>
    %516 = arith.addf %515, %514 : vector<8x32xf32>
    %517 = arith.divf %515, %516 : vector<8x32xf32>
    %518 = vector.extract_strided_slice %471 {offsets = [0, 32], sizes = [8, 32], strides = [1, 1]} : vector<8x96xf32> to vector<8x32xf32>
    %519 = vector.extract_strided_slice %483 {offsets = [0, 32], sizes = [8, 32], strides = [1, 1]} : vector<8x96xf32> to vector<8x32xf32>
    %520 = arith.addf %518, %519 : vector<8x32xf32>
    %521 = arith.negf %520 : vector<8x32xf32>
    %522 = math.exp %521 : vector<8x32xf32>
    %cst_174 = arith.constant 1.000000e+00 : f32
    %523 = vector.broadcast %cst_174 : f32 to vector<8x32xf32>
    %524 = arith.addf %523, %522 : vector<8x32xf32>
    %525 = arith.divf %523, %524 : vector<8x32xf32>
    %526 = vector.extract_strided_slice %471 {offsets = [0, 64], sizes = [8, 32], strides = [1, 1]} : vector<8x96xf32> to vector<8x32xf32>
    %527 = vector.extract_strided_slice %483 {offsets = [0, 64], sizes = [8, 32], strides = [1, 1]} : vector<8x96xf32> to vector<8x32xf32>
    %528 = arith.mulf %517, %527 : vector<8x32xf32>
    %529 = arith.addf %526, %528 : vector<8x32xf32>
    %530 = math.tanh %529 : vector<8x32xf32>
    %cst_175 = arith.constant 1.000000e+00 : f32
    %531 = vector.broadcast %cst_175 : f32 to vector<8x32xf32>
    %532 = arith.subf %531, %525 : vector<8x32xf32>
    %533 = arith.mulf %532, %530 : vector<8x32xf32>
    %534 = arith.mulf %525, %467 : vector<8x32xf32>
    %535 = arith.addf %533, %534 : vector<8x32xf32>
    %c48_176 = arith.constant 48 : index
    %c0_177 = arith.constant 0 : index
    %536 = vector.load %arg19[%c48_176, %c0_177] : memref<128x64xf32, #tpu.memory_space<vmem>>, vector<8x32xf32>
    tpu.vector_store %arg19[%c48_176, %c0_177], %509 {strides = array<i32>} : memref<128x64xf32, #tpu.memory_space<vmem>>, vector<8x32xf32>,
    %c72_178 = arith.constant 72 : index
    %c32_179 = arith.constant 32 : index
    %537 = vector.load %arg19[%c72_178, %c32_179] : memref<128x64xf32, #tpu.memory_space<vmem>>, vector<8x32xf32>
    tpu.vector_store %arg19[%c72_178, %c32_179], %535 {strides = array<i32>} : memref<128x64xf32, #tpu.memory_space<vmem>>, vector<8x32xf32>,
    %c56 = arith.constant 56 : index
    %c0_180 = arith.constant 0 : index
    %538 = vector.load %arg18[%c56, %c0_180] : memref<128x192xf32, #tpu.memory_space<vmem>>, vector<8x96xf32>
    %c64 = arith.constant 64 : index
    %c96_181 = arith.constant 96 : index
    %539 = vector.load %arg18[%c64, %c96_181] : memref<128x192xf32, #tpu.memory_space<vmem>>, vector<8x96xf32>
    %540 = arith.truncf %509 : vector<8x32xf32> to vector<8x32xbf16>
    %c0_182 = arith.constant 0 : index
    %c0_183 = arith.constant 0 : index
    %541 = vector.load %arg5[%c0_182, %c0_183] : memref<32x96xbf16, #tpu.memory_space<vmem>>, vector<32x96xbf16>
    %cst_184 = arith.constant dense<0.000000e+00> : vector<8x96xf32>
    %542 = tpu.matmul %540, %541, %cst_184 {dimension_numbers = #tpu.dot_dimension_numbers<[1], [0], [0], [1], [0, 0, 1, 1], [], []>} : vector<8x32xbf16>, vector<32x96xbf16>, vector<8x96xf32> -> vector<8x96xf32>
    %c0_185 = arith.constant 0 : index
    %c0_186 = arith.constant 0 : index
    %543 = vector.load %arg6[%c0_185, %c0_186] : memref<1x96xf32, #tpu.memory_space<vmem>>, vector<1x96xf32>
    %544 = vector.broadcast %543 : vector<1x96xf32> to vector<8x96xf32>
    %545 = arith.addf %542, %544 : vector<8x96xf32>
    %546 = arith.truncf %535 : vector<8x32xf32> to vector<8x32xbf16>
    %c0_187 = arith.constant 0 : index
    %c0_188 = arith.constant 0 : index
    %547 = vector.load %arg7[%c0_187, %c0_188] : memref<32x96xbf16, #tpu.memory_space<vmem>>, vector<32x96xbf16>
    %cst_189 = arith.constant dense<0.000000e+00> : vector<8x96xf32>
    %548 = tpu.matmul %546, %547, %cst_189 {dimension_numbers = #tpu.dot_dimension_numbers<[1], [0], [0], [1], [0, 0, 1, 1], [], []>} : vector<8x32xbf16>, vector<32x96xbf16>, vector<8x96xf32> -> vector<8x96xf32>
    %c0_190 = arith.constant 0 : index
    %c0_191 = arith.constant 0 : index
    %549 = vector.load %arg8[%c0_190, %c0_191] : memref<1x96xf32, #tpu.memory_space<vmem>>, vector<1x96xf32>
    %550 = vector.broadcast %549 : vector<1x96xf32> to vector<8x96xf32>
    %551 = arith.addf %548, %550 : vector<8x96xf32>
    %552 = vector.extract_strided_slice %538 {offsets = [0, 0], sizes = [8, 32], strides = [1, 1]} : vector<8x96xf32> to vector<8x32xf32>
    %553 = vector.extract_strided_slice %545 {offsets = [0, 0], sizes = [8, 32], strides = [1, 1]} : vector<8x96xf32> to vector<8x32xf32>
    %554 = arith.addf %552, %553 : vector<8x32xf32>
    %555 = arith.negf %554 : vector<8x32xf32>
    %556 = math.exp %555 : vector<8x32xf32>
    %cst_192 = arith.constant 1.000000e+00 : f32
    %557 = vector.broadcast %cst_192 : f32 to vector<8x32xf32>
    %558 = arith.addf %557, %556 : vector<8x32xf32>
    %559 = arith.divf %557, %558 : vector<8x32xf32>
    %560 = vector.extract_strided_slice %538 {offsets = [0, 32], sizes = [8, 32], strides = [1, 1]} : vector<8x96xf32> to vector<8x32xf32>
    %561 = vector.extract_strided_slice %545 {offsets = [0, 32], sizes = [8, 32], strides = [1, 1]} : vector<8x96xf32> to vector<8x32xf32>
    %562 = arith.addf %560, %561 : vector<8x32xf32>
    %563 = arith.negf %562 : vector<8x32xf32>
    %564 = math.exp %563 : vector<8x32xf32>
    %cst_193 = arith.constant 1.000000e+00 : f32
    %565 = vector.broadcast %cst_193 : f32 to vector<8x32xf32>
    %566 = arith.addf %565, %564 : vector<8x32xf32>
    %567 = arith.divf %565, %566 : vector<8x32xf32>
    %568 = vector.extract_strided_slice %538 {offsets = [0, 64], sizes = [8, 32], strides = [1, 1]} : vector<8x96xf32> to vector<8x32xf32>
    %569 = vector.extract_strided_slice %545 {offsets = [0, 64], sizes = [8, 32], strides = [1, 1]} : vector<8x96xf32> to vector<8x32xf32>
    %570 = arith.mulf %559, %569 : vector<8x32xf32>
    %571 = arith.addf %568, %570 : vector<8x32xf32>
    %572 = math.tanh %571 : vector<8x32xf32>
    %cst_194 = arith.constant 1.000000e+00 : f32
    %573 = vector.broadcast %cst_194 : f32 to vector<8x32xf32>
    %574 = arith.subf %573, %567 : vector<8x32xf32>
    %575 = arith.mulf %574, %572 : vector<8x32xf32>
    %576 = arith.mulf %567, %509 : vector<8x32xf32>
    %577 = arith.addf %575, %576 : vector<8x32xf32>
    %578 = vector.extract_strided_slice %539 {offsets = [0, 0], sizes = [8, 32], strides = [1, 1]} : vector<8x96xf32> to vector<8x32xf32>
    %579 = vector.extract_strided_slice %551 {offsets = [0, 0], sizes = [8, 32], strides = [1, 1]} : vector<8x96xf32> to vector<8x32xf32>
    %580 = arith.addf %578, %579 : vector<8x32xf32>
    %581 = arith.negf %580 : vector<8x32xf32>
    %582 = math.exp %581 : vector<8x32xf32>
    %cst_195 = arith.constant 1.000000e+00 : f32
    %583 = vector.broadcast %cst_195 : f32 to vector<8x32xf32>
    %584 = arith.addf %583, %582 : vector<8x32xf32>
    %585 = arith.divf %583, %584 : vector<8x32xf32>
    %586 = vector.extract_strided_slice %539 {offsets = [0, 32], sizes = [8, 32], strides = [1, 1]} : vector<8x96xf32> to vector<8x32xf32>
    %587 = vector.extract_strided_slice %551 {offsets = [0, 32], sizes = [8, 32], strides = [1, 1]} : vector<8x96xf32> to vector<8x32xf32>
    %588 = arith.addf %586, %587 : vector<8x32xf32>
    %589 = arith.negf %588 : vector<8x32xf32>
    %590 = math.exp %589 : vector<8x32xf32>
    %cst_196 = arith.constant 1.000000e+00 : f32
    %591 = vector.broadcast %cst_196 : f32 to vector<8x32xf32>
    %592 = arith.addf %591, %590 : vector<8x32xf32>
    %593 = arith.divf %591, %592 : vector<8x32xf32>
    %594 = vector.extract_strided_slice %539 {offsets = [0, 64], sizes = [8, 32], strides = [1, 1]} : vector<8x96xf32> to vector<8x32xf32>
    %595 = vector.extract_strided_slice %551 {offsets = [0, 64], sizes = [8, 32], strides = [1, 1]} : vector<8x96xf32> to vector<8x32xf32>
    %596 = arith.mulf %585, %595 : vector<8x32xf32>
    %597 = arith.addf %594, %596 : vector<8x32xf32>
    %598 = math.tanh %597 : vector<8x32xf32>
    %cst_197 = arith.constant 1.000000e+00 : f32
    %599 = vector.broadcast %cst_197 : f32 to vector<8x32xf32>
    %600 = arith.subf %599, %593 : vector<8x32xf32>
    %601 = arith.mulf %600, %598 : vector<8x32xf32>
    %602 = arith.mulf %593, %535 : vector<8x32xf32>
    %603 = arith.addf %601, %602 : vector<8x32xf32>
    %c56_198 = arith.constant 56 : index
    %c0_199 = arith.constant 0 : index
    %604 = vector.load %arg19[%c56_198, %c0_199] : memref<128x64xf32, #tpu.memory_space<vmem>>, vector<8x32xf32>
    tpu.vector_store %arg19[%c56_198, %c0_199], %577 {strides = array<i32>} : memref<128x64xf32, #tpu.memory_space<vmem>>, vector<8x32xf32>,
    %c64_200 = arith.constant 64 : index
    %c32_201 = arith.constant 32 : index
    %605 = vector.load %arg19[%c64_200, %c32_201] : memref<128x64xf32, #tpu.memory_space<vmem>>, vector<8x32xf32>
    tpu.vector_store %arg19[%c64_200, %c32_201], %603 {strides = array<i32>} : memref<128x64xf32, #tpu.memory_space<vmem>>, vector<8x32xf32>,
    %c64_202 = arith.constant 64 : index
    %c0_203 = arith.constant 0 : index
    %606 = vector.load %arg18[%c64_202, %c0_203] : memref<128x192xf32, #tpu.memory_space<vmem>>, vector<8x96xf32>
    %c56_204 = arith.constant 56 : index
    %c96_205 = arith.constant 96 : index
    %607 = vector.load %arg18[%c56_204, %c96_205] : memref<128x192xf32, #tpu.memory_space<vmem>>, vector<8x96xf32>
    %608 = arith.truncf %577 : vector<8x32xf32> to vector<8x32xbf16>
    %c0_206 = arith.constant 0 : index
    %c0_207 = arith.constant 0 : index
    %609 = vector.load %arg5[%c0_206, %c0_207] : memref<32x96xbf16, #tpu.memory_space<vmem>>, vector<32x96xbf16>
    %cst_208 = arith.constant dense<0.000000e+00> : vector<8x96xf32>
    %610 = tpu.matmul %608, %609, %cst_208 {dimension_numbers = #tpu.dot_dimension_numbers<[1], [0], [0], [1], [0, 0, 1, 1], [], []>} : vector<8x32xbf16>, vector<32x96xbf16>, vector<8x96xf32> -> vector<8x96xf32>
    %c0_209 = arith.constant 0 : index
    %c0_210 = arith.constant 0 : index
    %611 = vector.load %arg6[%c0_209, %c0_210] : memref<1x96xf32, #tpu.memory_space<vmem>>, vector<1x96xf32>
    %612 = vector.broadcast %611 : vector<1x96xf32> to vector<8x96xf32>
    %613 = arith.addf %610, %612 : vector<8x96xf32>
    %614 = arith.truncf %603 : vector<8x32xf32> to vector<8x32xbf16>
    %c0_211 = arith.constant 0 : index
    %c0_212 = arith.constant 0 : index
    %615 = vector.load %arg7[%c0_211, %c0_212] : memref<32x96xbf16, #tpu.memory_space<vmem>>, vector<32x96xbf16>
    %cst_213 = arith.constant dense<0.000000e+00> : vector<8x96xf32>
    %616 = tpu.matmul %614, %615, %cst_213 {dimension_numbers = #tpu.dot_dimension_numbers<[1], [0], [0], [1], [0, 0, 1, 1], [], []>} : vector<8x32xbf16>, vector<32x96xbf16>, vector<8x96xf32> -> vector<8x96xf32>
    %c0_214 = arith.constant 0 : index
    %c0_215 = arith.constant 0 : index
    %617 = vector.load %arg8[%c0_214, %c0_215] : memref<1x96xf32, #tpu.memory_space<vmem>>, vector<1x96xf32>
    %618 = vector.broadcast %617 : vector<1x96xf32> to vector<8x96xf32>
    %619 = arith.addf %616, %618 : vector<8x96xf32>
    %620 = vector.extract_strided_slice %606 {offsets = [0, 0], sizes = [8, 32], strides = [1, 1]} : vector<8x96xf32> to vector<8x32xf32>
    %621 = vector.extract_strided_slice %613 {offsets = [0, 0], sizes = [8, 32], strides = [1, 1]} : vector<8x96xf32> to vector<8x32xf32>
    %622 = arith.addf %620, %621 : vector<8x32xf32>
    %623 = arith.negf %622 : vector<8x32xf32>
    %624 = math.exp %623 : vector<8x32xf32>
    %cst_216 = arith.constant 1.000000e+00 : f32
    %625 = vector.broadcast %cst_216 : f32 to vector<8x32xf32>
    %626 = arith.addf %625, %624 : vector<8x32xf32>
    %627 = arith.divf %625, %626 : vector<8x32xf32>
    %628 = vector.extract_strided_slice %606 {offsets = [0, 32], sizes = [8, 32], strides = [1, 1]} : vector<8x96xf32> to vector<8x32xf32>
    %629 = vector.extract_strided_slice %613 {offsets = [0, 32], sizes = [8, 32], strides = [1, 1]} : vector<8x96xf32> to vector<8x32xf32>
    %630 = arith.addf %628, %629 : vector<8x32xf32>
    %631 = arith.negf %630 : vector<8x32xf32>
    %632 = math.exp %631 : vector<8x32xf32>
    %cst_217 = arith.constant 1.000000e+00 : f32
    %633 = vector.broadcast %cst_217 : f32 to vector<8x32xf32>
    %634 = arith.addf %633, %632 : vector<8x32xf32>
    %635 = arith.divf %633, %634 : vector<8x32xf32>
    %636 = vector.extract_strided_slice %606 {offsets = [0, 64], sizes = [8, 32], strides = [1, 1]} : vector<8x96xf32> to vector<8x32xf32>
    %637 = vector.extract_strided_slice %613 {offsets = [0, 64], sizes = [8, 32], strides = [1, 1]} : vector<8x96xf32> to vector<8x32xf32>
    %638 = arith.mulf %627, %637 : vector<8x32xf32>
    %639 = arith.addf %636, %638 : vector<8x32xf32>
    %640 = math.tanh %639 : vector<8x32xf32>
    %cst_218 = arith.constant 1.000000e+00 : f32
    %641 = vector.broadcast %cst_218 : f32 to vector<8x32xf32>
    %642 = arith.subf %641, %635 : vector<8x32xf32>
    %643 = arith.mulf %642, %640 : vector<8x32xf32>
    %644 = arith.mulf %635, %577 : vector<8x32xf32>
    %645 = arith.addf %643, %644 : vector<8x32xf32>
    %646 = vector.extract_strided_slice %607 {offsets = [0, 0], sizes = [8, 32], strides = [1, 1]} : vector<8x96xf32> to vector<8x32xf32>
    %647 = vector.extract_strided_slice %619 {offsets = [0, 0], sizes = [8, 32], strides = [1, 1]} : vector<8x96xf32> to vector<8x32xf32>
    %648 = arith.addf %646, %647 : vector<8x32xf32>
    %649 = arith.negf %648 : vector<8x32xf32>
    %650 = math.exp %649 : vector<8x32xf32>
    %cst_219 = arith.constant 1.000000e+00 : f32
    %651 = vector.broadcast %cst_219 : f32 to vector<8x32xf32>
    %652 = arith.addf %651, %650 : vector<8x32xf32>
    %653 = arith.divf %651, %652 : vector<8x32xf32>
    %654 = vector.extract_strided_slice %607 {offsets = [0, 32], sizes = [8, 32], strides = [1, 1]} : vector<8x96xf32> to vector<8x32xf32>
    %655 = vector.extract_strided_slice %619 {offsets = [0, 32], sizes = [8, 32], strides = [1, 1]} : vector<8x96xf32> to vector<8x32xf32>
    %656 = arith.addf %654, %655 : vector<8x32xf32>
    %657 = arith.negf %656 : vector<8x32xf32>
    %658 = math.exp %657 : vector<8x32xf32>
    %cst_220 = arith.constant 1.000000e+00 : f32
    %659 = vector.broadcast %cst_220 : f32 to vector<8x32xf32>
    %660 = arith.addf %659, %658 : vector<8x32xf32>
    %661 = arith.divf %659, %660 : vector<8x32xf32>
    %662 = vector.extract_strided_slice %607 {offsets = [0, 64], sizes = [8, 32], strides = [1, 1]} : vector<8x96xf32> to vector<8x32xf32>
    %663 = vector.extract_strided_slice %619 {offsets = [0, 64], sizes = [8, 32], strides = [1, 1]} : vector<8x96xf32> to vector<8x32xf32>
    %664 = arith.mulf %653, %663 : vector<8x32xf32>
    %665 = arith.addf %662, %664 : vector<8x32xf32>
    %666 = math.tanh %665 : vector<8x32xf32>
    %cst_221 = arith.constant 1.000000e+00 : f32
    %667 = vector.broadcast %cst_221 : f32 to vector<8x32xf32>
    %668 = arith.subf %667, %661 : vector<8x32xf32>
    %669 = arith.mulf %668, %666 : vector<8x32xf32>
    %670 = arith.mulf %661, %603 : vector<8x32xf32>
    %671 = arith.addf %669, %670 : vector<8x32xf32>
    %c64_222 = arith.constant 64 : index
    %c0_223 = arith.constant 0 : index
    %672 = vector.load %arg19[%c64_222, %c0_223] : memref<128x64xf32, #tpu.memory_space<vmem>>, vector<8x32xf32>
    tpu.vector_store %arg19[%c64_222, %c0_223], %645 {strides = array<i32>} : memref<128x64xf32, #tpu.memory_space<vmem>>, vector<8x32xf32>,
    %c56_224 = arith.constant 56 : index
    %c32_225 = arith.constant 32 : index
    %673 = vector.load %arg19[%c56_224, %c32_225] : memref<128x64xf32, #tpu.memory_space<vmem>>, vector<8x32xf32>
    tpu.vector_store %arg19[%c56_224, %c32_225], %671 {strides = array<i32>} : memref<128x64xf32, #tpu.memory_space<vmem>>, vector<8x32xf32>,
    %c72_226 = arith.constant 72 : index
    %c0_227 = arith.constant 0 : index
    %674 = vector.load %arg18[%c72_226, %c0_227] : memref<128x192xf32, #tpu.memory_space<vmem>>, vector<8x96xf32>
    %c48_228 = arith.constant 48 : index
    %c96_229 = arith.constant 96 : index
    %675 = vector.load %arg18[%c48_228, %c96_229] : memref<128x192xf32, #tpu.memory_space<vmem>>, vector<8x96xf32>
    %676 = arith.truncf %645 : vector<8x32xf32> to vector<8x32xbf16>
    %c0_230 = arith.constant 0 : index
    %c0_231 = arith.constant 0 : index
    %677 = vector.load %arg5[%c0_230, %c0_231] : memref<32x96xbf16, #tpu.memory_space<vmem>>, vector<32x96xbf16>
    %cst_232 = arith.constant dense<0.000000e+00> : vector<8x96xf32>
    %678 = tpu.matmul %676, %677, %cst_232 {dimension_numbers = #tpu.dot_dimension_numbers<[1], [0], [0], [1], [0, 0, 1, 1], [], []>} : vector<8x32xbf16>, vector<32x96xbf16>, vector<8x96xf32> -> vector<8x96xf32>
    %c0_233 = arith.constant 0 : index
    %c0_234 = arith.constant 0 : index
    %679 = vector.load %arg6[%c0_233, %c0_234] : memref<1x96xf32, #tpu.memory_space<vmem>>, vector<1x96xf32>
    %680 = vector.broadcast %679 : vector<1x96xf32> to vector<8x96xf32>
    %681 = arith.addf %678, %680 : vector<8x96xf32>
    %682 = arith.truncf %671 : vector<8x32xf32> to vector<8x32xbf16>
    %c0_235 = arith.constant 0 : index
    %c0_236 = arith.constant 0 : index
    %683 = vector.load %arg7[%c0_235, %c0_236] : memref<32x96xbf16, #tpu.memory_space<vmem>>, vector<32x96xbf16>
    %cst_237 = arith.constant dense<0.000000e+00> : vector<8x96xf32>
    %684 = tpu.matmul %682, %683, %cst_237 {dimension_numbers = #tpu.dot_dimension_numbers<[1], [0], [0], [1], [0, 0, 1, 1], [], []>} : vector<8x32xbf16>, vector<32x96xbf16>, vector<8x96xf32> -> vector<8x96xf32>
    %c0_238 = arith.constant 0 : index
    %c0_239 = arith.constant 0 : index
    %685 = vector.load %arg8[%c0_238, %c0_239] : memref<1x96xf32, #tpu.memory_space<vmem>>, vector<1x96xf32>
    %686 = vector.broadcast %685 : vector<1x96xf32> to vector<8x96xf32>
    %687 = arith.addf %684, %686 : vector<8x96xf32>
    %688 = vector.extract_strided_slice %674 {offsets = [0, 0], sizes = [8, 32], strides = [1, 1]} : vector<8x96xf32> to vector<8x32xf32>
    %689 = vector.extract_strided_slice %681 {offsets = [0, 0], sizes = [8, 32], strides = [1, 1]} : vector<8x96xf32> to vector<8x32xf32>
    %690 = arith.addf %688, %689 : vector<8x32xf32>
    %691 = arith.negf %690 : vector<8x32xf32>
    %692 = math.exp %691 : vector<8x32xf32>
    %cst_240 = arith.constant 1.000000e+00 : f32
    %693 = vector.broadcast %cst_240 : f32 to vector<8x32xf32>
    %694 = arith.addf %693, %692 : vector<8x32xf32>
    %695 = arith.divf %693, %694 : vector<8x32xf32>
    %696 = vector.extract_strided_slice %674 {offsets = [0, 32], sizes = [8, 32], strides = [1, 1]} : vector<8x96xf32> to vector<8x32xf32>
    %697 = vector.extract_strided_slice %681 {offsets = [0, 32], sizes = [8, 32], strides = [1, 1]} : vector<8x96xf32> to vector<8x32xf32>
    %698 = arith.addf %696, %697 : vector<8x32xf32>
    %699 = arith.negf %698 : vector<8x32xf32>
    %700 = math.exp %699 : vector<8x32xf32>
    %cst_241 = arith.constant 1.000000e+00 : f32
    %701 = vector.broadcast %cst_241 : f32 to vector<8x32xf32>
    %702 = arith.addf %701, %700 : vector<8x32xf32>
    %703 = arith.divf %701, %702 : vector<8x32xf32>
    %704 = vector.extract_strided_slice %674 {offsets = [0, 64], sizes = [8, 32], strides = [1, 1]} : vector<8x96xf32> to vector<8x32xf32>
    %705 = vector.extract_strided_slice %681 {offsets = [0, 64], sizes = [8, 32], strides = [1, 1]} : vector<8x96xf32> to vector<8x32xf32>
    %706 = arith.mulf %695, %705 : vector<8x32xf32>
    %707 = arith.addf %704, %706 : vector<8x32xf32>
    %708 = math.tanh %707 : vector<8x32xf32>
    %cst_242 = arith.constant 1.000000e+00 : f32
    %709 = vector.broadcast %cst_242 : f32 to vector<8x32xf32>
    %710 = arith.subf %709, %703 : vector<8x32xf32>
    %711 = arith.mulf %710, %708 : vector<8x32xf32>
    %712 = arith.mulf %703, %645 : vector<8x32xf32>
    %713 = arith.addf %711, %712 : vector<8x32xf32>
    %714 = vector.extract_strided_slice %675 {offsets = [0, 0], sizes = [8, 32], strides = [1, 1]} : vector<8x96xf32> to vector<8x32xf32>
    %715 = vector.extract_strided_slice %687 {offsets = [0, 0], sizes = [8, 32], strides = [1, 1]} : vector<8x96xf32> to vector<8x32xf32>
    %716 = arith.addf %714, %715 : vector<8x32xf32>
    %717 = arith.negf %716 : vector<8x32xf32>
    %718 = math.exp %717 : vector<8x32xf32>
    %cst_243 = arith.constant 1.000000e+00 : f32
    %719 = vector.broadcast %cst_243 : f32 to vector<8x32xf32>
    %720 = arith.addf %719, %718 : vector<8x32xf32>
    %721 = arith.divf %719, %720 : vector<8x32xf32>
    %722 = vector.extract_strided_slice %675 {offsets = [0, 32], sizes = [8, 32], strides = [1, 1]} : vector<8x96xf32> to vector<8x32xf32>
    %723 = vector.extract_strided_slice %687 {offsets = [0, 32], sizes = [8, 32], strides = [1, 1]} : vector<8x96xf32> to vector<8x32xf32>
    %724 = arith.addf %722, %723 : vector<8x32xf32>
    %725 = arith.negf %724 : vector<8x32xf32>
    %726 = math.exp %725 : vector<8x32xf32>
    %cst_244 = arith.constant 1.000000e+00 : f32
    %727 = vector.broadcast %cst_244 : f32 to vector<8x32xf32>
    %728 = arith.addf %727, %726 : vector<8x32xf32>
    %729 = arith.divf %727, %728 : vector<8x32xf32>
    %730 = vector.extract_strided_slice %675 {offsets = [0, 64], sizes = [8, 32], strides = [1, 1]} : vector<8x96xf32> to vector<8x32xf32>
    %731 = vector.extract_strided_slice %687 {offsets = [0, 64], sizes = [8, 32], strides = [1, 1]} : vector<8x96xf32> to vector<8x32xf32>
    %732 = arith.mulf %721, %731 : vector<8x32xf32>
    %733 = arith.addf %730, %732 : vector<8x32xf32>
    %734 = math.tanh %733 : vector<8x32xf32>
    %cst_245 = arith.constant 1.000000e+00 : f32
    %735 = vector.broadcast %cst_245 : f32 to vector<8x32xf32>
    %736 = arith.subf %735, %729 : vector<8x32xf32>
    %737 = arith.mulf %736, %734 : vector<8x32xf32>
    %738 = arith.mulf %729, %671 : vector<8x32xf32>
    %739 = arith.addf %737, %738 : vector<8x32xf32>
    %c72_246 = arith.constant 72 : index
    %c0_247 = arith.constant 0 : index
    %740 = vector.load %arg19[%c72_246, %c0_247] : memref<128x64xf32, #tpu.memory_space<vmem>>, vector<8x32xf32>
    tpu.vector_store %arg19[%c72_246, %c0_247], %713 {strides = array<i32>} : memref<128x64xf32, #tpu.memory_space<vmem>>, vector<8x32xf32>,
    %c48_248 = arith.constant 48 : index
    %c32_249 = arith.constant 32 : index
    %741 = vector.load %arg19[%c48_248, %c32_249] : memref<128x64xf32, #tpu.memory_space<vmem>>, vector<8x32xf32>
    tpu.vector_store %arg19[%c48_248, %c32_249], %739 {strides = array<i32>} : memref<128x64xf32, #tpu.memory_space<vmem>>, vector<8x32xf32>,
    %c80_250 = arith.constant 80 : index
    %c0_251 = arith.constant 0 : index
    %742 = vector.load %arg18[%c80_250, %c0_251] : memref<128x192xf32, #tpu.memory_space<vmem>>, vector<8x96xf32>
    %c40_252 = arith.constant 40 : index
    %c96_253 = arith.constant 96 : index
    %743 = vector.load %arg18[%c40_252, %c96_253] : memref<128x192xf32, #tpu.memory_space<vmem>>, vector<8x96xf32>
    %744 = arith.truncf %713 : vector<8x32xf32> to vector<8x32xbf16>
    %c0_254 = arith.constant 0 : index
    %c0_255 = arith.constant 0 : index
    %745 = vector.load %arg5[%c0_254, %c0_255] : memref<32x96xbf16, #tpu.memory_space<vmem>>, vector<32x96xbf16>
    %cst_256 = arith.constant dense<0.000000e+00> : vector<8x96xf32>
    %746 = tpu.matmul %744, %745, %cst_256 {dimension_numbers = #tpu.dot_dimension_numbers<[1], [0], [0], [1], [0, 0, 1, 1], [], []>} : vector<8x32xbf16>, vector<32x96xbf16>, vector<8x96xf32> -> vector<8x96xf32>
    %c0_257 = arith.constant 0 : index
    %c0_258 = arith.constant 0 : index
    %747 = vector.load %arg6[%c0_257, %c0_258] : memref<1x96xf32, #tpu.memory_space<vmem>>, vector<1x96xf32>
    %748 = vector.broadcast %747 : vector<1x96xf32> to vector<8x96xf32>
    %749 = arith.addf %746, %748 : vector<8x96xf32>
    %750 = arith.truncf %739 : vector<8x32xf32> to vector<8x32xbf16>
    %c0_259 = arith.constant 0 : index
    %c0_260 = arith.constant 0 : index
    %751 = vector.load %arg7[%c0_259, %c0_260] : memref<32x96xbf16, #tpu.memory_space<vmem>>, vector<32x96xbf16>
    %cst_261 = arith.constant dense<0.000000e+00> : vector<8x96xf32>
    %752 = tpu.matmul %750, %751, %cst_261 {dimension_numbers = #tpu.dot_dimension_numbers<[1], [0], [0], [1], [0, 0, 1, 1], [], []>} : vector<8x32xbf16>, vector<32x96xbf16>, vector<8x96xf32> -> vector<8x96xf32>
    %c0_262 = arith.constant 0 : index
    %c0_263 = arith.constant 0 : index
    %753 = vector.load %arg8[%c0_262, %c0_263] : memref<1x96xf32, #tpu.memory_space<vmem>>, vector<1x96xf32>
    %754 = vector.broadcast %753 : vector<1x96xf32> to vector<8x96xf32>
    %755 = arith.addf %752, %754 : vector<8x96xf32>
    %756 = vector.extract_strided_slice %742 {offsets = [0, 0], sizes = [8, 32], strides = [1, 1]} : vector<8x96xf32> to vector<8x32xf32>
    %757 = vector.extract_strided_slice %749 {offsets = [0, 0], sizes = [8, 32], strides = [1, 1]} : vector<8x96xf32> to vector<8x32xf32>
    %758 = arith.addf %756, %757 : vector<8x32xf32>
    %759 = arith.negf %758 : vector<8x32xf32>
    %760 = math.exp %759 : vector<8x32xf32>
    %cst_264 = arith.constant 1.000000e+00 : f32
    %761 = vector.broadcast %cst_264 : f32 to vector<8x32xf32>
    %762 = arith.addf %761, %760 : vector<8x32xf32>
    %763 = arith.divf %761, %762 : vector<8x32xf32>
    %764 = vector.extract_strided_slice %742 {offsets = [0, 32], sizes = [8, 32], strides = [1, 1]} : vector<8x96xf32> to vector<8x32xf32>
    %765 = vector.extract_strided_slice %749 {offsets = [0, 32], sizes = [8, 32], strides = [1, 1]} : vector<8x96xf32> to vector<8x32xf32>
    %766 = arith.addf %764, %765 : vector<8x32xf32>
    %767 = arith.negf %766 : vector<8x32xf32>
    %768 = math.exp %767 : vector<8x32xf32>
    %cst_265 = arith.constant 1.000000e+00 : f32
    %769 = vector.broadcast %cst_265 : f32 to vector<8x32xf32>
    %770 = arith.addf %769, %768 : vector<8x32xf32>
    %771 = arith.divf %769, %770 : vector<8x32xf32>
    %772 = vector.extract_strided_slice %742 {offsets = [0, 64], sizes = [8, 32], strides = [1, 1]} : vector<8x96xf32> to vector<8x32xf32>
    %773 = vector.extract_strided_slice %749 {offsets = [0, 64], sizes = [8, 32], strides = [1, 1]} : vector<8x96xf32> to vector<8x32xf32>
    %774 = arith.mulf %763, %773 : vector<8x32xf32>
    %775 = arith.addf %772, %774 : vector<8x32xf32>
    %776 = math.tanh %775 : vector<8x32xf32>
    %cst_266 = arith.constant 1.000000e+00 : f32
    %777 = vector.broadcast %cst_266 : f32 to vector<8x32xf32>
    %778 = arith.subf %777, %771 : vector<8x32xf32>
    %779 = arith.mulf %778, %776 : vector<8x32xf32>
    %780 = arith.mulf %771, %713 : vector<8x32xf32>
    %781 = arith.addf %779, %780 : vector<8x32xf32>
    %782 = vector.extract_strided_slice %743 {offsets = [0, 0], sizes = [8, 32], strides = [1, 1]} : vector<8x96xf32> to vector<8x32xf32>
    %783 = vector.extract_strided_slice %755 {offsets = [0, 0], sizes = [8, 32], strides = [1, 1]} : vector<8x96xf32> to vector<8x32xf32>
    %784 = arith.addf %782, %783 : vector<8x32xf32>
    %785 = arith.negf %784 : vector<8x32xf32>
    %786 = math.exp %785 : vector<8x32xf32>
    %cst_267 = arith.constant 1.000000e+00 : f32
    %787 = vector.broadcast %cst_267 : f32 to vector<8x32xf32>
    %788 = arith.addf %787, %786 : vector<8x32xf32>
    %789 = arith.divf %787, %788 : vector<8x32xf32>
    %790 = vector.extract_strided_slice %743 {offsets = [0, 32], sizes = [8, 32], strides = [1, 1]} : vector<8x96xf32> to vector<8x32xf32>
    %791 = vector.extract_strided_slice %755 {offsets = [0, 32], sizes = [8, 32], strides = [1, 1]} : vector<8x96xf32> to vector<8x32xf32>
    %792 = arith.addf %790, %791 : vector<8x32xf32>
    %793 = arith.negf %792 : vector<8x32xf32>
    %794 = math.exp %793 : vector<8x32xf32>
    %cst_268 = arith.constant 1.000000e+00 : f32
    %795 = vector.broadcast %cst_268 : f32 to vector<8x32xf32>
    %796 = arith.addf %795, %794 : vector<8x32xf32>
    %797 = arith.divf %795, %796 : vector<8x32xf32>
    %798 = vector.extract_strided_slice %743 {offsets = [0, 64], sizes = [8, 32], strides = [1, 1]} : vector<8x96xf32> to vector<8x32xf32>
    %799 = vector.extract_strided_slice %755 {offsets = [0, 64], sizes = [8, 32], strides = [1, 1]} : vector<8x96xf32> to vector<8x32xf32>
    %800 = arith.mulf %789, %799 : vector<8x32xf32>
    %801 = arith.addf %798, %800 : vector<8x32xf32>
    %802 = math.tanh %801 : vector<8x32xf32>
    %cst_269 = arith.constant 1.000000e+00 : f32
    %803 = vector.broadcast %cst_269 : f32 to vector<8x32xf32>
    %804 = arith.subf %803, %797 : vector<8x32xf32>
    %805 = arith.mulf %804, %802 : vector<8x32xf32>
    %806 = arith.mulf %797, %739 : vector<8x32xf32>
    %807 = arith.addf %805, %806 : vector<8x32xf32>
    %c80_270 = arith.constant 80 : index
    %c0_271 = arith.constant 0 : index
    %808 = vector.load %arg19[%c80_270, %c0_271] : memref<128x64xf32, #tpu.memory_space<vmem>>, vector<8x32xf32>
    tpu.vector_store %arg19[%c80_270, %c0_271], %781 {strides = array<i32>} : memref<128x64xf32, #tpu.memory_space<vmem>>, vector<8x32xf32>,
    %c40_272 = arith.constant 40 : index
    %c32_273 = arith.constant 32 : index
    %809 = vector.load %arg19[%c40_272, %c32_273] : memref<128x64xf32, #tpu.memory_space<vmem>>, vector<8x32xf32>
    tpu.vector_store %arg19[%c40_272, %c32_273], %807 {strides = array<i32>} : memref<128x64xf32, #tpu.memory_space<vmem>>, vector<8x32xf32>,
    %c88_274 = arith.constant 88 : index
    %c0_275 = arith.constant 0 : index
    %810 = vector.load %arg18[%c88_274, %c0_275] : memref<128x192xf32, #tpu.memory_space<vmem>>, vector<8x96xf32>
    %c32_276 = arith.constant 32 : index
    %c96_277 = arith.constant 96 : index
    %811 = vector.load %arg18[%c32_276, %c96_277] : memref<128x192xf32, #tpu.memory_space<vmem>>, vector<8x96xf32>
    %812 = arith.truncf %781 : vector<8x32xf32> to vector<8x32xbf16>
    %c0_278 = arith.constant 0 : index
    %c0_279 = arith.constant 0 : index
    %813 = vector.load %arg5[%c0_278, %c0_279] : memref<32x96xbf16, #tpu.memory_space<vmem>>, vector<32x96xbf16>
    %cst_280 = arith.constant dense<0.000000e+00> : vector<8x96xf32>
    %814 = tpu.matmul %812, %813, %cst_280 {dimension_numbers = #tpu.dot_dimension_numbers<[1], [0], [0], [1], [0, 0, 1, 1], [], []>} : vector<8x32xbf16>, vector<32x96xbf16>, vector<8x96xf32> -> vector<8x96xf32>
    %c0_281 = arith.constant 0 : index
    %c0_282 = arith.constant 0 : index
    %815 = vector.load %arg6[%c0_281, %c0_282] : memref<1x96xf32, #tpu.memory_space<vmem>>, vector<1x96xf32>
    %816 = vector.broadcast %815 : vector<1x96xf32> to vector<8x96xf32>
    %817 = arith.addf %814, %816 : vector<8x96xf32>
    %818 = arith.truncf %807 : vector<8x32xf32> to vector<8x32xbf16>
    %c0_283 = arith.constant 0 : index
    %c0_284 = arith.constant 0 : index
    %819 = vector.load %arg7[%c0_283, %c0_284] : memref<32x96xbf16, #tpu.memory_space<vmem>>, vector<32x96xbf16>
    %cst_285 = arith.constant dense<0.000000e+00> : vector<8x96xf32>
    %820 = tpu.matmul %818, %819, %cst_285 {dimension_numbers = #tpu.dot_dimension_numbers<[1], [0], [0], [1], [0, 0, 1, 1], [], []>} : vector<8x32xbf16>, vector<32x96xbf16>, vector<8x96xf32> -> vector<8x96xf32>
    %c0_286 = arith.constant 0 : index
    %c0_287 = arith.constant 0 : index
    %821 = vector.load %arg8[%c0_286, %c0_287] : memref<1x96xf32, #tpu.memory_space<vmem>>, vector<1x96xf32>
    %822 = vector.broadcast %821 : vector<1x96xf32> to vector<8x96xf32>
    %823 = arith.addf %820, %822 : vector<8x96xf32>
    %824 = vector.extract_strided_slice %810 {offsets = [0, 0], sizes = [8, 32], strides = [1, 1]} : vector<8x96xf32> to vector<8x32xf32>
    %825 = vector.extract_strided_slice %817 {offsets = [0, 0], sizes = [8, 32], strides = [1, 1]} : vector<8x96xf32> to vector<8x32xf32>
    %826 = arith.addf %824, %825 : vector<8x32xf32>
    %827 = arith.negf %826 : vector<8x32xf32>
    %828 = math.exp %827 : vector<8x32xf32>
    %cst_288 = arith.constant 1.000000e+00 : f32
    %829 = vector.broadcast %cst_288 : f32 to vector<8x32xf32>
    %830 = arith.addf %829, %828 : vector<8x32xf32>
    %831 = arith.divf %829, %830 : vector<8x32xf32>
    %832 = vector.extract_strided_slice %810 {offsets = [0, 32], sizes = [8, 32], strides = [1, 1]} : vector<8x96xf32> to vector<8x32xf32>
    %833 = vector.extract_strided_slice %817 {offsets = [0, 32], sizes = [8, 32], strides = [1, 1]} : vector<8x96xf32> to vector<8x32xf32>
    %834 = arith.addf %832, %833 : vector<8x32xf32>
    %835 = arith.negf %834 : vector<8x32xf32>
    %836 = math.exp %835 : vector<8x32xf32>
    %cst_289 = arith.constant 1.000000e+00 : f32
    %837 = vector.broadcast %cst_289 : f32 to vector<8x32xf32>
    %838 = arith.addf %837, %836 : vector<8x32xf32>
    %839 = arith.divf %837, %838 : vector<8x32xf32>
    %840 = vector.extract_strided_slice %810 {offsets = [0, 64], sizes = [8, 32], strides = [1, 1]} : vector<8x96xf32> to vector<8x32xf32>
    %841 = vector.extract_strided_slice %817 {offsets = [0, 64], sizes = [8, 32], strides = [1, 1]} : vector<8x96xf32> to vector<8x32xf32>
    %842 = arith.mulf %831, %841 : vector<8x32xf32>
    %843 = arith.addf %840, %842 : vector<8x32xf32>
    %844 = math.tanh %843 : vector<8x32xf32>
    %cst_290 = arith.constant 1.000000e+00 : f32
    %845 = vector.broadcast %cst_290 : f32 to vector<8x32xf32>
    %846 = arith.subf %845, %839 : vector<8x32xf32>
    %847 = arith.mulf %846, %844 : vector<8x32xf32>
    %848 = arith.mulf %839, %781 : vector<8x32xf32>
    %849 = arith.addf %847, %848 : vector<8x32xf32>
    %850 = vector.extract_strided_slice %811 {offsets = [0, 0], sizes = [8, 32], strides = [1, 1]} : vector<8x96xf32> to vector<8x32xf32>
    %851 = vector.extract_strided_slice %823 {offsets = [0, 0], sizes = [8, 32], strides = [1, 1]} : vector<8x96xf32> to vector<8x32xf32>
    %852 = arith.addf %850, %851 : vector<8x32xf32>
    %853 = arith.negf %852 : vector<8x32xf32>
    %854 = math.exp %853 : vector<8x32xf32>
    %cst_291 = arith.constant 1.000000e+00 : f32
    %855 = vector.broadcast %cst_291 : f32 to vector<8x32xf32>
    %856 = arith.addf %855, %854 : vector<8x32xf32>
    %857 = arith.divf %855, %856 : vector<8x32xf32>
    %858 = vector.extract_strided_slice %811 {offsets = [0, 32], sizes = [8, 32], strides = [1, 1]} : vector<8x96xf32> to vector<8x32xf32>
    %859 = vector.extract_strided_slice %823 {offsets = [0, 32], sizes = [8, 32], strides = [1, 1]} : vector<8x96xf32> to vector<8x32xf32>
    %860 = arith.addf %858, %859 : vector<8x32xf32>
    %861 = arith.negf %860 : vector<8x32xf32>
    %862 = math.exp %861 : vector<8x32xf32>
    %cst_292 = arith.constant 1.000000e+00 : f32
    %863 = vector.broadcast %cst_292 : f32 to vector<8x32xf32>
    %864 = arith.addf %863, %862 : vector<8x32xf32>
    %865 = arith.divf %863, %864 : vector<8x32xf32>
    %866 = vector.extract_strided_slice %811 {offsets = [0, 64], sizes = [8, 32], strides = [1, 1]} : vector<8x96xf32> to vector<8x32xf32>
    %867 = vector.extract_strided_slice %823 {offsets = [0, 64], sizes = [8, 32], strides = [1, 1]} : vector<8x96xf32> to vector<8x32xf32>
    %868 = arith.mulf %857, %867 : vector<8x32xf32>
    %869 = arith.addf %866, %868 : vector<8x32xf32>
    %870 = math.tanh %869 : vector<8x32xf32>
    %cst_293 = arith.constant 1.000000e+00 : f32
    %871 = vector.broadcast %cst_293 : f32 to vector<8x32xf32>
    %872 = arith.subf %871, %865 : vector<8x32xf32>
    %873 = arith.mulf %872, %870 : vector<8x32xf32>
    %874 = arith.mulf %865, %807 : vector<8x32xf32>
    %875 = arith.addf %873, %874 : vector<8x32xf32>
    %c88_294 = arith.constant 88 : index
    %c0_295 = arith.constant 0 : index
    %876 = vector.load %arg19[%c88_294, %c0_295] : memref<128x64xf32, #tpu.memory_space<vmem>>, vector<8x32xf32>
    tpu.vector_store %arg19[%c88_294, %c0_295], %849 {strides = array<i32>} : memref<128x64xf32, #tpu.memory_space<vmem>>, vector<8x32xf32>,
    %c32_296 = arith.constant 32 : index
    %c32_297 = arith.constant 32 : index
    %877 = vector.load %arg19[%c32_296, %c32_297] : memref<128x64xf32, #tpu.memory_space<vmem>>, vector<8x32xf32>
    tpu.vector_store %arg19[%c32_296, %c32_297], %875 {strides = array<i32>} : memref<128x64xf32, #tpu.memory_space<vmem>>, vector<8x32xf32>,
    %c96_298 = arith.constant 96 : index
    %c0_299 = arith.constant 0 : index
    %878 = vector.load %arg18[%c96_298, %c0_299] : memref<128x192xf32, #tpu.memory_space<vmem>>, vector<8x96xf32>
    %c24_300 = arith.constant 24 : index
    %c96_301 = arith.constant 96 : index
    %879 = vector.load %arg18[%c24_300, %c96_301] : memref<128x192xf32, #tpu.memory_space<vmem>>, vector<8x96xf32>
    %880 = arith.truncf %849 : vector<8x32xf32> to vector<8x32xbf16>
    %c0_302 = arith.constant 0 : index
    %c0_303 = arith.constant 0 : index
    %881 = vector.load %arg5[%c0_302, %c0_303] : memref<32x96xbf16, #tpu.memory_space<vmem>>, vector<32x96xbf16>
    %cst_304 = arith.constant dense<0.000000e+00> : vector<8x96xf32>
    %882 = tpu.matmul %880, %881, %cst_304 {dimension_numbers = #tpu.dot_dimension_numbers<[1], [0], [0], [1], [0, 0, 1, 1], [], []>} : vector<8x32xbf16>, vector<32x96xbf16>, vector<8x96xf32> -> vector<8x96xf32>
    %c0_305 = arith.constant 0 : index
    %c0_306 = arith.constant 0 : index
    %883 = vector.load %arg6[%c0_305, %c0_306] : memref<1x96xf32, #tpu.memory_space<vmem>>, vector<1x96xf32>
    %884 = vector.broadcast %883 : vector<1x96xf32> to vector<8x96xf32>
    %885 = arith.addf %882, %884 : vector<8x96xf32>
    %886 = arith.truncf %875 : vector<8x32xf32> to vector<8x32xbf16>
    %c0_307 = arith.constant 0 : index
    %c0_308 = arith.constant 0 : index
    %887 = vector.load %arg7[%c0_307, %c0_308] : memref<32x96xbf16, #tpu.memory_space<vmem>>, vector<32x96xbf16>
    %cst_309 = arith.constant dense<0.000000e+00> : vector<8x96xf32>
    %888 = tpu.matmul %886, %887, %cst_309 {dimension_numbers = #tpu.dot_dimension_numbers<[1], [0], [0], [1], [0, 0, 1, 1], [], []>} : vector<8x32xbf16>, vector<32x96xbf16>, vector<8x96xf32> -> vector<8x96xf32>
    %c0_310 = arith.constant 0 : index
    %c0_311 = arith.constant 0 : index
    %889 = vector.load %arg8[%c0_310, %c0_311] : memref<1x96xf32, #tpu.memory_space<vmem>>, vector<1x96xf32>
    %890 = vector.broadcast %889 : vector<1x96xf32> to vector<8x96xf32>
    %891 = arith.addf %888, %890 : vector<8x96xf32>
    %892 = vector.extract_strided_slice %878 {offsets = [0, 0], sizes = [8, 32], strides = [1, 1]} : vector<8x96xf32> to vector<8x32xf32>
    %893 = vector.extract_strided_slice %885 {offsets = [0, 0], sizes = [8, 32], strides = [1, 1]} : vector<8x96xf32> to vector<8x32xf32>
    %894 = arith.addf %892, %893 : vector<8x32xf32>
    %895 = arith.negf %894 : vector<8x32xf32>
    %896 = math.exp %895 : vector<8x32xf32>
    %cst_312 = arith.constant 1.000000e+00 : f32
    %897 = vector.broadcast %cst_312 : f32 to vector<8x32xf32>
    %898 = arith.addf %897, %896 : vector<8x32xf32>
    %899 = arith.divf %897, %898 : vector<8x32xf32>
    %900 = vector.extract_strided_slice %878 {offsets = [0, 32], sizes = [8, 32], strides = [1, 1]} : vector<8x96xf32> to vector<8x32xf32>
    %901 = vector.extract_strided_slice %885 {offsets = [0, 32], sizes = [8, 32], strides = [1, 1]} : vector<8x96xf32> to vector<8x32xf32>
    %902 = arith.addf %900, %901 : vector<8x32xf32>
    %903 = arith.negf %902 : vector<8x32xf32>
    %904 = math.exp %903 : vector<8x32xf32>
    %cst_313 = arith.constant 1.000000e+00 : f32
    %905 = vector.broadcast %cst_313 : f32 to vector<8x32xf32>
    %906 = arith.addf %905, %904 : vector<8x32xf32>
    %907 = arith.divf %905, %906 : vector<8x32xf32>
    %908 = vector.extract_strided_slice %878 {offsets = [0, 64], sizes = [8, 32], strides = [1, 1]} : vector<8x96xf32> to vector<8x32xf32>
    %909 = vector.extract_strided_slice %885 {offsets = [0, 64], sizes = [8, 32], strides = [1, 1]} : vector<8x96xf32> to vector<8x32xf32>
    %910 = arith.mulf %899, %909 : vector<8x32xf32>
    %911 = arith.addf %908, %910 : vector<8x32xf32>
    %912 = math.tanh %911 : vector<8x32xf32>
    %cst_314 = arith.constant 1.000000e+00 : f32
    %913 = vector.broadcast %cst_314 : f32 to vector<8x32xf32>
    %914 = arith.subf %913, %907 : vector<8x32xf32>
    %915 = arith.mulf %914, %912 : vector<8x32xf32>
    %916 = arith.mulf %907, %849 : vector<8x32xf32>
    %917 = arith.addf %915, %916 : vector<8x32xf32>
    %918 = vector.extract_strided_slice %879 {offsets = [0, 0], sizes = [8, 32], strides = [1, 1]} : vector<8x96xf32> to vector<8x32xf32>
    %919 = vector.extract_strided_slice %891 {offsets = [0, 0], sizes = [8, 32], strides = [1, 1]} : vector<8x96xf32> to vector<8x32xf32>
    %920 = arith.addf %918, %919 : vector<8x32xf32>
    %921 = arith.negf %920 : vector<8x32xf32>
    %922 = math.exp %921 : vector<8x32xf32>
    %cst_315 = arith.constant 1.000000e+00 : f32
    %923 = vector.broadcast %cst_315 : f32 to vector<8x32xf32>
    %924 = arith.addf %923, %922 : vector<8x32xf32>
    %925 = arith.divf %923, %924 : vector<8x32xf32>
    %926 = vector.extract_strided_slice %879 {offsets = [0, 32], sizes = [8, 32], strides = [1, 1]} : vector<8x96xf32> to vector<8x32xf32>
    %927 = vector.extract_strided_slice %891 {offsets = [0, 32], sizes = [8, 32], strides = [1, 1]} : vector<8x96xf32> to vector<8x32xf32>
    %928 = arith.addf %926, %927 : vector<8x32xf32>
    %929 = arith.negf %928 : vector<8x32xf32>
    %930 = math.exp %929 : vector<8x32xf32>
    %cst_316 = arith.constant 1.000000e+00 : f32
    %931 = vector.broadcast %cst_316 : f32 to vector<8x32xf32>
    %932 = arith.addf %931, %930 : vector<8x32xf32>
    %933 = arith.divf %931, %932 : vector<8x32xf32>
    %934 = vector.extract_strided_slice %879 {offsets = [0, 64], sizes = [8, 32], strides = [1, 1]} : vector<8x96xf32> to vector<8x32xf32>
    %935 = vector.extract_strided_slice %891 {offsets = [0, 64], sizes = [8, 32], strides = [1, 1]} : vector<8x96xf32> to vector<8x32xf32>
    %936 = arith.mulf %925, %935 : vector<8x32xf32>
    %937 = arith.addf %934, %936 : vector<8x32xf32>
    %938 = math.tanh %937 : vector<8x32xf32>
    %cst_317 = arith.constant 1.000000e+00 : f32
    %939 = vector.broadcast %cst_317 : f32 to vector<8x32xf32>
    %940 = arith.subf %939, %933 : vector<8x32xf32>
    %941 = arith.mulf %940, %938 : vector<8x32xf32>
    %942 = arith.mulf %933, %875 : vector<8x32xf32>
    %943 = arith.addf %941, %942 : vector<8x32xf32>
    %c96_318 = arith.constant 96 : index
    %c0_319 = arith.constant 0 : index
    %944 = vector.load %arg19[%c96_318, %c0_319] : memref<128x64xf32, #tpu.memory_space<vmem>>, vector<8x32xf32>
    tpu.vector_store %arg19[%c96_318, %c0_319], %917 {strides = array<i32>} : memref<128x64xf32, #tpu.memory_space<vmem>>, vector<8x32xf32>,
    %c24_320 = arith.constant 24 : index
    %c32_321 = arith.constant 32 : index
    %945 = vector.load %arg19[%c24_320, %c32_321] : memref<128x64xf32, #tpu.memory_space<vmem>>, vector<8x32xf32>
    tpu.vector_store %arg19[%c24_320, %c32_321], %943 {strides = array<i32>} : memref<128x64xf32, #tpu.memory_space<vmem>>, vector<8x32xf32>,
    %c104_322 = arith.constant 104 : index
    %c0_323 = arith.constant 0 : index
    %946 = vector.load %arg18[%c104_322, %c0_323] : memref<128x192xf32, #tpu.memory_space<vmem>>, vector<8x96xf32>
    %c16_324 = arith.constant 16 : index
    %c96_325 = arith.constant 96 : index
    %947 = vector.load %arg18[%c16_324, %c96_325] : memref<128x192xf32, #tpu.memory_space<vmem>>, vector<8x96xf32>
    %948 = arith.truncf %917 : vector<8x32xf32> to vector<8x32xbf16>
    %c0_326 = arith.constant 0 : index
    %c0_327 = arith.constant 0 : index
    %949 = vector.load %arg5[%c0_326, %c0_327] : memref<32x96xbf16, #tpu.memory_space<vmem>>, vector<32x96xbf16>
    %cst_328 = arith.constant dense<0.000000e+00> : vector<8x96xf32>
    %950 = tpu.matmul %948, %949, %cst_328 {dimension_numbers = #tpu.dot_dimension_numbers<[1], [0], [0], [1], [0, 0, 1, 1], [], []>} : vector<8x32xbf16>, vector<32x96xbf16>, vector<8x96xf32> -> vector<8x96xf32>
    %c0_329 = arith.constant 0 : index
    %c0_330 = arith.constant 0 : index
    %951 = vector.load %arg6[%c0_329, %c0_330] : memref<1x96xf32, #tpu.memory_space<vmem>>, vector<1x96xf32>
    %952 = vector.broadcast %951 : vector<1x96xf32> to vector<8x96xf32>
    %953 = arith.addf %950, %952 : vector<8x96xf32>
    %954 = arith.truncf %943 : vector<8x32xf32> to vector<8x32xbf16>
    %c0_331 = arith.constant 0 : index
    %c0_332 = arith.constant 0 : index
    %955 = vector.load %arg7[%c0_331, %c0_332] : memref<32x96xbf16, #tpu.memory_space<vmem>>, vector<32x96xbf16>
    %cst_333 = arith.constant dense<0.000000e+00> : vector<8x96xf32>
    %956 = tpu.matmul %954, %955, %cst_333 {dimension_numbers = #tpu.dot_dimension_numbers<[1], [0], [0], [1], [0, 0, 1, 1], [], []>} : vector<8x32xbf16>, vector<32x96xbf16>, vector<8x96xf32> -> vector<8x96xf32>
    %c0_334 = arith.constant 0 : index
    %c0_335 = arith.constant 0 : index
    %957 = vector.load %arg8[%c0_334, %c0_335] : memref<1x96xf32, #tpu.memory_space<vmem>>, vector<1x96xf32>
    %958 = vector.broadcast %957 : vector<1x96xf32> to vector<8x96xf32>
    %959 = arith.addf %956, %958 : vector<8x96xf32>
    %960 = vector.extract_strided_slice %946 {offsets = [0, 0], sizes = [8, 32], strides = [1, 1]} : vector<8x96xf32> to vector<8x32xf32>
    %961 = vector.extract_strided_slice %953 {offsets = [0, 0], sizes = [8, 32], strides = [1, 1]} : vector<8x96xf32> to vector<8x32xf32>
    %962 = arith.addf %960, %961 : vector<8x32xf32>
    %963 = arith.negf %962 : vector<8x32xf32>
    %964 = math.exp %963 : vector<8x32xf32>
    %cst_336 = arith.constant 1.000000e+00 : f32
    %965 = vector.broadcast %cst_336 : f32 to vector<8x32xf32>
    %966 = arith.addf %965, %964 : vector<8x32xf32>
    %967 = arith.divf %965, %966 : vector<8x32xf32>
    %968 = vector.extract_strided_slice %946 {offsets = [0, 32], sizes = [8, 32], strides = [1, 1]} : vector<8x96xf32> to vector<8x32xf32>
    %969 = vector.extract_strided_slice %953 {offsets = [0, 32], sizes = [8, 32], strides = [1, 1]} : vector<8x96xf32> to vector<8x32xf32>
    %970 = arith.addf %968, %969 : vector<8x32xf32>
    %971 = arith.negf %970 : vector<8x32xf32>
    %972 = math.exp %971 : vector<8x32xf32>
    %cst_337 = arith.constant 1.000000e+00 : f32
    %973 = vector.broadcast %cst_337 : f32 to vector<8x32xf32>
    %974 = arith.addf %973, %972 : vector<8x32xf32>
    %975 = arith.divf %973, %974 : vector<8x32xf32>
    %976 = vector.extract_strided_slice %946 {offsets = [0, 64], sizes = [8, 32], strides = [1, 1]} : vector<8x96xf32> to vector<8x32xf32>
    %977 = vector.extract_strided_slice %953 {offsets = [0, 64], sizes = [8, 32], strides = [1, 1]} : vector<8x96xf32> to vector<8x32xf32>
    %978 = arith.mulf %967, %977 : vector<8x32xf32>
    %979 = arith.addf %976, %978 : vector<8x32xf32>
    %980 = math.tanh %979 : vector<8x32xf32>
    %cst_338 = arith.constant 1.000000e+00 : f32
    %981 = vector.broadcast %cst_338 : f32 to vector<8x32xf32>
    %982 = arith.subf %981, %975 : vector<8x32xf32>
    %983 = arith.mulf %982, %980 : vector<8x32xf32>
    %984 = arith.mulf %975, %917 : vector<8x32xf32>
    %985 = arith.addf %983, %984 : vector<8x32xf32>
    %986 = vector.extract_strided_slice %947 {offsets = [0, 0], sizes = [8, 32], strides = [1, 1]} : vector<8x96xf32> to vector<8x32xf32>
    %987 = vector.extract_strided_slice %959 {offsets = [0, 0], sizes = [8, 32], strides = [1, 1]} : vector<8x96xf32> to vector<8x32xf32>
    %988 = arith.addf %986, %987 : vector<8x32xf32>
    %989 = arith.negf %988 : vector<8x32xf32>
    %990 = math.exp %989 : vector<8x32xf32>
    %cst_339 = arith.constant 1.000000e+00 : f32
    %991 = vector.broadcast %cst_339 : f32 to vector<8x32xf32>
    %992 = arith.addf %991, %990 : vector<8x32xf32>
    %993 = arith.divf %991, %992 : vector<8x32xf32>
    %994 = vector.extract_strided_slice %947 {offsets = [0, 32], sizes = [8, 32], strides = [1, 1]} : vector<8x96xf32> to vector<8x32xf32>
    %995 = vector.extract_strided_slice %959 {offsets = [0, 32], sizes = [8, 32], strides = [1, 1]} : vector<8x96xf32> to vector<8x32xf32>
    %996 = arith.addf %994, %995 : vector<8x32xf32>
    %997 = arith.negf %996 : vector<8x32xf32>
    %998 = math.exp %997 : vector<8x32xf32>
    %cst_340 = arith.constant 1.000000e+00 : f32
    %999 = vector.broadcast %cst_340 : f32 to vector<8x32xf32>
    %1000 = arith.addf %999, %998 : vector<8x32xf32>
    %1001 = arith.divf %999, %1000 : vector<8x32xf32>
    %1002 = vector.extract_strided_slice %947 {offsets = [0, 64], sizes = [8, 32], strides = [1, 1]} : vector<8x96xf32> to vector<8x32xf32>
    %1003 = vector.extract_strided_slice %959 {offsets = [0, 64], sizes = [8, 32], strides = [1, 1]} : vector<8x96xf32> to vector<8x32xf32>
    %1004 = arith.mulf %993, %1003 : vector<8x32xf32>
    %1005 = arith.addf %1002, %1004 : vector<8x32xf32>
    %1006 = math.tanh %1005 : vector<8x32xf32>
    %cst_341 = arith.constant 1.000000e+00 : f32
    %1007 = vector.broadcast %cst_341 : f32 to vector<8x32xf32>
    %1008 = arith.subf %1007, %1001 : vector<8x32xf32>
    %1009 = arith.mulf %1008, %1006 : vector<8x32xf32>
    %1010 = arith.mulf %1001, %943 : vector<8x32xf32>
    %1011 = arith.addf %1009, %1010 : vector<8x32xf32>
    %c104_342 = arith.constant 104 : index
    %c0_343 = arith.constant 0 : index
    %1012 = vector.load %arg19[%c104_342, %c0_343] : memref<128x64xf32, #tpu.memory_space<vmem>>, vector<8x32xf32>
    tpu.vector_store %arg19[%c104_342, %c0_343], %985 {strides = array<i32>} : memref<128x64xf32, #tpu.memory_space<vmem>>, vector<8x32xf32>,
    %c16_344 = arith.constant 16 : index
    %c32_345 = arith.constant 32 : index
    %1013 = vector.load %arg19[%c16_344, %c32_345] : memref<128x64xf32, #tpu.memory_space<vmem>>, vector<8x32xf32>
    tpu.vector_store %arg19[%c16_344, %c32_345], %1011 {strides = array<i32>} : memref<128x64xf32, #tpu.memory_space<vmem>>, vector<8x32xf32>,
    %c112_346 = arith.constant 112 : index
    %c0_347 = arith.constant 0 : index
    %1014 = vector.load %arg18[%c112_346, %c0_347] : memref<128x192xf32, #tpu.memory_space<vmem>>, vector<8x96xf32>
    %c8_348 = arith.constant 8 : index
    %c96_349 = arith.constant 96 : index
    %1015 = vector.load %arg18[%c8_348, %c96_349] : memref<128x192xf32, #tpu.memory_space<vmem>>, vector<8x96xf32>
    %1016 = arith.truncf %985 : vector<8x32xf32> to vector<8x32xbf16>
    %c0_350 = arith.constant 0 : index
    %c0_351 = arith.constant 0 : index
    %1017 = vector.load %arg5[%c0_350, %c0_351] : memref<32x96xbf16, #tpu.memory_space<vmem>>, vector<32x96xbf16>
    %cst_352 = arith.constant dense<0.000000e+00> : vector<8x96xf32>
    %1018 = tpu.matmul %1016, %1017, %cst_352 {dimension_numbers = #tpu.dot_dimension_numbers<[1], [0], [0], [1], [0, 0, 1, 1], [], []>} : vector<8x32xbf16>, vector<32x96xbf16>, vector<8x96xf32> -> vector<8x96xf32>
    %c0_353 = arith.constant 0 : index
    %c0_354 = arith.constant 0 : index
    %1019 = vector.load %arg6[%c0_353, %c0_354] : memref<1x96xf32, #tpu.memory_space<vmem>>, vector<1x96xf32>
    %1020 = vector.broadcast %1019 : vector<1x96xf32> to vector<8x96xf32>
    %1021 = arith.addf %1018, %1020 : vector<8x96xf32>
    %1022 = arith.truncf %1011 : vector<8x32xf32> to vector<8x32xbf16>
    %c0_355 = arith.constant 0 : index
    %c0_356 = arith.constant 0 : index
    %1023 = vector.load %arg7[%c0_355, %c0_356] : memref<32x96xbf16, #tpu.memory_space<vmem>>, vector<32x96xbf16>
    %cst_357 = arith.constant dense<0.000000e+00> : vector<8x96xf32>
    %1024 = tpu.matmul %1022, %1023, %cst_357 {dimension_numbers = #tpu.dot_dimension_numbers<[1], [0], [0], [1], [0, 0, 1, 1], [], []>} : vector<8x32xbf16>, vector<32x96xbf16>, vector<8x96xf32> -> vector<8x96xf32>
    %c0_358 = arith.constant 0 : index
    %c0_359 = arith.constant 0 : index
    %1025 = vector.load %arg8[%c0_358, %c0_359] : memref<1x96xf32, #tpu.memory_space<vmem>>, vector<1x96xf32>
    %1026 = vector.broadcast %1025 : vector<1x96xf32> to vector<8x96xf32>
    %1027 = arith.addf %1024, %1026 : vector<8x96xf32>
    %1028 = vector.extract_strided_slice %1014 {offsets = [0, 0], sizes = [8, 32], strides = [1, 1]} : vector<8x96xf32> to vector<8x32xf32>
    %1029 = vector.extract_strided_slice %1021 {offsets = [0, 0], sizes = [8, 32], strides = [1, 1]} : vector<8x96xf32> to vector<8x32xf32>
    %1030 = arith.addf %1028, %1029 : vector<8x32xf32>
    %1031 = arith.negf %1030 : vector<8x32xf32>
    %1032 = math.exp %1031 : vector<8x32xf32>
    %cst_360 = arith.constant 1.000000e+00 : f32
    %1033 = vector.broadcast %cst_360 : f32 to vector<8x32xf32>
    %1034 = arith.addf %1033, %1032 : vector<8x32xf32>
    %1035 = arith.divf %1033, %1034 : vector<8x32xf32>
    %1036 = vector.extract_strided_slice %1014 {offsets = [0, 32], sizes = [8, 32], strides = [1, 1]} : vector<8x96xf32> to vector<8x32xf32>
    %1037 = vector.extract_strided_slice %1021 {offsets = [0, 32], sizes = [8, 32], strides = [1, 1]} : vector<8x96xf32> to vector<8x32xf32>
    %1038 = arith.addf %1036, %1037 : vector<8x32xf32>
    %1039 = arith.negf %1038 : vector<8x32xf32>
    %1040 = math.exp %1039 : vector<8x32xf32>
    %cst_361 = arith.constant 1.000000e+00 : f32
    %1041 = vector.broadcast %cst_361 : f32 to vector<8x32xf32>
    %1042 = arith.addf %1041, %1040 : vector<8x32xf32>
    %1043 = arith.divf %1041, %1042 : vector<8x32xf32>
    %1044 = vector.extract_strided_slice %1014 {offsets = [0, 64], sizes = [8, 32], strides = [1, 1]} : vector<8x96xf32> to vector<8x32xf32>
    %1045 = vector.extract_strided_slice %1021 {offsets = [0, 64], sizes = [8, 32], strides = [1, 1]} : vector<8x96xf32> to vector<8x32xf32>
    %1046 = arith.mulf %1035, %1045 : vector<8x32xf32>
    %1047 = arith.addf %1044, %1046 : vector<8x32xf32>
    %1048 = math.tanh %1047 : vector<8x32xf32>
    %cst_362 = arith.constant 1.000000e+00 : f32
    %1049 = vector.broadcast %cst_362 : f32 to vector<8x32xf32>
    %1050 = arith.subf %1049, %1043 : vector<8x32xf32>
    %1051 = arith.mulf %1050, %1048 : vector<8x32xf32>
    %1052 = arith.mulf %1043, %985 : vector<8x32xf32>
    %1053 = arith.addf %1051, %1052 : vector<8x32xf32>
    %1054 = vector.extract_strided_slice %1015 {offsets = [0, 0], sizes = [8, 32], strides = [1, 1]} : vector<8x96xf32> to vector<8x32xf32>
    %1055 = vector.extract_strided_slice %1027 {offsets = [0, 0], sizes = [8, 32], strides = [1, 1]} : vector<8x96xf32> to vector<8x32xf32>
    %1056 = arith.addf %1054, %1055 : vector<8x32xf32>
    %1057 = arith.negf %1056 : vector<8x32xf32>
    %1058 = math.exp %1057 : vector<8x32xf32>
    %cst_363 = arith.constant 1.000000e+00 : f32
    %1059 = vector.broadcast %cst_363 : f32 to vector<8x32xf32>
    %1060 = arith.addf %1059, %1058 : vector<8x32xf32>
    %1061 = arith.divf %1059, %1060 : vector<8x32xf32>
    %1062 = vector.extract_strided_slice %1015 {offsets = [0, 32], sizes = [8, 32], strides = [1, 1]} : vector<8x96xf32> to vector<8x32xf32>
    %1063 = vector.extract_strided_slice %1027 {offsets = [0, 32], sizes = [8, 32], strides = [1, 1]} : vector<8x96xf32> to vector<8x32xf32>
    %1064 = arith.addf %1062, %1063 : vector<8x32xf32>
    %1065 = arith.negf %1064 : vector<8x32xf32>
    %1066 = math.exp %1065 : vector<8x32xf32>
    %cst_364 = arith.constant 1.000000e+00 : f32
    %1067 = vector.broadcast %cst_364 : f32 to vector<8x32xf32>
    %1068 = arith.addf %1067, %1066 : vector<8x32xf32>
    %1069 = arith.divf %1067, %1068 : vector<8x32xf32>
    %1070 = vector.extract_strided_slice %1015 {offsets = [0, 64], sizes = [8, 32], strides = [1, 1]} : vector<8x96xf32> to vector<8x32xf32>
    %1071 = vector.extract_strided_slice %1027 {offsets = [0, 64], sizes = [8, 32], strides = [1, 1]} : vector<8x96xf32> to vector<8x32xf32>
    %1072 = arith.mulf %1061, %1071 : vector<8x32xf32>
    %1073 = arith.addf %1070, %1072 : vector<8x32xf32>
    %1074 = math.tanh %1073 : vector<8x32xf32>
    %cst_365 = arith.constant 1.000000e+00 : f32
    %1075 = vector.broadcast %cst_365 : f32 to vector<8x32xf32>
    %1076 = arith.subf %1075, %1069 : vector<8x32xf32>
    %1077 = arith.mulf %1076, %1074 : vector<8x32xf32>
    %1078 = arith.mulf %1069, %1011 : vector<8x32xf32>
    %1079 = arith.addf %1077, %1078 : vector<8x32xf32>
    %c112_366 = arith.constant 112 : index
    %c0_367 = arith.constant 0 : index
    %1080 = vector.load %arg19[%c112_366, %c0_367] : memref<128x64xf32, #tpu.memory_space<vmem>>, vector<8x32xf32>
    tpu.vector_store %arg19[%c112_366, %c0_367], %1053 {strides = array<i32>} : memref<128x64xf32, #tpu.memory_space<vmem>>, vector<8x32xf32>,
    %c8_368 = arith.constant 8 : index
    %c32_369 = arith.constant 32 : index
    %1081 = vector.load %arg19[%c8_368, %c32_369] : memref<128x64xf32, #tpu.memory_space<vmem>>, vector<8x32xf32>
    tpu.vector_store %arg19[%c8_368, %c32_369], %1079 {strides = array<i32>} : memref<128x64xf32, #tpu.memory_space<vmem>>, vector<8x32xf32>,
    %c120_370 = arith.constant 120 : index
    %c0_371 = arith.constant 0 : index
    %1082 = vector.load %arg18[%c120_370, %c0_371] : memref<128x192xf32, #tpu.memory_space<vmem>>, vector<8x96xf32>
    %c0_372 = arith.constant 0 : index
    %c96_373 = arith.constant 96 : index
    %1083 = vector.load %arg18[%c0_372, %c96_373] : memref<128x192xf32, #tpu.memory_space<vmem>>, vector<8x96xf32>
    %1084 = arith.truncf %1053 : vector<8x32xf32> to vector<8x32xbf16>
    %c0_374 = arith.constant 0 : index
    %c0_375 = arith.constant 0 : index
    %1085 = vector.load %arg5[%c0_374, %c0_375] : memref<32x96xbf16, #tpu.memory_space<vmem>>, vector<32x96xbf16>
    %cst_376 = arith.constant dense<0.000000e+00> : vector<8x96xf32>
    %1086 = tpu.matmul %1084, %1085, %cst_376 {dimension_numbers = #tpu.dot_dimension_numbers<[1], [0], [0], [1], [0, 0, 1, 1], [], []>} : vector<8x32xbf16>, vector<32x96xbf16>, vector<8x96xf32> -> vector<8x96xf32>
    %c0_377 = arith.constant 0 : index
    %c0_378 = arith.constant 0 : index
    %1087 = vector.load %arg6[%c0_377, %c0_378] : memref<1x96xf32, #tpu.memory_space<vmem>>, vector<1x96xf32>
    %1088 = vector.broadcast %1087 : vector<1x96xf32> to vector<8x96xf32>
    %1089 = arith.addf %1086, %1088 : vector<8x96xf32>
    %1090 = arith.truncf %1079 : vector<8x32xf32> to vector<8x32xbf16>
    %c0_379 = arith.constant 0 : index
    %c0_380 = arith.constant 0 : index
    %1091 = vector.load %arg7[%c0_379, %c0_380] : memref<32x96xbf16, #tpu.memory_space<vmem>>, vector<32x96xbf16>
    %cst_381 = arith.constant dense<0.000000e+00> : vector<8x96xf32>
    %1092 = tpu.matmul %1090, %1091, %cst_381 {dimension_numbers = #tpu.dot_dimension_numbers<[1], [0], [0], [1], [0, 0, 1, 1], [], []>} : vector<8x32xbf16>, vector<32x96xbf16>, vector<8x96xf32> -> vector<8x96xf32>
    %c0_382 = arith.constant 0 : index
    %c0_383 = arith.constant 0 : index
    %1093 = vector.load %arg8[%c0_382, %c0_383] : memref<1x96xf32, #tpu.memory_space<vmem>>, vector<1x96xf32>
    %1094 = vector.broadcast %1093 : vector<1x96xf32> to vector<8x96xf32>
    %1095 = arith.addf %1092, %1094 : vector<8x96xf32>
    %1096 = vector.extract_strided_slice %1082 {offsets = [0, 0], sizes = [8, 32], strides = [1, 1]} : vector<8x96xf32> to vector<8x32xf32>
    %1097 = vector.extract_strided_slice %1089 {offsets = [0, 0], sizes = [8, 32], strides = [1, 1]} : vector<8x96xf32> to vector<8x32xf32>
    %1098 = arith.addf %1096, %1097 : vector<8x32xf32>
    %1099 = arith.negf %1098 : vector<8x32xf32>
    %1100 = math.exp %1099 : vector<8x32xf32>
    %cst_384 = arith.constant 1.000000e+00 : f32
    %1101 = vector.broadcast %cst_384 : f32 to vector<8x32xf32>
    %1102 = arith.addf %1101, %1100 : vector<8x32xf32>
    %1103 = arith.divf %1101, %1102 : vector<8x32xf32>
    %1104 = vector.extract_strided_slice %1082 {offsets = [0, 32], sizes = [8, 32], strides = [1, 1]} : vector<8x96xf32> to vector<8x32xf32>
    %1105 = vector.extract_strided_slice %1089 {offsets = [0, 32], sizes = [8, 32], strides = [1, 1]} : vector<8x96xf32> to vector<8x32xf32>
    %1106 = arith.addf %1104, %1105 : vector<8x32xf32>
    %1107 = arith.negf %1106 : vector<8x32xf32>
    %1108 = math.exp %1107 : vector<8x32xf32>
    %cst_385 = arith.constant 1.000000e+00 : f32
    %1109 = vector.broadcast %cst_385 : f32 to vector<8x32xf32>
    %1110 = arith.addf %1109, %1108 : vector<8x32xf32>
    %1111 = arith.divf %1109, %1110 : vector<8x32xf32>
    %1112 = vector.extract_strided_slice %1082 {offsets = [0, 64], sizes = [8, 32], strides = [1, 1]} : vector<8x96xf32> to vector<8x32xf32>
    %1113 = vector.extract_strided_slice %1089 {offsets = [0, 64], sizes = [8, 32], strides = [1, 1]} : vector<8x96xf32> to vector<8x32xf32>
    %1114 = arith.mulf %1103, %1113 : vector<8x32xf32>
    %1115 = arith.addf %1112, %1114 : vector<8x32xf32>
    %1116 = math.tanh %1115 : vector<8x32xf32>
    %cst_386 = arith.constant 1.000000e+00 : f32
    %1117 = vector.broadcast %cst_386 : f32 to vector<8x32xf32>
    %1118 = arith.subf %1117, %1111 : vector<8x32xf32>
    %1119 = arith.mulf %1118, %1116 : vector<8x32xf32>
    %1120 = arith.mulf %1111, %1053 : vector<8x32xf32>
    %1121 = arith.addf %1119, %1120 : vector<8x32xf32>
    %1122 = vector.extract_strided_slice %1083 {offsets = [0, 0], sizes = [8, 32], strides = [1, 1]} : vector<8x96xf32> to vector<8x32xf32>
    %1123 = vector.extract_strided_slice %1095 {offsets = [0, 0], sizes = [8, 32], strides = [1, 1]} : vector<8x96xf32> to vector<8x32xf32>
    %1124 = arith.addf %1122, %1123 : vector<8x32xf32>
    %1125 = arith.negf %1124 : vector<8x32xf32>
    %1126 = math.exp %1125 : vector<8x32xf32>
    %cst_387 = arith.constant 1.000000e+00 : f32
    %1127 = vector.broadcast %cst_387 : f32 to vector<8x32xf32>
    %1128 = arith.addf %1127, %1126 : vector<8x32xf32>
    %1129 = arith.divf %1127, %1128 : vector<8x32xf32>
    %1130 = vector.extract_strided_slice %1083 {offsets = [0, 32], sizes = [8, 32], strides = [1, 1]} : vector<8x96xf32> to vector<8x32xf32>
    %1131 = vector.extract_strided_slice %1095 {offsets = [0, 32], sizes = [8, 32], strides = [1, 1]} : vector<8x96xf32> to vector<8x32xf32>
    %1132 = arith.addf %1130, %1131 : vector<8x32xf32>
    %1133 = arith.negf %1132 : vector<8x32xf32>
    %1134 = math.exp %1133 : vector<8x32xf32>
    %cst_388 = arith.constant 1.000000e+00 : f32
    %1135 = vector.broadcast %cst_388 : f32 to vector<8x32xf32>
    %1136 = arith.addf %1135, %1134 : vector<8x32xf32>
    %1137 = arith.divf %1135, %1136 : vector<8x32xf32>
    %1138 = vector.extract_strided_slice %1083 {offsets = [0, 64], sizes = [8, 32], strides = [1, 1]} : vector<8x96xf32> to vector<8x32xf32>
    %1139 = vector.extract_strided_slice %1095 {offsets = [0, 64], sizes = [8, 32], strides = [1, 1]} : vector<8x96xf32> to vector<8x32xf32>
    %1140 = arith.mulf %1129, %1139 : vector<8x32xf32>
    %1141 = arith.addf %1138, %1140 : vector<8x32xf32>
    %1142 = math.tanh %1141 : vector<8x32xf32>
    %cst_389 = arith.constant 1.000000e+00 : f32
    %1143 = vector.broadcast %cst_389 : f32 to vector<8x32xf32>
    %1144 = arith.subf %1143, %1137 : vector<8x32xf32>
    %1145 = arith.mulf %1144, %1142 : vector<8x32xf32>
    %1146 = arith.mulf %1137, %1079 : vector<8x32xf32>
    %1147 = arith.addf %1145, %1146 : vector<8x32xf32>
    %c120_390 = arith.constant 120 : index
    %c0_391 = arith.constant 0 : index
    %1148 = vector.load %arg19[%c120_390, %c0_391] : memref<128x64xf32, #tpu.memory_space<vmem>>, vector<8x32xf32>
    tpu.vector_store %arg19[%c120_390, %c0_391], %1121 {strides = array<i32>} : memref<128x64xf32, #tpu.memory_space<vmem>>, vector<8x32xf32>,
    %c0_392 = arith.constant 0 : index
    %c32_393 = arith.constant 32 : index
    %1149 = vector.load %arg19[%c0_392, %c32_393] : memref<128x64xf32, #tpu.memory_space<vmem>>, vector<8x32xf32>
    tpu.vector_store %arg19[%c0_392, %c32_393], %1147 {strides = array<i32>} : memref<128x64xf32, #tpu.memory_space<vmem>>, vector<8x32xf32>,
    %c0_394 = arith.constant 0 : index
    %c0_395 = arith.constant 0 : index
    %1150 = vector.load %arg19[%c0_394, %c0_395] : memref<128x64xf32, #tpu.memory_space<vmem>>, vector<128x64xf32>
    %1151 = arith.truncf %1150 : vector<128x64xf32> to vector<128x64xbf16>
    %c0_396 = arith.constant 0 : index
    %c0_397 = arith.constant 0 : index
    %1152 = vector.load %arg9[%c0_396, %c0_397] : memref<64x192xbf16, #tpu.memory_space<vmem>>, vector<64x192xbf16>
    %cst_398 = arith.constant dense<0.000000e+00> : vector<128x192xf32>
    %1153 = tpu.matmul %1151, %1152, %cst_398 {dimension_numbers = #tpu.dot_dimension_numbers<[1], [0], [0], [1], [0, 0, 1, 1], [], []>} : vector<128x64xbf16>, vector<64x192xbf16>, vector<128x192xf32> -> vector<128x192xf32>
    %c0_399 = arith.constant 0 : index
    %c0_400 = arith.constant 0 : index
    %1154 = vector.load %arg10[%c0_399, %c0_400] : memref<1x192xf32, #tpu.memory_space<vmem>>, vector<1x192xf32>
    %1155 = vector.broadcast %1154 : vector<1x192xf32> to vector<128x192xf32>
    %1156 = arith.addf %1153, %1155 : vector<128x192xf32>
    %c0_401 = arith.constant 0 : index
    %c0_402 = arith.constant 0 : index
    %1157 = vector.load %arg18[%c0_401, %c0_402] : memref<128x192xf32, #tpu.memory_space<vmem>>, vector<128x192xf32>
    tpu.vector_store %arg18[%c0_401, %c0_402], %1156 {strides = array<i32>} : memref<128x192xf32, #tpu.memory_space<vmem>>, vector<128x192xf32>,
    %cst_403 = arith.constant 0.000000e+00 : f32
    %1158 = vector.broadcast %cst_403 : f32 to vector<8x32xf32>
    %cst_404 = arith.constant 0.000000e+00 : f32
    %1159 = vector.broadcast %cst_404 : f32 to vector<8x32xf32>
    %c0_405 = arith.constant 0 : index
    %c0_406 = arith.constant 0 : index
    %1160 = vector.load %arg18[%c0_405, %c0_406] : memref<128x192xf32, #tpu.memory_space<vmem>>, vector<8x96xf32>
    %c120_407 = arith.constant 120 : index
    %c96_408 = arith.constant 96 : index
    %1161 = vector.load %arg18[%c120_407, %c96_408] : memref<128x192xf32, #tpu.memory_space<vmem>>, vector<8x96xf32>
    %1162 = arith.truncf %1158 : vector<8x32xf32> to vector<8x32xbf16>
    %c0_409 = arith.constant 0 : index
    %c0_410 = arith.constant 0 : index
    %1163 = vector.load %arg11[%c0_409, %c0_410] : memref<32x96xbf16, #tpu.memory_space<vmem>>, vector<32x96xbf16>
    %cst_411 = arith.constant dense<0.000000e+00> : vector<8x96xf32>
    %1164 = tpu.matmul %1162, %1163, %cst_411 {dimension_numbers = #tpu.dot_dimension_numbers<[1], [0], [0], [1], [0, 0, 1, 1], [], []>} : vector<8x32xbf16>, vector<32x96xbf16>, vector<8x96xf32> -> vector<8x96xf32>
    %c0_412 = arith.constant 0 : index
    %c0_413 = arith.constant 0 : index
    %1165 = vector.load %arg12[%c0_412, %c0_413] : memref<1x96xf32, #tpu.memory_space<vmem>>, vector<1x96xf32>
    %1166 = vector.broadcast %1165 : vector<1x96xf32> to vector<8x96xf32>
    %1167 = arith.addf %1164, %1166 : vector<8x96xf32>
    %1168 = arith.truncf %1159 : vector<8x32xf32> to vector<8x32xbf16>
    %c0_414 = arith.constant 0 : index
    %c0_415 = arith.constant 0 : index
    %1169 = vector.load %arg13[%c0_414, %c0_415] : memref<32x96xbf16, #tpu.memory_space<vmem>>, vector<32x96xbf16>
    %cst_416 = arith.constant dense<0.000000e+00> : vector<8x96xf32>
    %1170 = tpu.matmul %1168, %1169, %cst_416 {dimension_numbers = #tpu.dot_dimension_numbers<[1], [0], [0], [1], [0, 0, 1, 1], [], []>} : vector<8x32xbf16>, vector<32x96xbf16>, vector<8x96xf32> -> vector<8x96xf32>
    %c0_417 = arith.constant 0 : index
    %c0_418 = arith.constant 0 : index
    %1171 = vector.load %arg14[%c0_417, %c0_418] : memref<1x96xf32, #tpu.memory_space<vmem>>, vector<1x96xf32>
    %1172 = vector.broadcast %1171 : vector<1x96xf32> to vector<8x96xf32>
    %1173 = arith.addf %1170, %1172 : vector<8x96xf32>
    %1174 = vector.extract_strided_slice %1160 {offsets = [0, 0], sizes = [8, 32], strides = [1, 1]} : vector<8x96xf32> to vector<8x32xf32>
    %1175 = vector.extract_strided_slice %1167 {offsets = [0, 0], sizes = [8, 32], strides = [1, 1]} : vector<8x96xf32> to vector<8x32xf32>
    %1176 = arith.addf %1174, %1175 : vector<8x32xf32>
    %1177 = arith.negf %1176 : vector<8x32xf32>
    %1178 = math.exp %1177 : vector<8x32xf32>
    %cst_419 = arith.constant 1.000000e+00 : f32
    %1179 = vector.broadcast %cst_419 : f32 to vector<8x32xf32>
    %1180 = arith.addf %1179, %1178 : vector<8x32xf32>
    %1181 = arith.divf %1179, %1180 : vector<8x32xf32>
    %1182 = vector.extract_strided_slice %1160 {offsets = [0, 32], sizes = [8, 32], strides = [1, 1]} : vector<8x96xf32> to vector<8x32xf32>
    %1183 = vector.extract_strided_slice %1167 {offsets = [0, 32], sizes = [8, 32], strides = [1, 1]} : vector<8x96xf32> to vector<8x32xf32>
    %1184 = arith.addf %1182, %1183 : vector<8x32xf32>
    %1185 = arith.negf %1184 : vector<8x32xf32>
    %1186 = math.exp %1185 : vector<8x32xf32>
    %cst_420 = arith.constant 1.000000e+00 : f32
    %1187 = vector.broadcast %cst_420 : f32 to vector<8x32xf32>
    %1188 = arith.addf %1187, %1186 : vector<8x32xf32>
    %1189 = arith.divf %1187, %1188 : vector<8x32xf32>
    %1190 = vector.extract_strided_slice %1160 {offsets = [0, 64], sizes = [8, 32], strides = [1, 1]} : vector<8x96xf32> to vector<8x32xf32>
    %1191 = vector.extract_strided_slice %1167 {offsets = [0, 64], sizes = [8, 32], strides = [1, 1]} : vector<8x96xf32> to vector<8x32xf32>
    %1192 = arith.mulf %1181, %1191 : vector<8x32xf32>
    %1193 = arith.addf %1190, %1192 : vector<8x32xf32>
    %1194 = math.tanh %1193 : vector<8x32xf32>
    %cst_421 = arith.constant 1.000000e+00 : f32
    %1195 = vector.broadcast %cst_421 : f32 to vector<8x32xf32>
    %1196 = arith.subf %1195, %1189 : vector<8x32xf32>
    %1197 = arith.mulf %1196, %1194 : vector<8x32xf32>
    %1198 = arith.mulf %1189, %1158 : vector<8x32xf32>
    %1199 = arith.addf %1197, %1198 : vector<8x32xf32>
    %1200 = vector.extract_strided_slice %1161 {offsets = [0, 0], sizes = [8, 32], strides = [1, 1]} : vector<8x96xf32> to vector<8x32xf32>
    %1201 = vector.extract_strided_slice %1173 {offsets = [0, 0], sizes = [8, 32], strides = [1, 1]} : vector<8x96xf32> to vector<8x32xf32>
    %1202 = arith.addf %1200, %1201 : vector<8x32xf32>
    %1203 = arith.negf %1202 : vector<8x32xf32>
    %1204 = math.exp %1203 : vector<8x32xf32>
    %cst_422 = arith.constant 1.000000e+00 : f32
    %1205 = vector.broadcast %cst_422 : f32 to vector<8x32xf32>
    %1206 = arith.addf %1205, %1204 : vector<8x32xf32>
    %1207 = arith.divf %1205, %1206 : vector<8x32xf32>
    %1208 = vector.extract_strided_slice %1161 {offsets = [0, 32], sizes = [8, 32], strides = [1, 1]} : vector<8x96xf32> to vector<8x32xf32>
    %1209 = vector.extract_strided_slice %1173 {offsets = [0, 32], sizes = [8, 32], strides = [1, 1]} : vector<8x96xf32> to vector<8x32xf32>
    %1210 = arith.addf %1208, %1209 : vector<8x32xf32>
    %1211 = arith.negf %1210 : vector<8x32xf32>
    %1212 = math.exp %1211 : vector<8x32xf32>
    %cst_423 = arith.constant 1.000000e+00 : f32
    %1213 = vector.broadcast %cst_423 : f32 to vector<8x32xf32>
    %1214 = arith.addf %1213, %1212 : vector<8x32xf32>
    %1215 = arith.divf %1213, %1214 : vector<8x32xf32>
    %1216 = vector.extract_strided_slice %1161 {offsets = [0, 64], sizes = [8, 32], strides = [1, 1]} : vector<8x96xf32> to vector<8x32xf32>
    %1217 = vector.extract_strided_slice %1173 {offsets = [0, 64], sizes = [8, 32], strides = [1, 1]} : vector<8x96xf32> to vector<8x32xf32>
    %1218 = arith.mulf %1207, %1217 : vector<8x32xf32>
    %1219 = arith.addf %1216, %1218 : vector<8x32xf32>
    %1220 = math.tanh %1219 : vector<8x32xf32>
    %cst_424 = arith.constant 1.000000e+00 : f32
    %1221 = vector.broadcast %cst_424 : f32 to vector<8x32xf32>
    %1222 = arith.subf %1221, %1215 : vector<8x32xf32>
    %1223 = arith.mulf %1222, %1220 : vector<8x32xf32>
    %1224 = arith.mulf %1215, %1159 : vector<8x32xf32>
    %1225 = arith.addf %1223, %1224 : vector<8x32xf32>
    %c8_425 = arith.constant 8 : index
    %c0_426 = arith.constant 0 : index
    %1226 = vector.load %arg18[%c8_425, %c0_426] : memref<128x192xf32, #tpu.memory_space<vmem>>, vector<8x96xf32>
    %c112_427 = arith.constant 112 : index
    %c96_428 = arith.constant 96 : index
    %1227 = vector.load %arg18[%c112_427, %c96_428] : memref<128x192xf32, #tpu.memory_space<vmem>>, vector<8x96xf32>
    %1228 = arith.truncf %1199 : vector<8x32xf32> to vector<8x32xbf16>
    %c0_429 = arith.constant 0 : index
    %c0_430 = arith.constant 0 : index
    %1229 = vector.load %arg11[%c0_429, %c0_430] : memref<32x96xbf16, #tpu.memory_space<vmem>>, vector<32x96xbf16>
    %cst_431 = arith.constant dense<0.000000e+00> : vector<8x96xf32>
    %1230 = tpu.matmul %1228, %1229, %cst_431 {dimension_numbers = #tpu.dot_dimension_numbers<[1], [0], [0], [1], [0, 0, 1, 1], [], []>} : vector<8x32xbf16>, vector<32x96xbf16>, vector<8x96xf32> -> vector<8x96xf32>
    %c0_432 = arith.constant 0 : index
    %c0_433 = arith.constant 0 : index
    %1231 = vector.load %arg12[%c0_432, %c0_433] : memref<1x96xf32, #tpu.memory_space<vmem>>, vector<1x96xf32>
    %1232 = vector.broadcast %1231 : vector<1x96xf32> to vector<8x96xf32>
    %1233 = arith.addf %1230, %1232 : vector<8x96xf32>
    %1234 = arith.truncf %1225 : vector<8x32xf32> to vector<8x32xbf16>
    %c0_434 = arith.constant 0 : index
    %c0_435 = arith.constant 0 : index
    %1235 = vector.load %arg13[%c0_434, %c0_435] : memref<32x96xbf16, #tpu.memory_space<vmem>>, vector<32x96xbf16>
    %cst_436 = arith.constant dense<0.000000e+00> : vector<8x96xf32>
    %1236 = tpu.matmul %1234, %1235, %cst_436 {dimension_numbers = #tpu.dot_dimension_numbers<[1], [0], [0], [1], [0, 0, 1, 1], [], []>} : vector<8x32xbf16>, vector<32x96xbf16>, vector<8x96xf32> -> vector<8x96xf32>
    %c0_437 = arith.constant 0 : index
    %c0_438 = arith.constant 0 : index
    %1237 = vector.load %arg14[%c0_437, %c0_438] : memref<1x96xf32, #tpu.memory_space<vmem>>, vector<1x96xf32>
    %1238 = vector.broadcast %1237 : vector<1x96xf32> to vector<8x96xf32>
    %1239 = arith.addf %1236, %1238 : vector<8x96xf32>
    %1240 = vector.extract_strided_slice %1226 {offsets = [0, 0], sizes = [8, 32], strides = [1, 1]} : vector<8x96xf32> to vector<8x32xf32>
    %1241 = vector.extract_strided_slice %1233 {offsets = [0, 0], sizes = [8, 32], strides = [1, 1]} : vector<8x96xf32> to vector<8x32xf32>
    %1242 = arith.addf %1240, %1241 : vector<8x32xf32>
    %1243 = arith.negf %1242 : vector<8x32xf32>
    %1244 = math.exp %1243 : vector<8x32xf32>
    %cst_439 = arith.constant 1.000000e+00 : f32
    %1245 = vector.broadcast %cst_439 : f32 to vector<8x32xf32>
    %1246 = arith.addf %1245, %1244 : vector<8x32xf32>
    %1247 = arith.divf %1245, %1246 : vector<8x32xf32>
    %1248 = vector.extract_strided_slice %1226 {offsets = [0, 32], sizes = [8, 32], strides = [1, 1]} : vector<8x96xf32> to vector<8x32xf32>
    %1249 = vector.extract_strided_slice %1233 {offsets = [0, 32], sizes = [8, 32], strides = [1, 1]} : vector<8x96xf32> to vector<8x32xf32>
    %1250 = arith.addf %1248, %1249 : vector<8x32xf32>
    %1251 = arith.negf %1250 : vector<8x32xf32>
    %1252 = math.exp %1251 : vector<8x32xf32>
    %cst_440 = arith.constant 1.000000e+00 : f32
    %1253 = vector.broadcast %cst_440 : f32 to vector<8x32xf32>
    %1254 = arith.addf %1253, %1252 : vector<8x32xf32>
    %1255 = arith.divf %1253, %1254 : vector<8x32xf32>
    %1256 = vector.extract_strided_slice %1226 {offsets = [0, 64], sizes = [8, 32], strides = [1, 1]} : vector<8x96xf32> to vector<8x32xf32>
    %1257 = vector.extract_strided_slice %1233 {offsets = [0, 64], sizes = [8, 32], strides = [1, 1]} : vector<8x96xf32> to vector<8x32xf32>
    %1258 = arith.mulf %1247, %1257 : vector<8x32xf32>
    %1259 = arith.addf %1256, %1258 : vector<8x32xf32>
    %1260 = math.tanh %1259 : vector<8x32xf32>
    %cst_441 = arith.constant 1.000000e+00 : f32
    %1261 = vector.broadcast %cst_441 : f32 to vector<8x32xf32>
    %1262 = arith.subf %1261, %1255 : vector<8x32xf32>
    %1263 = arith.mulf %1262, %1260 : vector<8x32xf32>
    %1264 = arith.mulf %1255, %1199 : vector<8x32xf32>
    %1265 = arith.addf %1263, %1264 : vector<8x32xf32>
    %1266 = vector.extract_strided_slice %1227 {offsets = [0, 0], sizes = [8, 32], strides = [1, 1]} : vector<8x96xf32> to vector<8x32xf32>
    %1267 = vector.extract_strided_slice %1239 {offsets = [0, 0], sizes = [8, 32], strides = [1, 1]} : vector<8x96xf32> to vector<8x32xf32>
    %1268 = arith.addf %1266, %1267 : vector<8x32xf32>
    %1269 = arith.negf %1268 : vector<8x32xf32>
    %1270 = math.exp %1269 : vector<8x32xf32>
    %cst_442 = arith.constant 1.000000e+00 : f32
    %1271 = vector.broadcast %cst_442 : f32 to vector<8x32xf32>
    %1272 = arith.addf %1271, %1270 : vector<8x32xf32>
    %1273 = arith.divf %1271, %1272 : vector<8x32xf32>
    %1274 = vector.extract_strided_slice %1227 {offsets = [0, 32], sizes = [8, 32], strides = [1, 1]} : vector<8x96xf32> to vector<8x32xf32>
    %1275 = vector.extract_strided_slice %1239 {offsets = [0, 32], sizes = [8, 32], strides = [1, 1]} : vector<8x96xf32> to vector<8x32xf32>
    %1276 = arith.addf %1274, %1275 : vector<8x32xf32>
    %1277 = arith.negf %1276 : vector<8x32xf32>
    %1278 = math.exp %1277 : vector<8x32xf32>
    %cst_443 = arith.constant 1.000000e+00 : f32
    %1279 = vector.broadcast %cst_443 : f32 to vector<8x32xf32>
    %1280 = arith.addf %1279, %1278 : vector<8x32xf32>
    %1281 = arith.divf %1279, %1280 : vector<8x32xf32>
    %1282 = vector.extract_strided_slice %1227 {offsets = [0, 64], sizes = [8, 32], strides = [1, 1]} : vector<8x96xf32> to vector<8x32xf32>
    %1283 = vector.extract_strided_slice %1239 {offsets = [0, 64], sizes = [8, 32], strides = [1, 1]} : vector<8x96xf32> to vector<8x32xf32>
    %1284 = arith.mulf %1273, %1283 : vector<8x32xf32>
    %1285 = arith.addf %1282, %1284 : vector<8x32xf32>
    %1286 = math.tanh %1285 : vector<8x32xf32>
    %cst_444 = arith.constant 1.000000e+00 : f32
    %1287 = vector.broadcast %cst_444 : f32 to vector<8x32xf32>
    %1288 = arith.subf %1287, %1281 : vector<8x32xf32>
    %1289 = arith.mulf %1288, %1286 : vector<8x32xf32>
    %1290 = arith.mulf %1281, %1225 : vector<8x32xf32>
    %1291 = arith.addf %1289, %1290 : vector<8x32xf32>
    %c16_445 = arith.constant 16 : index
    %c0_446 = arith.constant 0 : index
    %1292 = vector.load %arg18[%c16_445, %c0_446] : memref<128x192xf32, #tpu.memory_space<vmem>>, vector<8x96xf32>
    %c104_447 = arith.constant 104 : index
    %c96_448 = arith.constant 96 : index
    %1293 = vector.load %arg18[%c104_447, %c96_448] : memref<128x192xf32, #tpu.memory_space<vmem>>, vector<8x96xf32>
    %1294 = arith.truncf %1265 : vector<8x32xf32> to vector<8x32xbf16>
    %c0_449 = arith.constant 0 : index
    %c0_450 = arith.constant 0 : index
    %1295 = vector.load %arg11[%c0_449, %c0_450] : memref<32x96xbf16, #tpu.memory_space<vmem>>, vector<32x96xbf16>
    %cst_451 = arith.constant dense<0.000000e+00> : vector<8x96xf32>
    %1296 = tpu.matmul %1294, %1295, %cst_451 {dimension_numbers = #tpu.dot_dimension_numbers<[1], [0], [0], [1], [0, 0, 1, 1], [], []>} : vector<8x32xbf16>, vector<32x96xbf16>, vector<8x96xf32> -> vector<8x96xf32>
    %c0_452 = arith.constant 0 : index
    %c0_453 = arith.constant 0 : index
    %1297 = vector.load %arg12[%c0_452, %c0_453] : memref<1x96xf32, #tpu.memory_space<vmem>>, vector<1x96xf32>
    %1298 = vector.broadcast %1297 : vector<1x96xf32> to vector<8x96xf32>
    %1299 = arith.addf %1296, %1298 : vector<8x96xf32>
    %1300 = arith.truncf %1291 : vector<8x32xf32> to vector<8x32xbf16>
    %c0_454 = arith.constant 0 : index
    %c0_455 = arith.constant 0 : index
    %1301 = vector.load %arg13[%c0_454, %c0_455] : memref<32x96xbf16, #tpu.memory_space<vmem>>, vector<32x96xbf16>
    %cst_456 = arith.constant dense<0.000000e+00> : vector<8x96xf32>
    %1302 = tpu.matmul %1300, %1301, %cst_456 {dimension_numbers = #tpu.dot_dimension_numbers<[1], [0], [0], [1], [0, 0, 1, 1], [], []>} : vector<8x32xbf16>, vector<32x96xbf16>, vector<8x96xf32> -> vector<8x96xf32>
    %c0_457 = arith.constant 0 : index
    %c0_458 = arith.constant 0 : index
    %1303 = vector.load %arg14[%c0_457, %c0_458] : memref<1x96xf32, #tpu.memory_space<vmem>>, vector<1x96xf32>
    %1304 = vector.broadcast %1303 : vector<1x96xf32> to vector<8x96xf32>
    %1305 = arith.addf %1302, %1304 : vector<8x96xf32>
    %1306 = vector.extract_strided_slice %1292 {offsets = [0, 0], sizes = [8, 32], strides = [1, 1]} : vector<8x96xf32> to vector<8x32xf32>
    %1307 = vector.extract_strided_slice %1299 {offsets = [0, 0], sizes = [8, 32], strides = [1, 1]} : vector<8x96xf32> to vector<8x32xf32>
    %1308 = arith.addf %1306, %1307 : vector<8x32xf32>
    %1309 = arith.negf %1308 : vector<8x32xf32>
    %1310 = math.exp %1309 : vector<8x32xf32>
    %cst_459 = arith.constant 1.000000e+00 : f32
    %1311 = vector.broadcast %cst_459 : f32 to vector<8x32xf32>
    %1312 = arith.addf %1311, %1310 : vector<8x32xf32>
    %1313 = arith.divf %1311, %1312 : vector<8x32xf32>
    %1314 = vector.extract_strided_slice %1292 {offsets = [0, 32], sizes = [8, 32], strides = [1, 1]} : vector<8x96xf32> to vector<8x32xf32>
    %1315 = vector.extract_strided_slice %1299 {offsets = [0, 32], sizes = [8, 32], strides = [1, 1]} : vector<8x96xf32> to vector<8x32xf32>
    %1316 = arith.addf %1314, %1315 : vector<8x32xf32>
    %1317 = arith.negf %1316 : vector<8x32xf32>
    %1318 = math.exp %1317 : vector<8x32xf32>
    %cst_460 = arith.constant 1.000000e+00 : f32
    %1319 = vector.broadcast %cst_460 : f32 to vector<8x32xf32>
    %1320 = arith.addf %1319, %1318 : vector<8x32xf32>
    %1321 = arith.divf %1319, %1320 : vector<8x32xf32>
    %1322 = vector.extract_strided_slice %1292 {offsets = [0, 64], sizes = [8, 32], strides = [1, 1]} : vector<8x96xf32> to vector<8x32xf32>
    %1323 = vector.extract_strided_slice %1299 {offsets = [0, 64], sizes = [8, 32], strides = [1, 1]} : vector<8x96xf32> to vector<8x32xf32>
    %1324 = arith.mulf %1313, %1323 : vector<8x32xf32>
    %1325 = arith.addf %1322, %1324 : vector<8x32xf32>
    %1326 = math.tanh %1325 : vector<8x32xf32>
    %cst_461 = arith.constant 1.000000e+00 : f32
    %1327 = vector.broadcast %cst_461 : f32 to vector<8x32xf32>
    %1328 = arith.subf %1327, %1321 : vector<8x32xf32>
    %1329 = arith.mulf %1328, %1326 : vector<8x32xf32>
    %1330 = arith.mulf %1321, %1265 : vector<8x32xf32>
    %1331 = arith.addf %1329, %1330 : vector<8x32xf32>
    %1332 = vector.extract_strided_slice %1293 {offsets = [0, 0], sizes = [8, 32], strides = [1, 1]} : vector<8x96xf32> to vector<8x32xf32>
    %1333 = vector.extract_strided_slice %1305 {offsets = [0, 0], sizes = [8, 32], strides = [1, 1]} : vector<8x96xf32> to vector<8x32xf32>
    %1334 = arith.addf %1332, %1333 : vector<8x32xf32>
    %1335 = arith.negf %1334 : vector<8x32xf32>
    %1336 = math.exp %1335 : vector<8x32xf32>
    %cst_462 = arith.constant 1.000000e+00 : f32
    %1337 = vector.broadcast %cst_462 : f32 to vector<8x32xf32>
    %1338 = arith.addf %1337, %1336 : vector<8x32xf32>
    %1339 = arith.divf %1337, %1338 : vector<8x32xf32>
    %1340 = vector.extract_strided_slice %1293 {offsets = [0, 32], sizes = [8, 32], strides = [1, 1]} : vector<8x96xf32> to vector<8x32xf32>
    %1341 = vector.extract_strided_slice %1305 {offsets = [0, 32], sizes = [8, 32], strides = [1, 1]} : vector<8x96xf32> to vector<8x32xf32>
    %1342 = arith.addf %1340, %1341 : vector<8x32xf32>
    %1343 = arith.negf %1342 : vector<8x32xf32>
    %1344 = math.exp %1343 : vector<8x32xf32>
    %cst_463 = arith.constant 1.000000e+00 : f32
    %1345 = vector.broadcast %cst_463 : f32 to vector<8x32xf32>
    %1346 = arith.addf %1345, %1344 : vector<8x32xf32>
    %1347 = arith.divf %1345, %1346 : vector<8x32xf32>
    %1348 = vector.extract_strided_slice %1293 {offsets = [0, 64], sizes = [8, 32], strides = [1, 1]} : vector<8x96xf32> to vector<8x32xf32>
    %1349 = vector.extract_strided_slice %1305 {offsets = [0, 64], sizes = [8, 32], strides = [1, 1]} : vector<8x96xf32> to vector<8x32xf32>
    %1350 = arith.mulf %1339, %1349 : vector<8x32xf32>
    %1351 = arith.addf %1348, %1350 : vector<8x32xf32>
    %1352 = math.tanh %1351 : vector<8x32xf32>
    %cst_464 = arith.constant 1.000000e+00 : f32
    %1353 = vector.broadcast %cst_464 : f32 to vector<8x32xf32>
    %1354 = arith.subf %1353, %1347 : vector<8x32xf32>
    %1355 = arith.mulf %1354, %1352 : vector<8x32xf32>
    %1356 = arith.mulf %1347, %1291 : vector<8x32xf32>
    %1357 = arith.addf %1355, %1356 : vector<8x32xf32>
    %c24_465 = arith.constant 24 : index
    %c0_466 = arith.constant 0 : index
    %1358 = vector.load %arg18[%c24_465, %c0_466] : memref<128x192xf32, #tpu.memory_space<vmem>>, vector<8x96xf32>
    %c96_467 = arith.constant 96 : index
    %c96_468 = arith.constant 96 : index
    %1359 = vector.load %arg18[%c96_467, %c96_468] : memref<128x192xf32, #tpu.memory_space<vmem>>, vector<8x96xf32>
    %1360 = arith.truncf %1331 : vector<8x32xf32> to vector<8x32xbf16>
    %c0_469 = arith.constant 0 : index
    %c0_470 = arith.constant 0 : index
    %1361 = vector.load %arg11[%c0_469, %c0_470] : memref<32x96xbf16, #tpu.memory_space<vmem>>, vector<32x96xbf16>
    %cst_471 = arith.constant dense<0.000000e+00> : vector<8x96xf32>
    %1362 = tpu.matmul %1360, %1361, %cst_471 {dimension_numbers = #tpu.dot_dimension_numbers<[1], [0], [0], [1], [0, 0, 1, 1], [], []>} : vector<8x32xbf16>, vector<32x96xbf16>, vector<8x96xf32> -> vector<8x96xf32>
    %c0_472 = arith.constant 0 : index
    %c0_473 = arith.constant 0 : index
    %1363 = vector.load %arg12[%c0_472, %c0_473] : memref<1x96xf32, #tpu.memory_space<vmem>>, vector<1x96xf32>
    %1364 = vector.broadcast %1363 : vector<1x96xf32> to vector<8x96xf32>
    %1365 = arith.addf %1362, %1364 : vector<8x96xf32>
    %1366 = arith.truncf %1357 : vector<8x32xf32> to vector<8x32xbf16>
    %c0_474 = arith.constant 0 : index
    %c0_475 = arith.constant 0 : index
    %1367 = vector.load %arg13[%c0_474, %c0_475] : memref<32x96xbf16, #tpu.memory_space<vmem>>, vector<32x96xbf16>
    %cst_476 = arith.constant dense<0.000000e+00> : vector<8x96xf32>
    %1368 = tpu.matmul %1366, %1367, %cst_476 {dimension_numbers = #tpu.dot_dimension_numbers<[1], [0], [0], [1], [0, 0, 1, 1], [], []>} : vector<8x32xbf16>, vector<32x96xbf16>, vector<8x96xf32> -> vector<8x96xf32>
    %c0_477 = arith.constant 0 : index
    %c0_478 = arith.constant 0 : index
    %1369 = vector.load %arg14[%c0_477, %c0_478] : memref<1x96xf32, #tpu.memory_space<vmem>>, vector<1x96xf32>
    %1370 = vector.broadcast %1369 : vector<1x96xf32> to vector<8x96xf32>
    %1371 = arith.addf %1368, %1370 : vector<8x96xf32>
    %1372 = vector.extract_strided_slice %1358 {offsets = [0, 0], sizes = [8, 32], strides = [1, 1]} : vector<8x96xf32> to vector<8x32xf32>
    %1373 = vector.extract_strided_slice %1365 {offsets = [0, 0], sizes = [8, 32], strides = [1, 1]} : vector<8x96xf32> to vector<8x32xf32>
    %1374 = arith.addf %1372, %1373 : vector<8x32xf32>
    %1375 = arith.negf %1374 : vector<8x32xf32>
    %1376 = math.exp %1375 : vector<8x32xf32>
    %cst_479 = arith.constant 1.000000e+00 : f32
    %1377 = vector.broadcast %cst_479 : f32 to vector<8x32xf32>
    %1378 = arith.addf %1377, %1376 : vector<8x32xf32>
    %1379 = arith.divf %1377, %1378 : vector<8x32xf32>
    %1380 = vector.extract_strided_slice %1358 {offsets = [0, 32], sizes = [8, 32], strides = [1, 1]} : vector<8x96xf32> to vector<8x32xf32>
    %1381 = vector.extract_strided_slice %1365 {offsets = [0, 32], sizes = [8, 32], strides = [1, 1]} : vector<8x96xf32> to vector<8x32xf32>
    %1382 = arith.addf %1380, %1381 : vector<8x32xf32>
    %1383 = arith.negf %1382 : vector<8x32xf32>
    %1384 = math.exp %1383 : vector<8x32xf32>
    %cst_480 = arith.constant 1.000000e+00 : f32
    %1385 = vector.broadcast %cst_480 : f32 to vector<8x32xf32>
    %1386 = arith.addf %1385, %1384 : vector<8x32xf32>
    %1387 = arith.divf %1385, %1386 : vector<8x32xf32>
    %1388 = vector.extract_strided_slice %1358 {offsets = [0, 64], sizes = [8, 32], strides = [1, 1]} : vector<8x96xf32> to vector<8x32xf32>
    %1389 = vector.extract_strided_slice %1365 {offsets = [0, 64], sizes = [8, 32], strides = [1, 1]} : vector<8x96xf32> to vector<8x32xf32>
    %1390 = arith.mulf %1379, %1389 : vector<8x32xf32>
    %1391 = arith.addf %1388, %1390 : vector<8x32xf32>
    %1392 = math.tanh %1391 : vector<8x32xf32>
    %cst_481 = arith.constant 1.000000e+00 : f32
    %1393 = vector.broadcast %cst_481 : f32 to vector<8x32xf32>
    %1394 = arith.subf %1393, %1387 : vector<8x32xf32>
    %1395 = arith.mulf %1394, %1392 : vector<8x32xf32>
    %1396 = arith.mulf %1387, %1331 : vector<8x32xf32>
    %1397 = arith.addf %1395, %1396 : vector<8x32xf32>
    %1398 = vector.extract_strided_slice %1359 {offsets = [0, 0], sizes = [8, 32], strides = [1, 1]} : vector<8x96xf32> to vector<8x32xf32>
    %1399 = vector.extract_strided_slice %1371 {offsets = [0, 0], sizes = [8, 32], strides = [1, 1]} : vector<8x96xf32> to vector<8x32xf32>
    %1400 = arith.addf %1398, %1399 : vector<8x32xf32>
    %1401 = arith.negf %1400 : vector<8x32xf32>
    %1402 = math.exp %1401 : vector<8x32xf32>
    %cst_482 = arith.constant 1.000000e+00 : f32
    %1403 = vector.broadcast %cst_482 : f32 to vector<8x32xf32>
    %1404 = arith.addf %1403, %1402 : vector<8x32xf32>
    %1405 = arith.divf %1403, %1404 : vector<8x32xf32>
    %1406 = vector.extract_strided_slice %1359 {offsets = [0, 32], sizes = [8, 32], strides = [1, 1]} : vector<8x96xf32> to vector<8x32xf32>
    %1407 = vector.extract_strided_slice %1371 {offsets = [0, 32], sizes = [8, 32], strides = [1, 1]} : vector<8x96xf32> to vector<8x32xf32>
    %1408 = arith.addf %1406, %1407 : vector<8x32xf32>
    %1409 = arith.negf %1408 : vector<8x32xf32>
    %1410 = math.exp %1409 : vector<8x32xf32>
    %cst_483 = arith.constant 1.000000e+00 : f32
    %1411 = vector.broadcast %cst_483 : f32 to vector<8x32xf32>
    %1412 = arith.addf %1411, %1410 : vector<8x32xf32>
    %1413 = arith.divf %1411, %1412 : vector<8x32xf32>
    %1414 = vector.extract_strided_slice %1359 {offsets = [0, 64], sizes = [8, 32], strides = [1, 1]} : vector<8x96xf32> to vector<8x32xf32>
    %1415 = vector.extract_strided_slice %1371 {offsets = [0, 64], sizes = [8, 32], strides = [1, 1]} : vector<8x96xf32> to vector<8x32xf32>
    %1416 = arith.mulf %1405, %1415 : vector<8x32xf32>
    %1417 = arith.addf %1414, %1416 : vector<8x32xf32>
    %1418 = math.tanh %1417 : vector<8x32xf32>
    %cst_484 = arith.constant 1.000000e+00 : f32
    %1419 = vector.broadcast %cst_484 : f32 to vector<8x32xf32>
    %1420 = arith.subf %1419, %1413 : vector<8x32xf32>
    %1421 = arith.mulf %1420, %1418 : vector<8x32xf32>
    %1422 = arith.mulf %1413, %1357 : vector<8x32xf32>
    %1423 = arith.addf %1421, %1422 : vector<8x32xf32>
    %c32_485 = arith.constant 32 : index
    %c0_486 = arith.constant 0 : index
    %1424 = vector.load %arg18[%c32_485, %c0_486] : memref<128x192xf32, #tpu.memory_space<vmem>>, vector<8x96xf32>
    %c88_487 = arith.constant 88 : index
    %c96_488 = arith.constant 96 : index
    %1425 = vector.load %arg18[%c88_487, %c96_488] : memref<128x192xf32, #tpu.memory_space<vmem>>, vector<8x96xf32>
    %1426 = arith.truncf %1397 : vector<8x32xf32> to vector<8x32xbf16>
    %c0_489 = arith.constant 0 : index
    %c0_490 = arith.constant 0 : index
    %1427 = vector.load %arg11[%c0_489, %c0_490] : memref<32x96xbf16, #tpu.memory_space<vmem>>, vector<32x96xbf16>
    %cst_491 = arith.constant dense<0.000000e+00> : vector<8x96xf32>
    %1428 = tpu.matmul %1426, %1427, %cst_491 {dimension_numbers = #tpu.dot_dimension_numbers<[1], [0], [0], [1], [0, 0, 1, 1], [], []>} : vector<8x32xbf16>, vector<32x96xbf16>, vector<8x96xf32> -> vector<8x96xf32>
    %c0_492 = arith.constant 0 : index
    %c0_493 = arith.constant 0 : index
    %1429 = vector.load %arg12[%c0_492, %c0_493] : memref<1x96xf32, #tpu.memory_space<vmem>>, vector<1x96xf32>
    %1430 = vector.broadcast %1429 : vector<1x96xf32> to vector<8x96xf32>
    %1431 = arith.addf %1428, %1430 : vector<8x96xf32>
    %1432 = arith.truncf %1423 : vector<8x32xf32> to vector<8x32xbf16>
    %c0_494 = arith.constant 0 : index
    %c0_495 = arith.constant 0 : index
    %1433 = vector.load %arg13[%c0_494, %c0_495] : memref<32x96xbf16, #tpu.memory_space<vmem>>, vector<32x96xbf16>
    %cst_496 = arith.constant dense<0.000000e+00> : vector<8x96xf32>
    %1434 = tpu.matmul %1432, %1433, %cst_496 {dimension_numbers = #tpu.dot_dimension_numbers<[1], [0], [0], [1], [0, 0, 1, 1], [], []>} : vector<8x32xbf16>, vector<32x96xbf16>, vector<8x96xf32> -> vector<8x96xf32>
    %c0_497 = arith.constant 0 : index
    %c0_498 = arith.constant 0 : index
    %1435 = vector.load %arg14[%c0_497, %c0_498] : memref<1x96xf32, #tpu.memory_space<vmem>>, vector<1x96xf32>
    %1436 = vector.broadcast %1435 : vector<1x96xf32> to vector<8x96xf32>
    %1437 = arith.addf %1434, %1436 : vector<8x96xf32>
    %1438 = vector.extract_strided_slice %1424 {offsets = [0, 0], sizes = [8, 32], strides = [1, 1]} : vector<8x96xf32> to vector<8x32xf32>
    %1439 = vector.extract_strided_slice %1431 {offsets = [0, 0], sizes = [8, 32], strides = [1, 1]} : vector<8x96xf32> to vector<8x32xf32>
    %1440 = arith.addf %1438, %1439 : vector<8x32xf32>
    %1441 = arith.negf %1440 : vector<8x32xf32>
    %1442 = math.exp %1441 : vector<8x32xf32>
    %cst_499 = arith.constant 1.000000e+00 : f32
    %1443 = vector.broadcast %cst_499 : f32 to vector<8x32xf32>
    %1444 = arith.addf %1443, %1442 : vector<8x32xf32>
    %1445 = arith.divf %1443, %1444 : vector<8x32xf32>
    %1446 = vector.extract_strided_slice %1424 {offsets = [0, 32], sizes = [8, 32], strides = [1, 1]} : vector<8x96xf32> to vector<8x32xf32>
    %1447 = vector.extract_strided_slice %1431 {offsets = [0, 32], sizes = [8, 32], strides = [1, 1]} : vector<8x96xf32> to vector<8x32xf32>
    %1448 = arith.addf %1446, %1447 : vector<8x32xf32>
    %1449 = arith.negf %1448 : vector<8x32xf32>
    %1450 = math.exp %1449 : vector<8x32xf32>
    %cst_500 = arith.constant 1.000000e+00 : f32
    %1451 = vector.broadcast %cst_500 : f32 to vector<8x32xf32>
    %1452 = arith.addf %1451, %1450 : vector<8x32xf32>
    %1453 = arith.divf %1451, %1452 : vector<8x32xf32>
    %1454 = vector.extract_strided_slice %1424 {offsets = [0, 64], sizes = [8, 32], strides = [1, 1]} : vector<8x96xf32> to vector<8x32xf32>
    %1455 = vector.extract_strided_slice %1431 {offsets = [0, 64], sizes = [8, 32], strides = [1, 1]} : vector<8x96xf32> to vector<8x32xf32>
    %1456 = arith.mulf %1445, %1455 : vector<8x32xf32>
    %1457 = arith.addf %1454, %1456 : vector<8x32xf32>
    %1458 = math.tanh %1457 : vector<8x32xf32>
    %cst_501 = arith.constant 1.000000e+00 : f32
    %1459 = vector.broadcast %cst_501 : f32 to vector<8x32xf32>
    %1460 = arith.subf %1459, %1453 : vector<8x32xf32>
    %1461 = arith.mulf %1460, %1458 : vector<8x32xf32>
    %1462 = arith.mulf %1453, %1397 : vector<8x32xf32>
    %1463 = arith.addf %1461, %1462 : vector<8x32xf32>
    %1464 = vector.extract_strided_slice %1425 {offsets = [0, 0], sizes = [8, 32], strides = [1, 1]} : vector<8x96xf32> to vector<8x32xf32>
    %1465 = vector.extract_strided_slice %1437 {offsets = [0, 0], sizes = [8, 32], strides = [1, 1]} : vector<8x96xf32> to vector<8x32xf32>
    %1466 = arith.addf %1464, %1465 : vector<8x32xf32>
    %1467 = arith.negf %1466 : vector<8x32xf32>
    %1468 = math.exp %1467 : vector<8x32xf32>
    %cst_502 = arith.constant 1.000000e+00 : f32
    %1469 = vector.broadcast %cst_502 : f32 to vector<8x32xf32>
    %1470 = arith.addf %1469, %1468 : vector<8x32xf32>
    %1471 = arith.divf %1469, %1470 : vector<8x32xf32>
    %1472 = vector.extract_strided_slice %1425 {offsets = [0, 32], sizes = [8, 32], strides = [1, 1]} : vector<8x96xf32> to vector<8x32xf32>
    %1473 = vector.extract_strided_slice %1437 {offsets = [0, 32], sizes = [8, 32], strides = [1, 1]} : vector<8x96xf32> to vector<8x32xf32>
    %1474 = arith.addf %1472, %1473 : vector<8x32xf32>
    %1475 = arith.negf %1474 : vector<8x32xf32>
    %1476 = math.exp %1475 : vector<8x32xf32>
    %cst_503 = arith.constant 1.000000e+00 : f32
    %1477 = vector.broadcast %cst_503 : f32 to vector<8x32xf32>
    %1478 = arith.addf %1477, %1476 : vector<8x32xf32>
    %1479 = arith.divf %1477, %1478 : vector<8x32xf32>
    %1480 = vector.extract_strided_slice %1425 {offsets = [0, 64], sizes = [8, 32], strides = [1, 1]} : vector<8x96xf32> to vector<8x32xf32>
    %1481 = vector.extract_strided_slice %1437 {offsets = [0, 64], sizes = [8, 32], strides = [1, 1]} : vector<8x96xf32> to vector<8x32xf32>
    %1482 = arith.mulf %1471, %1481 : vector<8x32xf32>
    %1483 = arith.addf %1480, %1482 : vector<8x32xf32>
    %1484 = math.tanh %1483 : vector<8x32xf32>
    %cst_504 = arith.constant 1.000000e+00 : f32
    %1485 = vector.broadcast %cst_504 : f32 to vector<8x32xf32>
    %1486 = arith.subf %1485, %1479 : vector<8x32xf32>
    %1487 = arith.mulf %1486, %1484 : vector<8x32xf32>
    %1488 = arith.mulf %1479, %1423 : vector<8x32xf32>
    %1489 = arith.addf %1487, %1488 : vector<8x32xf32>
    %c40_505 = arith.constant 40 : index
    %c0_506 = arith.constant 0 : index
    %1490 = vector.load %arg18[%c40_505, %c0_506] : memref<128x192xf32, #tpu.memory_space<vmem>>, vector<8x96xf32>
    %c80_507 = arith.constant 80 : index
    %c96_508 = arith.constant 96 : index
    %1491 = vector.load %arg18[%c80_507, %c96_508] : memref<128x192xf32, #tpu.memory_space<vmem>>, vector<8x96xf32>
    %1492 = arith.truncf %1463 : vector<8x32xf32> to vector<8x32xbf16>
    %c0_509 = arith.constant 0 : index
    %c0_510 = arith.constant 0 : index
    %1493 = vector.load %arg11[%c0_509, %c0_510] : memref<32x96xbf16, #tpu.memory_space<vmem>>, vector<32x96xbf16>
    %cst_511 = arith.constant dense<0.000000e+00> : vector<8x96xf32>
    %1494 = tpu.matmul %1492, %1493, %cst_511 {dimension_numbers = #tpu.dot_dimension_numbers<[1], [0], [0], [1], [0, 0, 1, 1], [], []>} : vector<8x32xbf16>, vector<32x96xbf16>, vector<8x96xf32> -> vector<8x96xf32>
    %c0_512 = arith.constant 0 : index
    %c0_513 = arith.constant 0 : index
    %1495 = vector.load %arg12[%c0_512, %c0_513] : memref<1x96xf32, #tpu.memory_space<vmem>>, vector<1x96xf32>
    %1496 = vector.broadcast %1495 : vector<1x96xf32> to vector<8x96xf32>
    %1497 = arith.addf %1494, %1496 : vector<8x96xf32>
    %1498 = arith.truncf %1489 : vector<8x32xf32> to vector<8x32xbf16>
    %c0_514 = arith.constant 0 : index
    %c0_515 = arith.constant 0 : index
    %1499 = vector.load %arg13[%c0_514, %c0_515] : memref<32x96xbf16, #tpu.memory_space<vmem>>, vector<32x96xbf16>
    %cst_516 = arith.constant dense<0.000000e+00> : vector<8x96xf32>
    %1500 = tpu.matmul %1498, %1499, %cst_516 {dimension_numbers = #tpu.dot_dimension_numbers<[1], [0], [0], [1], [0, 0, 1, 1], [], []>} : vector<8x32xbf16>, vector<32x96xbf16>, vector<8x96xf32> -> vector<8x96xf32>
    %c0_517 = arith.constant 0 : index
    %c0_518 = arith.constant 0 : index
    %1501 = vector.load %arg14[%c0_517, %c0_518] : memref<1x96xf32, #tpu.memory_space<vmem>>, vector<1x96xf32>
    %1502 = vector.broadcast %1501 : vector<1x96xf32> to vector<8x96xf32>
    %1503 = arith.addf %1500, %1502 : vector<8x96xf32>
    %1504 = vector.extract_strided_slice %1490 {offsets = [0, 0], sizes = [8, 32], strides = [1, 1]} : vector<8x96xf32> to vector<8x32xf32>
    %1505 = vector.extract_strided_slice %1497 {offsets = [0, 0], sizes = [8, 32], strides = [1, 1]} : vector<8x96xf32> to vector<8x32xf32>
    %1506 = arith.addf %1504, %1505 : vector<8x32xf32>
    %1507 = arith.negf %1506 : vector<8x32xf32>
    %1508 = math.exp %1507 : vector<8x32xf32>
    %cst_519 = arith.constant 1.000000e+00 : f32
    %1509 = vector.broadcast %cst_519 : f32 to vector<8x32xf32>
    %1510 = arith.addf %1509, %1508 : vector<8x32xf32>
    %1511 = arith.divf %1509, %1510 : vector<8x32xf32>
    %1512 = vector.extract_strided_slice %1490 {offsets = [0, 32], sizes = [8, 32], strides = [1, 1]} : vector<8x96xf32> to vector<8x32xf32>
    %1513 = vector.extract_strided_slice %1497 {offsets = [0, 32], sizes = [8, 32], strides = [1, 1]} : vector<8x96xf32> to vector<8x32xf32>
    %1514 = arith.addf %1512, %1513 : vector<8x32xf32>
    %1515 = arith.negf %1514 : vector<8x32xf32>
    %1516 = math.exp %1515 : vector<8x32xf32>
    %cst_520 = arith.constant 1.000000e+00 : f32
    %1517 = vector.broadcast %cst_520 : f32 to vector<8x32xf32>
    %1518 = arith.addf %1517, %1516 : vector<8x32xf32>
    %1519 = arith.divf %1517, %1518 : vector<8x32xf32>
    %1520 = vector.extract_strided_slice %1490 {offsets = [0, 64], sizes = [8, 32], strides = [1, 1]} : vector<8x96xf32> to vector<8x32xf32>
    %1521 = vector.extract_strided_slice %1497 {offsets = [0, 64], sizes = [8, 32], strides = [1, 1]} : vector<8x96xf32> to vector<8x32xf32>
    %1522 = arith.mulf %1511, %1521 : vector<8x32xf32>
    %1523 = arith.addf %1520, %1522 : vector<8x32xf32>
    %1524 = math.tanh %1523 : vector<8x32xf32>
    %cst_521 = arith.constant 1.000000e+00 : f32
    %1525 = vector.broadcast %cst_521 : f32 to vector<8x32xf32>
    %1526 = arith.subf %1525, %1519 : vector<8x32xf32>
    %1527 = arith.mulf %1526, %1524 : vector<8x32xf32>
    %1528 = arith.mulf %1519, %1463 : vector<8x32xf32>
    %1529 = arith.addf %1527, %1528 : vector<8x32xf32>
    %1530 = vector.extract_strided_slice %1491 {offsets = [0, 0], sizes = [8, 32], strides = [1, 1]} : vector<8x96xf32> to vector<8x32xf32>
    %1531 = vector.extract_strided_slice %1503 {offsets = [0, 0], sizes = [8, 32], strides = [1, 1]} : vector<8x96xf32> to vector<8x32xf32>
    %1532 = arith.addf %1530, %1531 : vector<8x32xf32>
    %1533 = arith.negf %1532 : vector<8x32xf32>
    %1534 = math.exp %1533 : vector<8x32xf32>
    %cst_522 = arith.constant 1.000000e+00 : f32
    %1535 = vector.broadcast %cst_522 : f32 to vector<8x32xf32>
    %1536 = arith.addf %1535, %1534 : vector<8x32xf32>
    %1537 = arith.divf %1535, %1536 : vector<8x32xf32>
    %1538 = vector.extract_strided_slice %1491 {offsets = [0, 32], sizes = [8, 32], strides = [1, 1]} : vector<8x96xf32> to vector<8x32xf32>
    %1539 = vector.extract_strided_slice %1503 {offsets = [0, 32], sizes = [8, 32], strides = [1, 1]} : vector<8x96xf32> to vector<8x32xf32>
    %1540 = arith.addf %1538, %1539 : vector<8x32xf32>
    %1541 = arith.negf %1540 : vector<8x32xf32>
    %1542 = math.exp %1541 : vector<8x32xf32>
    %cst_523 = arith.constant 1.000000e+00 : f32
    %1543 = vector.broadcast %cst_523 : f32 to vector<8x32xf32>
    %1544 = arith.addf %1543, %1542 : vector<8x32xf32>
    %1545 = arith.divf %1543, %1544 : vector<8x32xf32>
    %1546 = vector.extract_strided_slice %1491 {offsets = [0, 64], sizes = [8, 32], strides = [1, 1]} : vector<8x96xf32> to vector<8x32xf32>
    %1547 = vector.extract_strided_slice %1503 {offsets = [0, 64], sizes = [8, 32], strides = [1, 1]} : vector<8x96xf32> to vector<8x32xf32>
    %1548 = arith.mulf %1537, %1547 : vector<8x32xf32>
    %1549 = arith.addf %1546, %1548 : vector<8x32xf32>
    %1550 = math.tanh %1549 : vector<8x32xf32>
    %cst_524 = arith.constant 1.000000e+00 : f32
    %1551 = vector.broadcast %cst_524 : f32 to vector<8x32xf32>
    %1552 = arith.subf %1551, %1545 : vector<8x32xf32>
    %1553 = arith.mulf %1552, %1550 : vector<8x32xf32>
    %1554 = arith.mulf %1545, %1489 : vector<8x32xf32>
    %1555 = arith.addf %1553, %1554 : vector<8x32xf32>
    %c48_525 = arith.constant 48 : index
    %c0_526 = arith.constant 0 : index
    %1556 = vector.load %arg18[%c48_525, %c0_526] : memref<128x192xf32, #tpu.memory_space<vmem>>, vector<8x96xf32>
    %c72_527 = arith.constant 72 : index
    %c96_528 = arith.constant 96 : index
    %1557 = vector.load %arg18[%c72_527, %c96_528] : memref<128x192xf32, #tpu.memory_space<vmem>>, vector<8x96xf32>
    %1558 = arith.truncf %1529 : vector<8x32xf32> to vector<8x32xbf16>
    %c0_529 = arith.constant 0 : index
    %c0_530 = arith.constant 0 : index
    %1559 = vector.load %arg11[%c0_529, %c0_530] : memref<32x96xbf16, #tpu.memory_space<vmem>>, vector<32x96xbf16>
    %cst_531 = arith.constant dense<0.000000e+00> : vector<8x96xf32>
    %1560 = tpu.matmul %1558, %1559, %cst_531 {dimension_numbers = #tpu.dot_dimension_numbers<[1], [0], [0], [1], [0, 0, 1, 1], [], []>} : vector<8x32xbf16>, vector<32x96xbf16>, vector<8x96xf32> -> vector<8x96xf32>
    %c0_532 = arith.constant 0 : index
    %c0_533 = arith.constant 0 : index
    %1561 = vector.load %arg12[%c0_532, %c0_533] : memref<1x96xf32, #tpu.memory_space<vmem>>, vector<1x96xf32>
    %1562 = vector.broadcast %1561 : vector<1x96xf32> to vector<8x96xf32>
    %1563 = arith.addf %1560, %1562 : vector<8x96xf32>
    %1564 = arith.truncf %1555 : vector<8x32xf32> to vector<8x32xbf16>
    %c0_534 = arith.constant 0 : index
    %c0_535 = arith.constant 0 : index
    %1565 = vector.load %arg13[%c0_534, %c0_535] : memref<32x96xbf16, #tpu.memory_space<vmem>>, vector<32x96xbf16>
    %cst_536 = arith.constant dense<0.000000e+00> : vector<8x96xf32>
    %1566 = tpu.matmul %1564, %1565, %cst_536 {dimension_numbers = #tpu.dot_dimension_numbers<[1], [0], [0], [1], [0, 0, 1, 1], [], []>} : vector<8x32xbf16>, vector<32x96xbf16>, vector<8x96xf32> -> vector<8x96xf32>
    %c0_537 = arith.constant 0 : index
    %c0_538 = arith.constant 0 : index
    %1567 = vector.load %arg14[%c0_537, %c0_538] : memref<1x96xf32, #tpu.memory_space<vmem>>, vector<1x96xf32>
    %1568 = vector.broadcast %1567 : vector<1x96xf32> to vector<8x96xf32>
    %1569 = arith.addf %1566, %1568 : vector<8x96xf32>
    %1570 = vector.extract_strided_slice %1556 {offsets = [0, 0], sizes = [8, 32], strides = [1, 1]} : vector<8x96xf32> to vector<8x32xf32>
    %1571 = vector.extract_strided_slice %1563 {offsets = [0, 0], sizes = [8, 32], strides = [1, 1]} : vector<8x96xf32> to vector<8x32xf32>
    %1572 = arith.addf %1570, %1571 : vector<8x32xf32>
    %1573 = arith.negf %1572 : vector<8x32xf32>
    %1574 = math.exp %1573 : vector<8x32xf32>
    %cst_539 = arith.constant 1.000000e+00 : f32
    %1575 = vector.broadcast %cst_539 : f32 to vector<8x32xf32>
    %1576 = arith.addf %1575, %1574 : vector<8x32xf32>
    %1577 = arith.divf %1575, %1576 : vector<8x32xf32>
    %1578 = vector.extract_strided_slice %1556 {offsets = [0, 32], sizes = [8, 32], strides = [1, 1]} : vector<8x96xf32> to vector<8x32xf32>
    %1579 = vector.extract_strided_slice %1563 {offsets = [0, 32], sizes = [8, 32], strides = [1, 1]} : vector<8x96xf32> to vector<8x32xf32>
    %1580 = arith.addf %1578, %1579 : vector<8x32xf32>
    %1581 = arith.negf %1580 : vector<8x32xf32>
    %1582 = math.exp %1581 : vector<8x32xf32>
    %cst_540 = arith.constant 1.000000e+00 : f32
    %1583 = vector.broadcast %cst_540 : f32 to vector<8x32xf32>
    %1584 = arith.addf %1583, %1582 : vector<8x32xf32>
    %1585 = arith.divf %1583, %1584 : vector<8x32xf32>
    %1586 = vector.extract_strided_slice %1556 {offsets = [0, 64], sizes = [8, 32], strides = [1, 1]} : vector<8x96xf32> to vector<8x32xf32>
    %1587 = vector.extract_strided_slice %1563 {offsets = [0, 64], sizes = [8, 32], strides = [1, 1]} : vector<8x96xf32> to vector<8x32xf32>
    %1588 = arith.mulf %1577, %1587 : vector<8x32xf32>
    %1589 = arith.addf %1586, %1588 : vector<8x32xf32>
    %1590 = math.tanh %1589 : vector<8x32xf32>
    %cst_541 = arith.constant 1.000000e+00 : f32
    %1591 = vector.broadcast %cst_541 : f32 to vector<8x32xf32>
    %1592 = arith.subf %1591, %1585 : vector<8x32xf32>
    %1593 = arith.mulf %1592, %1590 : vector<8x32xf32>
    %1594 = arith.mulf %1585, %1529 : vector<8x32xf32>
    %1595 = arith.addf %1593, %1594 : vector<8x32xf32>
    %1596 = vector.extract_strided_slice %1557 {offsets = [0, 0], sizes = [8, 32], strides = [1, 1]} : vector<8x96xf32> to vector<8x32xf32>
    %1597 = vector.extract_strided_slice %1569 {offsets = [0, 0], sizes = [8, 32], strides = [1, 1]} : vector<8x96xf32> to vector<8x32xf32>
    %1598 = arith.addf %1596, %1597 : vector<8x32xf32>
    %1599 = arith.negf %1598 : vector<8x32xf32>
    %1600 = math.exp %1599 : vector<8x32xf32>
    %cst_542 = arith.constant 1.000000e+00 : f32
    %1601 = vector.broadcast %cst_542 : f32 to vector<8x32xf32>
    %1602 = arith.addf %1601, %1600 : vector<8x32xf32>
    %1603 = arith.divf %1601, %1602 : vector<8x32xf32>
    %1604 = vector.extract_strided_slice %1557 {offsets = [0, 32], sizes = [8, 32], strides = [1, 1]} : vector<8x96xf32> to vector<8x32xf32>
    %1605 = vector.extract_strided_slice %1569 {offsets = [0, 32], sizes = [8, 32], strides = [1, 1]} : vector<8x96xf32> to vector<8x32xf32>
    %1606 = arith.addf %1604, %1605 : vector<8x32xf32>
    %1607 = arith.negf %1606 : vector<8x32xf32>
    %1608 = math.exp %1607 : vector<8x32xf32>
    %cst_543 = arith.constant 1.000000e+00 : f32
    %1609 = vector.broadcast %cst_543 : f32 to vector<8x32xf32>
    %1610 = arith.addf %1609, %1608 : vector<8x32xf32>
    %1611 = arith.divf %1609, %1610 : vector<8x32xf32>
    %1612 = vector.extract_strided_slice %1557 {offsets = [0, 64], sizes = [8, 32], strides = [1, 1]} : vector<8x96xf32> to vector<8x32xf32>
    %1613 = vector.extract_strided_slice %1569 {offsets = [0, 64], sizes = [8, 32], strides = [1, 1]} : vector<8x96xf32> to vector<8x32xf32>
    %1614 = arith.mulf %1603, %1613 : vector<8x32xf32>
    %1615 = arith.addf %1612, %1614 : vector<8x32xf32>
    %1616 = math.tanh %1615 : vector<8x32xf32>
    %cst_544 = arith.constant 1.000000e+00 : f32
    %1617 = vector.broadcast %cst_544 : f32 to vector<8x32xf32>
    %1618 = arith.subf %1617, %1611 : vector<8x32xf32>
    %1619 = arith.mulf %1618, %1616 : vector<8x32xf32>
    %1620 = arith.mulf %1611, %1555 : vector<8x32xf32>
    %1621 = arith.addf %1619, %1620 : vector<8x32xf32>
    %c56_545 = arith.constant 56 : index
    %c0_546 = arith.constant 0 : index
    %1622 = vector.load %arg18[%c56_545, %c0_546] : memref<128x192xf32, #tpu.memory_space<vmem>>, vector<8x96xf32>
    %c64_547 = arith.constant 64 : index
    %c96_548 = arith.constant 96 : index
    %1623 = vector.load %arg18[%c64_547, %c96_548] : memref<128x192xf32, #tpu.memory_space<vmem>>, vector<8x96xf32>
    %1624 = arith.truncf %1595 : vector<8x32xf32> to vector<8x32xbf16>
    %c0_549 = arith.constant 0 : index
    %c0_550 = arith.constant 0 : index
    %1625 = vector.load %arg11[%c0_549, %c0_550] : memref<32x96xbf16, #tpu.memory_space<vmem>>, vector<32x96xbf16>
    %cst_551 = arith.constant dense<0.000000e+00> : vector<8x96xf32>
    %1626 = tpu.matmul %1624, %1625, %cst_551 {dimension_numbers = #tpu.dot_dimension_numbers<[1], [0], [0], [1], [0, 0, 1, 1], [], []>} : vector<8x32xbf16>, vector<32x96xbf16>, vector<8x96xf32> -> vector<8x96xf32>
    %c0_552 = arith.constant 0 : index
    %c0_553 = arith.constant 0 : index
    %1627 = vector.load %arg12[%c0_552, %c0_553] : memref<1x96xf32, #tpu.memory_space<vmem>>, vector<1x96xf32>
    %1628 = vector.broadcast %1627 : vector<1x96xf32> to vector<8x96xf32>
    %1629 = arith.addf %1626, %1628 : vector<8x96xf32>
    %1630 = arith.truncf %1621 : vector<8x32xf32> to vector<8x32xbf16>
    %c0_554 = arith.constant 0 : index
    %c0_555 = arith.constant 0 : index
    %1631 = vector.load %arg13[%c0_554, %c0_555] : memref<32x96xbf16, #tpu.memory_space<vmem>>, vector<32x96xbf16>
    %cst_556 = arith.constant dense<0.000000e+00> : vector<8x96xf32>
    %1632 = tpu.matmul %1630, %1631, %cst_556 {dimension_numbers = #tpu.dot_dimension_numbers<[1], [0], [0], [1], [0, 0, 1, 1], [], []>} : vector<8x32xbf16>, vector<32x96xbf16>, vector<8x96xf32> -> vector<8x96xf32>
    %c0_557 = arith.constant 0 : index
    %c0_558 = arith.constant 0 : index
    %1633 = vector.load %arg14[%c0_557, %c0_558] : memref<1x96xf32, #tpu.memory_space<vmem>>, vector<1x96xf32>
    %1634 = vector.broadcast %1633 : vector<1x96xf32> to vector<8x96xf32>
    %1635 = arith.addf %1632, %1634 : vector<8x96xf32>
    %1636 = vector.extract_strided_slice %1622 {offsets = [0, 0], sizes = [8, 32], strides = [1, 1]} : vector<8x96xf32> to vector<8x32xf32>
    %1637 = vector.extract_strided_slice %1629 {offsets = [0, 0], sizes = [8, 32], strides = [1, 1]} : vector<8x96xf32> to vector<8x32xf32>
    %1638 = arith.addf %1636, %1637 : vector<8x32xf32>
    %1639 = arith.negf %1638 : vector<8x32xf32>
    %1640 = math.exp %1639 : vector<8x32xf32>
    %cst_559 = arith.constant 1.000000e+00 : f32
    %1641 = vector.broadcast %cst_559 : f32 to vector<8x32xf32>
    %1642 = arith.addf %1641, %1640 : vector<8x32xf32>
    %1643 = arith.divf %1641, %1642 : vector<8x32xf32>
    %1644 = vector.extract_strided_slice %1622 {offsets = [0, 32], sizes = [8, 32], strides = [1, 1]} : vector<8x96xf32> to vector<8x32xf32>
    %1645 = vector.extract_strided_slice %1629 {offsets = [0, 32], sizes = [8, 32], strides = [1, 1]} : vector<8x96xf32> to vector<8x32xf32>
    %1646 = arith.addf %1644, %1645 : vector<8x32xf32>
    %1647 = arith.negf %1646 : vector<8x32xf32>
    %1648 = math.exp %1647 : vector<8x32xf32>
    %cst_560 = arith.constant 1.000000e+00 : f32
    %1649 = vector.broadcast %cst_560 : f32 to vector<8x32xf32>
    %1650 = arith.addf %1649, %1648 : vector<8x32xf32>
    %1651 = arith.divf %1649, %1650 : vector<8x32xf32>
    %1652 = vector.extract_strided_slice %1622 {offsets = [0, 64], sizes = [8, 32], strides = [1, 1]} : vector<8x96xf32> to vector<8x32xf32>
    %1653 = vector.extract_strided_slice %1629 {offsets = [0, 64], sizes = [8, 32], strides = [1, 1]} : vector<8x96xf32> to vector<8x32xf32>
    %1654 = arith.mulf %1643, %1653 : vector<8x32xf32>
    %1655 = arith.addf %1652, %1654 : vector<8x32xf32>
    %1656 = math.tanh %1655 : vector<8x32xf32>
    %cst_561 = arith.constant 1.000000e+00 : f32
    %1657 = vector.broadcast %cst_561 : f32 to vector<8x32xf32>
    %1658 = arith.subf %1657, %1651 : vector<8x32xf32>
    %1659 = arith.mulf %1658, %1656 : vector<8x32xf32>
    %1660 = arith.mulf %1651, %1595 : vector<8x32xf32>
    %1661 = arith.addf %1659, %1660 : vector<8x32xf32>
    %1662 = vector.extract_strided_slice %1623 {offsets = [0, 0], sizes = [8, 32], strides = [1, 1]} : vector<8x96xf32> to vector<8x32xf32>
    %1663 = vector.extract_strided_slice %1635 {offsets = [0, 0], sizes = [8, 32], strides = [1, 1]} : vector<8x96xf32> to vector<8x32xf32>
    %1664 = arith.addf %1662, %1663 : vector<8x32xf32>
    %1665 = arith.negf %1664 : vector<8x32xf32>
    %1666 = math.exp %1665 : vector<8x32xf32>
    %cst_562 = arith.constant 1.000000e+00 : f32
    %1667 = vector.broadcast %cst_562 : f32 to vector<8x32xf32>
    %1668 = arith.addf %1667, %1666 : vector<8x32xf32>
    %1669 = arith.divf %1667, %1668 : vector<8x32xf32>
    %1670 = vector.extract_strided_slice %1623 {offsets = [0, 32], sizes = [8, 32], strides = [1, 1]} : vector<8x96xf32> to vector<8x32xf32>
    %1671 = vector.extract_strided_slice %1635 {offsets = [0, 32], sizes = [8, 32], strides = [1, 1]} : vector<8x96xf32> to vector<8x32xf32>
    %1672 = arith.addf %1670, %1671 : vector<8x32xf32>
    %1673 = arith.negf %1672 : vector<8x32xf32>
    %1674 = math.exp %1673 : vector<8x32xf32>
    %cst_563 = arith.constant 1.000000e+00 : f32
    %1675 = vector.broadcast %cst_563 : f32 to vector<8x32xf32>
    %1676 = arith.addf %1675, %1674 : vector<8x32xf32>
    %1677 = arith.divf %1675, %1676 : vector<8x32xf32>
    %1678 = vector.extract_strided_slice %1623 {offsets = [0, 64], sizes = [8, 32], strides = [1, 1]} : vector<8x96xf32> to vector<8x32xf32>
    %1679 = vector.extract_strided_slice %1635 {offsets = [0, 64], sizes = [8, 32], strides = [1, 1]} : vector<8x96xf32> to vector<8x32xf32>
    %1680 = arith.mulf %1669, %1679 : vector<8x32xf32>
    %1681 = arith.addf %1678, %1680 : vector<8x32xf32>
    %1682 = math.tanh %1681 : vector<8x32xf32>
    %cst_564 = arith.constant 1.000000e+00 : f32
    %1683 = vector.broadcast %cst_564 : f32 to vector<8x32xf32>
    %1684 = arith.subf %1683, %1677 : vector<8x32xf32>
    %1685 = arith.mulf %1684, %1682 : vector<8x32xf32>
    %1686 = arith.mulf %1677, %1621 : vector<8x32xf32>
    %1687 = arith.addf %1685, %1686 : vector<8x32xf32>
    %c64_565 = arith.constant 64 : index
    %c0_566 = arith.constant 0 : index
    %1688 = vector.load %arg18[%c64_565, %c0_566] : memref<128x192xf32, #tpu.memory_space<vmem>>, vector<8x96xf32>
    %c56_567 = arith.constant 56 : index
    %c96_568 = arith.constant 96 : index
    %1689 = vector.load %arg18[%c56_567, %c96_568] : memref<128x192xf32, #tpu.memory_space<vmem>>, vector<8x96xf32>
    %1690 = arith.truncf %1661 : vector<8x32xf32> to vector<8x32xbf16>
    %c0_569 = arith.constant 0 : index
    %c0_570 = arith.constant 0 : index
    %1691 = vector.load %arg11[%c0_569, %c0_570] : memref<32x96xbf16, #tpu.memory_space<vmem>>, vector<32x96xbf16>
    %cst_571 = arith.constant dense<0.000000e+00> : vector<8x96xf32>
    %1692 = tpu.matmul %1690, %1691, %cst_571 {dimension_numbers = #tpu.dot_dimension_numbers<[1], [0], [0], [1], [0, 0, 1, 1], [], []>} : vector<8x32xbf16>, vector<32x96xbf16>, vector<8x96xf32> -> vector<8x96xf32>
    %c0_572 = arith.constant 0 : index
    %c0_573 = arith.constant 0 : index
    %1693 = vector.load %arg12[%c0_572, %c0_573] : memref<1x96xf32, #tpu.memory_space<vmem>>, vector<1x96xf32>
    %1694 = vector.broadcast %1693 : vector<1x96xf32> to vector<8x96xf32>
    %1695 = arith.addf %1692, %1694 : vector<8x96xf32>
    %1696 = arith.truncf %1687 : vector<8x32xf32> to vector<8x32xbf16>
    %c0_574 = arith.constant 0 : index
    %c0_575 = arith.constant 0 : index
    %1697 = vector.load %arg13[%c0_574, %c0_575] : memref<32x96xbf16, #tpu.memory_space<vmem>>, vector<32x96xbf16>
    %cst_576 = arith.constant dense<0.000000e+00> : vector<8x96xf32>
    %1698 = tpu.matmul %1696, %1697, %cst_576 {dimension_numbers = #tpu.dot_dimension_numbers<[1], [0], [0], [1], [0, 0, 1, 1], [], []>} : vector<8x32xbf16>, vector<32x96xbf16>, vector<8x96xf32> -> vector<8x96xf32>
    %c0_577 = arith.constant 0 : index
    %c0_578 = arith.constant 0 : index
    %1699 = vector.load %arg14[%c0_577, %c0_578] : memref<1x96xf32, #tpu.memory_space<vmem>>, vector<1x96xf32>
    %1700 = vector.broadcast %1699 : vector<1x96xf32> to vector<8x96xf32>
    %1701 = arith.addf %1698, %1700 : vector<8x96xf32>
    %1702 = vector.extract_strided_slice %1688 {offsets = [0, 0], sizes = [8, 32], strides = [1, 1]} : vector<8x96xf32> to vector<8x32xf32>
    %1703 = vector.extract_strided_slice %1695 {offsets = [0, 0], sizes = [8, 32], strides = [1, 1]} : vector<8x96xf32> to vector<8x32xf32>
    %1704 = arith.addf %1702, %1703 : vector<8x32xf32>
    %1705 = arith.negf %1704 : vector<8x32xf32>
    %1706 = math.exp %1705 : vector<8x32xf32>
    %cst_579 = arith.constant 1.000000e+00 : f32
    %1707 = vector.broadcast %cst_579 : f32 to vector<8x32xf32>
    %1708 = arith.addf %1707, %1706 : vector<8x32xf32>
    %1709 = arith.divf %1707, %1708 : vector<8x32xf32>
    %1710 = vector.extract_strided_slice %1688 {offsets = [0, 32], sizes = [8, 32], strides = [1, 1]} : vector<8x96xf32> to vector<8x32xf32>
    %1711 = vector.extract_strided_slice %1695 {offsets = [0, 32], sizes = [8, 32], strides = [1, 1]} : vector<8x96xf32> to vector<8x32xf32>
    %1712 = arith.addf %1710, %1711 : vector<8x32xf32>
    %1713 = arith.negf %1712 : vector<8x32xf32>
    %1714 = math.exp %1713 : vector<8x32xf32>
    %cst_580 = arith.constant 1.000000e+00 : f32
    %1715 = vector.broadcast %cst_580 : f32 to vector<8x32xf32>
    %1716 = arith.addf %1715, %1714 : vector<8x32xf32>
    %1717 = arith.divf %1715, %1716 : vector<8x32xf32>
    %1718 = vector.extract_strided_slice %1688 {offsets = [0, 64], sizes = [8, 32], strides = [1, 1]} : vector<8x96xf32> to vector<8x32xf32>
    %1719 = vector.extract_strided_slice %1695 {offsets = [0, 64], sizes = [8, 32], strides = [1, 1]} : vector<8x96xf32> to vector<8x32xf32>
    %1720 = arith.mulf %1709, %1719 : vector<8x32xf32>
    %1721 = arith.addf %1718, %1720 : vector<8x32xf32>
    %1722 = math.tanh %1721 : vector<8x32xf32>
    %cst_581 = arith.constant 1.000000e+00 : f32
    %1723 = vector.broadcast %cst_581 : f32 to vector<8x32xf32>
    %1724 = arith.subf %1723, %1717 : vector<8x32xf32>
    %1725 = arith.mulf %1724, %1722 : vector<8x32xf32>
    %1726 = arith.mulf %1717, %1661 : vector<8x32xf32>
    %1727 = arith.addf %1725, %1726 : vector<8x32xf32>
    %1728 = vector.extract_strided_slice %1689 {offsets = [0, 0], sizes = [8, 32], strides = [1, 1]} : vector<8x96xf32> to vector<8x32xf32>
    %1729 = vector.extract_strided_slice %1701 {offsets = [0, 0], sizes = [8, 32], strides = [1, 1]} : vector<8x96xf32> to vector<8x32xf32>
    %1730 = arith.addf %1728, %1729 : vector<8x32xf32>
    %1731 = arith.negf %1730 : vector<8x32xf32>
    %1732 = math.exp %1731 : vector<8x32xf32>
    %cst_582 = arith.constant 1.000000e+00 : f32
    %1733 = vector.broadcast %cst_582 : f32 to vector<8x32xf32>
    %1734 = arith.addf %1733, %1732 : vector<8x32xf32>
    %1735 = arith.divf %1733, %1734 : vector<8x32xf32>
    %1736 = vector.extract_strided_slice %1689 {offsets = [0, 32], sizes = [8, 32], strides = [1, 1]} : vector<8x96xf32> to vector<8x32xf32>
    %1737 = vector.extract_strided_slice %1701 {offsets = [0, 32], sizes = [8, 32], strides = [1, 1]} : vector<8x96xf32> to vector<8x32xf32>
    %1738 = arith.addf %1736, %1737 : vector<8x32xf32>
    %1739 = arith.negf %1738 : vector<8x32xf32>
    %1740 = math.exp %1739 : vector<8x32xf32>
    %cst_583 = arith.constant 1.000000e+00 : f32
    %1741 = vector.broadcast %cst_583 : f32 to vector<8x32xf32>
    %1742 = arith.addf %1741, %1740 : vector<8x32xf32>
    %1743 = arith.divf %1741, %1742 : vector<8x32xf32>
    %1744 = vector.extract_strided_slice %1689 {offsets = [0, 64], sizes = [8, 32], strides = [1, 1]} : vector<8x96xf32> to vector<8x32xf32>
    %1745 = vector.extract_strided_slice %1701 {offsets = [0, 64], sizes = [8, 32], strides = [1, 1]} : vector<8x96xf32> to vector<8x32xf32>
    %1746 = arith.mulf %1735, %1745 : vector<8x32xf32>
    %1747 = arith.addf %1744, %1746 : vector<8x32xf32>
    %1748 = math.tanh %1747 : vector<8x32xf32>
    %cst_584 = arith.constant 1.000000e+00 : f32
    %1749 = vector.broadcast %cst_584 : f32 to vector<8x32xf32>
    %1750 = arith.subf %1749, %1743 : vector<8x32xf32>
    %1751 = arith.mulf %1750, %1748 : vector<8x32xf32>
    %1752 = arith.mulf %1743, %1687 : vector<8x32xf32>
    %1753 = arith.addf %1751, %1752 : vector<8x32xf32>
    %c72_585 = arith.constant 72 : index
    %c0_586 = arith.constant 0 : index
    %1754 = vector.load %arg18[%c72_585, %c0_586] : memref<128x192xf32, #tpu.memory_space<vmem>>, vector<8x96xf32>
    %c48_587 = arith.constant 48 : index
    %c96_588 = arith.constant 96 : index
    %1755 = vector.load %arg18[%c48_587, %c96_588] : memref<128x192xf32, #tpu.memory_space<vmem>>, vector<8x96xf32>
    %1756 = arith.truncf %1727 : vector<8x32xf32> to vector<8x32xbf16>
    %c0_589 = arith.constant 0 : index
    %c0_590 = arith.constant 0 : index
    %1757 = vector.load %arg11[%c0_589, %c0_590] : memref<32x96xbf16, #tpu.memory_space<vmem>>, vector<32x96xbf16>
    %cst_591 = arith.constant dense<0.000000e+00> : vector<8x96xf32>
    %1758 = tpu.matmul %1756, %1757, %cst_591 {dimension_numbers = #tpu.dot_dimension_numbers<[1], [0], [0], [1], [0, 0, 1, 1], [], []>} : vector<8x32xbf16>, vector<32x96xbf16>, vector<8x96xf32> -> vector<8x96xf32>
    %c0_592 = arith.constant 0 : index
    %c0_593 = arith.constant 0 : index
    %1759 = vector.load %arg12[%c0_592, %c0_593] : memref<1x96xf32, #tpu.memory_space<vmem>>, vector<1x96xf32>
    %1760 = vector.broadcast %1759 : vector<1x96xf32> to vector<8x96xf32>
    %1761 = arith.addf %1758, %1760 : vector<8x96xf32>
    %1762 = arith.truncf %1753 : vector<8x32xf32> to vector<8x32xbf16>
    %c0_594 = arith.constant 0 : index
    %c0_595 = arith.constant 0 : index
    %1763 = vector.load %arg13[%c0_594, %c0_595] : memref<32x96xbf16, #tpu.memory_space<vmem>>, vector<32x96xbf16>
    %cst_596 = arith.constant dense<0.000000e+00> : vector<8x96xf32>
    %1764 = tpu.matmul %1762, %1763, %cst_596 {dimension_numbers = #tpu.dot_dimension_numbers<[1], [0], [0], [1], [0, 0, 1, 1], [], []>} : vector<8x32xbf16>, vector<32x96xbf16>, vector<8x96xf32> -> vector<8x96xf32>
    %c0_597 = arith.constant 0 : index
    %c0_598 = arith.constant 0 : index
    %1765 = vector.load %arg14[%c0_597, %c0_598] : memref<1x96xf32, #tpu.memory_space<vmem>>, vector<1x96xf32>
    %1766 = vector.broadcast %1765 : vector<1x96xf32> to vector<8x96xf32>
    %1767 = arith.addf %1764, %1766 : vector<8x96xf32>
    %1768 = vector.extract_strided_slice %1754 {offsets = [0, 0], sizes = [8, 32], strides = [1, 1]} : vector<8x96xf32> to vector<8x32xf32>
    %1769 = vector.extract_strided_slice %1761 {offsets = [0, 0], sizes = [8, 32], strides = [1, 1]} : vector<8x96xf32> to vector<8x32xf32>
    %1770 = arith.addf %1768, %1769 : vector<8x32xf32>
    %1771 = arith.negf %1770 : vector<8x32xf32>
    %1772 = math.exp %1771 : vector<8x32xf32>
    %cst_599 = arith.constant 1.000000e+00 : f32
    %1773 = vector.broadcast %cst_599 : f32 to vector<8x32xf32>
    %1774 = arith.addf %1773, %1772 : vector<8x32xf32>
    %1775 = arith.divf %1773, %1774 : vector<8x32xf32>
    %1776 = vector.extract_strided_slice %1754 {offsets = [0, 32], sizes = [8, 32], strides = [1, 1]} : vector<8x96xf32> to vector<8x32xf32>
    %1777 = vector.extract_strided_slice %1761 {offsets = [0, 32], sizes = [8, 32], strides = [1, 1]} : vector<8x96xf32> to vector<8x32xf32>
    %1778 = arith.addf %1776, %1777 : vector<8x32xf32>
    %1779 = arith.negf %1778 : vector<8x32xf32>
    %1780 = math.exp %1779 : vector<8x32xf32>
    %cst_600 = arith.constant 1.000000e+00 : f32
    %1781 = vector.broadcast %cst_600 : f32 to vector<8x32xf32>
    %1782 = arith.addf %1781, %1780 : vector<8x32xf32>
    %1783 = arith.divf %1781, %1782 : vector<8x32xf32>
    %1784 = vector.extract_strided_slice %1754 {offsets = [0, 64], sizes = [8, 32], strides = [1, 1]} : vector<8x96xf32> to vector<8x32xf32>
    %1785 = vector.extract_strided_slice %1761 {offsets = [0, 64], sizes = [8, 32], strides = [1, 1]} : vector<8x96xf32> to vector<8x32xf32>
    %1786 = arith.mulf %1775, %1785 : vector<8x32xf32>
    %1787 = arith.addf %1784, %1786 : vector<8x32xf32>
    %1788 = math.tanh %1787 : vector<8x32xf32>
    %cst_601 = arith.constant 1.000000e+00 : f32
    %1789 = vector.broadcast %cst_601 : f32 to vector<8x32xf32>
    %1790 = arith.subf %1789, %1783 : vector<8x32xf32>
    %1791 = arith.mulf %1790, %1788 : vector<8x32xf32>
    %1792 = arith.mulf %1783, %1727 : vector<8x32xf32>
    %1793 = arith.addf %1791, %1792 : vector<8x32xf32>
    %1794 = vector.extract_strided_slice %1755 {offsets = [0, 0], sizes = [8, 32], strides = [1, 1]} : vector<8x96xf32> to vector<8x32xf32>
    %1795 = vector.extract_strided_slice %1767 {offsets = [0, 0], sizes = [8, 32], strides = [1, 1]} : vector<8x96xf32> to vector<8x32xf32>
    %1796 = arith.addf %1794, %1795 : vector<8x32xf32>
    %1797 = arith.negf %1796 : vector<8x32xf32>
    %1798 = math.exp %1797 : vector<8x32xf32>
    %cst_602 = arith.constant 1.000000e+00 : f32
    %1799 = vector.broadcast %cst_602 : f32 to vector<8x32xf32>
    %1800 = arith.addf %1799, %1798 : vector<8x32xf32>
    %1801 = arith.divf %1799, %1800 : vector<8x32xf32>
    %1802 = vector.extract_strided_slice %1755 {offsets = [0, 32], sizes = [8, 32], strides = [1, 1]} : vector<8x96xf32> to vector<8x32xf32>
    %1803 = vector.extract_strided_slice %1767 {offsets = [0, 32], sizes = [8, 32], strides = [1, 1]} : vector<8x96xf32> to vector<8x32xf32>
    %1804 = arith.addf %1802, %1803 : vector<8x32xf32>
    %1805 = arith.negf %1804 : vector<8x32xf32>
    %1806 = math.exp %1805 : vector<8x32xf32>
    %cst_603 = arith.constant 1.000000e+00 : f32
    %1807 = vector.broadcast %cst_603 : f32 to vector<8x32xf32>
    %1808 = arith.addf %1807, %1806 : vector<8x32xf32>
    %1809 = arith.divf %1807, %1808 : vector<8x32xf32>
    %1810 = vector.extract_strided_slice %1755 {offsets = [0, 64], sizes = [8, 32], strides = [1, 1]} : vector<8x96xf32> to vector<8x32xf32>
    %1811 = vector.extract_strided_slice %1767 {offsets = [0, 64], sizes = [8, 32], strides = [1, 1]} : vector<8x96xf32> to vector<8x32xf32>
    %1812 = arith.mulf %1801, %1811 : vector<8x32xf32>
    %1813 = arith.addf %1810, %1812 : vector<8x32xf32>
    %1814 = math.tanh %1813 : vector<8x32xf32>
    %cst_604 = arith.constant 1.000000e+00 : f32
    %1815 = vector.broadcast %cst_604 : f32 to vector<8x32xf32>
    %1816 = arith.subf %1815, %1809 : vector<8x32xf32>
    %1817 = arith.mulf %1816, %1814 : vector<8x32xf32>
    %1818 = arith.mulf %1809, %1753 : vector<8x32xf32>
    %1819 = arith.addf %1817, %1818 : vector<8x32xf32>
    %c80_605 = arith.constant 80 : index
    %c0_606 = arith.constant 0 : index
    %1820 = vector.load %arg18[%c80_605, %c0_606] : memref<128x192xf32, #tpu.memory_space<vmem>>, vector<8x96xf32>
    %c40_607 = arith.constant 40 : index
    %c96_608 = arith.constant 96 : index
    %1821 = vector.load %arg18[%c40_607, %c96_608] : memref<128x192xf32, #tpu.memory_space<vmem>>, vector<8x96xf32>
    %1822 = arith.truncf %1793 : vector<8x32xf32> to vector<8x32xbf16>
    %c0_609 = arith.constant 0 : index
    %c0_610 = arith.constant 0 : index
    %1823 = vector.load %arg11[%c0_609, %c0_610] : memref<32x96xbf16, #tpu.memory_space<vmem>>, vector<32x96xbf16>
    %cst_611 = arith.constant dense<0.000000e+00> : vector<8x96xf32>
    %1824 = tpu.matmul %1822, %1823, %cst_611 {dimension_numbers = #tpu.dot_dimension_numbers<[1], [0], [0], [1], [0, 0, 1, 1], [], []>} : vector<8x32xbf16>, vector<32x96xbf16>, vector<8x96xf32> -> vector<8x96xf32>
    %c0_612 = arith.constant 0 : index
    %c0_613 = arith.constant 0 : index
    %1825 = vector.load %arg12[%c0_612, %c0_613] : memref<1x96xf32, #tpu.memory_space<vmem>>, vector<1x96xf32>
    %1826 = vector.broadcast %1825 : vector<1x96xf32> to vector<8x96xf32>
    %1827 = arith.addf %1824, %1826 : vector<8x96xf32>
    %1828 = arith.truncf %1819 : vector<8x32xf32> to vector<8x32xbf16>
    %c0_614 = arith.constant 0 : index
    %c0_615 = arith.constant 0 : index
    %1829 = vector.load %arg13[%c0_614, %c0_615] : memref<32x96xbf16, #tpu.memory_space<vmem>>, vector<32x96xbf16>
    %cst_616 = arith.constant dense<0.000000e+00> : vector<8x96xf32>
    %1830 = tpu.matmul %1828, %1829, %cst_616 {dimension_numbers = #tpu.dot_dimension_numbers<[1], [0], [0], [1], [0, 0, 1, 1], [], []>} : vector<8x32xbf16>, vector<32x96xbf16>, vector<8x96xf32> -> vector<8x96xf32>
    %c0_617 = arith.constant 0 : index
    %c0_618 = arith.constant 0 : index
    %1831 = vector.load %arg14[%c0_617, %c0_618] : memref<1x96xf32, #tpu.memory_space<vmem>>, vector<1x96xf32>
    %1832 = vector.broadcast %1831 : vector<1x96xf32> to vector<8x96xf32>
    %1833 = arith.addf %1830, %1832 : vector<8x96xf32>
    %1834 = vector.extract_strided_slice %1820 {offsets = [0, 0], sizes = [8, 32], strides = [1, 1]} : vector<8x96xf32> to vector<8x32xf32>
    %1835 = vector.extract_strided_slice %1827 {offsets = [0, 0], sizes = [8, 32], strides = [1, 1]} : vector<8x96xf32> to vector<8x32xf32>
    %1836 = arith.addf %1834, %1835 : vector<8x32xf32>
    %1837 = arith.negf %1836 : vector<8x32xf32>
    %1838 = math.exp %1837 : vector<8x32xf32>
    %cst_619 = arith.constant 1.000000e+00 : f32
    %1839 = vector.broadcast %cst_619 : f32 to vector<8x32xf32>
    %1840 = arith.addf %1839, %1838 : vector<8x32xf32>
    %1841 = arith.divf %1839, %1840 : vector<8x32xf32>
    %1842 = vector.extract_strided_slice %1820 {offsets = [0, 32], sizes = [8, 32], strides = [1, 1]} : vector<8x96xf32> to vector<8x32xf32>
    %1843 = vector.extract_strided_slice %1827 {offsets = [0, 32], sizes = [8, 32], strides = [1, 1]} : vector<8x96xf32> to vector<8x32xf32>
    %1844 = arith.addf %1842, %1843 : vector<8x32xf32>
    %1845 = arith.negf %1844 : vector<8x32xf32>
    %1846 = math.exp %1845 : vector<8x32xf32>
    %cst_620 = arith.constant 1.000000e+00 : f32
    %1847 = vector.broadcast %cst_620 : f32 to vector<8x32xf32>
    %1848 = arith.addf %1847, %1846 : vector<8x32xf32>
    %1849 = arith.divf %1847, %1848 : vector<8x32xf32>
    %1850 = vector.extract_strided_slice %1820 {offsets = [0, 64], sizes = [8, 32], strides = [1, 1]} : vector<8x96xf32> to vector<8x32xf32>
    %1851 = vector.extract_strided_slice %1827 {offsets = [0, 64], sizes = [8, 32], strides = [1, 1]} : vector<8x96xf32> to vector<8x32xf32>
    %1852 = arith.mulf %1841, %1851 : vector<8x32xf32>
    %1853 = arith.addf %1850, %1852 : vector<8x32xf32>
    %1854 = math.tanh %1853 : vector<8x32xf32>
    %cst_621 = arith.constant 1.000000e+00 : f32
    %1855 = vector.broadcast %cst_621 : f32 to vector<8x32xf32>
    %1856 = arith.subf %1855, %1849 : vector<8x32xf32>
    %1857 = arith.mulf %1856, %1854 : vector<8x32xf32>
    %1858 = arith.mulf %1849, %1793 : vector<8x32xf32>
    %1859 = arith.addf %1857, %1858 : vector<8x32xf32>
    %1860 = vector.extract_strided_slice %1821 {offsets = [0, 0], sizes = [8, 32], strides = [1, 1]} : vector<8x96xf32> to vector<8x32xf32>
    %1861 = vector.extract_strided_slice %1833 {offsets = [0, 0], sizes = [8, 32], strides = [1, 1]} : vector<8x96xf32> to vector<8x32xf32>
    %1862 = arith.addf %1860, %1861 : vector<8x32xf32>
    %1863 = arith.negf %1862 : vector<8x32xf32>
    %1864 = math.exp %1863 : vector<8x32xf32>
    %cst_622 = arith.constant 1.000000e+00 : f32
    %1865 = vector.broadcast %cst_622 : f32 to vector<8x32xf32>
    %1866 = arith.addf %1865, %1864 : vector<8x32xf32>
    %1867 = arith.divf %1865, %1866 : vector<8x32xf32>
    %1868 = vector.extract_strided_slice %1821 {offsets = [0, 32], sizes = [8, 32], strides = [1, 1]} : vector<8x96xf32> to vector<8x32xf32>
    %1869 = vector.extract_strided_slice %1833 {offsets = [0, 32], sizes = [8, 32], strides = [1, 1]} : vector<8x96xf32> to vector<8x32xf32>
    %1870 = arith.addf %1868, %1869 : vector<8x32xf32>
    %1871 = arith.negf %1870 : vector<8x32xf32>
    %1872 = math.exp %1871 : vector<8x32xf32>
    %cst_623 = arith.constant 1.000000e+00 : f32
    %1873 = vector.broadcast %cst_623 : f32 to vector<8x32xf32>
    %1874 = arith.addf %1873, %1872 : vector<8x32xf32>
    %1875 = arith.divf %1873, %1874 : vector<8x32xf32>
    %1876 = vector.extract_strided_slice %1821 {offsets = [0, 64], sizes = [8, 32], strides = [1, 1]} : vector<8x96xf32> to vector<8x32xf32>
    %1877 = vector.extract_strided_slice %1833 {offsets = [0, 64], sizes = [8, 32], strides = [1, 1]} : vector<8x96xf32> to vector<8x32xf32>
    %1878 = arith.mulf %1867, %1877 : vector<8x32xf32>
    %1879 = arith.addf %1876, %1878 : vector<8x32xf32>
    %1880 = math.tanh %1879 : vector<8x32xf32>
    %cst_624 = arith.constant 1.000000e+00 : f32
    %1881 = vector.broadcast %cst_624 : f32 to vector<8x32xf32>
    %1882 = arith.subf %1881, %1875 : vector<8x32xf32>
    %1883 = arith.mulf %1882, %1880 : vector<8x32xf32>
    %1884 = arith.mulf %1875, %1819 : vector<8x32xf32>
    %1885 = arith.addf %1883, %1884 : vector<8x32xf32>
    %c88_625 = arith.constant 88 : index
    %c0_626 = arith.constant 0 : index
    %1886 = vector.load %arg18[%c88_625, %c0_626] : memref<128x192xf32, #tpu.memory_space<vmem>>, vector<8x96xf32>
    %c32_627 = arith.constant 32 : index
    %c96_628 = arith.constant 96 : index
    %1887 = vector.load %arg18[%c32_627, %c96_628] : memref<128x192xf32, #tpu.memory_space<vmem>>, vector<8x96xf32>
    %1888 = arith.truncf %1859 : vector<8x32xf32> to vector<8x32xbf16>
    %c0_629 = arith.constant 0 : index
    %c0_630 = arith.constant 0 : index
    %1889 = vector.load %arg11[%c0_629, %c0_630] : memref<32x96xbf16, #tpu.memory_space<vmem>>, vector<32x96xbf16>
    %cst_631 = arith.constant dense<0.000000e+00> : vector<8x96xf32>
    %1890 = tpu.matmul %1888, %1889, %cst_631 {dimension_numbers = #tpu.dot_dimension_numbers<[1], [0], [0], [1], [0, 0, 1, 1], [], []>} : vector<8x32xbf16>, vector<32x96xbf16>, vector<8x96xf32> -> vector<8x96xf32>
    %c0_632 = arith.constant 0 : index
    %c0_633 = arith.constant 0 : index
    %1891 = vector.load %arg12[%c0_632, %c0_633] : memref<1x96xf32, #tpu.memory_space<vmem>>, vector<1x96xf32>
    %1892 = vector.broadcast %1891 : vector<1x96xf32> to vector<8x96xf32>
    %1893 = arith.addf %1890, %1892 : vector<8x96xf32>
    %1894 = arith.truncf %1885 : vector<8x32xf32> to vector<8x32xbf16>
    %c0_634 = arith.constant 0 : index
    %c0_635 = arith.constant 0 : index
    %1895 = vector.load %arg13[%c0_634, %c0_635] : memref<32x96xbf16, #tpu.memory_space<vmem>>, vector<32x96xbf16>
    %cst_636 = arith.constant dense<0.000000e+00> : vector<8x96xf32>
    %1896 = tpu.matmul %1894, %1895, %cst_636 {dimension_numbers = #tpu.dot_dimension_numbers<[1], [0], [0], [1], [0, 0, 1, 1], [], []>} : vector<8x32xbf16>, vector<32x96xbf16>, vector<8x96xf32> -> vector<8x96xf32>
    %c0_637 = arith.constant 0 : index
    %c0_638 = arith.constant 0 : index
    %1897 = vector.load %arg14[%c0_637, %c0_638] : memref<1x96xf32, #tpu.memory_space<vmem>>, vector<1x96xf32>
    %1898 = vector.broadcast %1897 : vector<1x96xf32> to vector<8x96xf32>
    %1899 = arith.addf %1896, %1898 : vector<8x96xf32>
    %1900 = vector.extract_strided_slice %1886 {offsets = [0, 0], sizes = [8, 32], strides = [1, 1]} : vector<8x96xf32> to vector<8x32xf32>
    %1901 = vector.extract_strided_slice %1893 {offsets = [0, 0], sizes = [8, 32], strides = [1, 1]} : vector<8x96xf32> to vector<8x32xf32>
    %1902 = arith.addf %1900, %1901 : vector<8x32xf32>
    %1903 = arith.negf %1902 : vector<8x32xf32>
    %1904 = math.exp %1903 : vector<8x32xf32>
    %cst_639 = arith.constant 1.000000e+00 : f32
    %1905 = vector.broadcast %cst_639 : f32 to vector<8x32xf32>
    %1906 = arith.addf %1905, %1904 : vector<8x32xf32>
    %1907 = arith.divf %1905, %1906 : vector<8x32xf32>
    %1908 = vector.extract_strided_slice %1886 {offsets = [0, 32], sizes = [8, 32], strides = [1, 1]} : vector<8x96xf32> to vector<8x32xf32>
    %1909 = vector.extract_strided_slice %1893 {offsets = [0, 32], sizes = [8, 32], strides = [1, 1]} : vector<8x96xf32> to vector<8x32xf32>
    %1910 = arith.addf %1908, %1909 : vector<8x32xf32>
    %1911 = arith.negf %1910 : vector<8x32xf32>
    %1912 = math.exp %1911 : vector<8x32xf32>
    %cst_640 = arith.constant 1.000000e+00 : f32
    %1913 = vector.broadcast %cst_640 : f32 to vector<8x32xf32>
    %1914 = arith.addf %1913, %1912 : vector<8x32xf32>
    %1915 = arith.divf %1913, %1914 : vector<8x32xf32>
    %1916 = vector.extract_strided_slice %1886 {offsets = [0, 64], sizes = [8, 32], strides = [1, 1]} : vector<8x96xf32> to vector<8x32xf32>
    %1917 = vector.extract_strided_slice %1893 {offsets = [0, 64], sizes = [8, 32], strides = [1, 1]} : vector<8x96xf32> to vector<8x32xf32>
    %1918 = arith.mulf %1907, %1917 : vector<8x32xf32>
    %1919 = arith.addf %1916, %1918 : vector<8x32xf32>
    %1920 = math.tanh %1919 : vector<8x32xf32>
    %cst_641 = arith.constant 1.000000e+00 : f32
    %1921 = vector.broadcast %cst_641 : f32 to vector<8x32xf32>
    %1922 = arith.subf %1921, %1915 : vector<8x32xf32>
    %1923 = arith.mulf %1922, %1920 : vector<8x32xf32>
    %1924 = arith.mulf %1915, %1859 : vector<8x32xf32>
    %1925 = arith.addf %1923, %1924 : vector<8x32xf32>
    %1926 = vector.extract_strided_slice %1887 {offsets = [0, 0], sizes = [8, 32], strides = [1, 1]} : vector<8x96xf32> to vector<8x32xf32>
    %1927 = vector.extract_strided_slice %1899 {offsets = [0, 0], sizes = [8, 32], strides = [1, 1]} : vector<8x96xf32> to vector<8x32xf32>
    %1928 = arith.addf %1926, %1927 : vector<8x32xf32>
    %1929 = arith.negf %1928 : vector<8x32xf32>
    %1930 = math.exp %1929 : vector<8x32xf32>
    %cst_642 = arith.constant 1.000000e+00 : f32
    %1931 = vector.broadcast %cst_642 : f32 to vector<8x32xf32>
    %1932 = arith.addf %1931, %1930 : vector<8x32xf32>
    %1933 = arith.divf %1931, %1932 : vector<8x32xf32>
    %1934 = vector.extract_strided_slice %1887 {offsets = [0, 32], sizes = [8, 32], strides = [1, 1]} : vector<8x96xf32> to vector<8x32xf32>
    %1935 = vector.extract_strided_slice %1899 {offsets = [0, 32], sizes = [8, 32], strides = [1, 1]} : vector<8x96xf32> to vector<8x32xf32>
    %1936 = arith.addf %1934, %1935 : vector<8x32xf32>
    %1937 = arith.negf %1936 : vector<8x32xf32>
    %1938 = math.exp %1937 : vector<8x32xf32>
    %cst_643 = arith.constant 1.000000e+00 : f32
    %1939 = vector.broadcast %cst_643 : f32 to vector<8x32xf32>
    %1940 = arith.addf %1939, %1938 : vector<8x32xf32>
    %1941 = arith.divf %1939, %1940 : vector<8x32xf32>
    %1942 = vector.extract_strided_slice %1887 {offsets = [0, 64], sizes = [8, 32], strides = [1, 1]} : vector<8x96xf32> to vector<8x32xf32>
    %1943 = vector.extract_strided_slice %1899 {offsets = [0, 64], sizes = [8, 32], strides = [1, 1]} : vector<8x96xf32> to vector<8x32xf32>
    %1944 = arith.mulf %1933, %1943 : vector<8x32xf32>
    %1945 = arith.addf %1942, %1944 : vector<8x32xf32>
    %1946 = math.tanh %1945 : vector<8x32xf32>
    %cst_644 = arith.constant 1.000000e+00 : f32
    %1947 = vector.broadcast %cst_644 : f32 to vector<8x32xf32>
    %1948 = arith.subf %1947, %1941 : vector<8x32xf32>
    %1949 = arith.mulf %1948, %1946 : vector<8x32xf32>
    %1950 = arith.mulf %1941, %1885 : vector<8x32xf32>
    %1951 = arith.addf %1949, %1950 : vector<8x32xf32>
    %c96_645 = arith.constant 96 : index
    %c0_646 = arith.constant 0 : index
    %1952 = vector.load %arg18[%c96_645, %c0_646] : memref<128x192xf32, #tpu.memory_space<vmem>>, vector<8x96xf32>
    %c24_647 = arith.constant 24 : index
    %c96_648 = arith.constant 96 : index
    %1953 = vector.load %arg18[%c24_647, %c96_648] : memref<128x192xf32, #tpu.memory_space<vmem>>, vector<8x96xf32>
    %1954 = arith.truncf %1925 : vector<8x32xf32> to vector<8x32xbf16>
    %c0_649 = arith.constant 0 : index
    %c0_650 = arith.constant 0 : index
    %1955 = vector.load %arg11[%c0_649, %c0_650] : memref<32x96xbf16, #tpu.memory_space<vmem>>, vector<32x96xbf16>
    %cst_651 = arith.constant dense<0.000000e+00> : vector<8x96xf32>
    %1956 = tpu.matmul %1954, %1955, %cst_651 {dimension_numbers = #tpu.dot_dimension_numbers<[1], [0], [0], [1], [0, 0, 1, 1], [], []>} : vector<8x32xbf16>, vector<32x96xbf16>, vector<8x96xf32> -> vector<8x96xf32>
    %c0_652 = arith.constant 0 : index
    %c0_653 = arith.constant 0 : index
    %1957 = vector.load %arg12[%c0_652, %c0_653] : memref<1x96xf32, #tpu.memory_space<vmem>>, vector<1x96xf32>
    %1958 = vector.broadcast %1957 : vector<1x96xf32> to vector<8x96xf32>
    %1959 = arith.addf %1956, %1958 : vector<8x96xf32>
    %1960 = arith.truncf %1951 : vector<8x32xf32> to vector<8x32xbf16>
    %c0_654 = arith.constant 0 : index
    %c0_655 = arith.constant 0 : index
    %1961 = vector.load %arg13[%c0_654, %c0_655] : memref<32x96xbf16, #tpu.memory_space<vmem>>, vector<32x96xbf16>
    %cst_656 = arith.constant dense<0.000000e+00> : vector<8x96xf32>
    %1962 = tpu.matmul %1960, %1961, %cst_656 {dimension_numbers = #tpu.dot_dimension_numbers<[1], [0], [0], [1], [0, 0, 1, 1], [], []>} : vector<8x32xbf16>, vector<32x96xbf16>, vector<8x96xf32> -> vector<8x96xf32>
    %c0_657 = arith.constant 0 : index
    %c0_658 = arith.constant 0 : index
    %1963 = vector.load %arg14[%c0_657, %c0_658] : memref<1x96xf32, #tpu.memory_space<vmem>>, vector<1x96xf32>
    %1964 = vector.broadcast %1963 : vector<1x96xf32> to vector<8x96xf32>
    %1965 = arith.addf %1962, %1964 : vector<8x96xf32>
    %1966 = vector.extract_strided_slice %1952 {offsets = [0, 0], sizes = [8, 32], strides = [1, 1]} : vector<8x96xf32> to vector<8x32xf32>
    %1967 = vector.extract_strided_slice %1959 {offsets = [0, 0], sizes = [8, 32], strides = [1, 1]} : vector<8x96xf32> to vector<8x32xf32>
    %1968 = arith.addf %1966, %1967 : vector<8x32xf32>
    %1969 = arith.negf %1968 : vector<8x32xf32>
    %1970 = math.exp %1969 : vector<8x32xf32>
    %cst_659 = arith.constant 1.000000e+00 : f32
    %1971 = vector.broadcast %cst_659 : f32 to vector<8x32xf32>
    %1972 = arith.addf %1971, %1970 : vector<8x32xf32>
    %1973 = arith.divf %1971, %1972 : vector<8x32xf32>
    %1974 = vector.extract_strided_slice %1952 {offsets = [0, 32], sizes = [8, 32], strides = [1, 1]} : vector<8x96xf32> to vector<8x32xf32>
    %1975 = vector.extract_strided_slice %1959 {offsets = [0, 32], sizes = [8, 32], strides = [1, 1]} : vector<8x96xf32> to vector<8x32xf32>
    %1976 = arith.addf %1974, %1975 : vector<8x32xf32>
    %1977 = arith.negf %1976 : vector<8x32xf32>
    %1978 = math.exp %1977 : vector<8x32xf32>
    %cst_660 = arith.constant 1.000000e+00 : f32
    %1979 = vector.broadcast %cst_660 : f32 to vector<8x32xf32>
    %1980 = arith.addf %1979, %1978 : vector<8x32xf32>
    %1981 = arith.divf %1979, %1980 : vector<8x32xf32>
    %1982 = vector.extract_strided_slice %1952 {offsets = [0, 64], sizes = [8, 32], strides = [1, 1]} : vector<8x96xf32> to vector<8x32xf32>
    %1983 = vector.extract_strided_slice %1959 {offsets = [0, 64], sizes = [8, 32], strides = [1, 1]} : vector<8x96xf32> to vector<8x32xf32>
    %1984 = arith.mulf %1973, %1983 : vector<8x32xf32>
    %1985 = arith.addf %1982, %1984 : vector<8x32xf32>
    %1986 = math.tanh %1985 : vector<8x32xf32>
    %cst_661 = arith.constant 1.000000e+00 : f32
    %1987 = vector.broadcast %cst_661 : f32 to vector<8x32xf32>
    %1988 = arith.subf %1987, %1981 : vector<8x32xf32>
    %1989 = arith.mulf %1988, %1986 : vector<8x32xf32>
    %1990 = arith.mulf %1981, %1925 : vector<8x32xf32>
    %1991 = arith.addf %1989, %1990 : vector<8x32xf32>
    %1992 = vector.extract_strided_slice %1953 {offsets = [0, 0], sizes = [8, 32], strides = [1, 1]} : vector<8x96xf32> to vector<8x32xf32>
    %1993 = vector.extract_strided_slice %1965 {offsets = [0, 0], sizes = [8, 32], strides = [1, 1]} : vector<8x96xf32> to vector<8x32xf32>
    %1994 = arith.addf %1992, %1993 : vector<8x32xf32>
    %1995 = arith.negf %1994 : vector<8x32xf32>
    %1996 = math.exp %1995 : vector<8x32xf32>
    %cst_662 = arith.constant 1.000000e+00 : f32
    %1997 = vector.broadcast %cst_662 : f32 to vector<8x32xf32>
    %1998 = arith.addf %1997, %1996 : vector<8x32xf32>
    %1999 = arith.divf %1997, %1998 : vector<8x32xf32>
    %2000 = vector.extract_strided_slice %1953 {offsets = [0, 32], sizes = [8, 32], strides = [1, 1]} : vector<8x96xf32> to vector<8x32xf32>
    %2001 = vector.extract_strided_slice %1965 {offsets = [0, 32], sizes = [8, 32], strides = [1, 1]} : vector<8x96xf32> to vector<8x32xf32>
    %2002 = arith.addf %2000, %2001 : vector<8x32xf32>
    %2003 = arith.negf %2002 : vector<8x32xf32>
    %2004 = math.exp %2003 : vector<8x32xf32>
    %cst_663 = arith.constant 1.000000e+00 : f32
    %2005 = vector.broadcast %cst_663 : f32 to vector<8x32xf32>
    %2006 = arith.addf %2005, %2004 : vector<8x32xf32>
    %2007 = arith.divf %2005, %2006 : vector<8x32xf32>
    %2008 = vector.extract_strided_slice %1953 {offsets = [0, 64], sizes = [8, 32], strides = [1, 1]} : vector<8x96xf32> to vector<8x32xf32>
    %2009 = vector.extract_strided_slice %1965 {offsets = [0, 64], sizes = [8, 32], strides = [1, 1]} : vector<8x96xf32> to vector<8x32xf32>
    %2010 = arith.mulf %1999, %2009 : vector<8x32xf32>
    %2011 = arith.addf %2008, %2010 : vector<8x32xf32>
    %2012 = math.tanh %2011 : vector<8x32xf32>
    %cst_664 = arith.constant 1.000000e+00 : f32
    %2013 = vector.broadcast %cst_664 : f32 to vector<8x32xf32>
    %2014 = arith.subf %2013, %2007 : vector<8x32xf32>
    %2015 = arith.mulf %2014, %2012 : vector<8x32xf32>
    %2016 = arith.mulf %2007, %1951 : vector<8x32xf32>
    %2017 = arith.addf %2015, %2016 : vector<8x32xf32>
    %c104_665 = arith.constant 104 : index
    %c0_666 = arith.constant 0 : index
    %2018 = vector.load %arg18[%c104_665, %c0_666] : memref<128x192xf32, #tpu.memory_space<vmem>>, vector<8x96xf32>
    %c16_667 = arith.constant 16 : index
    %c96_668 = arith.constant 96 : index
    %2019 = vector.load %arg18[%c16_667, %c96_668] : memref<128x192xf32, #tpu.memory_space<vmem>>, vector<8x96xf32>
    %2020 = arith.truncf %1991 : vector<8x32xf32> to vector<8x32xbf16>
    %c0_669 = arith.constant 0 : index
    %c0_670 = arith.constant 0 : index
    %2021 = vector.load %arg11[%c0_669, %c0_670] : memref<32x96xbf16, #tpu.memory_space<vmem>>, vector<32x96xbf16>
    %cst_671 = arith.constant dense<0.000000e+00> : vector<8x96xf32>
    %2022 = tpu.matmul %2020, %2021, %cst_671 {dimension_numbers = #tpu.dot_dimension_numbers<[1], [0], [0], [1], [0, 0, 1, 1], [], []>} : vector<8x32xbf16>, vector<32x96xbf16>, vector<8x96xf32> -> vector<8x96xf32>
    %c0_672 = arith.constant 0 : index
    %c0_673 = arith.constant 0 : index
    %2023 = vector.load %arg12[%c0_672, %c0_673] : memref<1x96xf32, #tpu.memory_space<vmem>>, vector<1x96xf32>
    %2024 = vector.broadcast %2023 : vector<1x96xf32> to vector<8x96xf32>
    %2025 = arith.addf %2022, %2024 : vector<8x96xf32>
    %2026 = arith.truncf %2017 : vector<8x32xf32> to vector<8x32xbf16>
    %c0_674 = arith.constant 0 : index
    %c0_675 = arith.constant 0 : index
    %2027 = vector.load %arg13[%c0_674, %c0_675] : memref<32x96xbf16, #tpu.memory_space<vmem>>, vector<32x96xbf16>
    %cst_676 = arith.constant dense<0.000000e+00> : vector<8x96xf32>
    %2028 = tpu.matmul %2026, %2027, %cst_676 {dimension_numbers = #tpu.dot_dimension_numbers<[1], [0], [0], [1], [0, 0, 1, 1], [], []>} : vector<8x32xbf16>, vector<32x96xbf16>, vector<8x96xf32> -> vector<8x96xf32>
    %c0_677 = arith.constant 0 : index
    %c0_678 = arith.constant 0 : index
    %2029 = vector.load %arg14[%c0_677, %c0_678] : memref<1x96xf32, #tpu.memory_space<vmem>>, vector<1x96xf32>
    %2030 = vector.broadcast %2029 : vector<1x96xf32> to vector<8x96xf32>
    %2031 = arith.addf %2028, %2030 : vector<8x96xf32>
    %2032 = vector.extract_strided_slice %2018 {offsets = [0, 0], sizes = [8, 32], strides = [1, 1]} : vector<8x96xf32> to vector<8x32xf32>
    %2033 = vector.extract_strided_slice %2025 {offsets = [0, 0], sizes = [8, 32], strides = [1, 1]} : vector<8x96xf32> to vector<8x32xf32>
    %2034 = arith.addf %2032, %2033 : vector<8x32xf32>
    %2035 = arith.negf %2034 : vector<8x32xf32>
    %2036 = math.exp %2035 : vector<8x32xf32>
    %cst_679 = arith.constant 1.000000e+00 : f32
    %2037 = vector.broadcast %cst_679 : f32 to vector<8x32xf32>
    %2038 = arith.addf %2037, %2036 : vector<8x32xf32>
    %2039 = arith.divf %2037, %2038 : vector<8x32xf32>
    %2040 = vector.extract_strided_slice %2018 {offsets = [0, 32], sizes = [8, 32], strides = [1, 1]} : vector<8x96xf32> to vector<8x32xf32>
    %2041 = vector.extract_strided_slice %2025 {offsets = [0, 32], sizes = [8, 32], strides = [1, 1]} : vector<8x96xf32> to vector<8x32xf32>
    %2042 = arith.addf %2040, %2041 : vector<8x32xf32>
    %2043 = arith.negf %2042 : vector<8x32xf32>
    %2044 = math.exp %2043 : vector<8x32xf32>
    %cst_680 = arith.constant 1.000000e+00 : f32
    %2045 = vector.broadcast %cst_680 : f32 to vector<8x32xf32>
    %2046 = arith.addf %2045, %2044 : vector<8x32xf32>
    %2047 = arith.divf %2045, %2046 : vector<8x32xf32>
    %2048 = vector.extract_strided_slice %2018 {offsets = [0, 64], sizes = [8, 32], strides = [1, 1]} : vector<8x96xf32> to vector<8x32xf32>
    %2049 = vector.extract_strided_slice %2025 {offsets = [0, 64], sizes = [8, 32], strides = [1, 1]} : vector<8x96xf32> to vector<8x32xf32>
    %2050 = arith.mulf %2039, %2049 : vector<8x32xf32>
    %2051 = arith.addf %2048, %2050 : vector<8x32xf32>
    %2052 = math.tanh %2051 : vector<8x32xf32>
    %cst_681 = arith.constant 1.000000e+00 : f32
    %2053 = vector.broadcast %cst_681 : f32 to vector<8x32xf32>
    %2054 = arith.subf %2053, %2047 : vector<8x32xf32>
    %2055 = arith.mulf %2054, %2052 : vector<8x32xf32>
    %2056 = arith.mulf %2047, %1991 : vector<8x32xf32>
    %2057 = arith.addf %2055, %2056 : vector<8x32xf32>
    %2058 = vector.extract_strided_slice %2019 {offsets = [0, 0], sizes = [8, 32], strides = [1, 1]} : vector<8x96xf32> to vector<8x32xf32>
    %2059 = vector.extract_strided_slice %2031 {offsets = [0, 0], sizes = [8, 32], strides = [1, 1]} : vector<8x96xf32> to vector<8x32xf32>
    %2060 = arith.addf %2058, %2059 : vector<8x32xf32>
    %2061 = arith.negf %2060 : vector<8x32xf32>
    %2062 = math.exp %2061 : vector<8x32xf32>
    %cst_682 = arith.constant 1.000000e+00 : f32
    %2063 = vector.broadcast %cst_682 : f32 to vector<8x32xf32>
    %2064 = arith.addf %2063, %2062 : vector<8x32xf32>
    %2065 = arith.divf %2063, %2064 : vector<8x32xf32>
    %2066 = vector.extract_strided_slice %2019 {offsets = [0, 32], sizes = [8, 32], strides = [1, 1]} : vector<8x96xf32> to vector<8x32xf32>
    %2067 = vector.extract_strided_slice %2031 {offsets = [0, 32], sizes = [8, 32], strides = [1, 1]} : vector<8x96xf32> to vector<8x32xf32>
    %2068 = arith.addf %2066, %2067 : vector<8x32xf32>
    %2069 = arith.negf %2068 : vector<8x32xf32>
    %2070 = math.exp %2069 : vector<8x32xf32>
    %cst_683 = arith.constant 1.000000e+00 : f32
    %2071 = vector.broadcast %cst_683 : f32 to vector<8x32xf32>
    %2072 = arith.addf %2071, %2070 : vector<8x32xf32>
    %2073 = arith.divf %2071, %2072 : vector<8x32xf32>
    %2074 = vector.extract_strided_slice %2019 {offsets = [0, 64], sizes = [8, 32], strides = [1, 1]} : vector<8x96xf32> to vector<8x32xf32>
    %2075 = vector.extract_strided_slice %2031 {offsets = [0, 64], sizes = [8, 32], strides = [1, 1]} : vector<8x96xf32> to vector<8x32xf32>
    %2076 = arith.mulf %2065, %2075 : vector<8x32xf32>
    %2077 = arith.addf %2074, %2076 : vector<8x32xf32>
    %2078 = math.tanh %2077 : vector<8x32xf32>
    %cst_684 = arith.constant 1.000000e+00 : f32
    %2079 = vector.broadcast %cst_684 : f32 to vector<8x32xf32>
    %2080 = arith.subf %2079, %2073 : vector<8x32xf32>
    %2081 = arith.mulf %2080, %2078 : vector<8x32xf32>
    %2082 = arith.mulf %2073, %2017 : vector<8x32xf32>
    %2083 = arith.addf %2081, %2082 : vector<8x32xf32>
    %c112_685 = arith.constant 112 : index
    %c0_686 = arith.constant 0 : index
    %2084 = vector.load %arg18[%c112_685, %c0_686] : memref<128x192xf32, #tpu.memory_space<vmem>>, vector<8x96xf32>
    %c8_687 = arith.constant 8 : index
    %c96_688 = arith.constant 96 : index
    %2085 = vector.load %arg18[%c8_687, %c96_688] : memref<128x192xf32, #tpu.memory_space<vmem>>, vector<8x96xf32>
    %2086 = arith.truncf %2057 : vector<8x32xf32> to vector<8x32xbf16>
    %c0_689 = arith.constant 0 : index
    %c0_690 = arith.constant 0 : index
    %2087 = vector.load %arg11[%c0_689, %c0_690] : memref<32x96xbf16, #tpu.memory_space<vmem>>, vector<32x96xbf16>
    %cst_691 = arith.constant dense<0.000000e+00> : vector<8x96xf32>
    %2088 = tpu.matmul %2086, %2087, %cst_691 {dimension_numbers = #tpu.dot_dimension_numbers<[1], [0], [0], [1], [0, 0, 1, 1], [], []>} : vector<8x32xbf16>, vector<32x96xbf16>, vector<8x96xf32> -> vector<8x96xf32>
    %c0_692 = arith.constant 0 : index
    %c0_693 = arith.constant 0 : index
    %2089 = vector.load %arg12[%c0_692, %c0_693] : memref<1x96xf32, #tpu.memory_space<vmem>>, vector<1x96xf32>
    %2090 = vector.broadcast %2089 : vector<1x96xf32> to vector<8x96xf32>
    %2091 = arith.addf %2088, %2090 : vector<8x96xf32>
    %2092 = arith.truncf %2083 : vector<8x32xf32> to vector<8x32xbf16>
    %c0_694 = arith.constant 0 : index
    %c0_695 = arith.constant 0 : index
    %2093 = vector.load %arg13[%c0_694, %c0_695] : memref<32x96xbf16, #tpu.memory_space<vmem>>, vector<32x96xbf16>
    %cst_696 = arith.constant dense<0.000000e+00> : vector<8x96xf32>
    %2094 = tpu.matmul %2092, %2093, %cst_696 {dimension_numbers = #tpu.dot_dimension_numbers<[1], [0], [0], [1], [0, 0, 1, 1], [], []>} : vector<8x32xbf16>, vector<32x96xbf16>, vector<8x96xf32> -> vector<8x96xf32>
    %c0_697 = arith.constant 0 : index
    %c0_698 = arith.constant 0 : index
    %2095 = vector.load %arg14[%c0_697, %c0_698] : memref<1x96xf32, #tpu.memory_space<vmem>>, vector<1x96xf32>
    %2096 = vector.broadcast %2095 : vector<1x96xf32> to vector<8x96xf32>
    %2097 = arith.addf %2094, %2096 : vector<8x96xf32>
    %2098 = vector.extract_strided_slice %2084 {offsets = [0, 0], sizes = [8, 32], strides = [1, 1]} : vector<8x96xf32> to vector<8x32xf32>
    %2099 = vector.extract_strided_slice %2091 {offsets = [0, 0], sizes = [8, 32], strides = [1, 1]} : vector<8x96xf32> to vector<8x32xf32>
    %2100 = arith.addf %2098, %2099 : vector<8x32xf32>
    %2101 = arith.negf %2100 : vector<8x32xf32>
    %2102 = math.exp %2101 : vector<8x32xf32>
    %cst_699 = arith.constant 1.000000e+00 : f32
    %2103 = vector.broadcast %cst_699 : f32 to vector<8x32xf32>
    %2104 = arith.addf %2103, %2102 : vector<8x32xf32>
    %2105 = arith.divf %2103, %2104 : vector<8x32xf32>
    %2106 = vector.extract_strided_slice %2084 {offsets = [0, 32], sizes = [8, 32], strides = [1, 1]} : vector<8x96xf32> to vector<8x32xf32>
    %2107 = vector.extract_strided_slice %2091 {offsets = [0, 32], sizes = [8, 32], strides = [1, 1]} : vector<8x96xf32> to vector<8x32xf32>
    %2108 = arith.addf %2106, %2107 : vector<8x32xf32>
    %2109 = arith.negf %2108 : vector<8x32xf32>
    %2110 = math.exp %2109 : vector<8x32xf32>
    %cst_700 = arith.constant 1.000000e+00 : f32
    %2111 = vector.broadcast %cst_700 : f32 to vector<8x32xf32>
    %2112 = arith.addf %2111, %2110 : vector<8x32xf32>
    %2113 = arith.divf %2111, %2112 : vector<8x32xf32>
    %2114 = vector.extract_strided_slice %2084 {offsets = [0, 64], sizes = [8, 32], strides = [1, 1]} : vector<8x96xf32> to vector<8x32xf32>
    %2115 = vector.extract_strided_slice %2091 {offsets = [0, 64], sizes = [8, 32], strides = [1, 1]} : vector<8x96xf32> to vector<8x32xf32>
    %2116 = arith.mulf %2105, %2115 : vector<8x32xf32>
    %2117 = arith.addf %2114, %2116 : vector<8x32xf32>
    %2118 = math.tanh %2117 : vector<8x32xf32>
    %cst_701 = arith.constant 1.000000e+00 : f32
    %2119 = vector.broadcast %cst_701 : f32 to vector<8x32xf32>
    %2120 = arith.subf %2119, %2113 : vector<8x32xf32>
    %2121 = arith.mulf %2120, %2118 : vector<8x32xf32>
    %2122 = arith.mulf %2113, %2057 : vector<8x32xf32>
    %2123 = arith.addf %2121, %2122 : vector<8x32xf32>
    %2124 = vector.extract_strided_slice %2085 {offsets = [0, 0], sizes = [8, 32], strides = [1, 1]} : vector<8x96xf32> to vector<8x32xf32>
    %2125 = vector.extract_strided_slice %2097 {offsets = [0, 0], sizes = [8, 32], strides = [1, 1]} : vector<8x96xf32> to vector<8x32xf32>
    %2126 = arith.addf %2124, %2125 : vector<8x32xf32>
    %2127 = arith.negf %2126 : vector<8x32xf32>
    %2128 = math.exp %2127 : vector<8x32xf32>
    %cst_702 = arith.constant 1.000000e+00 : f32
    %2129 = vector.broadcast %cst_702 : f32 to vector<8x32xf32>
    %2130 = arith.addf %2129, %2128 : vector<8x32xf32>
    %2131 = arith.divf %2129, %2130 : vector<8x32xf32>
    %2132 = vector.extract_strided_slice %2085 {offsets = [0, 32], sizes = [8, 32], strides = [1, 1]} : vector<8x96xf32> to vector<8x32xf32>
    %2133 = vector.extract_strided_slice %2097 {offsets = [0, 32], sizes = [8, 32], strides = [1, 1]} : vector<8x96xf32> to vector<8x32xf32>
    %2134 = arith.addf %2132, %2133 : vector<8x32xf32>
    %2135 = arith.negf %2134 : vector<8x32xf32>
    %2136 = math.exp %2135 : vector<8x32xf32>
    %cst_703 = arith.constant 1.000000e+00 : f32
    %2137 = vector.broadcast %cst_703 : f32 to vector<8x32xf32>
    %2138 = arith.addf %2137, %2136 : vector<8x32xf32>
    %2139 = arith.divf %2137, %2138 : vector<8x32xf32>
    %2140 = vector.extract_strided_slice %2085 {offsets = [0, 64], sizes = [8, 32], strides = [1, 1]} : vector<8x96xf32> to vector<8x32xf32>
    %2141 = vector.extract_strided_slice %2097 {offsets = [0, 64], sizes = [8, 32], strides = [1, 1]} : vector<8x96xf32> to vector<8x32xf32>
    %2142 = arith.mulf %2131, %2141 : vector<8x32xf32>
    %2143 = arith.addf %2140, %2142 : vector<8x32xf32>
    %2144 = math.tanh %2143 : vector<8x32xf32>
    %cst_704 = arith.constant 1.000000e+00 : f32
    %2145 = vector.broadcast %cst_704 : f32 to vector<8x32xf32>
    %2146 = arith.subf %2145, %2139 : vector<8x32xf32>
    %2147 = arith.mulf %2146, %2144 : vector<8x32xf32>
    %2148 = arith.mulf %2139, %2083 : vector<8x32xf32>
    %2149 = arith.addf %2147, %2148 : vector<8x32xf32>
    %c120_705 = arith.constant 120 : index
    %c0_706 = arith.constant 0 : index
    %2150 = vector.load %arg18[%c120_705, %c0_706] : memref<128x192xf32, #tpu.memory_space<vmem>>, vector<8x96xf32>
    %c0_707 = arith.constant 0 : index
    %c96_708 = arith.constant 96 : index
    %2151 = vector.load %arg18[%c0_707, %c96_708] : memref<128x192xf32, #tpu.memory_space<vmem>>, vector<8x96xf32>
    %2152 = arith.truncf %2123 : vector<8x32xf32> to vector<8x32xbf16>
    %c0_709 = arith.constant 0 : index
    %c0_710 = arith.constant 0 : index
    %2153 = vector.load %arg11[%c0_709, %c0_710] : memref<32x96xbf16, #tpu.memory_space<vmem>>, vector<32x96xbf16>
    %cst_711 = arith.constant dense<0.000000e+00> : vector<8x96xf32>
    %2154 = tpu.matmul %2152, %2153, %cst_711 {dimension_numbers = #tpu.dot_dimension_numbers<[1], [0], [0], [1], [0, 0, 1, 1], [], []>} : vector<8x32xbf16>, vector<32x96xbf16>, vector<8x96xf32> -> vector<8x96xf32>
    %c0_712 = arith.constant 0 : index
    %c0_713 = arith.constant 0 : index
    %2155 = vector.load %arg12[%c0_712, %c0_713] : memref<1x96xf32, #tpu.memory_space<vmem>>, vector<1x96xf32>
    %2156 = vector.broadcast %2155 : vector<1x96xf32> to vector<8x96xf32>
    %2157 = arith.addf %2154, %2156 : vector<8x96xf32>
    %2158 = arith.truncf %2149 : vector<8x32xf32> to vector<8x32xbf16>
    %c0_714 = arith.constant 0 : index
    %c0_715 = arith.constant 0 : index
    %2159 = vector.load %arg13[%c0_714, %c0_715] : memref<32x96xbf16, #tpu.memory_space<vmem>>, vector<32x96xbf16>
    %cst_716 = arith.constant dense<0.000000e+00> : vector<8x96xf32>
    %2160 = tpu.matmul %2158, %2159, %cst_716 {dimension_numbers = #tpu.dot_dimension_numbers<[1], [0], [0], [1], [0, 0, 1, 1], [], []>} : vector<8x32xbf16>, vector<32x96xbf16>, vector<8x96xf32> -> vector<8x96xf32>
    %c0_717 = arith.constant 0 : index
    %c0_718 = arith.constant 0 : index
    %2161 = vector.load %arg14[%c0_717, %c0_718] : memref<1x96xf32, #tpu.memory_space<vmem>>, vector<1x96xf32>
    %2162 = vector.broadcast %2161 : vector<1x96xf32> to vector<8x96xf32>
    %2163 = arith.addf %2160, %2162 : vector<8x96xf32>
    %2164 = vector.extract_strided_slice %2150 {offsets = [0, 0], sizes = [8, 32], strides = [1, 1]} : vector<8x96xf32> to vector<8x32xf32>
    %2165 = vector.extract_strided_slice %2157 {offsets = [0, 0], sizes = [8, 32], strides = [1, 1]} : vector<8x96xf32> to vector<8x32xf32>
    %2166 = arith.addf %2164, %2165 : vector<8x32xf32>
    %2167 = arith.negf %2166 : vector<8x32xf32>
    %2168 = math.exp %2167 : vector<8x32xf32>
    %cst_719 = arith.constant 1.000000e+00 : f32
    %2169 = vector.broadcast %cst_719 : f32 to vector<8x32xf32>
    %2170 = arith.addf %2169, %2168 : vector<8x32xf32>
    %2171 = arith.divf %2169, %2170 : vector<8x32xf32>
    %2172 = vector.extract_strided_slice %2150 {offsets = [0, 32], sizes = [8, 32], strides = [1, 1]} : vector<8x96xf32> to vector<8x32xf32>
    %2173 = vector.extract_strided_slice %2157 {offsets = [0, 32], sizes = [8, 32], strides = [1, 1]} : vector<8x96xf32> to vector<8x32xf32>
    %2174 = arith.addf %2172, %2173 : vector<8x32xf32>
    %2175 = arith.negf %2174 : vector<8x32xf32>
    %2176 = math.exp %2175 : vector<8x32xf32>
    %cst_720 = arith.constant 1.000000e+00 : f32
    %2177 = vector.broadcast %cst_720 : f32 to vector<8x32xf32>
    %2178 = arith.addf %2177, %2176 : vector<8x32xf32>
    %2179 = arith.divf %2177, %2178 : vector<8x32xf32>
    %2180 = vector.extract_strided_slice %2150 {offsets = [0, 64], sizes = [8, 32], strides = [1, 1]} : vector<8x96xf32> to vector<8x32xf32>
    %2181 = vector.extract_strided_slice %2157 {offsets = [0, 64], sizes = [8, 32], strides = [1, 1]} : vector<8x96xf32> to vector<8x32xf32>
    %2182 = arith.mulf %2171, %2181 : vector<8x32xf32>
    %2183 = arith.addf %2180, %2182 : vector<8x32xf32>
    %2184 = math.tanh %2183 : vector<8x32xf32>
    %cst_721 = arith.constant 1.000000e+00 : f32
    %2185 = vector.broadcast %cst_721 : f32 to vector<8x32xf32>
    %2186 = arith.subf %2185, %2179 : vector<8x32xf32>
    %2187 = arith.mulf %2186, %2184 : vector<8x32xf32>
    %2188 = arith.mulf %2179, %2123 : vector<8x32xf32>
    %2189 = arith.addf %2187, %2188 : vector<8x32xf32>
    %2190 = vector.extract_strided_slice %2151 {offsets = [0, 0], sizes = [8, 32], strides = [1, 1]} : vector<8x96xf32> to vector<8x32xf32>
    %2191 = vector.extract_strided_slice %2163 {offsets = [0, 0], sizes = [8, 32], strides = [1, 1]} : vector<8x96xf32> to vector<8x32xf32>
    %2192 = arith.addf %2190, %2191 : vector<8x32xf32>
    %2193 = arith.negf %2192 : vector<8x32xf32>
    %2194 = math.exp %2193 : vector<8x32xf32>
    %cst_722 = arith.constant 1.000000e+00 : f32
    %2195 = vector.broadcast %cst_722 : f32 to vector<8x32xf32>
    %2196 = arith.addf %2195, %2194 : vector<8x32xf32>
    %2197 = arith.divf %2195, %2196 : vector<8x32xf32>
    %2198 = vector.extract_strided_slice %2151 {offsets = [0, 32], sizes = [8, 32], strides = [1, 1]} : vector<8x96xf32> to vector<8x32xf32>
    %2199 = vector.extract_strided_slice %2163 {offsets = [0, 32], sizes = [8, 32], strides = [1, 1]} : vector<8x96xf32> to vector<8x32xf32>
    %2200 = arith.addf %2198, %2199 : vector<8x32xf32>
    %2201 = arith.negf %2200 : vector<8x32xf32>
    %2202 = math.exp %2201 : vector<8x32xf32>
    %cst_723 = arith.constant 1.000000e+00 : f32
    %2203 = vector.broadcast %cst_723 : f32 to vector<8x32xf32>
    %2204 = arith.addf %2203, %2202 : vector<8x32xf32>
    %2205 = arith.divf %2203, %2204 : vector<8x32xf32>
    %2206 = vector.extract_strided_slice %2151 {offsets = [0, 64], sizes = [8, 32], strides = [1, 1]} : vector<8x96xf32> to vector<8x32xf32>
    %2207 = vector.extract_strided_slice %2163 {offsets = [0, 64], sizes = [8, 32], strides = [1, 1]} : vector<8x96xf32> to vector<8x32xf32>
    %2208 = arith.mulf %2197, %2207 : vector<8x32xf32>
    %2209 = arith.addf %2206, %2208 : vector<8x32xf32>
    %2210 = math.tanh %2209 : vector<8x32xf32>
    %cst_724 = arith.constant 1.000000e+00 : f32
    %2211 = vector.broadcast %cst_724 : f32 to vector<8x32xf32>
    %2212 = arith.subf %2211, %2205 : vector<8x32xf32>
    %2213 = arith.mulf %2212, %2210 : vector<8x32xf32>
    %2214 = arith.mulf %2205, %2149 : vector<8x32xf32>
    %2215 = arith.addf %2213, %2214 : vector<8x32xf32>
    %2216 = tpu.concatenate %1121, %1147, %2189, %2215 in 1 : vector<8x32xf32>, vector<8x32xf32>, vector<8x32xf32>, vector<8x32xf32> -> vector<8x128xf32>
    %2217 = arith.truncf %2216 : vector<8x128xf32> to vector<8x128xbf16>
    %c0_725 = arith.constant 0 : index
    %c0_726 = arith.constant 0 : index
    %2218 = vector.load %arg15[%c0_725, %c0_726] : memref<128x3xbf16, #tpu.memory_space<vmem>>, vector<128x3xbf16>
    %cst_727 = arith.constant dense<0.000000e+00> : vector<8x3xf32>
    %2219 = tpu.matmul %2217, %2218, %cst_727 {dimension_numbers = #tpu.dot_dimension_numbers<[1], [0], [0], [1], [0, 0, 1, 1], [], []>} : vector<8x128xbf16>, vector<128x3xbf16>, vector<8x3xf32> -> vector<8x3xf32>
    %c0_728 = arith.constant 0 : index
    %c0_729 = arith.constant 0 : index
    %2220 = vector.load %arg16[%c0_728, %c0_729] : memref<1x3xf32, #tpu.memory_space<vmem>>, vector<1x3xf32>
    %2221 = vector.broadcast %2220 : vector<1x3xf32> to vector<8x3xf32>
    %2222 = arith.addf %2219, %2221 : vector<8x3xf32>
    %c0_730 = arith.constant 0 : index
    %c0_731 = arith.constant 0 : index
    %2223 = vector.load %arg17[%c0_730, %c0_731] : memref<8x3xf32, #tpu.memory_space<vmem>>, vector<8x3xf32>
    tpu.vector_store %arg17[%c0_730, %c0_731], %2222 {strides = array<i32>} : memref<8x3xf32, #tpu.memory_space<vmem>>, vector<8x3xf32>,
    return
  }
}

</mosaic_0001>

<llo_original>
// kernel: rnn_forward.1
$region0: #{rnn_forward.1}
  #allocation0 [shape = 'u32[]', space=smem, size = 0x4, offset = 0x4, fixed_abs, tag = 'smem constant byte address 0x4 - core index']
  #allocation1 [shape = 'u32[144,128]{1,0:T(1,128)}', space=vmem, size = 0x12000, scoped, tag = 'internal scratch']
  #allocation2 [shape = 'f32[128,192]{1,0:T(8,128)}', space=vmem, size = 0x20000, scoped, tag = 'scratch operand']
  #allocation3 [shape = 'f32[128,64]{1,0:T(8,128)}', space=vmem, size = 0x10000, scoped, tag = 'scratch operand']
  %s0 = inlined_call_operand.vmem [shape: bf16[12,2304], index: 0, kind: input, shape index: {}]
  %s1 = inlined_call_operand.vmem [shape: bf16[3,8,12], index: 1, kind: input, shape index: {}]
  %s2 = inlined_call_operand.vmem [shape: f32[8,1], index: 2, kind: input, shape index: {}]
  %s3 = inlined_call_operand.vmem [shape: bf16[8,192], index: 3, kind: input, shape index: {}]
  %s4 = inlined_call_operand.vmem [shape: f32[1,192], index: 4, kind: input, shape index: {}]
  %s5 = inlined_call_operand.vmem [shape: bf16[32,96], index: 5, kind: input, shape index: {}]
  %s6 = inlined_call_operand.vmem [shape: f32[1,96], index: 6, kind: input, shape index: {}]
  %s7 = inlined_call_operand.vmem [shape: bf16[32,96], index: 7, kind: input, shape index: {}]
  %s8 = inlined_call_operand.vmem [shape: f32[1,96], index: 8, kind: input, shape index: {}]
  %s9 = inlined_call_operand.vmem [shape: bf16[64,192], index: 9, kind: input, shape index: {}]
  %s10 = inlined_call_operand.vmem [shape: f32[1,192], index: 10, kind: input, shape index: {}]
  %s11 = inlined_call_operand.vmem [shape: bf16[32,96], index: 11, kind: input, shape index: {}]
  %s12 = inlined_call_operand.vmem [shape: f32[1,96], index: 12, kind: input, shape index: {}]
  %s13 = inlined_call_operand.vmem [shape: bf16[32,96], index: 13, kind: input, shape index: {}]
  %s14 = inlined_call_operand.vmem [shape: f32[1,96], index: 14, kind: input, shape index: {}]
  %s15 = inlined_call_operand.vmem [shape: bf16[128,3], index: 15, kind: input, shape index: {}]
  %s16 = inlined_call_operand.vmem [shape: f32[1,3], index: 16, kind: input, shape index: {}]
  %s17 = inlined_call_operand.vmem [shape: f32[8,3], index: 17, kind: output, shape index: {}]
  %s18 = sld [smem:[#allocation0]]
  $region78: #{rnn_forward.1} parent=0
    _
  %s20 = ssub.s32 1, %s18
  %s21 = scalar_select 0, %s20, %s18
  // Predicated region
  $region2: #{rnn_forward.1} parent=0 // pred_check
    _
  $region3: #{rnn_forward.1} parent=0 // pred_check_branch
    %23 = sbr.rel (0) target = $region5
  $region4: #{rnn_forward.1} parent=0 // pred_region
    _
  $region5: #{rnn_forward.1} parent=0 // pred_fallthru
    _
  // Predicated region
  $region6: #{rnn_forward.1} parent=0 // pred_check
    _
  $region7: #{rnn_forward.1} parent=0 // pred_check_branch
    %25 = sbr.rel (0) target = $region9
  $region8: #{rnn_forward.1} parent=0 // pred_region
    _
  $region9: #{rnn_forward.1} parent=0 // pred_fallthru
    _
  // Predicated region
  $region10: #{rnn_forward.1} parent=0 // pred_check
    _
  $region11: #{rnn_forward.1} parent=0 // pred_check_branch
    %27 = sbr.rel (0) target = $region13
  $region12: #{rnn_forward.1} parent=0 // pred_region
    _
  $region13: #{rnn_forward.1} parent=0 // pred_fallthru
    _
  // Predicated region
  $region14: #{rnn_forward.1} parent=0 // pred_check
    _
  $region15: #{rnn_forward.1} parent=0 // pred_check_branch
    %29 = sbr.rel (0) target = $region17
  $region16: #{rnn_forward.1} parent=0 // pred_region
    _
  $region17: #{rnn_forward.1} parent=0 // pred_fallthru
    _
  // Predicated region
  $region18: #{rnn_forward.1} parent=0 // pred_check
    _
  $region19: #{rnn_forward.1} parent=0 // pred_check_branch
    %31 = sbr.rel (0) target = $region21
  $region20: #{rnn_forward.1} parent=0 // pred_region
    _
  $region21: #{rnn_forward.1} parent=0 // pred_fallthru
    _
  // Predicated region
  $region22: #{rnn_forward.1} parent=0 // pred_check
    _
  $region23: #{rnn_forward.1} parent=0 // pred_check_branch
    %33 = sbr.rel (0) target = $region25
  $region24: #{rnn_forward.1} parent=0 // pred_region
    _
  $region25: #{rnn_forward.1} parent=0 // pred_fallthru
    _
  // Predicated region
  $region26: #{rnn_forward.1} parent=0 // pred_check
    _
  $region27: #{rnn_forward.1} parent=0 // pred_check_branch
    %35 = sbr.rel (0) target = $region29
  $region28: #{rnn_forward.1} parent=0 // pred_region
    _
  $region29: #{rnn_forward.1} parent=0 // pred_fallthru
    _
  // Predicated region
  $region30: #{rnn_forward.1} parent=0 // pred_check
    _
  $region31: #{rnn_forward.1} parent=0 // pred_check_branch
    %37 = sbr.rel (0) target = $region33
  $region32: #{rnn_forward.1} parent=0 // pred_region
    _
  $region33: #{rnn_forward.1} parent=0 // pred_fallthru
    _
  // Predicated region
  $region34: #{rnn_forward.1} parent=0 // pred_check
    _
  $region35: #{rnn_forward.1} parent=0 // pred_check_branch
    %39 = sbr.rel (0) target = $region37
  $region36: #{rnn_forward.1} parent=0 // pred_region
    _
  $region37: #{rnn_forward.1} parent=0 // pred_fallthru
    _
  // Predicated region
  $region38: #{rnn_forward.1} parent=0 // pred_check
    _
  $region39: #{rnn_forward.1} parent=0 // pred_check_branch
    %41 = sbr.rel (0) target = $region41
  $region40: #{rnn_forward.1} parent=0 // pred_region
    _
  $region41: #{rnn_forward.1} parent=0 // pred_fallthru
    _
  // Predicated region
  $region42: #{rnn_forward.1} parent=0 // pred_check
    _
  $region43: #{rnn_forward.1} parent=0 // pred_check_branch
    %43 = sbr.rel (0) target = $region45
  $region44: #{rnn_forward.1} parent=0 // pred_region
    _
  $region45: #{rnn_forward.1} parent=0 // pred_fallthru
    _
  // Predicated region
  $region46: #{rnn_forward.1} parent=0 // pred_check
    _
  $region47: #{rnn_forward.1} parent=0 // pred_check_branch
    %45 = sbr.rel (0) target = $region49
  $region48: #{rnn_forward.1} parent=0 // pred_region
    _
  $region49: #{rnn_forward.1} parent=0 // pred_fallthru
    _
  // Predicated region
  $region50: #{rnn_forward.1} parent=0 // pred_check
    _
  $region51: #{rnn_forward.1} parent=0 // pred_check_branch
    %47 = sbr.rel (0) target = $region53
  $region52: #{rnn_forward.1} parent=0 // pred_region
    _
  $region53: #{rnn_forward.1} parent=0 // pred_fallthru
    _
  // Predicated region
  $region54: #{rnn_forward.1} parent=0 // pred_check
    _
  $region55: #{rnn_forward.1} parent=0 // pred_check_branch
    %49 = sbr.rel (0) target = $region57
  $region56: #{rnn_forward.1} parent=0 // pred_region
    _
  $region57: #{rnn_forward.1} parent=0 // pred_fallthru
    _
  // Predicated region
  $region58: #{rnn_forward.1} parent=0 // pred_check
    _
  $region59: #{rnn_forward.1} parent=0 // pred_check_branch
    %51 = sbr.rel (0) target = $region61
  $region60: #{rnn_forward.1} parent=0 // pred_region
    _
  $region61: #{rnn_forward.1} parent=0 // pred_fallthru
    _
  // Predicated region
  $region62: #{rnn_forward.1} parent=0 // pred_check
    _
  $region63: #{rnn_forward.1} parent=0 // pred_check_branch
    %53 = sbr.rel (0) target = $region65
  $region64: #{rnn_forward.1} parent=0 // pred_region
    _
  $region65: #{rnn_forward.1} parent=0 // pred_fallthru
    _
  // Predicated region
  $region66: #{rnn_forward.1} parent=0 // pred_check
    _
  $region67: #{rnn_forward.1} parent=0 // pred_check_branch
    %55 = sbr.rel (0) target = $region69
  $region68: #{rnn_forward.1} parent=0 // pred_region
    _
  $region69: #{rnn_forward.1} parent=0 // pred_fallthru
    _
  %v57 = vld [vmem:[%s1] sm:$0xf]
  %v58 = vld [vmem:[%s0] sm:$0xff]
  %v59 = vld [vmem:[%s0 + $0x8] sm:$0xff]
  %v60 = vld [vmem:[%s0 + $0x10] sm:$0xff]
  %v61 = vld [vmem:[%s0 + $0x18] sm:$0xff]
  %v62 = vld [vmem:[%s0 + $0x20] sm:$0xff]
  %v63 = vld [vmem:[%s0 + $0x28] sm:$0xff]
  %v64 = vld [vmem:[%s0 + $0x30] sm:$0xff]
  %v65 = vld [vmem:[%s0 + $0x38] sm:$0xff]
  %v66 = vld [vmem:[%s0 + $0x48] sm:$0x33]
  %v67 = vld [vmem:[%s0 + $0x50] sm:$0x33]
  %v68 = vld [vmem:[%s0 + $0x58] sm:$0x33]
  %v69 = vld [vmem:[%s0 + $0x60] sm:$0x33]
  %v70 = vld [vmem:[%s0 + $0x68] sm:$0x33]
  %v71 = vld [vmem:[%s0 + $0x70] sm:$0x33]
  %v72 = vld [vmem:[%s0 + $0x78] sm:$0x33]
  %v73 = vld [vmem:[%s0 + $0x80] sm:$0x33]
  %s74 = scalar_lea.vmem %s1, 4
  %v75 = vld [vmem:[%s74] sm:$0xf]
  %v76 = vld [vmem:[%s0 + $0x4] sm:$0xff]
  %v77 = vld [vmem:[%s0 + $0xc] sm:$0xff]
  %v78 = vld [vmem:[%s0 + $0x14] sm:$0xff]
  %v79 = vld [vmem:[%s0 + $0x1c] sm:$0xff]
  %v80 = vld [vmem:[%s0 + $0x24] sm:$0xff]
  %v81 = vld [vmem:[%s0 + $0x2c] sm:$0xff]
  %v82 = vld [vmem:[%s0 + $0x34] sm:$0xff]
  %v83 = vld [vmem:[%s0 + $0x3c] sm:$0xff]
  %v84 = vld [vmem:[%s0 + $0x4c] sm:$0x33]
  %v85 = vld [vmem:[%s0 + $0x54] sm:$0x33]
  %v86 = vld [vmem:[%s0 + $0x5c] sm:$0x33]
  %v87 = vld [vmem:[%s0 + $0x64] sm:$0x33]
  %v88 = vld [vmem:[%s0 + $0x6c] sm:$0x33]
  %v89 = vld [vmem:[%s0 + $0x74] sm:$0x33]
  %v90 = vld [vmem:[%s0 + $0x7c] sm:$0x33]
  %v91 = vld [vmem:[%s0 + $0x84] sm:$0x33]
  %v108 = vunpack.c.l.b16 %v76
  %v109 = vunpack.c.h.b16 %v76
  %v110 = vunpack.c.l.b16 %v77
  %v111 = vunpack.c.h.b16 %v77
  %v112 = vunpack.c.l.b16 %v78
  %v113 = vunpack.c.h.b16 %v78
  %v114 = vunpack.c.l.b16 %v79
  %v115 = vunpack.c.h.b16 %v79
  %v116 = vunpack.c.l.b16 %v80
  %v117 = vunpack.c.h.b16 %v80
  %v118 = vunpack.c.l.b16 %v81
  %v119 = vunpack.c.h.b16 %v81
  %v120 = vunpack.c.l.b16 %v82
  %v121 = vunpack.c.h.b16 %v82
  %v122 = vunpack.c.l.b16 %v83
  %v123 = vunpack.c.h.b16 %v83
  %v124 = vunpack.c.l.b16 %v84
  %v125 = vunpack.c.h.b16 %v84
  %v126 = vunpack.c.l.b16 %v85
  %v127 = vunpack.c.h.b16 %v85
  %v128 = vunpack.c.l.b16 %v86
  %v129 = vunpack.c.h.b16 %v86
  %v130 = vunpack.c.l.b16 %v87
  %v131 = vunpack.c.h.b16 %v87
  %v132 = vunpack.c.l.b16 %v88
  %v133 = vunpack.c.h.b16 %v88
  %v134 = vunpack.c.l.b16 %v89
  %v135 = vunpack.c.h.b16 %v89
  %v136 = vunpack.c.l.b16 %v90
  %v137 = vunpack.c.h.b16 %v90
  %v138 = vunpack.c.l.b16 %v91
  %v139 = vunpack.c.h.b16 %v91
  %v140 = vpack.c.b16 %v124, %v108
  %v141 = vpack.c.b16 %v125, %v109
  %v142 = vpack.c.b16 %v126, %v110
  %v143 = vpack.c.b16 %v127, %v111
  %v144 = vpack.c.b16 %v128, %v112
  %v145 = vpack.c.b16 %v129, %v113
  %v146 = vpack.c.b16 %v130, %v114
  %v147 = vpack.c.b16 %v131, %v115
  %v148 = vpack.c.b16 %v132, %v116
  %v149 = vpack.c.b16 %v133, %v117
  %v150 = vpack.c.b16 %v134, %v118
  %v151 = vpack.c.b16 %v135, %v119
  %v152 = vpack.c.b16 %v136, %v120
  %v153 = vpack.c.b16 %v137, %v121
  %v154 = vpack.c.b16 %v138, %v122
  %v155 = vpack.c.b16 %v139, %v123
  %vm156 = vcmask 97280
  %v158 = vsel %vm156, %v75, 0
  %vm160 = vcmask 1045504
  %v162 = vsel %vm160, %v140, 0
  %v165 = vsel %vm160, %v141, 0
  %v168 = vsel %vm160, %v142, 0
  %v171 = vsel %vm160, %v143, 0
  %v174 = vsel %vm160, %v144, 0
  %v177 = vsel %vm160, %v145, 0
  %v180 = vsel %vm160, %v146, 0
  %v183 = vsel %vm160, %v147, 0
  %v186 = vsel %vm160, %v148, 0
  %v189 = vsel %vm160, %v149, 0
  %v192 = vsel %vm160, %v150, 0
  %v195 = vsel %vm160, %v151, 0
  %v198 = vsel %vm160, %v152, 0
  %v201 = vsel %vm160, %v153, 0
  %v204 = vsel %vm160, %v154, 0
  %v207 = vsel %vm160, %v155, 0
  %209 = vmatprep.subr.bf16.mxu0 %v165
  %210 = vmatpush1.bf16.msra.mxu0 %v162
  %211 = vmatprep.subr.bf16.mxu0 0
  %212 = vmatpush1.bf16.msra.mxu0 0
  %213 = vmatprep.subr.bf16.mxu0 0
  %214 = vmatpush1.bf16.msra.mxu0 0
  %215 = vmatprep.subr.bf16.mxu0 0
  %216 = vmatpush1.bf16.msra.mxu0 0
  %217 = vmatprep.subr.bf16.mxu0 0
  %218 = vmatpush1.bf16.msra.mxu0 0
  %219 = vmatprep.subr.bf16.mxu0 0
  %220 = vmatpush1.bf16.msra.mxu0 0
  %221 = vmatprep.subr.bf16.mxu0 0
  %222 = vmatpush1.bf16.msra.mxu0 0
  %223 = vmatprep.subr.bf16.mxu0 0
  %224 = vmatpush1.bf16.msra.mxu0 0
  %225 = vmatprep.subr.bf16.mxu0 0
  %226 = vmatpush1.bf16.msra.mxu0 0
  %227 = vmatprep.subr.bf16.mxu0 0
  %228 = vmatpush1.bf16.msra.mxu0 0
  %229 = vmatprep.subr.bf16.mxu0 0
  %230 = vmatpush1.bf16.msra.mxu0 0
  %231 = vmatprep.subr.bf16.mxu0 0
  %232 = vmatpush1.bf16.msra.mxu0 0
  %233 = vmatprep.subr.bf16.mxu0 0
  %234 = vmatpush1.bf16.msra.mxu0 0
  %235 = vmatprep.subr.bf16.mxu0 0
  %236 = vmatpush1.bf16.msra.mxu0 0
  %237 = vmatprep.subr.bf16.mxu0 0
  %238 = vmatpush1.bf16.msra.mxu0 0
  %239 = vmatprep.subr.bf16.mxu0 0
  %240 = vmatpush1.bf16.msra.mxu0 0
  %241 = vmatprep.mubr.bf16.mxu0 0
  %242 = vmatmul.mubr.bf16.gmra.mrb[0].mxu0 %v158
  %v243 = vpop.f32.mrb[0].mxu0
  %v244 = vadd.f32 0.0, %v243
  %v245 = vpop.f32.mrb[0].mxu0
  %v246 = vadd.f32 0.0, %v245
  %v247 = vpop.f32.mrb[0].mxu0
  %v248 = vpop.f32.mrb[0].mxu0
  %249 = vdwg.mxu0
  %250 = vmatprep.subr.bf16.mxu0 %v171
  %251 = vmatpush1.bf16.msra.mxu0 %v168
  %252 = vmatprep.subr.bf16.mxu0 0
  %253 = vmatpush1.bf16.msra.mxu0 0
  %254 = vmatprep.subr.bf16.mxu0 0
  %255 = vmatpush1.bf16.msra.mxu0 0
  %256 = vmatprep.subr.bf16.mxu0 0
  %257 = vmatpush1.bf16.msra.mxu0 0
  %258 = vmatprep.subr.bf16.mxu0 0
  %259 = vmatpush1.bf16.msra.mxu0 0
  %260 = vmatprep.subr.bf16.mxu0 0
  %261 = vmatpush1.bf16.msra.mxu0 0
  %262 = vmatprep.subr.bf16.mxu0 0
  %263 = vmatpush1.bf16.msra.mxu0 0
  %264 = vmatprep.subr.bf16.mxu0 0
  %265 = vmatpush1.bf16.msra.mxu0 0
  %266 = vmatprep.subr.bf16.mxu0 0
  %267 = vmatpush1.bf16.msra.mxu0 0
  %268 = vmatprep.subr.bf16.mxu0 0
  %269 = vmatpush1.bf16.msra.mxu0 0
  %270 = vmatprep.subr.bf16.mxu0 0
  %271 = vmatpush1.bf16.msra.mxu0 0
  %272 = vmatprep.subr.bf16.mxu0 0
  %273 = vmatpush1.bf16.msra.mxu0 0
  %274 = vmatprep.subr.bf16.mxu0 0
  %275 = vmatpush1.bf16.msra.mxu0 0
  %276 = vmatprep.subr.bf16.mxu0 0
  %277 = vmatpush1.bf16.msra.mxu0 0
  %278 = vmatprep.subr.bf16.mxu0 0
  %279 = vmatpush1.bf16.msra.mxu0 0
  %280 = vmatprep.subr.bf16.mxu0 0
  %281 = vmatpush1.bf16.msra.mxu0 0
  %282 = vmatprep.mubr.bf16.mxu0 0
  %283 = vmatmul.mubr.bf16.gmra.mrb[0].mxu0 %v158
  %v284 = vpop.f32.mrb[0].mxu0
  %v285 = vadd.f32 0.0, %v284
  %v286 = vpop.f32.mrb[0].mxu0
  %v287 = vadd.f32 0.0, %v286
  %v288 = vpop.f32.mrb[0].mxu0
  %v289 = vpop.f32.mrb[0].mxu0
  %290 = vdwg.mxu0
  %291 = vmatprep.subr.bf16.mxu0 %v177
  %292 = vmatpush1.bf16.msra.mxu0 %v174
  %293 = vmatprep.subr.bf16.mxu0 0
  %294 = vmatpush1.bf16.msra.mxu0 0
  %295 = vmatprep.subr.bf16.mxu0 0
  %296 = vmatpush1.bf16.msra.mxu0 0
  %297 = vmatprep.subr.bf16.mxu0 0
  %298 = vmatpush1.bf16.msra.mxu0 0
  %299 = vmatprep.subr.bf16.mxu0 0
  %300 = vmatpush1.bf16.msra.mxu0 0
  %301 = vmatprep.subr.bf16.mxu0 0
  %302 = vmatpush1.bf16.msra.mxu0 0
  %303 = vmatprep.subr.bf16.mxu0 0
  %304 = vmatpush1.bf16.msra.mxu0 0
  %305 = vmatprep.subr.bf16.mxu0 0
  %306 = vmatpush1.bf16.msra.mxu0 0
  %307 = vmatprep.subr.bf16.mxu0 0
  %308 = vmatpush1.bf16.msra.mxu0 0
  %309 = vmatprep.subr.bf16.mxu0 0
  %310 = vmatpush1.bf16.msra.mxu0 0
  %311 = vmatprep.subr.bf16.mxu0 0
  %312 = vmatpush1.bf16.msra.mxu0 0
  %313 = vmatprep.subr.bf16.mxu0 0
  %314 = vmatpush1.bf16.msra.mxu0 0
  %315 = vmatprep.subr.bf16.mxu0 0
  %316 = vmatpush1.bf16.msra.mxu0 0
  %317 = vmatprep.subr.bf16.mxu0 0
  %318 = vmatpush1.bf16.msra.mxu0 0
  %319 = vmatprep.subr.bf16.mxu0 0
  %320 = vmatpush1.bf16.msra.mxu0 0
  %321 = vmatprep.subr.bf16.mxu0 0
  %322 = vmatpush1.bf16.msra.mxu0 0
  %323 = vmatprep.mubr.bf16.mxu0 0
  %324 = vmatmul.mubr.bf16.gmra.mrb[0].mxu0 %v158
  %v325 = vpop.f32.mrb[0].mxu0
  %v326 = vadd.f32 0.0, %v325
  %v327 = vpop.f32.mrb[0].mxu0
  %v328 = vadd.f32 0.0, %v327
  %v329 = vpop.f32.mrb[0].mxu0
  %v330 = vpop.f32.mrb[0].mxu0
  %331 = vdwg.mxu0
  %332 = vmatprep.subr.bf16.mxu0 %v183
  %333 = vmatpush1.bf16.msra.mxu0 %v180
  %334 = vmatprep.subr.bf16.mxu0 0
  %335 = vmatpush1.bf16.msra.mxu0 0
  %336 = vmatprep.subr.bf16.mxu0 0
  %337 = vmatpush1.bf16.msra.mxu0 0
  %338 = vmatprep.subr.bf16.mxu0 0
  %339 = vmatpush1.bf16.msra.mxu0 0
  %340 = vmatprep.subr.bf16.mxu0 0
  %341 = vmatpush1.bf16.msra.mxu0 0
  %342 = vmatprep.subr.bf16.mxu0 0
  %343 = vmatpush1.bf16.msra.mxu0 0
  %344 = vmatprep.subr.bf16.mxu0 0
  %345 = vmatpush1.bf16.msra.mxu0 0
  %346 = vmatprep.subr.bf16.mxu0 0
  %347 = vmatpush1.bf16.msra.mxu0 0
  %348 = vmatprep.subr.bf16.mxu0 0
  %349 = vmatpush1.bf16.msra.mxu0 0
  %350 = vmatprep.subr.bf16.mxu0 0
  %351 = vmatpush1.bf16.msra.mxu0 0
  %352 = vmatprep.subr.bf16.mxu0 0
  %353 = vmatpush1.bf16.msra.mxu0 0
  %354 = vmatprep.subr.bf16.mxu0 0
  %355 = vmatpush1.bf16.msra.mxu0 0
  %356 = vmatprep.subr.bf16.mxu0 0
  %357 = vmatpush1.bf16.msra.mxu0 0
  %358 = vmatprep.subr.bf16.mxu0 0
  %359 = vmatpush1.bf16.msra.mxu0 0
  %360 = vmatprep.subr.bf16.mxu0 0
  %361 = vmatpush1.bf16.msra.mxu0 0
  %362 = vmatprep.subr.bf16.mxu0 0
  %363 = vmatpush1.bf16.msra.mxu0 0
  %364 = vmatprep.mubr.bf16.mxu0 0
  %365 = vmatmul.mubr.bf16.gmra.mrb[0].mxu0 %v158
  %v366 = vpop.f32.mrb[0].mxu0
  %v367 = vadd.f32 0.0, %v366
  %v368 = vpop.f32.mrb[0].mxu0
  %v369 = vadd.f32 0.0, %v368
  %v370 = vpop.f32.mrb[0].mxu0
  %v371 = vpop.f32.mrb[0].mxu0
  %372 = vdwg.mxu0
  %373 = vmatprep.subr.bf16.mxu0 %v189
  %374 = vmatpush1.bf16.msra.mxu0 %v186
  %375 = vmatprep.subr.bf16.mxu0 0
  %376 = vmatpush1.bf16.msra.mxu0 0
  %377 = vmatprep.subr.bf16.mxu0 0
  %378 = vmatpush1.bf16.msra.mxu0 0
  %379 = vmatprep.subr.bf16.mxu0 0
  %380 = vmatpush1.bf16.msra.mxu0 0
  %381 = vmatprep.subr.bf16.mxu0 0
  %382 = vmatpush1.bf16.msra.mxu0 0
  %383 = vmatprep.subr.bf16.mxu0 0
  %384 = vmatpush1.bf16.msra.mxu0 0
  %385 = vmatprep.subr.bf16.mxu0 0
  %386 = vmatpush1.bf16.msra.mxu0 0
  %387 = vmatprep.subr.bf16.mxu0 0
  %388 = vmatpush1.bf16.msra.mxu0 0
  %389 = vmatprep.subr.bf16.mxu0 0
  %390 = vmatpush1.bf16.msra.mxu0 0
  %391 = vmatprep.subr.bf16.mxu0 0
  %392 = vmatpush1.bf16.msra.mxu0 0
  %393 = vmatprep.subr.bf16.mxu0 0
  %394 = vmatpush1.bf16.msra.mxu0 0
  %395 = vmatprep.subr.bf16.mxu0 0
  %396 = vmatpush1.bf16.msra.mxu0 0
  %397 = vmatprep.subr.bf16.mxu0 0
  %398 = vmatpush1.bf16.msra.mxu0 0
  %399 = vmatprep.subr.bf16.mxu0 0
  %400 = vmatpush1.bf16.msra.mxu0 0
  %401 = vmatprep.subr.bf16.mxu0 0
  %402 = vmatpush1.bf16.msra.mxu0 0
  %403 = vmatprep.subr.bf16.mxu0 0
  %404 = vmatpush1.bf16.msra.mxu0 0
  %405 = vmatprep.mubr.bf16.mxu0 0
  %406 = vmatmul.mubr.bf16.gmra.mrb[0].mxu0 %v158
  %v407 = vpop.f32.mrb[0].mxu0
  %v408 = vadd.f32 0.0, %v407
  %v409 = vpop.f32.mrb[0].mxu0
  %v410 = vadd.f32 0.0, %v409
  %v411 = vpop.f32.mrb[0].mxu0
  %v412 = vpop.f32.mrb[0].mxu0
  %413 = vdwg.mxu0
  %414 = vmatprep.subr.bf16.mxu0 %v195
  %415 = vmatpush1.bf16.msra.mxu0 %v192
  %416 = vmatprep.subr.bf16.mxu0 0
  %417 = vmatpush1.bf16.msra.mxu0 0
  %418 = vmatprep.subr.bf16.mxu0 0
  %419 = vmatpush1.bf16.msra.mxu0 0
  %420 = vmatprep.subr.bf16.mxu0 0
  %421 = vmatpush1.bf16.msra.mxu0 0
  %422 = vmatprep.subr.bf16.mxu0 0
  %423 = vmatpush1.bf16.msra.mxu0 0
  %424 = vmatprep.subr.bf16.mxu0 0
  %425 = vmatpush1.bf16.msra.mxu0 0
  %426 = vmatprep.subr.bf16.mxu0 0
  %427 = vmatpush1.bf16.msra.mxu0 0
  %428 = vmatprep.subr.bf16.mxu0 0
  %429 = vmatpush1.bf16.msra.mxu0 0
  %430 = vmatprep.subr.bf16.mxu0 0
  %431 = vmatpush1.bf16.msra.mxu0 0
  %432 = vmatprep.subr.bf16.mxu0 0
  %433 = vmatpush1.bf16.msra.mxu0 0
  %434 = vmatprep.subr.bf16.mxu0 0
  %435 = vmatpush1.bf16.msra.mxu0 0
  %436 = vmatprep.subr.bf16.mxu0 0
  %437 = vmatpush1.bf16.msra.mxu0 0
  %438 = vmatprep.subr.bf16.mxu0 0
  %439 = vmatpush1.bf16.msra.mxu0 0
  %440 = vmatprep.subr.bf16.mxu0 0
  %441 = vmatpush1.bf16.msra.mxu0 0
  %442 = vmatprep.subr.bf16.mxu0 0
  %443 = vmatpush1.bf16.msra.mxu0 0
  %444 = vmatprep.subr.bf16.mxu0 0
  %445 = vmatpush1.bf16.msra.mxu0 0
  %446 = vmatprep.mubr.bf16.mxu0 0
  %447 = vmatmul.mubr.bf16.gmra.mrb[0].mxu0 %v158
  %v448 = vpop.f32.mrb[0].mxu0
  %v449 = vadd.f32 0.0, %v448
  %v450 = vpop.f32.mrb[0].mxu0
  %v451 = vadd.f32 0.0, %v450
  %v452 = vpop.f32.mrb[0].mxu0
  %v453 = vpop.f32.mrb[0].mxu0
  %454 = vdwg.mxu0
  %455 = vmatprep.subr.bf16.mxu0 %v201
  %456 = vmatpush1.bf16.msra.mxu0 %v198
  %457 = vmatprep.subr.bf16.mxu0 0
  %458 = vmatpush1.bf16.msra.mxu0 0
  %459 = vmatprep.subr.bf16.mxu0 0
  %460 = vmatpush1.bf16.msra.mxu0 0
  %461 = vmatprep.subr.bf16.mxu0 0
  %462 = vmatpush1.bf16.msra.mxu0 0
  %463 = vmatprep.subr.bf16.mxu0 0
  %464 = vmatpush1.bf16.msra.mxu0 0
  %465 = vmatprep.subr.bf16.mxu0 0
  %466 = vmatpush1.bf16.msra.mxu0 0
  %467 = vmatprep.subr.bf16.mxu0 0
  %468 = vmatpush1.bf16.msra.mxu0 0
  %469 = vmatprep.subr.bf16.mxu0 0
  %470 = vmatpush1.bf16.msra.mxu0 0
  %471 = vmatprep.subr.bf16.mxu0 0
  %472 = vmatpush1.bf16.msra.mxu0 0
  %473 = vmatprep.subr.bf16.mxu0 0
  %474 = vmatpush1.bf16.msra.mxu0 0
  %475 = vmatprep.subr.bf16.mxu0 0
  %476 = vmatpush1.bf16.msra.mxu0 0
  %477 = vmatprep.subr.bf16.mxu0 0
  %478 = vmatpush1.bf16.msra.mxu0 0
  %479 = vmatprep.subr.bf16.mxu0 0
  %480 = vmatpush1.bf16.msra.mxu0 0
  %481 = vmatprep.subr.bf16.mxu0 0
  %482 = vmatpush1.bf16.msra.mxu0 0
  %483 = vmatprep.subr.bf16.mxu0 0
  %484 = vmatpush1.bf16.msra.mxu0 0
  %485 = vmatprep.subr.bf16.mxu0 0
  %486 = vmatpush1.bf16.msra.mxu0 0
  %487 = vmatprep.mubr.bf16.mxu0 0
  %488 = vmatmul.mubr.bf16.gmra.mrb[0].mxu0 %v158
  %v489 = vpop.f32.mrb[0].mxu0
  %v490 = vadd.f32 0.0, %v489
  %v491 = vpop.f32.mrb[0].mxu0
  %v492 = vadd.f32 0.0, %v491
  %v493 = vpop.f32.mrb[0].mxu0
  %v494 = vpop.f32.mrb[0].mxu0
  %495 = vdwg.mxu0
  %496 = vmatprep.subr.bf16.mxu0 %v207
  %497 = vmatpush1.bf16.msra.mxu0 %v204
  %498 = vmatprep.subr.bf16.mxu0 0
  %499 = vmatpush1.bf16.msra.mxu0 0
  %500 = vmatprep.subr.bf16.mxu0 0
  %501 = vmatpush1.bf16.msra.mxu0 0
  %502 = vmatprep.subr.bf16.mxu0 0
  %503 = vmatpush1.bf16.msra.mxu0 0
  %504 = vmatprep.subr.bf16.mxu0 0
  %505 = vmatpush1.bf16.msra.mxu0 0
  %506 = vmatprep.subr.bf16.mxu0 0
  %507 = vmatpush1.bf16.msra.mxu0 0
  %508 = vmatprep.subr.bf16.mxu0 0
  %509 = vmatpush1.bf16.msra.mxu0 0
  %510 = vmatprep.subr.bf16.mxu0 0
  %511 = vmatpush1.bf16.msra.mxu0 0
  %512 = vmatprep.subr.bf16.mxu0 0
  %513 = vmatpush1.bf16.msra.mxu0 0
  %514 = vmatprep.subr.bf16.mxu0 0
  %515 = vmatpush1.bf16.msra.mxu0 0
  %516 = vmatprep.subr.bf16.mxu0 0
  %517 = vmatpush1.bf16.msra.mxu0 0
  %518 = vmatprep.subr.bf16.mxu0 0
  %519 = vmatpush1.bf16.msra.mxu0 0
  %520 = vmatprep.subr.bf16.mxu0 0
  %521 = vmatpush1.bf16.msra.mxu0 0
  %522 = vmatprep.subr.bf16.mxu0 0
  %523 = vmatpush1.bf16.msra.mxu0 0
  %524 = vmatprep.subr.bf16.mxu0 0
  %525 = vmatpush1.bf16.msra.mxu0 0
  %526 = vmatprep.subr.bf16.mxu0 0
  %527 = vmatpush1.bf16.msra.mxu0 0
  %528 = vmatprep.mubr.bf16.mxu0 0
  %529 = vmatmul.mubr.bf16.gmra.mrb[0].mxu0 %v158
  %v530 = vpop.f32.mrb[0].mxu0
  %v531 = vadd.f32 0.0, %v530
  %v532 = vpop.f32.mrb[0].mxu0
  %v533 = vadd.f32 0.0, %v532
  %v534 = vpop.f32.mrb[0].mxu0
  %v535 = vpop.f32.mrb[0].mxu0
  %536 = vdwg.mxu0
  %v553 = vunpack.c.l.b16 %v58
  %v554 = vunpack.c.h.b16 %v58
  %v555 = vunpack.c.l.b16 %v59
  %v556 = vunpack.c.h.b16 %v59
  %v557 = vunpack.c.l.b16 %v60
  %v558 = vunpack.c.h.b16 %v60
  %v559 = vunpack.c.l.b16 %v61
  %v560 = vunpack.c.h.b16 %v61
  %v561 = vunpack.c.l.b16 %v62
  %v562 = vunpack.c.h.b16 %v62
  %v563 = vunpack.c.l.b16 %v63
  %v564 = vunpack.c.h.b16 %v63
  %v565 = vunpack.c.l.b16 %v64
  %v566 = vunpack.c.h.b16 %v64
  %v567 = vunpack.c.l.b16 %v65
  %v568 = vunpack.c.h.b16 %v65
  %v569 = vunpack.c.l.b16 %v66
  %v570 = vunpack.c.h.b16 %v66
  %v571 = vunpack.c.l.b16 %v67
  %v572 = vunpack.c.h.b16 %v67
  %v573 = vunpack.c.l.b16 %v68
  %v574 = vunpack.c.h.b16 %v68
  %v575 = vunpack.c.l.b16 %v69
  %v576 = vunpack.c.h.b16 %v69
  %v577 = vunpack.c.l.b16 %v70
  %v578 = vunpack.c.h.b16 %v70
  %v579 = vunpack.c.l.b16 %v71
  %v580 = vunpack.c.h.b16 %v71
  %v581 = vunpack.c.l.b16 %v72
  %v582 = vunpack.c.h.b16 %v72
  %v583 = vunpack.c.l.b16 %v73
  %v584 = vunpack.c.h.b16 %v73
  %v585 = vpack.c.b16 %v569, %v553
  %v586 = vpack.c.b16 %v570, %v554
  %v587 = vpack.c.b16 %v571, %v555
  %v588 = vpack.c.b16 %v572, %v556
  %v589 = vpack.c.b16 %v573, %v557
  %v590 = vpack.c.b16 %v574, %v558
  %v591 = vpack.c.b16 %v575, %v559
  %v592 = vpack.c.b16 %v576, %v560
  %v593 = vpack.c.b16 %v577, %v561
  %v594 = vpack.c.b16 %v578, %v562
  %v595 = vpack.c.b16 %v579, %v563
  %v596 = vpack.c.b16 %v580, %v564
  %v597 = vpack.c.b16 %v581, %v565
  %v598 = vpack.c.b16 %v582, %v566
  %v599 = vpack.c.b16 %v583, %v567
  %v600 = vpack.c.b16 %v584, %v568
  %v602 = vsel %vm156, %v57, 0
  %v605 = vsel %vm160, %v585, 0
  %v608 = vsel %vm160, %v586, 0
  %v611 = vsel %vm160, %v587, 0
  %v614 = vsel %vm160, %v588, 0
  %v617 = vsel %vm160, %v589, 0
  %v620 = vsel %vm160, %v590, 0
  %v623 = vsel %vm160, %v591, 0
  %v626 = vsel %vm160, %v592, 0
  %v629 = vsel %vm160, %v593, 0
  %v632 = vsel %vm160, %v594, 0
  %v635 = vsel %vm160, %v595, 0
  %v638 = vsel %vm160, %v596, 0
  %v641 = vsel %vm160, %v597, 0
  %v644 = vsel %vm160, %v598, 0
  %v647 = vsel %vm160, %v599, 0
  %v650 = vsel %vm160, %v600, 0
  %652 = vmatprep.subr.bf16.mxu0 %v608
  %653 = vmatpush1.bf16.msra.mxu0 %v605
  %654 = vmatprep.subr.bf16.mxu0 0
  %655 = vmatpush1.bf16.msra.mxu0 0
  %656 = vmatprep.subr.bf16.mxu0 0
  %657 = vmatpush1.bf16.msra.mxu0 0
  %658 = vmatprep.subr.bf16.mxu0 0
  %659 = vmatpush1.bf16.msra.mxu0 0
  %660 = vmatprep.subr.bf16.mxu0 0
  %661 = vmatpush1.bf16.msra.mxu0 0
  %662 = vmatprep.subr.bf16.mxu0 0
  %663 = vmatpush1.bf16.msra.mxu0 0
  %664 = vmatprep.subr.bf16.mxu0 0
  %665 = vmatpush1.bf16.msra.mxu0 0
  %666 = vmatprep.subr.bf16.mxu0 0
  %667 = vmatpush1.bf16.msra.mxu0 0
  %668 = vmatprep.subr.bf16.mxu0 0
  %669 = vmatpush1.bf16.msra.mxu0 0
  %670 = vmatprep.subr.bf16.mxu0 0
  %671 = vmatpush1.bf16.msra.mxu0 0
  %672 = vmatprep.subr.bf16.mxu0 0
  %673 = vmatpush1.bf16.msra.mxu0 0
  %674 = vmatprep.subr.bf16.mxu0 0
  %675 = vmatpush1.bf16.msra.mxu0 0
  %676 = vmatprep.subr.bf16.mxu0 0
  %677 = vmatpush1.bf16.msra.mxu0 0
  %678 = vmatprep.subr.bf16.mxu0 0
  %679 = vmatpush1.bf16.msra.mxu0 0
  %680 = vmatprep.subr.bf16.mxu0 0
  %681 = vmatpush1.bf16.msra.mxu0 0
  %682 = vmatprep.subr.bf16.mxu0 0
  %683 = vmatpush1.bf16.msra.mxu0 0
  %684 = vmatprep.mubr.bf16.mxu0 0
  %685 = vmatmul.mubr.bf16.gmra.mrb[0].mxu0 %v602
  %v686 = vpop.f32.mrb[0].mxu0
  %v687 = vadd.f32 %v244, %v686
  %v688 = vpop.f32.mrb[0].mxu0
  %v689 = vadd.f32 %v246, %v688
  %v690 = vpop.f32.mrb[0].mxu0
  %v691 = vpop.f32.mrb[0].mxu0
  %692 = vdwg.mxu0
  %693 = vmatprep.subr.bf16.mxu0 %v614
  %694 = vmatpush1.bf16.msra.mxu0 %v611
  %695 = vmatprep.subr.bf16.mxu0 0
  %696 = vmatpush1.bf16.msra.mxu0 0
  %697 = vmatprep.subr.bf16.mxu0 0
  %698 = vmatpush1.bf16.msra.mxu0 0
  %699 = vmatprep.subr.bf16.mxu0 0
  %700 = vmatpush1.bf16.msra.mxu0 0
  %701 = vmatprep.subr.bf16.mxu0 0
  %702 = vmatpush1.bf16.msra.mxu0 0
  %703 = vmatprep.subr.bf16.mxu0 0
  %704 = vmatpush1.bf16.msra.mxu0 0
  %705 = vmatprep.subr.bf16.mxu0 0
  %706 = vmatpush1.bf16.msra.mxu0 0
  %707 = vmatprep.subr.bf16.mxu0 0
  %708 = vmatpush1.bf16.msra.mxu0 0
  %709 = vmatprep.subr.bf16.mxu0 0
  %710 = vmatpush1.bf16.msra.mxu0 0
  %711 = vmatprep.subr.bf16.mxu0 0
  %712 = vmatpush1.bf16.msra.mxu0 0
  %713 = vmatprep.subr.bf16.mxu0 0
  %714 = vmatpush1.bf16.msra.mxu0 0
  %715 = vmatprep.subr.bf16.mxu0 0
  %716 = vmatpush1.bf16.msra.mxu0 0
  %717 = vmatprep.subr.bf16.mxu0 0
  %718 = vmatpush1.bf16.msra.mxu0 0
  %719 = vmatprep.subr.bf16.mxu0 0
  %720 = vmatpush1.bf16.msra.mxu0 0
  %721 = vmatprep.subr.bf16.mxu0 0
  %722 = vmatpush1.bf16.msra.mxu0 0
  %723 = vmatprep.subr.bf16.mxu0 0
  %724 = vmatpush1.bf16.msra.mxu0 0
  %725 = vmatprep.mubr.bf16.mxu0 0
  %726 = vmatmul.mubr.bf16.gmra.mrb[0].mxu0 %v602
  %v727 = vpop.f32.mrb[0].mxu0
  %v728 = vadd.f32 %v285, %v727
  %v729 = vpop.f32.mrb[0].mxu0
  %v730 = vadd.f32 %v287, %v729
  %v731 = vpop.f32.mrb[0].mxu0
  %v732 = vpop.f32.mrb[0].mxu0
  %733 = vdwg.mxu0
  %734 = vmatprep.subr.bf16.mxu0 %v620
  %735 = vmatpush1.bf16.msra.mxu0 %v617
  %736 = vmatprep.subr.bf16.mxu0 0
  %737 = vmatpush1.bf16.msra.mxu0 0
  %738 = vmatprep.subr.bf16.mxu0 0
  %739 = vmatpush1.bf16.msra.mxu0 0
  %740 = vmatprep.subr.bf16.mxu0 0
  %741 = vmatpush1.bf16.msra.mxu0 0
  %742 = vmatprep.subr.bf16.mxu0 0
  %743 = vmatpush1.bf16.msra.mxu0 0
  %744 = vmatprep.subr.bf16.mxu0 0
  %745 = vmatpush1.bf16.msra.mxu0 0
  %746 = vmatprep.subr.bf16.mxu0 0
  %747 = vmatpush1.bf16.msra.mxu0 0
  %748 = vmatprep.subr.bf16.mxu0 0
  %749 = vmatpush1.bf16.msra.mxu0 0
  %750 = vmatprep.subr.bf16.mxu0 0
  %751 = vmatpush1.bf16.msra.mxu0 0
  %752 = vmatprep.subr.bf16.mxu0 0
  %753 = vmatpush1.bf16.msra.mxu0 0
  %754 = vmatprep.subr.bf16.mxu0 0
  %755 = vmatpush1.bf16.msra.mxu0 0
  %756 = vmatprep.subr.bf16.mxu0 0
  %757 = vmatpush1.bf16.msra.mxu0 0
  %758 = vmatprep.subr.bf16.mxu0 0
  %759 = vmatpush1.bf16.msra.mxu0 0
  %760 = vmatprep.subr.bf16.mxu0 0
  %761 = vmatpush1.bf16.msra.mxu0 0
  %762 = vmatprep.subr.bf16.mxu0 0
  %763 = vmatpush1.bf16.msra.mxu0 0
  %764 = vmatprep.subr.bf16.mxu0 0
  %765 = vmatpush1.bf16.msra.mxu0 0
  %766 = vmatprep.mubr.bf16.mxu0 0
  %767 = vmatmul.mubr.bf16.gmra.mrb[0].mxu0 %v602
  %v768 = vpop.f32.mrb[0].mxu0
  %v769 = vadd.f32 %v326, %v768
  %v770 = vpop.f32.mrb[0].mxu0
  %v771 = vadd.f32 %v328, %v770
  %v772 = vpop.f32.mrb[0].mxu0
  %v773 = vpop.f32.mrb[0].mxu0
  %774 = vdwg.mxu0
  %775 = vmatprep.subr.bf16.mxu0 %v626
  %776 = vmatpush1.bf16.msra.mxu0 %v623
  %777 = vmatprep.subr.bf16.mxu0 0
  %778 = vmatpush1.bf16.msra.mxu0 0
  %779 = vmatprep.subr.bf16.mxu0 0
  %780 = vmatpush1.bf16.msra.mxu0 0
  %781 = vmatprep.subr.bf16.mxu0 0
  %782 = vmatpush1.bf16.msra.mxu0 0
  %783 = vmatprep.subr.bf16.mxu0 0
  %784 = vmatpush1.bf16.msra.mxu0 0
  %785 = vmatprep.subr.bf16.mxu0 0
  %786 = vmatpush1.bf16.msra.mxu0 0
  %787 = vmatprep.subr.bf16.mxu0 0
  %788 = vmatpush1.bf16.msra.mxu0 0
  %789 = vmatprep.subr.bf16.mxu0 0
  %790 = vmatpush1.bf16.msra.mxu0 0
  %791 = vmatprep.subr.bf16.mxu0 0
  %792 = vmatpush1.bf16.msra.mxu0 0
  %793 = vmatprep.subr.bf16.mxu0 0
  %794 = vmatpush1.bf16.msra.mxu0 0
  %795 = vmatprep.subr.bf16.mxu0 0
  %796 = vmatpush1.bf16.msra.mxu0 0
  %797 = vmatprep.subr.bf16.mxu0 0
  %798 = vmatpush1.bf16.msra.mxu0 0
  %799 = vmatprep.subr.bf16.mxu0 0
  %800 = vmatpush1.bf16.msra.mxu0 0
  %801 = vmatprep.subr.bf16.mxu0 0
  %802 = vmatpush1.bf16.msra.mxu0 0
  %803 = vmatprep.subr.bf16.mxu0 0
  %804 = vmatpush1.bf16.msra.mxu0 0
  %805 = vmatprep.subr.bf16.mxu0 0
  %806 = vmatpush1.bf16.msra.mxu0 0
  %807 = vmatprep.mubr.bf16.mxu0 0
  %808 = vmatmul.mubr.bf16.gmra.mrb[0].mxu0 %v602
  %v809 = vpop.f32.mrb[0].mxu0
  %v810 = vadd.f32 %v367, %v809
  %v811 = vpop.f32.mrb[0].mxu0
  %v812 = vadd.f32 %v369, %v811
  %v813 = vpop.f32.mrb[0].mxu0
  %v814 = vpop.f32.mrb[0].mxu0
  %815 = vdwg.mxu0
  %816 = vmatprep.subr.bf16.mxu0 %v632
  %817 = vmatpush1.bf16.msra.mxu0 %v629
  %818 = vmatprep.subr.bf16.mxu0 0
  %819 = vmatpush1.bf16.msra.mxu0 0
  %820 = vmatprep.subr.bf16.mxu0 0
  %821 = vmatpush1.bf16.msra.mxu0 0
  %822 = vmatprep.subr.bf16.mxu0 0
  %823 = vmatpush1.bf16.msra.mxu0 0
  %824 = vmatprep.subr.bf16.mxu0 0
  %825 = vmatpush1.bf16.msra.mxu0 0
  %826 = vmatprep.subr.bf16.mxu0 0
  %827 = vmatpush1.bf16.msra.mxu0 0
  %828 = vmatprep.subr.bf16.mxu0 0
  %829 = vmatpush1.bf16.msra.mxu0 0
  %830 = vmatprep.subr.bf16.mxu0 0
  %831 = vmatpush1.bf16.msra.mxu0 0
  %832 = vmatprep.subr.bf16.mxu0 0
  %833 = vmatpush1.bf16.msra.mxu0 0
  %834 = vmatprep.subr.bf16.mxu0 0
  %835 = vmatpush1.bf16.msra.mxu0 0
  %836 = vmatprep.subr.bf16.mxu0 0
  %837 = vmatpush1.bf16.msra.mxu0 0
  %838 = vmatprep.subr.bf16.mxu0 0
  %839 = vmatpush1.bf16.msra.mxu0 0
  %840 = vmatprep.subr.bf16.mxu0 0
  %841 = vmatpush1.bf16.msra.mxu0 0
  %842 = vmatprep.subr.bf16.mxu0 0
  %843 = vmatpush1.bf16.msra.mxu0 0
  %844 = vmatprep.subr.bf16.mxu0 0
  %845 = vmatpush1.bf16.msra.mxu0 0
  %846 = vmatprep.subr.bf16.mxu0 0
  %847 = vmatpush1.bf16.msra.mxu0 0
  %848 = vmatprep.mubr.bf16.mxu0 0
  %849 = vmatmul.mubr.bf16.gmra.mrb[0].mxu0 %v602
  %v850 = vpop.f32.mrb[0].mxu0
  %v851 = vadd.f32 %v408, %v850
  %v852 = vpop.f32.mrb[0].mxu0
  %v853 = vadd.f32 %v410, %v852
  %v854 = vpop.f32.mrb[0].mxu0
  %v855 = vpop.f32.mrb[0].mxu0
  %856 = vdwg.mxu0
  %857 = vmatprep.subr.bf16.mxu0 %v638
  %858 = vmatpush1.bf16.msra.mxu0 %v635
  %859 = vmatprep.subr.bf16.mxu0 0
  %860 = vmatpush1.bf16.msra.mxu0 0
  %861 = vmatprep.subr.bf16.mxu0 0
  %862 = vmatpush1.bf16.msra.mxu0 0
  %863 = vmatprep.subr.bf16.mxu0 0
  %864 = vmatpush1.bf16.msra.mxu0 0
  %865 = vmatprep.subr.bf16.mxu0 0
  %866 = vmatpush1.bf16.msra.mxu0 0
  %867 = vmatprep.subr.bf16.mxu0 0
  %868 = vmatpush1.bf16.msra.mxu0 0
  %869 = vmatprep.subr.bf16.mxu0 0
  %870 = vmatpush1.bf16.msra.mxu0 0
  %871 = vmatprep.subr.bf16.mxu0 0
  %872 = vmatpush1.bf16.msra.mxu0 0
  %873 = vmatprep.subr.bf16.mxu0 0
  %874 = vmatpush1.bf16.msra.mxu0 0
  %875 = vmatprep.subr.bf16.mxu0 0
  %876 = vmatpush1.bf16.msra.mxu0 0
  %877 = vmatprep.subr.bf16.mxu0 0
  %878 = vmatpush1.bf16.msra.mxu0 0
  %879 = vmatprep.subr.bf16.mxu0 0
  %880 = vmatpush1.bf16.msra.mxu0 0
  %881 = vmatprep.subr.bf16.mxu0 0
  %882 = vmatpush1.bf16.msra.mxu0 0
  %883 = vmatprep.subr.bf16.mxu0 0
  %884 = vmatpush1.bf16.msra.mxu0 0
  %885 = vmatprep.subr.bf16.mxu0 0
  %886 = vmatpush1.bf16.msra.mxu0 0
  %887 = vmatprep.subr.bf16.mxu0 0
  %888 = vmatpush1.bf16.msra.mxu0 0
  %889 = vmatprep.mubr.bf16.mxu0 0
  %890 = vmatmul.mubr.bf16.gmra.mrb[0].mxu0 %v602
  %v891 = vpop.f32.mrb[0].mxu0
  %v892 = vadd.f32 %v449, %v891
  %v893 = vpop.f32.mrb[0].mxu0
  %v894 = vadd.f32 %v451, %v893
  %v895 = vpop.f32.mrb[0].mxu0
  %v896 = vpop.f32.mrb[0].mxu0
  %897 = vdwg.mxu0
  %898 = vmatprep.subr.bf16.mxu0 %v644
  %899 = vmatpush1.bf16.msra.mxu0 %v641
  %900 = vmatprep.subr.bf16.mxu0 0
  %901 = vmatpush1.bf16.msra.mxu0 0
  %902 = vmatprep.subr.bf16.mxu0 0
  %903 = vmatpush1.bf16.msra.mxu0 0
  %904 = vmatprep.subr.bf16.mxu0 0
  %905 = vmatpush1.bf16.msra.mxu0 0
  %906 = vmatprep.subr.bf16.mxu0 0
  %907 = vmatpush1.bf16.msra.mxu0 0
  %908 = vmatprep.subr.bf16.mxu0 0
  %909 = vmatpush1.bf16.msra.mxu0 0
  %910 = vmatprep.subr.bf16.mxu0 0
  %911 = vmatpush1.bf16.msra.mxu0 0
  %912 = vmatprep.subr.bf16.mxu0 0
  %913 = vmatpush1.bf16.msra.mxu0 0
  %914 = vmatprep.subr.bf16.mxu0 0
  %915 = vmatpush1.bf16.msra.mxu0 0
  %916 = vmatprep.subr.bf16.mxu0 0
  %917 = vmatpush1.bf16.msra.mxu0 0
  %918 = vmatprep.subr.bf16.mxu0 0
  %919 = vmatpush1.bf16.msra.mxu0 0
  %920 = vmatprep.subr.bf16.mxu0 0
  %921 = vmatpush1.bf16.msra.mxu0 0
  %922 = vmatprep.subr.bf16.mxu0 0
  %923 = vmatpush1.bf16.msra.mxu0 0
  %924 = vmatprep.subr.bf16.mxu0 0
  %925 = vmatpush1.bf16.msra.mxu0 0
  %926 = vmatprep.subr.bf16.mxu0 0
  %927 = vmatpush1.bf16.msra.mxu0 0
  %928 = vmatprep.subr.bf16.mxu0 0
  %929 = vmatpush1.bf16.msra.mxu0 0
  %930 = vmatprep.mubr.bf16.mxu0 0
  %931 = vmatmul.mubr.bf16.gmra.mrb[0].mxu0 %v602
  %v932 = vpop.f32.mrb[0].mxu0
  %v933 = vadd.f32 %v490, %v932
  %v934 = vpop.f32.mrb[0].mxu0
  %v935 = vadd.f32 %v492, %v934
  %v936 = vpop.f32.mrb[0].mxu0
  %v937 = vpop.f32.mrb[0].mxu0
  %938 = vdwg.mxu0
  %939 = vmatprep.subr.bf16.mxu0 %v650
  %940 = vmatpush1.bf16.msra.mxu0 %v647
  %941 = vmatprep.subr.bf16.mxu0 0
  %942 = vmatpush1.bf16.msra.mxu0 0
  %943 = vmatprep.subr.bf16.mxu0 0
  %944 = vmatpush1.bf16.msra.mxu0 0
  %945 = vmatprep.subr.bf16.mxu0 0
  %946 = vmatpush1.bf16.msra.mxu0 0
  %947 = vmatprep.subr.bf16.mxu0 0
  %948 = vmatpush1.bf16.msra.mxu0 0
  %949 = vmatprep.subr.bf16.mxu0 0
  %950 = vmatpush1.bf16.msra.mxu0 0
  %951 = vmatprep.subr.bf16.mxu0 0
  %952 = vmatpush1.bf16.msra.mxu0 0
  %953 = vmatprep.subr.bf16.mxu0 0
  %954 = vmatpush1.bf16.msra.mxu0 0
  %955 = vmatprep.subr.bf16.mxu0 0
  %956 = vmatpush1.bf16.msra.mxu0 0
  %957 = vmatprep.subr.bf16.mxu0 0
  %958 = vmatpush1.bf16.msra.mxu0 0
  %959 = vmatprep.subr.bf16.mxu0 0
  %960 = vmatpush1.bf16.msra.mxu0 0
  %961 = vmatprep.subr.bf16.mxu0 0
  %962 = vmatpush1.bf16.msra.mxu0 0
  %963 = vmatprep.subr.bf16.mxu0 0
  %964 = vmatpush1.bf16.msra.mxu0 0
  %965 = vmatprep.subr.bf16.mxu0 0
  %966 = vmatpush1.bf16.msra.mxu0 0
  %967 = vmatprep.subr.bf16.mxu0 0
  %968 = vmatpush1.bf16.msra.mxu0 0
  %969 = vmatprep.subr.bf16.mxu0 0
  %970 = vmatpush1.bf16.msra.mxu0 0
  %971 = vmatprep.mubr.bf16.mxu0 0
  %972 = vmatmul.mubr.bf16.gmra.mrb[0].mxu0 %v602
  %v973 = vpop.f32.mrb[0].mxu0
  %v974 = vadd.f32 %v531, %v973
  %v975 = vpop.f32.mrb[0].mxu0
  %v976 = vadd.f32 %v533, %v975
  %v977 = vpop.f32.mrb[0].mxu0
  %v978 = vpop.f32.mrb[0].mxu0
  %979 = vdwg.mxu0
  %s980 = scalar_lea.vmem %s1, 8
  %v981 = vld [vmem:[%s980] sm:$0xf]
  %v982 = vld [vmem:[%s0 + $0x8] sm:$0xff]
  %v983 = vld [vmem:[%s0 + $0x10] sm:$0xff]
  %v984 = vld [vmem:[%s0 + $0x18] sm:$0xff]
  %v985 = vld [vmem:[%s0 + $0x20] sm:$0xff]
  %v986 = vld [vmem:[%s0 + $0x28] sm:$0xff]
  %v987 = vld [vmem:[%s0 + $0x30] sm:$0xff]
  %v988 = vld [vmem:[%s0 + $0x38] sm:$0xff]
  %v989 = vld [vmem:[%s0 + $0x40] sm:$0xff]
  %v990 = vld [vmem:[%s0 + $0x50] sm:$0x33]
  %v991 = vld [vmem:[%s0 + $0x58] sm:$0x33]
  %v992 = vld [vmem:[%s0 + $0x60] sm:$0x33]
  %v993 = vld [vmem:[%s0 + $0x68] sm:$0x33]
  %v994 = vld [vmem:[%s0 + $0x70] sm:$0x33]
  %v995 = vld [vmem:[%s0 + $0x78] sm:$0x33]
  %v996 = vld [vmem:[%s0 + $0x80] sm:$0x33]
  %v997 = vld [vmem:[%s0 + $0x88] sm:$0x33]
  %v1014 = vunpack.c.l.b16 %v982
  %v1015 = vunpack.c.h.b16 %v982
  %v1016 = vunpack.c.l.b16 %v983
  %v1017 = vunpack.c.h.b16 %v983
  %v1018 = vunpack.c.l.b16 %v984
  %v1019 = vunpack.c.h.b16 %v984
  %v1020 = vunpack.c.l.b16 %v985
  %v1021 = vunpack.c.h.b16 %v985
  %v1022 = vunpack.c.l.b16 %v986
  %v1023 = vunpack.c.h.b16 %v986
  %v1024 = vunpack.c.l.b16 %v987
  %v1025 = vunpack.c.h.b16 %v987
  %v1026 = vunpack.c.l.b16 %v988
  %v1027 = vunpack.c.h.b16 %v988
  %v1028 = vunpack.c.l.b16 %v989
  %v1029 = vunpack.c.h.b16 %v989
  %v1030 = vunpack.c.l.b16 %v990
  %v1031 = vunpack.c.h.b16 %v990
  %v1032 = vunpack.c.l.b16 %v991
  %v1033 = vunpack.c.h.b16 %v991
  %v1034 = vunpack.c.l.b16 %v992
  %v1035 = vunpack.c.h.b16 %v992
  %v1036 = vunpack.c.l.b16 %v993
  %v1037 = vunpack.c.h.b16 %v993
  %v1038 = vunpack.c.l.b16 %v994
  %v1039 = vunpack.c.h.b16 %v994
  %v1040 = vunpack.c.l.b16 %v995
  %v1041 = vunpack.c.h.b16 %v995
  %v1042 = vunpack.c.l.b16 %v996
  %v1043 = vunpack.c.h.b16 %v996
  %v1044 = vunpack.c.l.b16 %v997
  %v1045 = vunpack.c.h.b16 %v997
  %v1046 = vpack.c.b16 %v1030, %v1014
  %v1047 = vpack.c.b16 %v1031, %v1015
  %v1048 = vpack.c.b16 %v1032, %v1016
  %v1049 = vpack.c.b16 %v1033, %v1017
  %v1050 = vpack.c.b16 %v1034, %v1018
  %v1051 = vpack.c.b16 %v1035, %v1019
  %v1052 = vpack.c.b16 %v1036, %v1020
  %v1053 = vpack.c.b16 %v1037, %v1021
  %v1054 = vpack.c.b16 %v1038, %v1022
  %v1055 = vpack.c.b16 %v1039, %v1023
  %v1056 = vpack.c.b16 %v1040, %v1024
  %v1057 = vpack.c.b16 %v1041, %v1025
  %v1058 = vpack.c.b16 %v1042, %v1026
  %v1059 = vpack.c.b16 %v1043, %v1027
  %v1060 = vpack.c.b16 %v1044, %v1028
  %v1061 = vpack.c.b16 %v1045, %v1029
  %v1063 = vsel %vm156, %v981, 0
  %v1066 = vsel %vm160, %v1046, 0
  %v1069 = vsel %vm160, %v1047, 0
  %v1072 = vsel %vm160, %v1048, 0
  %v1075 = vsel %vm160, %v1049, 0
  %v1078 = vsel %vm160, %v1050, 0
  %v1081 = vsel %vm160, %v1051, 0
  %v1084 = vsel %vm160, %v1052, 0
  %v1087 = vsel %vm160, %v1053, 0
  %v1090 = vsel %vm160, %v1054, 0
  %v1093 = vsel %vm160, %v1055, 0
  %v1096 = vsel %vm160, %v1056, 0
  %v1099 = vsel %vm160, %v1057, 0
  %v1102 = vsel %vm160, %v1058, 0
  %v1105 = vsel %vm160, %v1059, 0
  %v1108 = vsel %vm160, %v1060, 0
  %v1111 = vsel %vm160, %v1061, 0
  %1113 = vmatprep.subr.bf16.mxu0 %v1069
  %1114 = vmatpush1.bf16.msra.mxu0 %v1066
  %1115 = vmatprep.subr.bf16.mxu0 0
  %1116 = vmatpush1.bf16.msra.mxu0 0
  %1117 = vmatprep.subr.bf16.mxu0 0
  %1118 = vmatpush1.bf16.msra.mxu0 0
  %1119 = vmatprep.subr.bf16.mxu0 0
  %1120 = vmatpush1.bf16.msra.mxu0 0
  %1121 = vmatprep.subr.bf16.mxu0 0
  %1122 = vmatpush1.bf16.msra.mxu0 0
  %1123 = vmatprep.subr.bf16.mxu0 0
  %1124 = vmatpush1.bf16.msra.mxu0 0
  %1125 = vmatprep.subr.bf16.mxu0 0
  %1126 = vmatpush1.bf16.msra.mxu0 0
  %1127 = vmatprep.subr.bf16.mxu0 0
  %1128 = vmatpush1.bf16.msra.mxu0 0
  %1129 = vmatprep.subr.bf16.mxu0 0
  %1130 = vmatpush1.bf16.msra.mxu0 0
  %1131 = vmatprep.subr.bf16.mxu0 0
  %1132 = vmatpush1.bf16.msra.mxu0 0
  %1133 = vmatprep.subr.bf16.mxu0 0
  %1134 = vmatpush1.bf16.msra.mxu0 0
  %1135 = vmatprep.subr.bf16.mxu0 0
  %1136 = vmatpush1.bf16.msra.mxu0 0
  %1137 = vmatprep.subr.bf16.mxu0 0
  %1138 = vmatpush1.bf16.msra.mxu0 0
  %1139 = vmatprep.subr.bf16.mxu0 0
  %1140 = vmatpush1.bf16.msra.mxu0 0
  %1141 = vmatprep.subr.bf16.mxu0 0
  %1142 = vmatpush1.bf16.msra.mxu0 0
  %1143 = vmatprep.subr.bf16.mxu0 0
  %1144 = vmatpush1.bf16.msra.mxu0 0
  %1145 = vmatprep.mubr.bf16.mxu0 0
  %1146 = vmatmul.mubr.bf16.gmra.mrb[0].mxu0 %v1063
  %v1147 = vpop.f32.mrb[0].mxu0
  %v1148 = vadd.f32 0.0, %v1147
  %v1149 = vpop.f32.mrb[0].mxu0
  %v1150 = vadd.f32 0.0, %v1149
  %v1151 = vpop.f32.mrb[0].mxu0
  %v1152 = vpop.f32.mrb[0].mxu0
  %1153 = vdwg.mxu0
  %1154 = vmatprep.subr.bf16.mxu0 %v1075
  %1155 = vmatpush1.bf16.msra.mxu0 %v1072
  %1156 = vmatprep.subr.bf16.mxu0 0
  %1157 = vmatpush1.bf16.msra.mxu0 0
  %1158 = vmatprep.subr.bf16.mxu0 0
  %1159 = vmatpush1.bf16.msra.mxu0 0
  %1160 = vmatprep.subr.bf16.mxu0 0
  %1161 = vmatpush1.bf16.msra.mxu0 0
  %1162 = vmatprep.subr.bf16.mxu0 0
  %1163 = vmatpush1.bf16.msra.mxu0 0
  %1164 = vmatprep.subr.bf16.mxu0 0
  %1165 = vmatpush1.bf16.msra.mxu0 0
  %1166 = vmatprep.subr.bf16.mxu0 0
  %1167 = vmatpush1.bf16.msra.mxu0 0
  %1168 = vmatprep.subr.bf16.mxu0 0
  %1169 = vmatpush1.bf16.msra.mxu0 0
  %1170 = vmatprep.subr.bf16.mxu0 0
  %1171 = vmatpush1.bf16.msra.mxu0 0
  %1172 = vmatprep.subr.bf16.mxu0 0
  %1173 = vmatpush1.bf16.msra.mxu0 0
  %1174 = vmatprep.subr.bf16.mxu0 0
  %1175 = vmatpush1.bf16.msra.mxu0 0
  %1176 = vmatprep.subr.bf16.mxu0 0
  %1177 = vmatpush1.bf16.msra.mxu0 0
  %1178 = vmatprep.subr.bf16.mxu0 0
  %1179 = vmatpush1.bf16.msra.mxu0 0
  %1180 = vmatprep.subr.bf16.mxu0 0
  %1181 = vmatpush1.bf16.msra.mxu0 0
  %1182 = vmatprep.subr.bf16.mxu0 0
  %1183 = vmatpush1.bf16.msra.mxu0 0
  %1184 = vmatprep.subr.bf16.mxu0 0
  %1185 = vmatpush1.bf16.msra.mxu0 0
  %1186 = vmatprep.mubr.bf16.mxu0 0
  %1187 = vmatmul.mubr.bf16.gmra.mrb[0].mxu0 %v1063
  %v1188 = vpop.f32.mrb[0].mxu0
  %v1189 = vadd.f32 0.0, %v1188
  %v1190 = vpop.f32.mrb[0].mxu0
  %v1191 = vadd.f32 0.0, %v1190
  %v1192 = vpop.f32.mrb[0].mxu0
  %v1193 = vpop.f32.mrb[0].mxu0
  %1194 = vdwg.mxu0
  %1195 = vmatprep.subr.bf16.mxu0 %v1081
  %1196 = vmatpush1.bf16.msra.mxu0 %v1078
  %1197 = vmatprep.subr.bf16.mxu0 0
  %1198 = vmatpush1.bf16.msra.mxu0 0
  %1199 = vmatprep.subr.bf16.mxu0 0
  %1200 = vmatpush1.bf16.msra.mxu0 0
  %1201 = vmatprep.subr.bf16.mxu0 0
  %1202 = vmatpush1.bf16.msra.mxu0 0
  %1203 = vmatprep.subr.bf16.mxu0 0
  %1204 = vmatpush1.bf16.msra.mxu0 0
  %1205 = vmatprep.subr.bf16.mxu0 0
  %1206 = vmatpush1.bf16.msra.mxu0 0
  %1207 = vmatprep.subr.bf16.mxu0 0
  %1208 = vmatpush1.bf16.msra.mxu0 0
  %1209 = vmatprep.subr.bf16.mxu0 0
  %1210 = vmatpush1.bf16.msra.mxu0 0
  %1211 = vmatprep.subr.bf16.mxu0 0
  %1212 = vmatpush1.bf16.msra.mxu0 0
  %1213 = vmatprep.subr.bf16.mxu0 0
  %1214 = vmatpush1.bf16.msra.mxu0 0
  %1215 = vmatprep.subr.bf16.mxu0 0
  %1216 = vmatpush1.bf16.msra.mxu0 0
  %1217 = vmatprep.subr.bf16.mxu0 0
  %1218 = vmatpush1.bf16.msra.mxu0 0
  %1219 = vmatprep.subr.bf16.mxu0 0
  %1220 = vmatpush1.bf16.msra.mxu0 0
  %1221 = vmatprep.subr.bf16.mxu0 0
  %1222 = vmatpush1.bf16.msra.mxu0 0
  %1223 = vmatprep.subr.bf16.mxu0 0
  %1224 = vmatpush1.bf16.msra.mxu0 0
  %1225 = vmatprep.subr.bf16.mxu0 0
  %1226 = vmatpush1.bf16.msra.mxu0 0
  %1227 = vmatprep.mubr.bf16.mxu0 0
  %1228 = vmatmul.mubr.bf16.gmra.mrb[0].mxu0 %v1063
  %v1229 = vpop.f32.mrb[0].mxu0
  %v1230 = vadd.f32 0.0, %v1229
  %v1231 = vpop.f32.mrb[0].mxu0
  %v1232 = vadd.f32 0.0, %v1231
  %v1233 = vpop.f32.mrb[0].mxu0
  %v1234 = vpop.f32.mrb[0].mxu0
  %1235 = vdwg.mxu0
  %1236 = vmatprep.subr.bf16.mxu0 %v1087
  %1237 = vmatpush1.bf16.msra.mxu0 %v1084
  %1238 = vmatprep.subr.bf16.mxu0 0
  %1239 = vmatpush1.bf16.msra.mxu0 0
  %1240 = vmatprep.subr.bf16.mxu0 0
  %1241 = vmatpush1.bf16.msra.mxu0 0
  %1242 = vmatprep.subr.bf16.mxu0 0
  %1243 = vmatpush1.bf16.msra.mxu0 0
  %1244 = vmatprep.subr.bf16.mxu0 0
  %1245 = vmatpush1.bf16.msra.mxu0 0
  %1246 = vmatprep.subr.bf16.mxu0 0
  %1247 = vmatpush1.bf16.msra.mxu0 0
  %1248 = vmatprep.subr.bf16.mxu0 0
  %1249 = vmatpush1.bf16.msra.mxu0 0
  %1250 = vmatprep.subr.bf16.mxu0 0
  %1251 = vmatpush1.bf16.msra.mxu0 0
  %1252 = vmatprep.subr.bf16.mxu0 0
  %1253 = vmatpush1.bf16.msra.mxu0 0
  %1254 = vmatprep.subr.bf16.mxu0 0
  %1255 = vmatpush1.bf16.msra.mxu0 0
  %1256 = vmatprep.subr.bf16.mxu0 0
  %1257 = vmatpush1.bf16.msra.mxu0 0
  %1258 = vmatprep.subr.bf16.mxu0 0
  %1259 = vmatpush1.bf16.msra.mxu0 0
  %1260 = vmatprep.subr.bf16.mxu0 0
  %1261 = vmatpush1.bf16.msra.mxu0 0
  %1262 = vmatprep.subr.bf16.mxu0 0
  %1263 = vmatpush1.bf16.msra.mxu0 0
  %1264 = vmatprep.subr.bf16.mxu0 0
  %1265 = vmatpush1.bf16.msra.mxu0 0
  %1266 = vmatprep.subr.bf16.mxu0 0
  %1267 = vmatpush1.bf16.msra.mxu0 0
  %1268 = vmatprep.mubr.bf16.mxu0 0
  %1269 = vmatmul.mubr.bf16.gmra.mrb[0].mxu0 %v1063
  %v1270 = vpop.f32.mrb[0].mxu0
  %v1271 = vadd.f32 0.0, %v1270
  %v1272 = vpop.f32.mrb[0].mxu0
  %v1273 = vadd.f32 0.0, %v1272
  %v1274 = vpop.f32.mrb[0].mxu0
  %v1275 = vpop.f32.mrb[0].mxu0
  %1276 = vdwg.mxu0
  %1277 = vmatprep.subr.bf16.mxu0 %v1093
  %1278 = vmatpush1.bf16.msra.mxu0 %v1090
  %1279 = vmatprep.subr.bf16.mxu0 0
  %1280 = vmatpush1.bf16.msra.mxu0 0
  %1281 = vmatprep.subr.bf16.mxu0 0
  %1282 = vmatpush1.bf16.msra.mxu0 0
  %1283 = vmatprep.subr.bf16.mxu0 0
  %1284 = vmatpush1.bf16.msra.mxu0 0
  %1285 = vmatprep.subr.bf16.mxu0 0
  %1286 = vmatpush1.bf16.msra.mxu0 0
  %1287 = vmatprep.subr.bf16.mxu0 0
  %1288 = vmatpush1.bf16.msra.mxu0 0
  %1289 = vmatprep.subr.bf16.mxu0 0
  %1290 = vmatpush1.bf16.msra.mxu0 0
  %1291 = vmatprep.subr.bf16.mxu0 0
  %1292 = vmatpush1.bf16.msra.mxu0 0
  %1293 = vmatprep.subr.bf16.mxu0 0
  %1294 = vmatpush1.bf16.msra.mxu0 0
  %1295 = vmatprep.subr.bf16.mxu0 0
  %1296 = vmatpush1.bf16.msra.mxu0 0
  %1297 = vmatprep.subr.bf16.mxu0 0
  %1298 = vmatpush1.bf16.msra.mxu0 0
  %1299 = vmatprep.subr.bf16.mxu0 0
  %1300 = vmatpush1.bf16.msra.mxu0 0
  %1301 = vmatprep.subr.bf16.mxu0 0
  %1302 = vmatpush1.bf16.msra.mxu0 0
  %1303 = vmatprep.subr.bf16.mxu0 0
  %1304 = vmatpush1.bf16.msra.mxu0 0
  %1305 = vmatprep.subr.bf16.mxu0 0
  %1306 = vmatpush1.bf16.msra.mxu0 0
  %1307 = vmatprep.subr.bf16.mxu0 0
  %1308 = vmatpush1.bf16.msra.mxu0 0
  %1309 = vmatprep.mubr.bf16.mxu0 0
  %1310 = vmatmul.mubr.bf16.gmra.mrb[0].mxu0 %v1063
  %v1311 = vpop.f32.mrb[0].mxu0
  %v1312 = vadd.f32 0.0, %v1311
  %v1313 = vpop.f32.mrb[0].mxu0
  %v1314 = vadd.f32 0.0, %v1313
  %v1315 = vpop.f32.mrb[0].mxu0
  %v1316 = vpop.f32.mrb[0].mxu0
  %1317 = vdwg.mxu0
  %1318 = vmatprep.subr.bf16.mxu0 %v1099
  %1319 = vmatpush1.bf16.msra.mxu0 %v1096
  %1320 = vmatprep.subr.bf16.mxu0 0
  %1321 = vmatpush1.bf16.msra.mxu0 0
  %1322 = vmatprep.subr.bf16.mxu0 0
  %1323 = vmatpush1.bf16.msra.mxu0 0
  %1324 = vmatprep.subr.bf16.mxu0 0
  %1325 = vmatpush1.bf16.msra.mxu0 0
  %1326 = vmatprep.subr.bf16.mxu0 0
  %1327 = vmatpush1.bf16.msra.mxu0 0
  %1328 = vmatprep.subr.bf16.mxu0 0
  %1329 = vmatpush1.bf16.msra.mxu0 0
  %1330 = vmatprep.subr.bf16.mxu0 0
  %1331 = vmatpush1.bf16.msra.mxu0 0
  %1332 = vmatprep.subr.bf16.mxu0 0
  %1333 = vmatpush1.bf16.msra.mxu0 0
  %1334 = vmatprep.subr.bf16.mxu0 0
  %1335 = vmatpush1.bf16.msra.mxu0 0
  %1336 = vmatprep.subr.bf16.mxu0 0
  %1337 = vmatpush1.bf16.msra.mxu0 0
  %1338 = vmatprep.subr.bf16.mxu0 0
  %1339 = vmatpush1.bf16.msra.mxu0 0
  %1340 = vmatprep.subr.bf16.mxu0 0
  %1341 = vmatpush1.bf16.msra.mxu0 0
  %1342 = vmatprep.subr.bf16.mxu0 0
  %1343 = vmatpush1.bf16.msra.mxu0 0
  %1344 = vmatprep.subr.bf16.mxu0 0
  %1345 = vmatpush1.bf16.msra.mxu0 0
  %1346 = vmatprep.subr.bf16.mxu0 0
  %1347 = vmatpush1.bf16.msra.mxu0 0
  %1348 = vmatprep.subr.bf16.mxu0 0
  %1349 = vmatpush1.bf16.msra.mxu0 0
  %1350 = vmatprep.mubr.bf16.mxu0 0
  %1351 = vmatmul.mubr.bf16.gmra.mrb[0].mxu0 %v1063
  %v1352 = vpop.f32.mrb[0].mxu0
  %v1353 = vadd.f32 0.0, %v1352
  %v1354 = vpop.f32.mrb[0].mxu0
  %v1355 = vadd.f32 0.0, %v1354
  %v1356 = vpop.f32.mrb[0].mxu0
  %v1357 = vpop.f32.mrb[0].mxu0
  %1358 = vdwg.mxu0
  %1359 = vmatprep.subr.bf16.mxu0 %v1105
  %1360 = vmatpush1.bf16.msra.mxu0 %v1102
  %1361 = vmatprep.subr.bf16.mxu0 0
  %1362 = vmatpush1.bf16.msra.mxu0 0
  %1363 = vmatprep.subr.bf16.mxu0 0
  %1364 = vmatpush1.bf16.msra.mxu0 0
  %1365 = vmatprep.subr.bf16.mxu0 0
  %1366 = vmatpush1.bf16.msra.mxu0 0
  %1367 = vmatprep.subr.bf16.mxu0 0
  %1368 = vmatpush1.bf16.msra.mxu0 0
  %1369 = vmatprep.subr.bf16.mxu0 0
  %1370 = vmatpush1.bf16.msra.mxu0 0
  %1371 = vmatprep.subr.bf16.mxu0 0
  %1372 = vmatpush1.bf16.msra.mxu0 0
  %1373 = vmatprep.subr.bf16.mxu0 0
  %1374 = vmatpush1.bf16.msra.mxu0 0
  %1375 = vmatprep.subr.bf16.mxu0 0
  %1376 = vmatpush1.bf16.msra.mxu0 0
  %1377 = vmatprep.subr.bf16.mxu0 0
  %1378 = vmatpush1.bf16.msra.mxu0 0
  %1379 = vmatprep.subr.bf16.mxu0 0
  %1380 = vmatpush1.bf16.msra.mxu0 0
  %1381 = vmatprep.subr.bf16.mxu0 0
  %1382 = vmatpush1.bf16.msra.mxu0 0
  %1383 = vmatprep.subr.bf16.mxu0 0
  %1384 = vmatpush1.bf16.msra.mxu0 0
  %1385 = vmatprep.subr.bf16.mxu0 0
  %1386 = vmatpush1.bf16.msra.mxu0 0
  %1387 = vmatprep.subr.bf16.mxu0 0
  %1388 = vmatpush1.bf16.msra.mxu0 0
  %1389 = vmatprep.subr.bf16.mxu0 0
  %1390 = vmatpush1.bf16.msra.mxu0 0
  %1391 = vmatprep.mubr.bf16.mxu0 0
  %1392 = vmatmul.mubr.bf16.gmra.mrb[0].mxu0 %v1063
  %v1393 = vpop.f32.mrb[0].mxu0
  %v1394 = vadd.f32 0.0, %v1393
  %v1395 = vpop.f32.mrb[0].mxu0
  %v1396 = vadd.f32 0.0, %v1395
  %v1397 = vpop.f32.mrb[0].mxu0
  %v1398 = vpop.f32.mrb[0].mxu0
  %1399 = vdwg.mxu0
  %1400 = vmatprep.subr.bf16.mxu0 %v1111
  %1401 = vmatpush1.bf16.msra.mxu0 %v1108
  %1402 = vmatprep.subr.bf16.mxu0 0
  %1403 = vmatpush1.bf16.msra.mxu0 0
  %1404 = vmatprep.subr.bf16.mxu0 0
  %1405 = vmatpush1.bf16.msra.mxu0 0
  %1406 = vmatprep.subr.bf16.mxu0 0
  %1407 = vmatpush1.bf16.msra.mxu0 0
  %1408 = vmatprep.subr.bf16.mxu0 0
  %1409 = vmatpush1.bf16.msra.mxu0 0
  %1410 = vmatprep.subr.bf16.mxu0 0
  %1411 = vmatpush1.bf16.msra.mxu0 0
  %1412 = vmatprep.subr.bf16.mxu0 0
  %1413 = vmatpush1.bf16.msra.mxu0 0
  %1414 = vmatprep.subr.bf16.mxu0 0
  %1415 = vmatpush1.bf16.msra.mxu0 0
  %1416 = vmatprep.subr.bf16.mxu0 0
  %1417 = vmatpush1.bf16.msra.mxu0 0
  %1418 = vmatprep.subr.bf16.mxu0 0
  %1419 = vmatpush1.bf16.msra.mxu0 0
  %1420 = vmatprep.subr.bf16.mxu0 0
  %1421 = vmatpush1.bf16.msra.mxu0 0
  %1422 = vmatprep.subr.bf16.mxu0 0
  %1423 = vmatpush1.bf16.msra.mxu0 0
  %1424 = vmatprep.subr.bf16.mxu0 0
  %1425 = vmatpush1.bf16.msra.mxu0 0
  %1426 = vmatprep.subr.bf16.mxu0 0
  %1427 = vmatpush1.bf16.msra.mxu0 0
  %1428 = vmatprep.subr.bf16.mxu0 0
  %1429 = vmatpush1.bf16.msra.mxu0 0
  %1430 = vmatprep.subr.bf16.mxu0 0
  %1431 = vmatpush1.bf16.msra.mxu0 0
  %1432 = vmatprep.mubr.bf16.mxu0 0
  %1433 = vmatmul.mubr.bf16.gmra.mrb[0].mxu0 %v1063
  %v1434 = vpop.f32.mrb[0].mxu0
  %v1435 = vadd.f32 0.0, %v1434
  %v1436 = vpop.f32.mrb[0].mxu0
  %v1437 = vadd.f32 0.0, %v1436
  %v1438 = vpop.f32.mrb[0].mxu0
  %v1439 = vpop.f32.mrb[0].mxu0
  %1440 = vdwg.mxu0
  %v1441 = vadd.f32 %v687, %v1148
  %v1442 = vadd.f32 %v689, %v1150
  %v1443 = vadd.f32 %v728, %v1189
  %v1444 = vadd.f32 %v730, %v1191
  %v1445 = vadd.f32 %v769, %v1230
  %v1446 = vadd.f32 %v771, %v1232
  %v1447 = vadd.f32 %v810, %v1271
  %v1448 = vadd.f32 %v812, %v1273
  %v1449 = vadd.f32 %v851, %v1312
  %v1450 = vadd.f32 %v853, %v1314
  %v1451 = vadd.f32 %v892, %v1353
  %v1452 = vadd.f32 %v894, %v1355
  %v1453 = vadd.f32 %v933, %v1394
  %v1454 = vadd.f32 %v935, %v1396
  %v1455 = vadd.f32 %v974, %v1435
  %v1456 = vadd.f32 %v976, %v1437
  %v1457 = vld [vmem:[%s2] sm:$0xff]
  %1459 = vset.pattern.permute.xlu0 0
  %1460 = vperm.xlu0 %1459, %v1457
  %v1461 = vpop.permute.xlu0 %1460
  %v1463 = vadd.f32 %v1441, %v1461
  %v1464 = vadd.f32 %v1442, %v1461
  %v1465 = vadd.f32 %v1443, %v1461
  %v1466 = vadd.f32 %v1444, %v1461
  %v1467 = vadd.f32 %v1445, %v1461
  %v1468 = vadd.f32 %v1446, %v1461
  %v1469 = vadd.f32 %v1447, %v1461
  %v1470 = vadd.f32 %v1448, %v1461
  %v1471 = vadd.f32 %v1449, %v1461
  %v1472 = vadd.f32 %v1450, %v1461
  %v1473 = vadd.f32 %v1451, %v1461
  %v1474 = vadd.f32 %v1452, %v1461
  %v1475 = vadd.f32 %v1453, %v1461
  %v1476 = vadd.f32 %v1454, %v1461
  %v1477 = vadd.f32 %v1455, %v1461
  %v1478 = vadd.f32 %v1456, %v1461
  %v1479 = vmax.f32 %v1463, 0.0
  %v1480 = vmax.f32 %v1464, 0.0
  %v1481 = vmax.f32 %v1465, 0.0
  %v1482 = vmax.f32 %v1466, 0.0
  %v1483 = vmax.f32 %v1467, 0.0
  %v1484 = vmax.f32 %v1468, 0.0
  %v1485 = vmax.f32 %v1469, 0.0
  %v1486 = vmax.f32 %v1470, 0.0
  %v1487 = vmax.f32 %v1471, 0.0
  %v1488 = vmax.f32 %v1472, 0.0
  %v1489 = vmax.f32 %v1473, 0.0
  %v1490 = vmax.f32 %v1474, 0.0
  %v1491 = vmax.f32 %v1475, 0.0
  %v1492 = vmax.f32 %v1476, 0.0
  %v1493 = vmax.f32 %v1477, 0.0
  %v1494 = vmax.f32 %v1478, 0.0
  %v1495 = vadd.f32 %v1479, %v1480
  %v1496 = vadd.f32 %v1495, %v1481
  %v1497 = vadd.f32 %v1496, %v1482
  %v1498 = vadd.f32 %v1497, %v1483
  %v1499 = vadd.f32 %v1498, %v1484
  %v1500 = vadd.f32 %v1499, %v1485
  %v1501 = vadd.f32 %v1500, %v1486
  %v1502 = vadd.f32 %v1501, %v1487
  %v1503 = vadd.f32 %v1502, %v1488
  %v1504 = vadd.f32 %v1503, %v1489
  %v1505 = vadd.f32 %v1504, %v1490
  %v1506 = vadd.f32 %v1505, %v1491
  %v1507 = vadd.f32 %v1506, %v1492
  %v1508 = vadd.f32 %v1507, %v1493
  %v1509 = vadd.f32 %v1508, %v1494
  %v1510 = vmul.f32 %v1509, 0.0625
  %1511 = vxpose.xlu0.b32.start [1/16] %v1510, 128
  %1512 = vxpose.xlu0.b32.cont [2/16] 0.0, 128
  %1513 = vxpose.xlu0.b32.cont [3/16] 0.0, 128
  %1514 = vxpose.xlu0.b32.cont [4/16] 0.0, 128
  %1515 = vxpose.xlu0.b32.cont [5/16] 0.0, 128
  %1516 = vxpose.xlu0.b32.cont [6/16] 0.0, 128
  %1517 = vxpose.xlu0.b32.cont [7/16] 0.0, 128
  %1518 = vxpose.xlu0.b32.cont [8/16] 0.0, 128
  %1519 = vxpose.xlu0.b32.cont [9/16] 0.0, 128
  %1520 = vxpose.xlu0.b32.cont [10/16] 0.0, 128
  %1521 = vxpose.xlu0.b32.cont [11/16] 0.0, 128
  %1522 = vxpose.xlu0.b32.cont [12/16] 0.0, 128
  %1523 = vxpose.xlu0.b32.cont [13/16] 0.0, 128
  %1524 = vxpose.xlu0.b32.cont [14/16] 0.0, 128
  %1525 = vxpose.xlu0.b32.cont [15/16] 0.0, 128
  %1526 = vxpose.xlu0.b32.end [16/16] 0.0, 128
  %v1527 = vpop.trf.xlu0
  %v1528 = vpop.trf.xlu0
  %v1529 = vpop.trf.xlu0
  %v1530 = vpop.trf.xlu0
  %v1531 = vpop.trf.xlu0
  %v1532 = vpop.trf.xlu0
  %v1533 = vpop.trf.xlu0
  %v1534 = vpop.trf.xlu0
  %v1535 = vpop.trf.xlu0
  %v1536 = vpop.trf.xlu0
  %v1537 = vpop.trf.xlu0
  %v1538 = vpop.trf.xlu0
  %v1539 = vpop.trf.xlu0
  %v1540 = vpop.trf.xlu0
  %v1541 = vpop.trf.xlu0
  %v1542 = vpop.trf.xlu0
  %v1543 = vpack.c.bf16 %v1528, %v1527
  %v1544 = vpack.c.bf16 %v1530, %v1529
  %v1545 = vpack.c.bf16 %v1532, %v1531
  %v1546 = vpack.c.bf16 %v1534, %v1533
  %v1547 = vpack.c.bf16 %v1536, %v1535
  %v1548 = vpack.c.bf16 %v1538, %v1537
  %v1549 = vpack.c.bf16 %v1540, %v1539
  %v1550 = vpack.c.bf16 %v1542, %v1541
  %v1551 = vld [vmem:[%s3] sm:$0xff]
  %v1552 = vld [vmem:[%s4] sm:$0x3]
  %v1554 = vlaneseq
  %v1555 = vshrl.u32 %v1554, 7
  %v1556 = vsub.s32 0, %v1555
  %v1557 = vrot.slane %v1552, %v1556
  %v1558 = vlaneseq
  %v1559 = vshrl.u32 %v1558, 7
  %v1560 = vsub.s32 1, %v1559
  %v1561 = vrot.slane %v1552, %v1560
  %v1565 = vunpack.c.l.b16 %v1551
  %v1566 = vunpack.c.h.b16 %v1551
  %v1567 = vpack.c.b16 %v1565, %v1565
  %v1568 = vpack.c.b16 %v1566, %v1566
  %vm1569 = vcmask 64512
  %v1571 = vsel %vm1569, %v1543, 0
  %v1574 = vsel %vm1569, %v1544, 0
  %v1577 = vsel %vm1569, %v1545, 0
  %v1580 = vsel %vm1569, %v1546, 0
  %v1583 = vsel %vm1569, %v1547, 0
  %v1586 = vsel %vm1569, %v1548, 0
  %v1589 = vsel %vm1569, %v1549, 0
  %v1592 = vsel %vm1569, %v1550, 0
  %vm1594 = vcmask 1043456
  %v1596 = vsel %vm1594, %v1567, 0
  %v1599 = vsel %vm1594, %v1568, 0
  %1601 = vmatprep.subr.bf16.mxu0 %v1599
  %1602 = vmatpush1.bf16.msra.mxu0 %v1596
  %1603 = vmatprep.subr.bf16.mxu0 0
  %1604 = vmatpush1.bf16.msra.mxu0 0
  %1605 = vmatprep.subr.bf16.mxu0 0
  %1606 = vmatpush1.bf16.msra.mxu0 0
  %1607 = vmatprep.subr.bf16.mxu0 0
  %1608 = vmatpush1.bf16.msra.mxu0 0
  %1609 = vmatprep.subr.bf16.mxu0 0
  %1610 = vmatpush1.bf16.msra.mxu0 0
  %1611 = vmatprep.subr.bf16.mxu0 0
  %1612 = vmatpush1.bf16.msra.mxu0 0
  %1613 = vmatprep.subr.bf16.mxu0 0
  %1614 = vmatpush1.bf16.msra.mxu0 0
  %1615 = vmatprep.subr.bf16.mxu0 0
  %1616 = vmatpush1.bf16.msra.mxu0 0
  %1617 = vmatprep.subr.bf16.mxu0 0
  %1618 = vmatpush1.bf16.msra.mxu0 0
  %1619 = vmatprep.subr.bf16.mxu0 0
  %1620 = vmatpush1.bf16.msra.mxu0 0
  %1621 = vmatprep.subr.bf16.mxu0 0
  %1622 = vmatpush1.bf16.msra.mxu0 0
  %1623 = vmatprep.subr.bf16.mxu0 0
  %1624 = vmatpush1.bf16.msra.mxu0 0
  %1625 = vmatprep.subr.bf16.mxu0 0
  %1626 = vmatpush1.bf16.msra.mxu0 0
  %1627 = vmatprep.subr.bf16.mxu0 0
  %1628 = vmatpush1.bf16.msra.mxu0 0
  %1629 = vmatprep.subr.bf16.mxu0 0
  %1630 = vmatpush1.bf16.msra.mxu0 0
  %1631 = vmatprep.subr.bf16.mxu0 0
  %1632 = vmatpush1.bf16.msra.mxu0 0
  %1633 = vmatprep.mubr.bf16.mxu0 0
  %1634 = vmatmul.mubr.bf16.gmra.mrb[0].mxu0 %v1571
  %v1635 = vpop.f32.mrb[0].mxu0
  %v1636 = vadd.f32 %v1557, %v1635
  %v1637 = vpop.f32.mrb[0].mxu0
  %v1638 = vadd.f32 %v1561, %v1637
  %v1639 = vpop.f32.mrb[0].mxu0
  %v1640 = vadd.f32 %v1557, %v1639
  %v1641 = vpop.f32.mrb[0].mxu0
  %v1642 = vadd.f32 %v1561, %v1641
  %1643 = vmatprep.mubr.bf16.mxu0 0
  %1644 = vmatmul.mubr.bf16.gmra.mrb[0].mxu0 %v1574
  %v1645 = vpop.f32.mrb[0].mxu0
  %v1646 = vadd.f32 %v1557, %v1645
  %v1647 = vpop.f32.mrb[0].mxu0
  %v1648 = vadd.f32 %v1561, %v1647
  %v1649 = vpop.f32.mrb[0].mxu0
  %v1650 = vadd.f32 %v1557, %v1649
  %v1651 = vpop.f32.mrb[0].mxu0
  %v1652 = vadd.f32 %v1561, %v1651
  %1653 = vmatprep.mubr.bf16.mxu0 0
  %1654 = vmatmul.mubr.bf16.gmra.mrb[0].mxu0 %v1577
  %v1655 = vpop.f32.mrb[0].mxu0
  %v1656 = vadd.f32 %v1557, %v1655
  %v1657 = vpop.f32.mrb[0].mxu0
  %v1658 = vadd.f32 %v1561, %v1657
  %v1659 = vpop.f32.mrb[0].mxu0
  %v1660 = vadd.f32 %v1557, %v1659
  %v1661 = vpop.f32.mrb[0].mxu0
  %v1662 = vadd.f32 %v1561, %v1661
  %1663 = vmatprep.mubr.bf16.mxu0 0
  %1664 = vmatmul.mubr.bf16.gmra.mrb[0].mxu0 %v1580
  %v1665 = vpop.f32.mrb[0].mxu0
  %v1666 = vadd.f32 %v1557, %v1665
  %v1667 = vpop.f32.mrb[0].mxu0
  %v1668 = vadd.f32 %v1561, %v1667
  %v1669 = vpop.f32.mrb[0].mxu0
  %v1670 = vadd.f32 %v1557, %v1669
  %v1671 = vpop.f32.mrb[0].mxu0
  %v1672 = vadd.f32 %v1561, %v1671
  %1673 = vmatprep.mubr.bf16.mxu0 0
  %1674 = vmatmul.mubr.bf16.gmra.mrb[0].mxu0 %v1583
  %v1675 = vpop.f32.mrb[0].mxu0
  %v1676 = vadd.f32 %v1557, %v1675
  %v1677 = vpop.f32.mrb[0].mxu0
  %v1678 = vadd.f32 %v1561, %v1677
  %v1679 = vpop.f32.mrb[0].mxu0
  %v1680 = vadd.f32 %v1557, %v1679
  %v1681 = vpop.f32.mrb[0].mxu0
  %v1682 = vadd.f32 %v1561, %v1681
  %1683 = vmatprep.mubr.bf16.mxu0 0
  %1684 = vmatmul.mubr.bf16.gmra.mrb[0].mxu0 %v1586
  %v1685 = vpop.f32.mrb[0].mxu0
  %v1686 = vadd.f32 %v1557, %v1685
  %v1687 = vpop.f32.mrb[0].mxu0
  %v1688 = vadd.f32 %v1561, %v1687
  %v1689 = vpop.f32.mrb[0].mxu0
  %v1690 = vadd.f32 %v1557, %v1689
  %v1691 = vpop.f32.mrb[0].mxu0
  %v1692 = vadd.f32 %v1561, %v1691
  %1693 = vmatprep.mubr.bf16.mxu0 0
  %1694 = vmatmul.mubr.bf16.gmra.mrb[0].mxu0 %v1589
  %v1695 = vpop.f32.mrb[0].mxu0
  %v1696 = vadd.f32 %v1557, %v1695
  %v1697 = vpop.f32.mrb[0].mxu0
  %v1698 = vadd.f32 %v1561, %v1697
  %v1699 = vpop.f32.mrb[0].mxu0
  %v1700 = vadd.f32 %v1557, %v1699
  %v1701 = vpop.f32.mrb[0].mxu0
  %v1702 = vadd.f32 %v1561, %v1701
  %1703 = vmatprep.mubr.bf16.mxu0 0
  %1704 = vmatmul.mubr.bf16.gmra.mrb[0].mxu0 %v1592
  %v1705 = vpop.f32.mrb[0].mxu0
  %v1706 = vadd.f32 %v1557, %v1705
  %v1707 = vpop.f32.mrb[0].mxu0
  %v1708 = vadd.f32 %v1561, %v1707
  %v1709 = vpop.f32.mrb[0].mxu0
  %v1710 = vadd.f32 %v1557, %v1709
  %v1711 = vpop.f32.mrb[0].mxu0
  %v1712 = vadd.f32 %v1561, %v1711
  %1713 = vdwg.mxu0
  %1714 = vst [vmem:[#allocation2] sm:$0xff] %v1636
  %vm1715 = vcmask 523264
  %1716 = vst.msk [vmem:[#allocation2 + $0x8] sm:$0xff] %vm1715, %v1638
  %1717 = vst [vmem:[#allocation2 + $0x10] sm:$0xff] %v1640
  %1718 = vst.msk [vmem:[#allocation2 + $0x18] sm:$0xff] %vm1715, %v1642
  %1719 = vst [vmem:[#allocation2 + $0x20] sm:$0xff] %v1646
  %1720 = vst.msk [vmem:[#allocation2 + $0x28] sm:$0xff] %vm1715, %v1648
  %1721 = vst [vmem:[#allocation2 + $0x30] sm:$0xff] %v1650
  %1722 = vst.msk [vmem:[#allocation2 + $0x38] sm:$0xff] %vm1715, %v1652
  %1723 = vst [vmem:[#allocation2 + $0x40] sm:$0xff] %v1656
  %1724 = vst.msk [vmem:[#allocation2 + $0x48] sm:$0xff] %vm1715, %v1658
  %1725 = vst [vmem:[#allocation2 + $0x50] sm:$0xff] %v1660
  %1726 = vst.msk [vmem:[#allocation2 + $0x58] sm:$0xff] %vm1715, %v1662
  %1727 = vst [vmem:[#allocation2 + $0x60] sm:$0xff] %v1666
  %1728 = vst.msk [vmem:[#allocation2 + $0x68] sm:$0xff] %vm1715, %v1668
  %1729 = vst [vmem:[#allocation2 + $0x70] sm:$0xff] %v1670
  %1730 = vst.msk [vmem:[#allocation2 + $0x78] sm:$0xff] %vm1715, %v1672
  %1731 = vst [vmem:[#allocation2 + $0x80] sm:$0xff] %v1676
  %1732 = vst.msk [vmem:[#allocation2 + $0x88] sm:$0xff] %vm1715, %v1678
  %1733 = vst [vmem:[#allocation2 + $0x90] sm:$0xff] %v1680
  %1734 = vst.msk [vmem:[#allocation2 + $0x98] sm:$0xff] %vm1715, %v1682
  %1735 = vst [vmem:[#allocation2 + $0xa0] sm:$0xff] %v1686
  %1736 = vst.msk [vmem:[#allocation2 + $0xa8] sm:$0xff] %vm1715, %v1688
  %1737 = vst [vmem:[#allocation2 + $0xb0] sm:$0xff] %v1690
  %1738 = vst.msk [vmem:[#allocation2 + $0xb8] sm:$0xff] %vm1715, %v1692
  %1739 = vst [vmem:[#allocation2 + $0xc0] sm:$0xff] %v1696
  %1740 = vst.msk [vmem:[#allocation2 + $0xc8] sm:$0xff] %vm1715, %v1698
  %1741 = vst [vmem:[#allocation2 + $0xd0] sm:$0xff] %v1700
  %1742 = vst.msk [vmem:[#allocation2 + $0xd8] sm:$0xff] %vm1715, %v1702
  %1743 = vst [vmem:[#allocation2 + $0xe0] sm:$0xff] %v1706
  %1744 = vst.msk [vmem:[#allocation2 + $0xe8] sm:$0xff] %vm1715, %v1708
  %1745 = vst [vmem:[#allocation2 + $0xf0] sm:$0xff] %v1710
  %1746 = vst.msk [vmem:[#allocation2 + $0xf8] sm:$0xff] %vm1715, %v1712
  %v1747 = vld [vmem:[#allocation2] sm:$0xff]
  %v1748 = vld [vmem:[#allocation2 + $0xf0] sm:$0xff]
  %v1749 = vld [vmem:[#allocation2 + $0xf8] sm:$0xff]
  %v1750 = vld [vmem:[%s5] sm:$0xf]
  %v1751 = vld [vmem:[%s5 + $0x4] sm:$0xf]
  %v1752 = vld [vmem:[%s5 + $0x8] sm:$0xf]
  %v1753 = vld [vmem:[%s5 + $0xc] sm:$0xf]
  %v1754 = vld [vmem:[%s6] sm:$0x1]
  %v1756 = vlaneseq
  %v1757 = vshrl.u32 %v1756, 7
  %v1758 = vsub.s32 0, %v1757
  %v1759 = vrot.slane %v1754, %v1758
  %v1765 = vunpack.c.l.b16 %v1750
  %v1766 = vunpack.c.l.b16 %v1751
  %v1767 = vunpack.c.l.b16 %v1752
  %v1768 = vunpack.c.l.b16 %v1753
  %v1769 = vpack.c.b16 %v1766, %v1765
  %v1770 = vpack.c.b16 %v1768, %v1767
  %vm1773 = vcmask 261120
  %v1775 = vsel %vm1773, 0, 0
  %1777 = vmatprep.subr.bf16.mxu0 0
  %1778 = vmatpush1.bf16.msra.mxu0 %v1769
  %1779 = vmatprep.subr.bf16.mxu0 0
  %1780 = vmatpush1.bf16.msra.mxu0 %v1770
  %1781 = vmatprep.subr.bf16.mxu0 0
  %1782 = vmatpush1.bf16.msra.mxu0 0
  %1783 = vmatprep.subr.bf16.mxu0 0
  %1784 = vmatpush1.bf16.msra.mxu0 0
  %1785 = vmatprep.subr.bf16.mxu0 0
  %1786 = vmatpush1.bf16.msra.mxu0 0
  %1787 = vmatprep.subr.bf16.mxu0 0
  %1788 = vmatpush1.bf16.msra.mxu0 0
  %1789 = vmatprep.subr.bf16.mxu0 0
  %1790 = vmatpush1.bf16.msra.mxu0 0
  %1791 = vmatprep.subr.bf16.mxu0 0
  %1792 = vmatpush1.bf16.msra.mxu0 0
  %1793 = vmatprep.subr.bf16.mxu0 0
  %1794 = vmatpush1.bf16.msra.mxu0 0
  %1795 = vmatprep.subr.bf16.mxu0 0
  %1796 = vmatpush1.bf16.msra.mxu0 0
  %1797 = vmatprep.subr.bf16.mxu0 0
  %1798 = vmatpush1.bf16.msra.mxu0 0
  %1799 = vmatprep.subr.bf16.mxu0 0
  %1800 = vmatpush1.bf16.msra.mxu0 0
  %1801 = vmatprep.subr.bf16.mxu0 0
  %1802 = vmatpush1.bf16.msra.mxu0 0
  %1803 = vmatprep.subr.bf16.mxu0 0
  %1804 = vmatpush1.bf16.msra.mxu0 0
  %1805 = vmatprep.subr.bf16.mxu0 0
  %1806 = vmatpush1.bf16.msra.mxu0 0
  %1807 = vmatprep.subr.bf16.mxu0 0
  %1808 = vmatpush1.bf16.msra.mxu0 0
  %1809 = vmatprep.mubr.bf16.mxu0 0
  %1810 = vmatmul.mubr.bf16.gmra.mrb[0].mxu0 %v1775
  %v1811 = vpop.f32.mrb[0].mxu0
  %v1812 = vadd.f32 %v1759, %v1811
  %v1813 = vpop.f32.mrb[0].mxu0
  %v1814 = vpop.f32.mrb[0].mxu0
  %v1815 = vpop.f32.mrb[0].mxu0
  %1816 = vdwg.mxu0
  %v1817 = vld [vmem:[%s7] sm:$0xf]
  %v1818 = vld [vmem:[%s7 + $0x4] sm:$0xf]
  %v1819 = vld [vmem:[%s7 + $0x8] sm:$0xf]
  %v1820 = vld [vmem:[%s7 + $0xc] sm:$0xf]
  %v1821 = vld [vmem:[%s8] sm:$0x1]
  %v1823 = vlaneseq
  %v1824 = vshrl.u32 %v1823, 7
  %v1825 = vsub.s32 0, %v1824
  %v1826 = vrot.slane %v1821, %v1825
  %v1832 = vunpack.c.l.b16 %v1817
  %v1833 = vunpack.c.l.b16 %v1818
  %v1834 = vunpack.c.l.b16 %v1819
  %v1835 = vunpack.c.l.b16 %v1820
  %v1836 = vpack.c.b16 %v1833, %v1832
  %v1837 = vpack.c.b16 %v1835, %v1834
  %1840 = vmatprep.subr.bf16.mxu0 0
  %1841 = vmatpush1.bf16.msra.mxu0 %v1836
  %1842 = vmatprep.subr.bf16.mxu0 0
  %1843 = vmatpush1.bf16.msra.mxu0 %v1837
  %1844 = vmatprep.subr.bf16.mxu0 0
  %1845 = vmatpush1.bf16.msra.mxu0 0
  %1846 = vmatprep.subr.bf16.mxu0 0
  %1847 = vmatpush1.bf16.msra.mxu0 0
  %1848 = vmatprep.subr.bf16.mxu0 0
  %1849 = vmatpush1.bf16.msra.mxu0 0
  %1850 = vmatprep.subr.bf16.mxu0 0
  %1851 = vmatpush1.bf16.msra.mxu0 0
  %1852 = vmatprep.subr.bf16.mxu0 0
  %1853 = vmatpush1.bf16.msra.mxu0 0
  %1854 = vmatprep.subr.bf16.mxu0 0
  %1855 = vmatpush1.bf16.msra.mxu0 0
  %1856 = vmatprep.subr.bf16.mxu0 0
  %1857 = vmatpush1.bf16.msra.mxu0 0
  %1858 = vmatprep.subr.bf16.mxu0 0
  %1859 = vmatpush1.bf16.msra.mxu0 0
  %1860 = vmatprep.subr.bf16.mxu0 0
  %1861 = vmatpush1.bf16.msra.mxu0 0
  %1862 = vmatprep.subr.bf16.mxu0 0
  %1863 = vmatpush1.bf16.msra.mxu0 0
  %1864 = vmatprep.subr.bf16.mxu0 0
  %1865 = vmatpush1.bf16.msra.mxu0 0
  %1866 = vmatprep.subr.bf16.mxu0 0
  %1867 = vmatpush1.bf16.msra.mxu0 0
  %1868 = vmatprep.subr.bf16.mxu0 0
  %1869 = vmatpush1.bf16.msra.mxu0 0
  %1870 = vmatprep.subr.bf16.mxu0 0
  %1871 = vmatpush1.bf16.msra.mxu0 0
  %1872 = vmatprep.mubr.bf16.mxu0 0
  %1873 = vmatmul.mubr.bf16.gmra.mrb[0].mxu0 %v1775
  %v1874 = vpop.f32.mrb[0].mxu0
  %v1875 = vadd.f32 %v1826, %v1874
  %v1876 = vpop.f32.mrb[0].mxu0
  %v1877 = vpop.f32.mrb[0].mxu0
  %v1878 = vpop.f32.mrb[0].mxu0
  %1879 = vdwg.mxu0
  %v1880 = vadd.f32 %v1747, %v1812
  %v1881 = vxor.u32 %v1880, 2147483648
  %v1882 = vmul.f32 %v1881, 1.442695
  %v1883 = vpow.pop %v1882
  %v1884 = vadd.f32 %v1883, 1.0
  %v1885 = vrcp.pop %v1884
  %v1886 = vmul.f32 1.0, %v1885
  %1888 = vrot.lane.b32.xlu0 %v1812, 64
  %v1889 = vpop.permute.xlu0 %1888
  %v1891 = vmul.f32 %v1886, %v1889
  %1893 = vrot.lane.b32.xlu0 %v1891, 64
  %v1894 = vpop.permute.xlu0 %1893
  %v1896 = vadd.f32 %v1747, %v1894
  %v1897 = vtanh.pop %v1896
  %v1898 = vsub.f32 1.0, %v1886
  %1900 = vrot.lane.b32.xlu0 %v1897, 96
  %v1901 = vpop.permute.xlu0 %1900
  %v1903 = vmul.f32 %v1898, %v1901
  %v1904 = vmul.f32 %v1886, 0.0
  %v1905 = vadd.f32 %v1903, %v1904
  %1907 = vrot.lane.b32.xlu0 %v1875, 96
  %v1908 = vpop.permute.xlu0 %1907
  %v1910 = vadd.f32 %v1748, %v1908
  %v1911 = vxor.u32 %v1910, 2147483648
  %v1912 = vmul.f32 %v1911, 1.442695
  %v1913 = vpow.pop %v1912
  %v1914 = vadd.f32 %v1913, 1.0
  %v1915 = vrcp.pop %v1914
  %v1916 = vmul.f32 1.0, %v1915
  %v1917 = vadd.f32 %v1749, %v1908
  %v1918 = vxor.u32 %v1917, 2147483648
  %v1919 = vmul.f32 %v1918, 1.442695
  %v1920 = vpow.pop %v1919
  %v1921 = vadd.f32 %v1920, 1.0
  %v1922 = vrcp.pop %v1921
  %v1923 = vmul.f32 1.0, %v1922
  %1924 = vrot.lane.b32.xlu0 %v1875, 32
  %v1925 = vpop.permute.xlu0 %1924
  %v1927 = vmul.f32 %v1916, %v1925
  %1929 = vrot.lane.b32.xlu0 %v1927, 64
  %v1930 = vpop.permute.xlu0 %1929
  %v1932 = vadd.f32 %v1749, %v1930
  %v1933 = vtanh.pop %v1932
  %v1934 = vsub.f32 1.0, %v1923
  %1936 = vrot.lane.b32.xlu0 %v1933, 96
  %v1937 = vpop.permute.xlu0 %1936
  %v1939 = vmul.f32 %v1934, %v1937
  %v1940 = vmul.f32 %v1923, 0.0
  %v1941 = vadd.f32 %v1939, %v1940
  %1943 = vrot.lane.b32.xlu0 %v1905, 96
  %v1944 = vpop.permute.xlu0 %1943
  %1946 = vst.msk [vmem:[#allocation3] sm:$0xff] %vm1773, %v1944
  %1948 = vrot.lane.b32.xlu0 %v1941, 32
  %v1949 = vpop.permute.xlu0 %1948
  %vm1951 = vcmask 523520
  %1952 = vst.msk [vmem:[#allocation3 + $0x78] sm:$0xff] %vm1951, %v1949
  %v1953 = vld [vmem:[#allocation2 + $0x10] sm:$0xff]
  %v1954 = vld [vmem:[#allocation2 + $0xe0] sm:$0xff]
  %v1955 = vld [vmem:[#allocation2 + $0xe8] sm:$0xff]
  %v1956 = vpack.c.bf16 %v1905, %v1905
  %v1957 = vld [vmem:[%s5] sm:$0xf]
  %v1958 = vld [vmem:[%s5 + $0x4] sm:$0xf]
  %v1959 = vld [vmem:[%s5 + $0x8] sm:$0xf]
  %v1960 = vld [vmem:[%s5 + $0xc] sm:$0xf]
  %v1961 = vld [vmem:[%s6] sm:$0x1]
  %v1963 = vlaneseq
  %v1964 = vshrl.u32 %v1963, 7
  %v1965 = vsub.s32 0, %v1964
  %v1966 = vrot.slane %v1961, %v1965
  %1969 = vrot.lane.b32.xlu0 %v1956, 96
  %v1970 = vpop.permute.xlu0 %1969
  %v1975 = vunpack.c.l.b16 %v1957
  %v1976 = vunpack.c.l.b16 %v1958
  %v1977 = vunpack.c.l.b16 %v1959
  %v1978 = vunpack.c.l.b16 %v1960
  %v1979 = vpack.c.b16 %v1976, %v1975
  %v1980 = vpack.c.b16 %v1978, %v1977
  %v1984 = vsel %vm1773, %v1970, 0
  %1986 = vmatprep.subr.bf16.mxu0 0
  %1987 = vmatpush1.bf16.msra.mxu0 %v1979
  %1988 = vmatprep.subr.bf16.mxu0 0
  %1989 = vmatpush1.bf16.msra.mxu0 %v1980
  %1990 = vmatprep.subr.bf16.mxu0 0
  %1991 = vmatpush1.bf16.msra.mxu0 0
  %1992 = vmatprep.subr.bf16.mxu0 0
  %1993 = vmatpush1.bf16.msra.mxu0 0
  %1994 = vmatprep.subr.bf16.mxu0 0
  %1995 = vmatpush1.bf16.msra.mxu0 0
  %1996 = vmatprep.subr.bf16.mxu0 0
  %1997 = vmatpush1.bf16.msra.mxu0 0
  %1998 = vmatprep.subr.bf16.mxu0 0
  %1999 = vmatpush1.bf16.msra.mxu0 0
  %2000 = vmatprep.subr.bf16.mxu0 0
  %2001 = vmatpush1.bf16.msra.mxu0 0
  %2002 = vmatprep.subr.bf16.mxu0 0
  %2003 = vmatpush1.bf16.msra.mxu0 0
  %2004 = vmatprep.subr.bf16.mxu0 0
  %2005 = vmatpush1.bf16.msra.mxu0 0
  %2006 = vmatprep.subr.bf16.mxu0 0
  %2007 = vmatpush1.bf16.msra.mxu0 0
  %2008 = vmatprep.subr.bf16.mxu0 0
  %2009 = vmatpush1.bf16.msra.mxu0 0
  %2010 = vmatprep.subr.bf16.mxu0 0
  %2011 = vmatpush1.bf16.msra.mxu0 0
  %2012 = vmatprep.subr.bf16.mxu0 0
  %2013 = vmatpush1.bf16.msra.mxu0 0
  %2014 = vmatprep.subr.bf16.mxu0 0
  %2015 = vmatpush1.bf16.msra.mxu0 0
  %2016 = vmatprep.subr.bf16.mxu0 0
  %2017 = vmatpush1.bf16.msra.mxu0 0
  %2018 = vmatprep.mubr.bf16.mxu0 0
  %2019 = vmatmul.mubr.bf16.gmra.mrb[0].mxu0 %v1984
  %v2020 = vpop.f32.mrb[0].mxu0
  %v2021 = vadd.f32 %v1966, %v2020
  %v2022 = vpop.f32.mrb[0].mxu0
  %v2023 = vpop.f32.mrb[0].mxu0
  %v2024 = vpop.f32.mrb[0].mxu0
  %2025 = vdwg.mxu0
  %v2026 = vpack.c.bf16 %v1941, %v1941
  %v2027 = vld [vmem:[%s7] sm:$0xf]
  %v2028 = vld [vmem:[%s7 + $0x4] sm:$0xf]
  %v2029 = vld [vmem:[%s7 + $0x8] sm:$0xf]
  %v2030 = vld [vmem:[%s7 + $0xc] sm:$0xf]
  %v2031 = vld [vmem:[%s8] sm:$0x1]
  %v2033 = vlaneseq
  %v2034 = vshrl.u32 %v2033, 7
  %v2035 = vsub.s32 0, %v2034
  %v2036 = vrot.slane %v2031, %v2035
  %v2042 = vunpack.c.l.b16 %v2027
  %v2043 = vunpack.c.l.b16 %v2028
  %v2044 = vunpack.c.l.b16 %v2029
  %v2045 = vunpack.c.l.b16 %v2030
  %v2046 = vpack.c.b16 %v2043, %v2042
  %v2047 = vpack.c.b16 %v2045, %v2044
  %v2051 = vsel %vm1773, %v2026, 0
  %2053 = vmatprep.subr.bf16.mxu0 0
  %2054 = vmatpush1.bf16.msra.mxu0 %v2046
  %2055 = vmatprep.subr.bf16.mxu0 0
  %2056 = vmatpush1.bf16.msra.mxu0 %v2047
  %2057 = vmatprep.subr.bf16.mxu0 0
  %2058 = vmatpush1.bf16.msra.mxu0 0
  %2059 = vmatprep.subr.bf16.mxu0 0
  %2060 = vmatpush1.bf16.msra.mxu0 0
  %2061 = vmatprep.subr.bf16.mxu0 0
  %2062 = vmatpush1.bf16.msra.mxu0 0
  %2063 = vmatprep.subr.bf16.mxu0 0
  %2064 = vmatpush1.bf16.msra.mxu0 0
  %2065 = vmatprep.subr.bf16.mxu0 0
  %2066 = vmatpush1.bf16.msra.mxu0 0
  %2067 = vmatprep.subr.bf16.mxu0 0
  %2068 = vmatpush1.bf16.msra.mxu0 0
  %2069 = vmatprep.subr.bf16.mxu0 0
  %2070 = vmatpush1.bf16.msra.mxu0 0
  %2071 = vmatprep.subr.bf16.mxu0 0
  %2072 = vmatpush1.bf16.msra.mxu0 0
  %2073 = vmatprep.subr.bf16.mxu0 0
  %2074 = vmatpush1.bf16.msra.mxu0 0
  %2075 = vmatprep.subr.bf16.mxu0 0
  %2076 = vmatpush1.bf16.msra.mxu0 0
  %2077 = vmatprep.subr.bf16.mxu0 0
  %2078 = vmatpush1.bf16.msra.mxu0 0
  %2079 = vmatprep.subr.bf16.mxu0 0
  %2080 = vmatpush1.bf16.msra.mxu0 0
  %2081 = vmatprep.subr.bf16.mxu0 0
  %2082 = vmatpush1.bf16.msra.mxu0 0
  %2083 = vmatprep.subr.bf16.mxu0 0
  %2084 = vmatpush1.bf16.msra.mxu0 0
  %2085 = vmatprep.mubr.bf16.mxu0 0
  %2086 = vmatmul.mubr.bf16.gmra.mrb[0].mxu0 %v2051
  %v2087 = vpop.f32.mrb[0].mxu0
  %v2088 = vadd.f32 %v2036, %v2087
  %v2089 = vpop.f32.mrb[0].mxu0
  %v2090 = vpop.f32.mrb[0].mxu0
  %v2091 = vpop.f32.mrb[0].mxu0
  %2092 = vdwg.mxu0
  %v2093 = vadd.f32 %v1953, %v2021
  %v2094 = vxor.u32 %v2093, 2147483648
  %v2095 = vmul.f32 %v2094, 1.442695
  %v2096 = vpow.pop %v2095
  %v2097 = vadd.f32 %v2096, 1.0
  %v2098 = vrcp.pop %v2097
  %v2099 = vmul.f32 1.0, %v2098
  %2101 = vrot.lane.b32.xlu0 %v2021, 64
  %v2102 = vpop.permute.xlu0 %2101
  %v2104 = vmul.f32 %v2099, %v2102
  %2106 = vrot.lane.b32.xlu0 %v2104, 64
  %v2107 = vpop.permute.xlu0 %2106
  %v2109 = vadd.f32 %v1953, %v2107
  %v2110 = vtanh.pop %v2109
  %v2111 = vsub.f32 1.0, %v2099
  %2113 = vrot.lane.b32.xlu0 %v2110, 96
  %v2114 = vpop.permute.xlu0 %2113
  %v2116 = vmul.f32 %v2111, %v2114
  %v2117 = vmul.f32 %v2099, %v1905
  %v2118 = vadd.f32 %v2116, %v2117
  %2120 = vrot.lane.b32.xlu0 %v2088, 96
  %v2121 = vpop.permute.xlu0 %2120
  %v2123 = vadd.f32 %v1954, %v2121
  %v2124 = vxor.u32 %v2123, 2147483648
  %v2125 = vmul.f32 %v2124, 1.442695
  %v2126 = vpow.pop %v2125
  %v2127 = vadd.f32 %v2126, 1.0
  %v2128 = vrcp.pop %v2127
  %v2129 = vmul.f32 1.0, %v2128
  %v2130 = vadd.f32 %v1955, %v2121
  %v2131 = vxor.u32 %v2130, 2147483648
  %v2132 = vmul.f32 %v2131, 1.442695
  %v2133 = vpow.pop %v2132
  %v2134 = vadd.f32 %v2133, 1.0
  %v2135 = vrcp.pop %v2134
  %v2136 = vmul.f32 1.0, %v2135
  %2137 = vrot.lane.b32.xlu0 %v2088, 32
  %v2138 = vpop.permute.xlu0 %2137
  %v2140 = vmul.f32 %v2129, %v2138
  %2142 = vrot.lane.b32.xlu0 %v2140, 64
  %v2143 = vpop.permute.xlu0 %2142
  %v2145 = vadd.f32 %v1955, %v2143
  %v2146 = vtanh.pop %v2145
  %v2147 = vsub.f32 1.0, %v2136
  %2149 = vrot.lane.b32.xlu0 %v2146, 96
  %v2150 = vpop.permute.xlu0 %2149
  %v2152 = vmul.f32 %v2147, %v2150
  %v2153 = vmul.f32 %v2136, %v1941
  %v2154 = vadd.f32 %v2152, %v2153
  %2156 = vrot.lane.b32.xlu0 %v2118, 96
  %v2157 = vpop.permute.xlu0 %2156
  %2159 = vst.msk [vmem:[#allocation3 + $0x8] sm:$0xff] %vm1773, %v2157
  %2161 = vrot.lane.b32.xlu0 %v2154, 32
  %v2162 = vpop.permute.xlu0 %2161
  %2164 = vst.msk [vmem:[#allocation3 + $0x70] sm:$0xff] %vm1951, %v2162
  %v2165 = vld [vmem:[#allocation2 + $0x20] sm:$0xff]
  %v2166 = vld [vmem:[#allocation2 + $0xd0] sm:$0xff]
  %v2167 = vld [vmem:[#allocation2 + $0xd8] sm:$0xff]
  %v2168 = vpack.c.bf16 %v2118, %v2118
  %v2169 = vld [vmem:[%s5] sm:$0xf]
  %v2170 = vld [vmem:[%s5 + $0x4] sm:$0xf]
  %v2171 = vld [vmem:[%s5 + $0x8] sm:$0xf]
  %v2172 = vld [vmem:[%s5 + $0xc] sm:$0xf]
  %v2173 = vld [vmem:[%s6] sm:$0x1]
  %v2175 = vlaneseq
  %v2176 = vshrl.u32 %v2175, 7
  %v2177 = vsub.s32 0, %v2176
  %v2178 = vrot.slane %v2173, %v2177
  %2181 = vrot.lane.b32.xlu0 %v2168, 96
  %v2182 = vpop.permute.xlu0 %2181
  %v2187 = vunpack.c.l.b16 %v2169
  %v2188 = vunpack.c.l.b16 %v2170
  %v2189 = vunpack.c.l.b16 %v2171
  %v2190 = vunpack.c.l.b16 %v2172
  %v2191 = vpack.c.b16 %v2188, %v2187
  %v2192 = vpack.c.b16 %v2190, %v2189
  %v2196 = vsel %vm1773, %v2182, 0
  %2198 = vmatprep.subr.bf16.mxu0 0
  %2199 = vmatpush1.bf16.msra.mxu0 %v2191
  %2200 = vmatprep.subr.bf16.mxu0 0
  %2201 = vmatpush1.bf16.msra.mxu0 %v2192
  %2202 = vmatprep.subr.bf16.mxu0 0
  %2203 = vmatpush1.bf16.msra.mxu0 0
  %2204 = vmatprep.subr.bf16.mxu0 0
  %2205 = vmatpush1.bf16.msra.mxu0 0
  %2206 = vmatprep.subr.bf16.mxu0 0
  %2207 = vmatpush1.bf16.msra.mxu0 0
  %2208 = vmatprep.subr.bf16.mxu0 0
  %2209 = vmatpush1.bf16.msra.mxu0 0
  %2210 = vmatprep.subr.bf16.mxu0 0
  %2211 = vmatpush1.bf16.msra.mxu0 0
  %2212 = vmatprep.subr.bf16.mxu0 0
  %2213 = vmatpush1.bf16.msra.mxu0 0
  %2214 = vmatprep.subr.bf16.mxu0 0
  %2215 = vmatpush1.bf16.msra.mxu0 0
  %2216 = vmatprep.subr.bf16.mxu0 0
  %2217 = vmatpush1.bf16.msra.mxu0 0
  %2218 = vmatprep.subr.bf16.mxu0 0
  %2219 = vmatpush1.bf16.msra.mxu0 0
  %2220 = vmatprep.subr.bf16.mxu0 0
  %2221 = vmatpush1.bf16.msra.mxu0 0
  %2222 = vmatprep.subr.bf16.mxu0 0
  %2223 = vmatpush1.bf16.msra.mxu0 0
  %2224 = vmatprep.subr.bf16.mxu0 0
  %2225 = vmatpush1.bf16.msra.mxu0 0
  %2226 = vmatprep.subr.bf16.mxu0 0
  %2227 = vmatpush1.bf16.msra.mxu0 0
  %2228 = vmatprep.subr.bf16.mxu0 0
  %2229 = vmatpush1.bf16.msra.mxu0 0
  %2230 = vmatprep.mubr.bf16.mxu0 0
  %2231 = vmatmul.mubr.bf16.gmra.mrb[0].mxu0 %v2196
  %v2232 = vpop.f32.mrb[0].mxu0
  %v2233 = vadd.f32 %v2178, %v2232
  %v2234 = vpop.f32.mrb[0].mxu0
  %v2235 = vpop.f32.mrb[0].mxu0
  %v2236 = vpop.f32.mrb[0].mxu0
  %2237 = vdwg.mxu0
  %v2238 = vpack.c.bf16 %v2154, %v2154
  %v2239 = vld [vmem:[%s7] sm:$0xf]
  %v2240 = vld [vmem:[%s7 + $0x4] sm:$0xf]
  %v2241 = vld [vmem:[%s7 + $0x8] sm:$0xf]
  %v2242 = vld [vmem:[%s7 + $0xc] sm:$0xf]
  %v2243 = vld [vmem:[%s8] sm:$0x1]
  %v2245 = vlaneseq
  %v2246 = vshrl.u32 %v2245, 7
  %v2247 = vsub.s32 0, %v2246
  %v2248 = vrot.slane %v2243, %v2247
  %v2254 = vunpack.c.l.b16 %v2239
  %v2255 = vunpack.c.l.b16 %v2240
  %v2256 = vunpack.c.l.b16 %v2241
  %v2257 = vunpack.c.l.b16 %v2242
  %v2258 = vpack.c.b16 %v2255, %v2254
  %v2259 = vpack.c.b16 %v2257, %v2256
  %v2263 = vsel %vm1773, %v2238, 0
  %2265 = vmatprep.subr.bf16.mxu0 0
  %2266 = vmatpush1.bf16.msra.mxu0 %v2258
  %2267 = vmatprep.subr.bf16.mxu0 0
  %2268 = vmatpush1.bf16.msra.mxu0 %v2259
  %2269 = vmatprep.subr.bf16.mxu0 0
  %2270 = vmatpush1.bf16.msra.mxu0 0
  %2271 = vmatprep.subr.bf16.mxu0 0
  %2272 = vmatpush1.bf16.msra.mxu0 0
  %2273 = vmatprep.subr.bf16.mxu0 0
  %2274 = vmatpush1.bf16.msra.mxu0 0
  %2275 = vmatprep.subr.bf16.mxu0 0
  %2276 = vmatpush1.bf16.msra.mxu0 0
  %2277 = vmatprep.subr.bf16.mxu0 0
  %2278 = vmatpush1.bf16.msra.mxu0 0
  %2279 = vmatprep.subr.bf16.mxu0 0
  %2280 = vmatpush1.bf16.msra.mxu0 0
  %2281 = vmatprep.subr.bf16.mxu0 0
  %2282 = vmatpush1.bf16.msra.mxu0 0
  %2283 = vmatprep.subr.bf16.mxu0 0
  %2284 = vmatpush1.bf16.msra.mxu0 0
  %2285 = vmatprep.subr.bf16.mxu0 0
  %2286 = vmatpush1.bf16.msra.mxu0 0
  %2287 = vmatprep.subr.bf16.mxu0 0
  %2288 = vmatpush1.bf16.msra.mxu0 0
  %2289 = vmatprep.subr.bf16.mxu0 0
  %2290 = vmatpush1.bf16.msra.mxu0 0
  %2291 = vmatprep.subr.bf16.mxu0 0
  %2292 = vmatpush1.bf16.msra.mxu0 0
  %2293 = vmatprep.subr.bf16.mxu0 0
  %2294 = vmatpush1.bf16.msra.mxu0 0
  %2295 = vmatprep.subr.bf16.mxu0 0
  %2296 = vmatpush1.bf16.msra.mxu0 0
  %2297 = vmatprep.mubr.bf16.mxu0 0
  %2298 = vmatmul.mubr.bf16.gmra.mrb[0].mxu0 %v2263
  %v2299 = vpop.f32.mrb[0].mxu0
  %v2300 = vadd.f32 %v2248, %v2299
  %v2301 = vpop.f32.mrb[0].mxu0
  %v2302 = vpop.f32.mrb[0].mxu0
  %v2303 = vpop.f32.mrb[0].mxu0
  %2304 = vdwg.mxu0
  %v2305 = vadd.f32 %v2165, %v2233
  %v2306 = vxor.u32 %v2305, 2147483648
  %v2307 = vmul.f32 %v2306, 1.442695
  %v2308 = vpow.pop %v2307
  %v2309 = vadd.f32 %v2308, 1.0
  %v2310 = vrcp.pop %v2309
  %v2311 = vmul.f32 1.0, %v2310
  %2313 = vrot.lane.b32.xlu0 %v2233, 64
  %v2314 = vpop.permute.xlu0 %2313
  %v2316 = vmul.f32 %v2311, %v2314
  %2318 = vrot.lane.b32.xlu0 %v2316, 64
  %v2319 = vpop.permute.xlu0 %2318
  %v2321 = vadd.f32 %v2165, %v2319
  %v2322 = vtanh.pop %v2321
  %v2323 = vsub.f32 1.0, %v2311
  %2325 = vrot.lane.b32.xlu0 %v2322, 96
  %v2326 = vpop.permute.xlu0 %2325
  %v2328 = vmul.f32 %v2323, %v2326
  %v2329 = vmul.f32 %v2311, %v2118
  %v2330 = vadd.f32 %v2328, %v2329
  %2332 = vrot.lane.b32.xlu0 %v2300, 96
  %v2333 = vpop.permute.xlu0 %2332
  %v2335 = vadd.f32 %v2166, %v2333
  %v2336 = vxor.u32 %v2335, 2147483648
  %v2337 = vmul.f32 %v2336, 1.442695
  %v2338 = vpow.pop %v2337
  %v2339 = vadd.f32 %v2338, 1.0
  %v2340 = vrcp.pop %v2339
  %v2341 = vmul.f32 1.0, %v2340
  %v2342 = vadd.f32 %v2167, %v2333
  %v2343 = vxor.u32 %v2342, 2147483648
  %v2344 = vmul.f32 %v2343, 1.442695
  %v2345 = vpow.pop %v2344
  %v2346 = vadd.f32 %v2345, 1.0
  %v2347 = vrcp.pop %v2346
  %v2348 = vmul.f32 1.0, %v2347
  %2349 = vrot.lane.b32.xlu0 %v2300, 32
  %v2350 = vpop.permute.xlu0 %2349
  %v2352 = vmul.f32 %v2341, %v2350
  %2354 = vrot.lane.b32.xlu0 %v2352, 64
  %v2355 = vpop.permute.xlu0 %2354
  %v2357 = vadd.f32 %v2167, %v2355
  %v2358 = vtanh.pop %v2357
  %v2359 = vsub.f32 1.0, %v2348
  %2361 = vrot.lane.b32.xlu0 %v2358, 96
  %v2362 = vpop.permute.xlu0 %2361
  %v2364 = vmul.f32 %v2359, %v2362
  %v2365 = vmul.f32 %v2348, %v2154
  %v2366 = vadd.f32 %v2364, %v2365
  %2368 = vrot.lane.b32.xlu0 %v2330, 96
  %v2369 = vpop.permute.xlu0 %2368
  %2371 = vst.msk [vmem:[#allocation3 + $0x10] sm:$0xff] %vm1773, %v2369
  %2373 = vrot.lane.b32.xlu0 %v2366, 32
  %v2374 = vpop.permute.xlu0 %2373
  %2376 = vst.msk [vmem:[#allocation3 + $0x68] sm:$0xff] %vm1951, %v2374
  %v2377 = vld [vmem:[#allocation2 + $0x30] sm:$0xff]
  %v2378 = vld [vmem:[#allocation2 + $0xc0] sm:$0xff]
  %v2379 = vld [vmem:[#allocation2 + $0xc8] sm:$0xff]
  %v2380 = vpack.c.bf16 %v2330, %v2330
  %v2381 = vld [vmem:[%s5] sm:$0xf]
  %v2382 = vld [vmem:[%s5 + $0x4] sm:$0xf]
  %v2383 = vld [vmem:[%s5 + $0x8] sm:$0xf]
  %v2384 = vld [vmem:[%s5 + $0xc] sm:$0xf]
  %v2385 = vld [vmem:[%s6] sm:$0x1]
  %v2387 = vlaneseq
  %v2388 = vshrl.u32 %v2387, 7
  %v2389 = vsub.s32 0, %v2388
  %v2390 = vrot.slane %v2385, %v2389
  %2393 = vrot.lane.b32.xlu0 %v2380, 96
  %v2394 = vpop.permute.xlu0 %2393
  %v2399 = vunpack.c.l.b16 %v2381
  %v2400 = vunpack.c.l.b16 %v2382
  %v2401 = vunpack.c.l.b16 %v2383
  %v2402 = vunpack.c.l.b16 %v2384
  %v2403 = vpack.c.b16 %v2400, %v2399
  %v2404 = vpack.c.b16 %v2402, %v2401
  %v2408 = vsel %vm1773, %v2394, 0
  %2410 = vmatprep.subr.bf16.mxu0 0
  %2411 = vmatpush1.bf16.msra.mxu0 %v2403
  %2412 = vmatprep.subr.bf16.mxu0 0
  %2413 = vmatpush1.bf16.msra.mxu0 %v2404
  %2414 = vmatprep.subr.bf16.mxu0 0
  %2415 = vmatpush1.bf16.msra.mxu0 0
  %2416 = vmatprep.subr.bf16.mxu0 0
  %2417 = vmatpush1.bf16.msra.mxu0 0
  %2418 = vmatprep.subr.bf16.mxu0 0
  %2419 = vmatpush1.bf16.msra.mxu0 0
  %2420 = vmatprep.subr.bf16.mxu0 0
  %2421 = vmatpush1.bf16.msra.mxu0 0
  %2422 = vmatprep.subr.bf16.mxu0 0
  %2423 = vmatpush1.bf16.msra.mxu0 0
  %2424 = vmatprep.subr.bf16.mxu0 0
  %2425 = vmatpush1.bf16.msra.mxu0 0
  %2426 = vmatprep.subr.bf16.mxu0 0
  %2427 = vmatpush1.bf16.msra.mxu0 0
  %2428 = vmatprep.subr.bf16.mxu0 0
  %2429 = vmatpush1.bf16.msra.mxu0 0
  %2430 = vmatprep.subr.bf16.mxu0 0
  %2431 = vmatpush1.bf16.msra.mxu0 0
  %2432 = vmatprep.subr.bf16.mxu0 0
  %2433 = vmatpush1.bf16.msra.mxu0 0
  %2434 = vmatprep.subr.bf16.mxu0 0
  %2435 = vmatpush1.bf16.msra.mxu0 0
  %2436 = vmatprep.subr.bf16.mxu0 0
  %2437 = vmatpush1.bf16.msra.mxu0 0
  %2438 = vmatprep.subr.bf16.mxu0 0
  %2439 = vmatpush1.bf16.msra.mxu0 0
  %2440 = vmatprep.subr.bf16.mxu0 0
  %2441 = vmatpush1.bf16.msra.mxu0 0
  %2442 = vmatprep.mubr.bf16.mxu0 0
  %2443 = vmatmul.mubr.bf16.gmra.mrb[0].mxu0 %v2408
  %v2444 = vpop.f32.mrb[0].mxu0
  %v2445 = vadd.f32 %v2390, %v2444
  %v2446 = vpop.f32.mrb[0].mxu0
  %v2447 = vpop.f32.mrb[0].mxu0
  %v2448 = vpop.f32.mrb[0].mxu0
  %2449 = vdwg.mxu0
  %v2450 = vpack.c.bf16 %v2366, %v2366
  %v2451 = vld [vmem:[%s7] sm:$0xf]
  %v2452 = vld [vmem:[%s7 + $0x4] sm:$0xf]
  %v2453 = vld [vmem:[%s7 + $0x8] sm:$0xf]
  %v2454 = vld [vmem:[%s7 + $0xc] sm:$0xf]
  %v2455 = vld [vmem:[%s8] sm:$0x1]
  %v2457 = vlaneseq
  %v2458 = vshrl.u32 %v2457, 7
  %v2459 = vsub.s32 0, %v2458
  %v2460 = vrot.slane %v2455, %v2459
  %v2466 = vunpack.c.l.b16 %v2451
  %v2467 = vunpack.c.l.b16 %v2452
  %v2468 = vunpack.c.l.b16 %v2453
  %v2469 = vunpack.c.l.b16 %v2454
  %v2470 = vpack.c.b16 %v2467, %v2466
  %v2471 = vpack.c.b16 %v2469, %v2468
  %v2475 = vsel %vm1773, %v2450, 0
  %2477 = vmatprep.subr.bf16.mxu0 0
  %2478 = vmatpush1.bf16.msra.mxu0 %v2470
  %2479 = vmatprep.subr.bf16.mxu0 0
  %2480 = vmatpush1.bf16.msra.mxu0 %v2471
  %2481 = vmatprep.subr.bf16.mxu0 0
  %2482 = vmatpush1.bf16.msra.mxu0 0
  %2483 = vmatprep.subr.bf16.mxu0 0
  %2484 = vmatpush1.bf16.msra.mxu0 0
  %2485 = vmatprep.subr.bf16.mxu0 0
  %2486 = vmatpush1.bf16.msra.mxu0 0
  %2487 = vmatprep.subr.bf16.mxu0 0
  %2488 = vmatpush1.bf16.msra.mxu0 0
  %2489 = vmatprep.subr.bf16.mxu0 0
  %2490 = vmatpush1.bf16.msra.mxu0 0
  %2491 = vmatprep.subr.bf16.mxu0 0
  %2492 = vmatpush1.bf16.msra.mxu0 0
  %2493 = vmatprep.subr.bf16.mxu0 0
  %2494 = vmatpush1.bf16.msra.mxu0 0
  %2495 = vmatprep.subr.bf16.mxu0 0
  %2496 = vmatpush1.bf16.msra.mxu0 0
  %2497 = vmatprep.subr.bf16.mxu0 0
  %2498 = vmatpush1.bf16.msra.mxu0 0
  %2499 = vmatprep.subr.bf16.mxu0 0
  %2500 = vmatpush1.bf16.msra.mxu0 0
  %2501 = vmatprep.subr.bf16.mxu0 0
  %2502 = vmatpush1.bf16.msra.mxu0 0
  %2503 = vmatprep.subr.bf16.mxu0 0
  %2504 = vmatpush1.bf16.msra.mxu0 0
  %2505 = vmatprep.subr.bf16.mxu0 0
  %2506 = vmatpush1.bf16.msra.mxu0 0
  %2507 = vmatprep.subr.bf16.mxu0 0
  %2508 = vmatpush1.bf16.msra.mxu0 0
  %2509 = vmatprep.mubr.bf16.mxu0 0
  %2510 = vmatmul.mubr.bf16.gmra.mrb[0].mxu0 %v2475
  %v2511 = vpop.f32.mrb[0].mxu0
  %v2512 = vadd.f32 %v2460, %v2511
  %v2513 = vpop.f32.mrb[0].mxu0
  %v2514 = vpop.f32.mrb[0].mxu0
  %v2515 = vpop.f32.mrb[0].mxu0
  %2516 = vdwg.mxu0
  %v2517 = vadd.f32 %v2377, %v2445
  %v2518 = vxor.u32 %v2517, 2147483648
  %v2519 = vmul.f32 %v2518, 1.442695
  %v2520 = vpow.pop %v2519
  %v2521 = vadd.f32 %v2520, 1.0
  %v2522 = vrcp.pop %v2521
  %v2523 = vmul.f32 1.0, %v2522
  %2525 = vrot.lane.b32.xlu0 %v2445, 64
  %v2526 = vpop.permute.xlu0 %2525
  %v2528 = vmul.f32 %v2523, %v2526
  %2530 = vrot.lane.b32.xlu0 %v2528, 64
  %v2531 = vpop.permute.xlu0 %2530
  %v2533 = vadd.f32 %v2377, %v2531
  %v2534 = vtanh.pop %v2533
  %v2535 = vsub.f32 1.0, %v2523
  %2537 = vrot.lane.b32.xlu0 %v2534, 96
  %v2538 = vpop.permute.xlu0 %2537
  %v2540 = vmul.f32 %v2535, %v2538
  %v2541 = vmul.f32 %v2523, %v2330
  %v2542 = vadd.f32 %v2540, %v2541
  %2544 = vrot.lane.b32.xlu0 %v2512, 96
  %v2545 = vpop.permute.xlu0 %2544
  %v2547 = vadd.f32 %v2378, %v2545
  %v2548 = vxor.u32 %v2547, 2147483648
  %v2549 = vmul.f32 %v2548, 1.442695
  %v2550 = vpow.pop %v2549
  %v2551 = vadd.f32 %v2550, 1.0
  %v2552 = vrcp.pop %v2551
  %v2553 = vmul.f32 1.0, %v2552
  %v2554 = vadd.f32 %v2379, %v2545
  %v2555 = vxor.u32 %v2554, 2147483648
  %v2556 = vmul.f32 %v2555, 1.442695
  %v2557 = vpow.pop %v2556
  %v2558 = vadd.f32 %v2557, 1.0
  %v2559 = vrcp.pop %v2558
  %v2560 = vmul.f32 1.0, %v2559
  %2561 = vrot.lane.b32.xlu0 %v2512, 32
  %v2562 = vpop.permute.xlu0 %2561
  %v2564 = vmul.f32 %v2553, %v2562
  %2566 = vrot.lane.b32.xlu0 %v2564, 64
  %v2567 = vpop.permute.xlu0 %2566
  %v2569 = vadd.f32 %v2379, %v2567
  %v2570 = vtanh.pop %v2569
  %v2571 = vsub.f32 1.0, %v2560
  %2573 = vrot.lane.b32.xlu0 %v2570, 96
  %v2574 = vpop.permute.xlu0 %2573
  %v2576 = vmul.f32 %v2571, %v2574
  %v2577 = vmul.f32 %v2560, %v2366
  %v2578 = vadd.f32 %v2576, %v2577
  %2580 = vrot.lane.b32.xlu0 %v2542, 96
  %v2581 = vpop.permute.xlu0 %2580
  %2583 = vst.msk [vmem:[#allocation3 + $0x18] sm:$0xff] %vm1773, %v2581
  %2585 = vrot.lane.b32.xlu0 %v2578, 32
  %v2586 = vpop.permute.xlu0 %2585
  %2588 = vst.msk [vmem:[#allocation3 + $0x60] sm:$0xff] %vm1951, %v2586
  %v2589 = vld [vmem:[#allocation2 + $0x40] sm:$0xff]
  %v2590 = vld [vmem:[#allocation2 + $0xb0] sm:$0xff]
  %v2591 = vld [vmem:[#allocation2 + $0xb8] sm:$0xff]
  %v2592 = vpack.c.bf16 %v2542, %v2542
  %v2593 = vld [vmem:[%s5] sm:$0xf]
  %v2594 = vld [vmem:[%s5 + $0x4] sm:$0xf]
  %v2595 = vld [vmem:[%s5 + $0x8] sm:$0xf]
  %v2596 = vld [vmem:[%s5 + $0xc] sm:$0xf]
  %v2597 = vld [vmem:[%s6] sm:$0x1]
  %v2599 = vlaneseq
  %v2600 = vshrl.u32 %v2599, 7
  %v2601 = vsub.s32 0, %v2600
  %v2602 = vrot.slane %v2597, %v2601
  %2605 = vrot.lane.b32.xlu0 %v2592, 96
  %v2606 = vpop.permute.xlu0 %2605
  %v2611 = vunpack.c.l.b16 %v2593
  %v2612 = vunpack.c.l.b16 %v2594
  %v2613 = vunpack.c.l.b16 %v2595
  %v2614 = vunpack.c.l.b16 %v2596
  %v2615 = vpack.c.b16 %v2612, %v2611
  %v2616 = vpack.c.b16 %v2614, %v2613
  %v2620 = vsel %vm1773, %v2606, 0
  %2622 = vmatprep.subr.bf16.mxu0 0
  %2623 = vmatpush1.bf16.msra.mxu0 %v2615
  %2624 = vmatprep.subr.bf16.mxu0 0
  %2625 = vmatpush1.bf16.msra.mxu0 %v2616
  %2626 = vmatprep.subr.bf16.mxu0 0
  %2627 = vmatpush1.bf16.msra.mxu0 0
  %2628 = vmatprep.subr.bf16.mxu0 0
  %2629 = vmatpush1.bf16.msra.mxu0 0
  %2630 = vmatprep.subr.bf16.mxu0 0
  %2631 = vmatpush1.bf16.msra.mxu0 0
  %2632 = vmatprep.subr.bf16.mxu0 0
  %2633 = vmatpush1.bf16.msra.mxu0 0
  %2634 = vmatprep.subr.bf16.mxu0 0
  %2635 = vmatpush1.bf16.msra.mxu0 0
  %2636 = vmatprep.subr.bf16.mxu0 0
  %2637 = vmatpush1.bf16.msra.mxu0 0
  %2638 = vmatprep.subr.bf16.mxu0 0
  %2639 = vmatpush1.bf16.msra.mxu0 0
  %2640 = vmatprep.subr.bf16.mxu0 0
  %2641 = vmatpush1.bf16.msra.mxu0 0
  %2642 = vmatprep.subr.bf16.mxu0 0
  %2643 = vmatpush1.bf16.msra.mxu0 0
  %2644 = vmatprep.subr.bf16.mxu0 0
  %2645 = vmatpush1.bf16.msra.mxu0 0
  %2646 = vmatprep.subr.bf16.mxu0 0
  %2647 = vmatpush1.bf16.msra.mxu0 0
  %2648 = vmatprep.subr.bf16.mxu0 0
  %2649 = vmatpush1.bf16.msra.mxu0 0
  %2650 = vmatprep.subr.bf16.mxu0 0
  %2651 = vmatpush1.bf16.msra.mxu0 0
  %2652 = vmatprep.subr.bf16.mxu0 0
  %2653 = vmatpush1.bf16.msra.mxu0 0
  %2654 = vmatprep.mubr.bf16.mxu0 0
  %2655 = vmatmul.mubr.bf16.gmra.mrb[0].mxu0 %v2620
  %v2656 = vpop.f32.mrb[0].mxu0
  %v2657 = vadd.f32 %v2602, %v2656
  %v2658 = vpop.f32.mrb[0].mxu0
  %v2659 = vpop.f32.mrb[0].mxu0
  %v2660 = vpop.f32.mrb[0].mxu0
  %2661 = vdwg.mxu0
  %v2662 = vpack.c.bf16 %v2578, %v2578
  %v2663 = vld [vmem:[%s7] sm:$0xf]
  %v2664 = vld [vmem:[%s7 + $0x4] sm:$0xf]
  %v2665 = vld [vmem:[%s7 + $0x8] sm:$0xf]
  %v2666 = vld [vmem:[%s7 + $0xc] sm:$0xf]
  %v2667 = vld [vmem:[%s8] sm:$0x1]
  %v2669 = vlaneseq
  %v2670 = vshrl.u32 %v2669, 7
  %v2671 = vsub.s32 0, %v2670
  %v2672 = vrot.slane %v2667, %v2671
  %v2678 = vunpack.c.l.b16 %v2663
  %v2679 = vunpack.c.l.b16 %v2664
  %v2680 = vunpack.c.l.b16 %v2665
  %v2681 = vunpack.c.l.b16 %v2666
  %v2682 = vpack.c.b16 %v2679, %v2678
  %v2683 = vpack.c.b16 %v2681, %v2680
  %v2687 = vsel %vm1773, %v2662, 0
  %2689 = vmatprep.subr.bf16.mxu0 0
  %2690 = vmatpush1.bf16.msra.mxu0 %v2682
  %2691 = vmatprep.subr.bf16.mxu0 0
  %2692 = vmatpush1.bf16.msra.mxu0 %v2683
  %2693 = vmatprep.subr.bf16.mxu0 0
  %2694 = vmatpush1.bf16.msra.mxu0 0
  %2695 = vmatprep.subr.bf16.mxu0 0
  %2696 = vmatpush1.bf16.msra.mxu0 0
  %2697 = vmatprep.subr.bf16.mxu0 0
  %2698 = vmatpush1.bf16.msra.mxu0 0
  %2699 = vmatprep.subr.bf16.mxu0 0
  %2700 = vmatpush1.bf16.msra.mxu0 0
  %2701 = vmatprep.subr.bf16.mxu0 0
  %2702 = vmatpush1.bf16.msra.mxu0 0
  %2703 = vmatprep.subr.bf16.mxu0 0
  %2704 = vmatpush1.bf16.msra.mxu0 0
  %2705 = vmatprep.subr.bf16.mxu0 0
  %2706 = vmatpush1.bf16.msra.mxu0 0
  %2707 = vmatprep.subr.bf16.mxu0 0
  %2708 = vmatpush1.bf16.msra.mxu0 0
  %2709 = vmatprep.subr.bf16.mxu0 0
  %2710 = vmatpush1.bf16.msra.mxu0 0
  %2711 = vmatprep.subr.bf16.mxu0 0
  %2712 = vmatpush1.bf16.msra.mxu0 0
  %2713 = vmatprep.subr.bf16.mxu0 0
  %2714 = vmatpush1.bf16.msra.mxu0 0
  %2715 = vmatprep.subr.bf16.mxu0 0
  %2716 = vmatpush1.bf16.msra.mxu0 0
  %2717 = vmatprep.subr.bf16.mxu0 0
  %2718 = vmatpush1.bf16.msra.mxu0 0
  %2719 = vmatprep.subr.bf16.mxu0 0
  %2720 = vmatpush1.bf16.msra.mxu0 0
  %2721 = vmatprep.mubr.bf16.mxu0 0
  %2722 = vmatmul.mubr.bf16.gmra.mrb[0].mxu0 %v2687
  %v2723 = vpop.f32.mrb[0].mxu0
  %v2724 = vadd.f32 %v2672, %v2723
  %v2725 = vpop.f32.mrb[0].mxu0
  %v2726 = vpop.f32.mrb[0].mxu0
  %v2727 = vpop.f32.mrb[0].mxu0
  %2728 = vdwg.mxu0
  %v2729 = vadd.f32 %v2589, %v2657
  %v2730 = vxor.u32 %v2729, 2147483648
  %v2731 = vmul.f32 %v2730, 1.442695
  %v2732 = vpow.pop %v2731
  %v2733 = vadd.f32 %v2732, 1.0
  %v2734 = vrcp.pop %v2733
  %v2735 = vmul.f32 1.0, %v2734
  %2737 = vrot.lane.b32.xlu0 %v2657, 64
  %v2738 = vpop.permute.xlu0 %2737
  %v2740 = vmul.f32 %v2735, %v2738
  %2742 = vrot.lane.b32.xlu0 %v2740, 64
  %v2743 = vpop.permute.xlu0 %2742
  %v2745 = vadd.f32 %v2589, %v2743
  %v2746 = vtanh.pop %v2745
  %v2747 = vsub.f32 1.0, %v2735
  %2749 = vrot.lane.b32.xlu0 %v2746, 96
  %v2750 = vpop.permute.xlu0 %2749
  %v2752 = vmul.f32 %v2747, %v2750
  %v2753 = vmul.f32 %v2735, %v2542
  %v2754 = vadd.f32 %v2752, %v2753
  %2756 = vrot.lane.b32.xlu0 %v2724, 96
  %v2757 = vpop.permute.xlu0 %2756
  %v2759 = vadd.f32 %v2590, %v2757
  %v2760 = vxor.u32 %v2759, 2147483648
  %v2761 = vmul.f32 %v2760, 1.442695
  %v2762 = vpow.pop %v2761
  %v2763 = vadd.f32 %v2762, 1.0
  %v2764 = vrcp.pop %v2763
  %v2765 = vmul.f32 1.0, %v2764
  %v2766 = vadd.f32 %v2591, %v2757
  %v2767 = vxor.u32 %v2766, 2147483648
  %v2768 = vmul.f32 %v2767, 1.442695
  %v2769 = vpow.pop %v2768
  %v2770 = vadd.f32 %v2769, 1.0
  %v2771 = vrcp.pop %v2770
  %v2772 = vmul.f32 1.0, %v2771
  %2773 = vrot.lane.b32.xlu0 %v2724, 32
  %v2774 = vpop.permute.xlu0 %2773
  %v2776 = vmul.f32 %v2765, %v2774
  %2778 = vrot.lane.b32.xlu0 %v2776, 64
  %v2779 = vpop.permute.xlu0 %2778
  %v2781 = vadd.f32 %v2591, %v2779
  %v2782 = vtanh.pop %v2781
  %v2783 = vsub.f32 1.0, %v2772
  %2785 = vrot.lane.b32.xlu0 %v2782, 96
  %v2786 = vpop.permute.xlu0 %2785
  %v2788 = vmul.f32 %v2783, %v2786
  %v2789 = vmul.f32 %v2772, %v2578
  %v2790 = vadd.f32 %v2788, %v2789
  %2792 = vrot.lane.b32.xlu0 %v2754, 96
  %v2793 = vpop.permute.xlu0 %2792
  %2795 = vst.msk [vmem:[#allocation3 + $0x20] sm:$0xff] %vm1773, %v2793
  %2797 = vrot.lane.b32.xlu0 %v2790, 32
  %v2798 = vpop.permute.xlu0 %2797
  %2800 = vst.msk [vmem:[#allocation3 + $0x58] sm:$0xff] %vm1951, %v2798
  %v2801 = vld [vmem:[#allocation2 + $0x50] sm:$0xff]
  %v2802 = vld [vmem:[#allocation2 + $0xa0] sm:$0xff]
  %v2803 = vld [vmem:[#allocation2 + $0xa8] sm:$0xff]
  %v2804 = vpack.c.bf16 %v2754, %v2754
  %v2805 = vld [vmem:[%s5] sm:$0xf]
  %v2806 = vld [vmem:[%s5 + $0x4] sm:$0xf]
  %v2807 = vld [vmem:[%s5 + $0x8] sm:$0xf]
  %v2808 = vld [vmem:[%s5 + $0xc] sm:$0xf]
  %v2809 = vld [vmem:[%s6] sm:$0x1]
  %v2811 = vlaneseq
  %v2812 = vshrl.u32 %v2811, 7
  %v2813 = vsub.s32 0, %v2812
  %v2814 = vrot.slane %v2809, %v2813
  %2817 = vrot.lane.b32.xlu0 %v2804, 96
  %v2818 = vpop.permute.xlu0 %2817
  %v2823 = vunpack.c.l.b16 %v2805
  %v2824 = vunpack.c.l.b16 %v2806
  %v2825 = vunpack.c.l.b16 %v2807
  %v2826 = vunpack.c.l.b16 %v2808
  %v2827 = vpack.c.b16 %v2824, %v2823
  %v2828 = vpack.c.b16 %v2826, %v2825
  %v2832 = vsel %vm1773, %v2818, 0
  %2834 = vmatprep.subr.bf16.mxu0 0
  %2835 = vmatpush1.bf16.msra.mxu0 %v2827
  %2836 = vmatprep.subr.bf16.mxu0 0
  %2837 = vmatpush1.bf16.msra.mxu0 %v2828
  %2838 = vmatprep.subr.bf16.mxu0 0
  %2839 = vmatpush1.bf16.msra.mxu0 0
  %2840 = vmatprep.subr.bf16.mxu0 0
  %2841 = vmatpush1.bf16.msra.mxu0 0
  %2842 = vmatprep.subr.bf16.mxu0 0
  %2843 = vmatpush1.bf16.msra.mxu0 0
  %2844 = vmatprep.subr.bf16.mxu0 0
  %2845 = vmatpush1.bf16.msra.mxu0 0
  %2846 = vmatprep.subr.bf16.mxu0 0
  %2847 = vmatpush1.bf16.msra.mxu0 0
  %2848 = vmatprep.subr.bf16.mxu0 0
  %2849 = vmatpush1.bf16.msra.mxu0 0
  %2850 = vmatprep.subr.bf16.mxu0 0
  %2851 = vmatpush1.bf16.msra.mxu0 0
  %2852 = vmatprep.subr.bf16.mxu0 0
  %2853 = vmatpush1.bf16.msra.mxu0 0
  %2854 = vmatprep.subr.bf16.mxu0 0
  %2855 = vmatpush1.bf16.msra.mxu0 0
  %2856 = vmatprep.subr.bf16.mxu0 0
  %2857 = vmatpush1.bf16.msra.mxu0 0
  %2858 = vmatprep.subr.bf16.mxu0 0
  %2859 = vmatpush1.bf16.msra.mxu0 0
  %2860 = vmatprep.subr.bf16.mxu0 0
  %2861 = vmatpush1.bf16.msra.mxu0 0
  %2862 = vmatprep.subr.bf16.mxu0 0
  %2863 = vmatpush1.bf16.msra.mxu0 0
  %2864 = vmatprep.subr.bf16.mxu0 0
  %2865 = vmatpush1.bf16.msra.mxu0 0
  %2866 = vmatprep.mubr.bf16.mxu0 0
  %2867 = vmatmul.mubr.bf16.gmra.mrb[0].mxu0 %v2832
  %v2868 = vpop.f32.mrb[0].mxu0
  %v2869 = vadd.f32 %v2814, %v2868
  %v2870 = vpop.f32.mrb[0].mxu0
  %v2871 = vpop.f32.mrb[0].mxu0
  %v2872 = vpop.f32.mrb[0].mxu0
  %2873 = vdwg.mxu0
  %v2874 = vpack.c.bf16 %v2790, %v2790
  %v2875 = vld [vmem:[%s7] sm:$0xf]
  %v2876 = vld [vmem:[%s7 + $0x4] sm:$0xf]
  %v2877 = vld [vmem:[%s7 + $0x8] sm:$0xf]
  %v2878 = vld [vmem:[%s7 + $0xc] sm:$0xf]
  %v2879 = vld [vmem:[%s8] sm:$0x1]
  %v2881 = vlaneseq
  %v2882 = vshrl.u32 %v2881, 7
  %v2883 = vsub.s32 0, %v2882
  %v2884 = vrot.slane %v2879, %v2883
  %v2890 = vunpack.c.l.b16 %v2875
  %v2891 = vunpack.c.l.b16 %v2876
  %v2892 = vunpack.c.l.b16 %v2877
  %v2893 = vunpack.c.l.b16 %v2878
  %v2894 = vpack.c.b16 %v2891, %v2890
  %v2895 = vpack.c.b16 %v2893, %v2892
  %v2899 = vsel %vm1773, %v2874, 0
  %2901 = vmatprep.subr.bf16.mxu0 0
  %2902 = vmatpush1.bf16.msra.mxu0 %v2894
  %2903 = vmatprep.subr.bf16.mxu0 0
  %2904 = vmatpush1.bf16.msra.mxu0 %v2895
  %2905 = vmatprep.subr.bf16.mxu0 0
  %2906 = vmatpush1.bf16.msra.mxu0 0
  %2907 = vmatprep.subr.bf16.mxu0 0
  %2908 = vmatpush1.bf16.msra.mxu0 0
  %2909 = vmatprep.subr.bf16.mxu0 0
  %2910 = vmatpush1.bf16.msra.mxu0 0
  %2911 = vmatprep.subr.bf16.mxu0 0
  %2912 = vmatpush1.bf16.msra.mxu0 0
  %2913 = vmatprep.subr.bf16.mxu0 0
  %2914 = vmatpush1.bf16.msra.mxu0 0
  %2915 = vmatprep.subr.bf16.mxu0 0
  %2916 = vmatpush1.bf16.msra.mxu0 0
  %2917 = vmatprep.subr.bf16.mxu0 0
  %2918 = vmatpush1.bf16.msra.mxu0 0
  %2919 = vmatprep.subr.bf16.mxu0 0
  %2920 = vmatpush1.bf16.msra.mxu0 0
  %2921 = vmatprep.subr.bf16.mxu0 0
  %2922 = vmatpush1.bf16.msra.mxu0 0
  %2923 = vmatprep.subr.bf16.mxu0 0
  %2924 = vmatpush1.bf16.msra.mxu0 0
  %2925 = vmatprep.subr.bf16.mxu0 0
  %2926 = vmatpush1.bf16.msra.mxu0 0
  %2927 = vmatprep.subr.bf16.mxu0 0
  %2928 = vmatpush1.bf16.msra.mxu0 0
  %2929 = vmatprep.subr.bf16.mxu0 0
  %2930 = vmatpush1.bf16.msra.mxu0 0
  %2931 = vmatprep.subr.bf16.mxu0 0
  %2932 = vmatpush1.bf16.msra.mxu0 0
  %2933 = vmatprep.mubr.bf16.mxu0 0
  %2934 = vmatmul.mubr.bf16.gmra.mrb[0].mxu0 %v2899
  %v2935 = vpop.f32.mrb[0].mxu0
  %v2936 = vadd.f32 %v2884, %v2935
  %v2937 = vpop.f32.mrb[0].mxu0
  %v2938 = vpop.f32.mrb[0].mxu0
  %v2939 = vpop.f32.mrb[0].mxu0
  %2940 = vdwg.mxu0
  %v2941 = vadd.f32 %v2801, %v2869
  %v2942 = vxor.u32 %v2941, 2147483648
  %v2943 = vmul.f32 %v2942, 1.442695
  %v2944 = vpow.pop %v2943
  %v2945 = vadd.f32 %v2944, 1.0
  %v2946 = vrcp.pop %v2945
  %v2947 = vmul.f32 1.0, %v2946
  %2949 = vrot.lane.b32.xlu0 %v2869, 64
  %v2950 = vpop.permute.xlu0 %2949
  %v2952 = vmul.f32 %v2947, %v2950
  %2954 = vrot.lane.b32.xlu0 %v2952, 64
  %v2955 = vpop.permute.xlu0 %2954
  %v2957 = vadd.f32 %v2801, %v2955
  %v2958 = vtanh.pop %v2957
  %v2959 = vsub.f32 1.0, %v2947
  %2961 = vrot.lane.b32.xlu0 %v2958, 96
  %v2962 = vpop.permute.xlu0 %2961
  %v2964 = vmul.f32 %v2959, %v2962
  %v2965 = vmul.f32 %v2947, %v2754
  %v2966 = vadd.f32 %v2964, %v2965
  %2968 = vrot.lane.b32.xlu0 %v2936, 96
  %v2969 = vpop.permute.xlu0 %2968
  %v2971 = vadd.f32 %v2802, %v2969
  %v2972 = vxor.u32 %v2971, 2147483648
  %v2973 = vmul.f32 %v2972, 1.442695
  %v2974 = vpow.pop %v2973
  %v2975 = vadd.f32 %v2974, 1.0
  %v2976 = vrcp.pop %v2975
  %v2977 = vmul.f32 1.0, %v2976
  %v2978 = vadd.f32 %v2803, %v2969
  %v2979 = vxor.u32 %v2978, 2147483648
  %v2980 = vmul.f32 %v2979, 1.442695
  %v2981 = vpow.pop %v2980
  %v2982 = vadd.f32 %v2981, 1.0
  %v2983 = vrcp.pop %v2982
  %v2984 = vmul.f32 1.0, %v2983
  %2985 = vrot.lane.b32.xlu0 %v2936, 32
  %v2986 = vpop.permute.xlu0 %2985
  %v2988 = vmul.f32 %v2977, %v2986
  %2990 = vrot.lane.b32.xlu0 %v2988, 64
  %v2991 = vpop.permute.xlu0 %2990
  %v2993 = vadd.f32 %v2803, %v2991
  %v2994 = vtanh.pop %v2993
  %v2995 = vsub.f32 1.0, %v2984
  %2997 = vrot.lane.b32.xlu0 %v2994, 96
  %v2998 = vpop.permute.xlu0 %2997
  %v3000 = vmul.f32 %v2995, %v2998
  %v3001 = vmul.f32 %v2984, %v2790
  %v3002 = vadd.f32 %v3000, %v3001
  %3004 = vrot.lane.b32.xlu0 %v2966, 96
  %v3005 = vpop.permute.xlu0 %3004
  %3007 = vst.msk [vmem:[#allocation3 + $0x28] sm:$0xff] %vm1773, %v3005
  %3009 = vrot.lane.b32.xlu0 %v3002, 32
  %v3010 = vpop.permute.xlu0 %3009
  %3012 = vst.msk [vmem:[#allocation3 + $0x50] sm:$0xff] %vm1951, %v3010
  %v3013 = vld [vmem:[#allocation2 + $0x60] sm:$0xff]
  %v3014 = vld [vmem:[#allocation2 + $0x90] sm:$0xff]
  %v3015 = vld [vmem:[#allocation2 + $0x98] sm:$0xff]
  %v3016 = vpack.c.bf16 %v2966, %v2966
  %v3017 = vld [vmem:[%s5] sm:$0xf]
  %v3018 = vld [vmem:[%s5 + $0x4] sm:$0xf]
  %v3019 = vld [vmem:[%s5 + $0x8] sm:$0xf]
  %v3020 = vld [vmem:[%s5 + $0xc] sm:$0xf]
  %v3021 = vld [vmem:[%s6] sm:$0x1]
  %v3023 = vlaneseq
  %v3024 = vshrl.u32 %v3023, 7
  %v3025 = vsub.s32 0, %v3024
  %v3026 = vrot.slane %v3021, %v3025
  %3029 = vrot.lane.b32.xlu0 %v3016, 96
  %v3030 = vpop.permute.xlu0 %3029
  %v3035 = vunpack.c.l.b16 %v3017
  %v3036 = vunpack.c.l.b16 %v3018
  %v3037 = vunpack.c.l.b16 %v3019
  %v3038 = vunpack.c.l.b16 %v3020
  %v3039 = vpack.c.b16 %v3036, %v3035
  %v3040 = vpack.c.b16 %v3038, %v3037
  %v3044 = vsel %vm1773, %v3030, 0
  %3046 = vmatprep.subr.bf16.mxu0 0
  %3047 = vmatpush1.bf16.msra.mxu0 %v3039
  %3048 = vmatprep.subr.bf16.mxu0 0
  %3049 = vmatpush1.bf16.msra.mxu0 %v3040
  %3050 = vmatprep.subr.bf16.mxu0 0
  %3051 = vmatpush1.bf16.msra.mxu0 0
  %3052 = vmatprep.subr.bf16.mxu0 0
  %3053 = vmatpush1.bf16.msra.mxu0 0
  %3054 = vmatprep.subr.bf16.mxu0 0
  %3055 = vmatpush1.bf16.msra.mxu0 0
  %3056 = vmatprep.subr.bf16.mxu0 0
  %3057 = vmatpush1.bf16.msra.mxu0 0
  %3058 = vmatprep.subr.bf16.mxu0 0
  %3059 = vmatpush1.bf16.msra.mxu0 0
  %3060 = vmatprep.subr.bf16.mxu0 0
  %3061 = vmatpush1.bf16.msra.mxu0 0
  %3062 = vmatprep.subr.bf16.mxu0 0
  %3063 = vmatpush1.bf16.msra.mxu0 0
  %3064 = vmatprep.subr.bf16.mxu0 0
  %3065 = vmatpush1.bf16.msra.mxu0 0
  %3066 = vmatprep.subr.bf16.mxu0 0
  %3067 = vmatpush1.bf16.msra.mxu0 0
  %3068 = vmatprep.subr.bf16.mxu0 0
  %3069 = vmatpush1.bf16.msra.mxu0 0
  %3070 = vmatprep.subr.bf16.mxu0 0
  %3071 = vmatpush1.bf16.msra.mxu0 0
  %3072 = vmatprep.subr.bf16.mxu0 0
  %3073 = vmatpush1.bf16.msra.mxu0 0
  %3074 = vmatprep.subr.bf16.mxu0 0
  %3075 = vmatpush1.bf16.msra.mxu0 0
  %3076 = vmatprep.subr.bf16.mxu0 0
  %3077 = vmatpush1.bf16.msra.mxu0 0
  %3078 = vmatprep.mubr.bf16.mxu0 0
  %3079 = vmatmul.mubr.bf16.gmra.mrb[0].mxu0 %v3044
  %v3080 = vpop.f32.mrb[0].mxu0
  %v3081 = vadd.f32 %v3026, %v3080
  %v3082 = vpop.f32.mrb[0].mxu0
  %v3083 = vpop.f32.mrb[0].mxu0
  %v3084 = vpop.f32.mrb[0].mxu0
  %3085 = vdwg.mxu0
  %v3086 = vpack.c.bf16 %v3002, %v3002
  %v3087 = vld [vmem:[%s7] sm:$0xf]
  %v3088 = vld [vmem:[%s7 + $0x4] sm:$0xf]
  %v3089 = vld [vmem:[%s7 + $0x8] sm:$0xf]
  %v3090 = vld [vmem:[%s7 + $0xc] sm:$0xf]
  %v3091 = vld [vmem:[%s8] sm:$0x1]
  %v3093 = vlaneseq
  %v3094 = vshrl.u32 %v3093, 7
  %v3095 = vsub.s32 0, %v3094
  %v3096 = vrot.slane %v3091, %v3095
  %v3102 = vunpack.c.l.b16 %v3087
  %v3103 = vunpack.c.l.b16 %v3088
  %v3104 = vunpack.c.l.b16 %v3089
  %v3105 = vunpack.c.l.b16 %v3090
  %v3106 = vpack.c.b16 %v3103, %v3102
  %v3107 = vpack.c.b16 %v3105, %v3104
  %v3111 = vsel %vm1773, %v3086, 0
  %3113 = vmatprep.subr.bf16.mxu0 0
  %3114 = vmatpush1.bf16.msra.mxu0 %v3106
  %3115 = vmatprep.subr.bf16.mxu0 0
  %3116 = vmatpush1.bf16.msra.mxu0 %v3107
  %3117 = vmatprep.subr.bf16.mxu0 0
  %3118 = vmatpush1.bf16.msra.mxu0 0
  %3119 = vmatprep.subr.bf16.mxu0 0
  %3120 = vmatpush1.bf16.msra.mxu0 0
  %3121 = vmatprep.subr.bf16.mxu0 0
  %3122 = vmatpush1.bf16.msra.mxu0 0
  %3123 = vmatprep.subr.bf16.mxu0 0
  %3124 = vmatpush1.bf16.msra.mxu0 0
  %3125 = vmatprep.subr.bf16.mxu0 0
  %3126 = vmatpush1.bf16.msra.mxu0 0
  %3127 = vmatprep.subr.bf16.mxu0 0
  %3128 = vmatpush1.bf16.msra.mxu0 0
  %3129 = vmatprep.subr.bf16.mxu0 0
  %3130 = vmatpush1.bf16.msra.mxu0 0
  %3131 = vmatprep.subr.bf16.mxu0 0
  %3132 = vmatpush1.bf16.msra.mxu0 0
  %3133 = vmatprep.subr.bf16.mxu0 0
  %3134 = vmatpush1.bf16.msra.mxu0 0
  %3135 = vmatprep.subr.bf16.mxu0 0
  %3136 = vmatpush1.bf16.msra.mxu0 0
  %3137 = vmatprep.subr.bf16.mxu0 0
  %3138 = vmatpush1.bf16.msra.mxu0 0
  %3139 = vmatprep.subr.bf16.mxu0 0
  %3140 = vmatpush1.bf16.msra.mxu0 0
  %3141 = vmatprep.subr.bf16.mxu0 0
  %3142 = vmatpush1.bf16.msra.mxu0 0
  %3143 = vmatprep.subr.bf16.mxu0 0
  %3144 = vmatpush1.bf16.msra.mxu0 0
  %3145 = vmatprep.mubr.bf16.mxu0 0
  %3146 = vmatmul.mubr.bf16.gmra.mrb[0].mxu0 %v3111
  %v3147 = vpop.f32.mrb[0].mxu0
  %v3148 = vadd.f32 %v3096, %v3147
  %v3149 = vpop.f32.mrb[0].mxu0
  %v3150 = vpop.f32.mrb[0].mxu0
  %v3151 = vpop.f32.mrb[0].mxu0
  %3152 = vdwg.mxu0
  %v3153 = vadd.f32 %v3013, %v3081
  %v3154 = vxor.u32 %v3153, 2147483648
  %v3155 = vmul.f32 %v3154, 1.442695
  %v3156 = vpow.pop %v3155
  %v3157 = vadd.f32 %v3156, 1.0
  %v3158 = vrcp.pop %v3157
  %v3159 = vmul.f32 1.0, %v3158
  %3161 = vrot.lane.b32.xlu0 %v3081, 64
  %v3162 = vpop.permute.xlu0 %3161
  %v3164 = vmul.f32 %v3159, %v3162
  %3166 = vrot.lane.b32.xlu0 %v3164, 64
  %v3167 = vpop.permute.xlu0 %3166
  %v3169 = vadd.f32 %v3013, %v3167
  %v3170 = vtanh.pop %v3169
  %v3171 = vsub.f32 1.0, %v3159
  %3173 = vrot.lane.b32.xlu0 %v3170, 96
  %v3174 = vpop.permute.xlu0 %3173
  %v3176 = vmul.f32 %v3171, %v3174
  %v3177 = vmul.f32 %v3159, %v2966
  %v3178 = vadd.f32 %v3176, %v3177
  %3180 = vrot.lane.b32.xlu0 %v3148, 96
  %v3181 = vpop.permute.xlu0 %3180
  %v3183 = vadd.f32 %v3014, %v3181
  %v3184 = vxor.u32 %v3183, 2147483648
  %v3185 = vmul.f32 %v3184, 1.442695
  %v3186 = vpow.pop %v3185
  %v3187 = vadd.f32 %v3186, 1.0
  %v3188 = vrcp.pop %v3187
  %v3189 = vmul.f32 1.0, %v3188
  %v3190 = vadd.f32 %v3015, %v3181
  %v3191 = vxor.u32 %v3190, 2147483648
  %v3192 = vmul.f32 %v3191, 1.442695
  %v3193 = vpow.pop %v3192
  %v3194 = vadd.f32 %v3193, 1.0
  %v3195 = vrcp.pop %v3194
  %v3196 = vmul.f32 1.0, %v3195
  %3197 = vrot.lane.b32.xlu0 %v3148, 32
  %v3198 = vpop.permute.xlu0 %3197
  %v3200 = vmul.f32 %v3189, %v3198
  %3202 = vrot.lane.b32.xlu0 %v3200, 64
  %v3203 = vpop.permute.xlu0 %3202
  %v3205 = vadd.f32 %v3015, %v3203
  %v3206 = vtanh.pop %v3205
  %v3207 = vsub.f32 1.0, %v3196
  %3209 = vrot.lane.b32.xlu0 %v3206, 96
  %v3210 = vpop.permute.xlu0 %3209
  %v3212 = vmul.f32 %v3207, %v3210
  %v3213 = vmul.f32 %v3196, %v3002
  %v3214 = vadd.f32 %v3212, %v3213
  %3216 = vrot.lane.b32.xlu0 %v3178, 96
  %v3217 = vpop.permute.xlu0 %3216
  %3219 = vst.msk [vmem:[#allocation3 + $0x30] sm:$0xff] %vm1773, %v3217
  %3221 = vrot.lane.b32.xlu0 %v3214, 32
  %v3222 = vpop.permute.xlu0 %3221
  %3224 = vst.msk [vmem:[#allocation3 + $0x48] sm:$0xff] %vm1951, %v3222
  %v3225 = vld [vmem:[#allocation2 + $0x70] sm:$0xff]
  %v3226 = vld [vmem:[#allocation2 + $0x80] sm:$0xff]
  %v3227 = vld [vmem:[#allocation2 + $0x88] sm:$0xff]
  %v3228 = vpack.c.bf16 %v3178, %v3178
  %v3229 = vld [vmem:[%s5] sm:$0xf]
  %v3230 = vld [vmem:[%s5 + $0x4] sm:$0xf]
  %v3231 = vld [vmem:[%s5 + $0x8] sm:$0xf]
  %v3232 = vld [vmem:[%s5 + $0xc] sm:$0xf]
  %v3233 = vld [vmem:[%s6] sm:$0x1]
  %v3235 = vlaneseq
  %v3236 = vshrl.u32 %v3235, 7
  %v3237 = vsub.s32 0, %v3236
  %v3238 = vrot.slane %v3233, %v3237
  %3241 = vrot.lane.b32.xlu0 %v3228, 96
  %v3242 = vpop.permute.xlu0 %3241
  %v3247 = vunpack.c.l.b16 %v3229
  %v3248 = vunpack.c.l.b16 %v3230
  %v3249 = vunpack.c.l.b16 %v3231
  %v3250 = vunpack.c.l.b16 %v3232
  %v3251 = vpack.c.b16 %v3248, %v3247
  %v3252 = vpack.c.b16 %v3250, %v3249
  %v3256 = vsel %vm1773, %v3242, 0
  %3258 = vmatprep.subr.bf16.mxu0 0
  %3259 = vmatpush1.bf16.msra.mxu0 %v3251
  %3260 = vmatprep.subr.bf16.mxu0 0
  %3261 = vmatpush1.bf16.msra.mxu0 %v3252
  %3262 = vmatprep.subr.bf16.mxu0 0
  %3263 = vmatpush1.bf16.msra.mxu0 0
  %3264 = vmatprep.subr.bf16.mxu0 0
  %3265 = vmatpush1.bf16.msra.mxu0 0
  %3266 = vmatprep.subr.bf16.mxu0 0
  %3267 = vmatpush1.bf16.msra.mxu0 0
  %3268 = vmatprep.subr.bf16.mxu0 0
  %3269 = vmatpush1.bf16.msra.mxu0 0
  %3270 = vmatprep.subr.bf16.mxu0 0
  %3271 = vmatpush1.bf16.msra.mxu0 0
  %3272 = vmatprep.subr.bf16.mxu0 0
  %3273 = vmatpush1.bf16.msra.mxu0 0
  %3274 = vmatprep.subr.bf16.mxu0 0
  %3275 = vmatpush1.bf16.msra.mxu0 0
  %3276 = vmatprep.subr.bf16.mxu0 0
  %3277 = vmatpush1.bf16.msra.mxu0 0
  %3278 = vmatprep.subr.bf16.mxu0 0
  %3279 = vmatpush1.bf16.msra.mxu0 0
  %3280 = vmatprep.subr.bf16.mxu0 0
  %3281 = vmatpush1.bf16.msra.mxu0 0
  %3282 = vmatprep.subr.bf16.mxu0 0
  %3283 = vmatpush1.bf16.msra.mxu0 0
  %3284 = vmatprep.subr.bf16.mxu0 0
  %3285 = vmatpush1.bf16.msra.mxu0 0
  %3286 = vmatprep.subr.bf16.mxu0 0
  %3287 = vmatpush1.bf16.msra.mxu0 0
  %3288 = vmatprep.subr.bf16.mxu0 0
  %3289 = vmatpush1.bf16.msra.mxu0 0
  %3290 = vmatprep.mubr.bf16.mxu0 0
  %3291 = vmatmul.mubr.bf16.gmra.mrb[0].mxu0 %v3256
  %v3292 = vpop.f32.mrb[0].mxu0
  %v3293 = vadd.f32 %v3238, %v3292
  %v3294 = vpop.f32.mrb[0].mxu0
  %v3295 = vpop.f32.mrb[0].mxu0
  %v3296 = vpop.f32.mrb[0].mxu0
  %3297 = vdwg.mxu0
  %v3298 = vpack.c.bf16 %v3214, %v3214
  %v3299 = vld [vmem:[%s7] sm:$0xf]
  %v3300 = vld [vmem:[%s7 + $0x4] sm:$0xf]
  %v3301 = vld [vmem:[%s7 + $0x8] sm:$0xf]
  %v3302 = vld [vmem:[%s7 + $0xc] sm:$0xf]
  %v3303 = vld [vmem:[%s8] sm:$0x1]
  %v3305 = vlaneseq
  %v3306 = vshrl.u32 %v3305, 7
  %v3307 = vsub.s32 0, %v3306
  %v3308 = vrot.slane %v3303, %v3307
  %v3314 = vunpack.c.l.b16 %v3299
  %v3315 = vunpack.c.l.b16 %v3300
  %v3316 = vunpack.c.l.b16 %v3301
  %v3317 = vunpack.c.l.b16 %v3302
  %v3318 = vpack.c.b16 %v3315, %v3314
  %v3319 = vpack.c.b16 %v3317, %v3316
  %v3323 = vsel %vm1773, %v3298, 0
  %3325 = vmatprep.subr.bf16.mxu0 0
  %3326 = vmatpush1.bf16.msra.mxu0 %v3318
  %3327 = vmatprep.subr.bf16.mxu0 0
  %3328 = vmatpush1.bf16.msra.mxu0 %v3319
  %3329 = vmatprep.subr.bf16.mxu0 0
  %3330 = vmatpush1.bf16.msra.mxu0 0
  %3331 = vmatprep.subr.bf16.mxu0 0
  %3332 = vmatpush1.bf16.msra.mxu0 0
  %3333 = vmatprep.subr.bf16.mxu0 0
  %3334 = vmatpush1.bf16.msra.mxu0 0
  %3335 = vmatprep.subr.bf16.mxu0 0
  %3336 = vmatpush1.bf16.msra.mxu0 0
  %3337 = vmatprep.subr.bf16.mxu0 0
  %3338 = vmatpush1.bf16.msra.mxu0 0
  %3339 = vmatprep.subr.bf16.mxu0 0
  %3340 = vmatpush1.bf16.msra.mxu0 0
  %3341 = vmatprep.subr.bf16.mxu0 0
  %3342 = vmatpush1.bf16.msra.mxu0 0
  %3343 = vmatprep.subr.bf16.mxu0 0
  %3344 = vmatpush1.bf16.msra.mxu0 0
  %3345 = vmatprep.subr.bf16.mxu0 0
  %3346 = vmatpush1.bf16.msra.mxu0 0
  %3347 = vmatprep.subr.bf16.mxu0 0
  %3348 = vmatpush1.bf16.msra.mxu0 0
  %3349 = vmatprep.subr.bf16.mxu0 0
  %3350 = vmatpush1.bf16.msra.mxu0 0
  %3351 = vmatprep.subr.bf16.mxu0 0
  %3352 = vmatpush1.bf16.msra.mxu0 0
  %3353 = vmatprep.subr.bf16.mxu0 0
  %3354 = vmatpush1.bf16.msra.mxu0 0
  %3355 = vmatprep.subr.bf16.mxu0 0
  %3356 = vmatpush1.bf16.msra.mxu0 0
  %3357 = vmatprep.mubr.bf16.mxu0 0
  %3358 = vmatmul.mubr.bf16.gmra.mrb[0].mxu0 %v3323
  %v3359 = vpop.f32.mrb[0].mxu0
  %v3360 = vadd.f32 %v3308, %v3359
  %v3361 = vpop.f32.mrb[0].mxu0
  %v3362 = vpop.f32.mrb[0].mxu0
  %v3363 = vpop.f32.mrb[0].mxu0
  %3364 = vdwg.mxu0
  %v3365 = vadd.f32 %v3225, %v3293
  %v3366 = vxor.u32 %v3365, 2147483648
  %v3367 = vmul.f32 %v3366, 1.442695
  %v3368 = vpow.pop %v3367
  %v3369 = vadd.f32 %v3368, 1.0
  %v3370 = vrcp.pop %v3369
  %v3371 = vmul.f32 1.0, %v3370
  %3373 = vrot.lane.b32.xlu0 %v3293, 64
  %v3374 = vpop.permute.xlu0 %3373
  %v3376 = vmul.f32 %v3371, %v3374
  %3378 = vrot.lane.b32.xlu0 %v3376, 64
  %v3379 = vpop.permute.xlu0 %3378
  %v3381 = vadd.f32 %v3225, %v3379
  %v3382 = vtanh.pop %v3381
  %v3383 = vsub.f32 1.0, %v3371
  %3385 = vrot.lane.b32.xlu0 %v3382, 96
  %v3386 = vpop.permute.xlu0 %3385
  %v3388 = vmul.f32 %v3383, %v3386
  %v3389 = vmul.f32 %v3371, %v3178
  %v3390 = vadd.f32 %v3388, %v3389
  %3392 = vrot.lane.b32.xlu0 %v3360, 96
  %v3393 = vpop.permute.xlu0 %3392
  %v3395 = vadd.f32 %v3226, %v3393
  %v3396 = vxor.u32 %v3395, 2147483648
  %v3397 = vmul.f32 %v3396, 1.442695
  %v3398 = vpow.pop %v3397
  %v3399 = vadd.f32 %v3398, 1.0
  %v3400 = vrcp.pop %v3399
  %v3401 = vmul.f32 1.0, %v3400
  %v3402 = vadd.f32 %v3227, %v3393
  %v3403 = vxor.u32 %v3402, 2147483648
  %v3404 = vmul.f32 %v3403, 1.442695
  %v3405 = vpow.pop %v3404
  %v3406 = vadd.f32 %v3405, 1.0
  %v3407 = vrcp.pop %v3406
  %v3408 = vmul.f32 1.0, %v3407
  %3409 = vrot.lane.b32.xlu0 %v3360, 32
  %v3410 = vpop.permute.xlu0 %3409
  %v3412 = vmul.f32 %v3401, %v3410
  %3414 = vrot.lane.b32.xlu0 %v3412, 64
  %v3415 = vpop.permute.xlu0 %3414
  %v3417 = vadd.f32 %v3227, %v3415
  %v3418 = vtanh.pop %v3417
  %v3419 = vsub.f32 1.0, %v3408
  %3421 = vrot.lane.b32.xlu0 %v3418, 96
  %v3422 = vpop.permute.xlu0 %3421
  %v3424 = vmul.f32 %v3419, %v3422
  %v3425 = vmul.f32 %v3408, %v3214
  %v3426 = vadd.f32 %v3424, %v3425
  %3428 = vrot.lane.b32.xlu0 %v3390, 96
  %v3429 = vpop.permute.xlu0 %3428
  %3431 = vst.msk [vmem:[#allocation3 + $0x38] sm:$0xff] %vm1773, %v3429
  %3433 = vrot.lane.b32.xlu0 %v3426, 32
  %v3434 = vpop.permute.xlu0 %3433
  %3436 = vst.msk [vmem:[#allocation3 + $0x40] sm:$0xff] %vm1951, %v3434
  %v3437 = vld [vmem:[#allocation2 + $0x80] sm:$0xff]
  %v3438 = vld [vmem:[#allocation2 + $0x70] sm:$0xff]
  %v3439 = vld [vmem:[#allocation2 + $0x78] sm:$0xff]
  %v3440 = vpack.c.bf16 %v3390, %v3390
  %v3441 = vld [vmem:[%s5] sm:$0xf]
  %v3442 = vld [vmem:[%s5 + $0x4] sm:$0xf]
  %v3443 = vld [vmem:[%s5 + $0x8] sm:$0xf]
  %v3444 = vld [vmem:[%s5 + $0xc] sm:$0xf]
  %v3445 = vld [vmem:[%s6] sm:$0x1]
  %v3447 = vlaneseq
  %v3448 = vshrl.u32 %v3447, 7
  %v3449 = vsub.s32 0, %v3448
  %v3450 = vrot.slane %v3445, %v3449
  %3453 = vrot.lane.b32.xlu0 %v3440, 96
  %v3454 = vpop.permute.xlu0 %3453
  %v3459 = vunpack.c.l.b16 %v3441
  %v3460 = vunpack.c.l.b16 %v3442
  %v3461 = vunpack.c.l.b16 %v3443
  %v3462 = vunpack.c.l.b16 %v3444
  %v3463 = vpack.c.b16 %v3460, %v3459
  %v3464 = vpack.c.b16 %v3462, %v3461
  %v3468 = vsel %vm1773, %v3454, 0
  %3470 = vmatprep.subr.bf16.mxu0 0
  %3471 = vmatpush1.bf16.msra.mxu0 %v3463
  %3472 = vmatprep.subr.bf16.mxu0 0
  %3473 = vmatpush1.bf16.msra.mxu0 %v3464
  %3474 = vmatprep.subr.bf16.mxu0 0
  %3475 = vmatpush1.bf16.msra.mxu0 0
  %3476 = vmatprep.subr.bf16.mxu0 0
  %3477 = vmatpush1.bf16.msra.mxu0 0
  %3478 = vmatprep.subr.bf16.mxu0 0
  %3479 = vmatpush1.bf16.msra.mxu0 0
  %3480 = vmatprep.subr.bf16.mxu0 0
  %3481 = vmatpush1.bf16.msra.mxu0 0
  %3482 = vmatprep.subr.bf16.mxu0 0
  %3483 = vmatpush1.bf16.msra.mxu0 0
  %3484 = vmatprep.subr.bf16.mxu0 0
  %3485 = vmatpush1.bf16.msra.mxu0 0
  %3486 = vmatprep.subr.bf16.mxu0 0
  %3487 = vmatpush1.bf16.msra.mxu0 0
  %3488 = vmatprep.subr.bf16.mxu0 0
  %3489 = vmatpush1.bf16.msra.mxu0 0
  %3490 = vmatprep.subr.bf16.mxu0 0
  %3491 = vmatpush1.bf16.msra.mxu0 0
  %3492 = vmatprep.subr.bf16.mxu0 0
  %3493 = vmatpush1.bf16.msra.mxu0 0
  %3494 = vmatprep.subr.bf16.mxu0 0
  %3495 = vmatpush1.bf16.msra.mxu0 0
  %3496 = vmatprep.subr.bf16.mxu0 0
  %3497 = vmatpush1.bf16.msra.mxu0 0
  %3498 = vmatprep.subr.bf16.mxu0 0
  %3499 = vmatpush1.bf16.msra.mxu0 0
  %3500 = vmatprep.subr.bf16.mxu0 0
  %3501 = vmatpush1.bf16.msra.mxu0 0
  %3502 = vmatprep.mubr.bf16.mxu0 0
  %3503 = vmatmul.mubr.bf16.gmra.mrb[0].mxu0 %v3468
  %v3504 = vpop.f32.mrb[0].mxu0
  %v3505 = vadd.f32 %v3450, %v3504
  %v3506 = vpop.f32.mrb[0].mxu0
  %v3507 = vpop.f32.mrb[0].mxu0
  %v3508 = vpop.f32.mrb[0].mxu0
  %3509 = vdwg.mxu0
  %v3510 = vpack.c.bf16 %v3426, %v3426
  %v3511 = vld [vmem:[%s7] sm:$0xf]
  %v3512 = vld [vmem:[%s7 + $0x4] sm:$0xf]
  %v3513 = vld [vmem:[%s7 + $0x8] sm:$0xf]
  %v3514 = vld [vmem:[%s7 + $0xc] sm:$0xf]
  %v3515 = vld [vmem:[%s8] sm:$0x1]
  %v3517 = vlaneseq
  %v3518 = vshrl.u32 %v3517, 7
  %v3519 = vsub.s32 0, %v3518
  %v3520 = vrot.slane %v3515, %v3519
  %v3526 = vunpack.c.l.b16 %v3511
  %v3527 = vunpack.c.l.b16 %v3512
  %v3528 = vunpack.c.l.b16 %v3513
  %v3529 = vunpack.c.l.b16 %v3514
  %v3530 = vpack.c.b16 %v3527, %v3526
  %v3531 = vpack.c.b16 %v3529, %v3528
  %v3535 = vsel %vm1773, %v3510, 0
  %3537 = vmatprep.subr.bf16.mxu0 0
  %3538 = vmatpush1.bf16.msra.mxu0 %v3530
  %3539 = vmatprep.subr.bf16.mxu0 0
  %3540 = vmatpush1.bf16.msra.mxu0 %v3531
  %3541 = vmatprep.subr.bf16.mxu0 0
  %3542 = vmatpush1.bf16.msra.mxu0 0
  %3543 = vmatprep.subr.bf16.mxu0 0
  %3544 = vmatpush1.bf16.msra.mxu0 0
  %3545 = vmatprep.subr.bf16.mxu0 0
  %3546 = vmatpush1.bf16.msra.mxu0 0
  %3547 = vmatprep.subr.bf16.mxu0 0
  %3548 = vmatpush1.bf16.msra.mxu0 0
  %3549 = vmatprep.subr.bf16.mxu0 0
  %3550 = vmatpush1.bf16.msra.mxu0 0
  %3551 = vmatprep.subr.bf16.mxu0 0
  %3552 = vmatpush1.bf16.msra.mxu0 0
  %3553 = vmatprep.subr.bf16.mxu0 0
  %3554 = vmatpush1.bf16.msra.mxu0 0
  %3555 = vmatprep.subr.bf16.mxu0 0
  %3556 = vmatpush1.bf16.msra.mxu0 0
  %3557 = vmatprep.subr.bf16.mxu0 0
  %3558 = vmatpush1.bf16.msra.mxu0 0
  %3559 = vmatprep.subr.bf16.mxu0 0
  %3560 = vmatpush1.bf16.msra.mxu0 0
  %3561 = vmatprep.subr.bf16.mxu0 0
  %3562 = vmatpush1.bf16.msra.mxu0 0
  %3563 = vmatprep.subr.bf16.mxu0 0
  %3564 = vmatpush1.bf16.msra.mxu0 0
  %3565 = vmatprep.subr.bf16.mxu0 0
  %3566 = vmatpush1.bf16.msra.mxu0 0
  %3567 = vmatprep.subr.bf16.mxu0 0
  %3568 = vmatpush1.bf16.msra.mxu0 0
  %3569 = vmatprep.mubr.bf16.mxu0 0
  %3570 = vmatmul.mubr.bf16.gmra.mrb[0].mxu0 %v3535
  %v3571 = vpop.f32.mrb[0].mxu0
  %v3572 = vadd.f32 %v3520, %v3571
  %v3573 = vpop.f32.mrb[0].mxu0
  %v3574 = vpop.f32.mrb[0].mxu0
  %v3575 = vpop.f32.mrb[0].mxu0
  %3576 = vdwg.mxu0
  %v3577 = vadd.f32 %v3437, %v3505
  %v3578 = vxor.u32 %v3577, 2147483648
  %v3579 = vmul.f32 %v3578, 1.442695
  %v3580 = vpow.pop %v3579
  %v3581 = vadd.f32 %v3580, 1.0
  %v3582 = vrcp.pop %v3581
  %v3583 = vmul.f32 1.0, %v3582
  %3585 = vrot.lane.b32.xlu0 %v3505, 64
  %v3586 = vpop.permute.xlu0 %3585
  %v3588 = vmul.f32 %v3583, %v3586
  %3590 = vrot.lane.b32.xlu0 %v3588, 64
  %v3591 = vpop.permute.xlu0 %3590
  %v3593 = vadd.f32 %v3437, %v3591
  %v3594 = vtanh.pop %v3593
  %v3595 = vsub.f32 1.0, %v3583
  %3597 = vrot.lane.b32.xlu0 %v3594, 96
  %v3598 = vpop.permute.xlu0 %3597
  %v3600 = vmul.f32 %v3595, %v3598
  %v3601 = vmul.f32 %v3583, %v3390
  %v3602 = vadd.f32 %v3600, %v3601
  %3604 = vrot.lane.b32.xlu0 %v3572, 96
  %v3605 = vpop.permute.xlu0 %3604
  %v3607 = vadd.f32 %v3438, %v3605
  %v3608 = vxor.u32 %v3607, 2147483648
  %v3609 = vmul.f32 %v3608, 1.442695
  %v3610 = vpow.pop %v3609
  %v3611 = vadd.f32 %v3610, 1.0
  %v3612 = vrcp.pop %v3611
  %v3613 = vmul.f32 1.0, %v3612
  %v3614 = vadd.f32 %v3439, %v3605
  %v3615 = vxor.u32 %v3614, 2147483648
  %v3616 = vmul.f32 %v3615, 1.442695
  %v3617 = vpow.pop %v3616
  %v3618 = vadd.f32 %v3617, 1.0
  %v3619 = vrcp.pop %v3618
  %v3620 = vmul.f32 1.0, %v3619
  %3621 = vrot.lane.b32.xlu0 %v3572, 32
  %v3622 = vpop.permute.xlu0 %3621
  %v3624 = vmul.f32 %v3613, %v3622
  %3626 = vrot.lane.b32.xlu0 %v3624, 64
  %v3627 = vpop.permute.xlu0 %3626
  %v3629 = vadd.f32 %v3439, %v3627
  %v3630 = vtanh.pop %v3629
  %v3631 = vsub.f32 1.0, %v3620
  %3633 = vrot.lane.b32.xlu0 %v3630, 96
  %v3634 = vpop.permute.xlu0 %3633
  %v3636 = vmul.f32 %v3631, %v3634
  %v3637 = vmul.f32 %v3620, %v3426
  %v3638 = vadd.f32 %v3636, %v3637
  %3640 = vrot.lane.b32.xlu0 %v3602, 96
  %v3641 = vpop.permute.xlu0 %3640
  %3643 = vst.msk [vmem:[#allocation3 + $0x40] sm:$0xff] %vm1773, %v3641
  %3645 = vrot.lane.b32.xlu0 %v3638, 32
  %v3646 = vpop.permute.xlu0 %3645
  %3648 = vst.msk [vmem:[#allocation3 + $0x38] sm:$0xff] %vm1951, %v3646
  %v3649 = vld [vmem:[#allocation2 + $0x90] sm:$0xff]
  %v3650 = vld [vmem:[#allocation2 + $0x60] sm:$0xff]
  %v3651 = vld [vmem:[#allocation2 + $0x68] sm:$0xff]
  %v3652 = vpack.c.bf16 %v3602, %v3602
  %v3653 = vld [vmem:[%s5] sm:$0xf]
  %v3654 = vld [vmem:[%s5 + $0x4] sm:$0xf]
  %v3655 = vld [vmem:[%s5 + $0x8] sm:$0xf]
  %v3656 = vld [vmem:[%s5 + $0xc] sm:$0xf]
  %v3657 = vld [vmem:[%s6] sm:$0x1]
  %v3659 = vlaneseq
  %v3660 = vshrl.u32 %v3659, 7
  %v3661 = vsub.s32 0, %v3660
  %v3662 = vrot.slane %v3657, %v3661
  %3665 = vrot.lane.b32.xlu0 %v3652, 96
  %v3666 = vpop.permute.xlu0 %3665
  %v3671 = vunpack.c.l.b16 %v3653
  %v3672 = vunpack.c.l.b16 %v3654
  %v3673 = vunpack.c.l.b16 %v3655
  %v3674 = vunpack.c.l.b16 %v3656
  %v3675 = vpack.c.b16 %v3672, %v3671
  %v3676 = vpack.c.b16 %v3674, %v3673
  %v3680 = vsel %vm1773, %v3666, 0
  %3682 = vmatprep.subr.bf16.mxu0 0
  %3683 = vmatpush1.bf16.msra.mxu0 %v3675
  %3684 = vmatprep.subr.bf16.mxu0 0
  %3685 = vmatpush1.bf16.msra.mxu0 %v3676
  %3686 = vmatprep.subr.bf16.mxu0 0
  %3687 = vmatpush1.bf16.msra.mxu0 0
  %3688 = vmatprep.subr.bf16.mxu0 0
  %3689 = vmatpush1.bf16.msra.mxu0 0
  %3690 = vmatprep.subr.bf16.mxu0 0
  %3691 = vmatpush1.bf16.msra.mxu0 0
  %3692 = vmatprep.subr.bf16.mxu0 0
  %3693 = vmatpush1.bf16.msra.mxu0 0
  %3694 = vmatprep.subr.bf16.mxu0 0
  %3695 = vmatpush1.bf16.msra.mxu0 0
  %3696 = vmatprep.subr.bf16.mxu0 0
  %3697 = vmatpush1.bf16.msra.mxu0 0
  %3698 = vmatprep.subr.bf16.mxu0 0
  %3699 = vmatpush1.bf16.msra.mxu0 0
  %3700 = vmatprep.subr.bf16.mxu0 0
  %3701 = vmatpush1.bf16.msra.mxu0 0
  %3702 = vmatprep.subr.bf16.mxu0 0
  %3703 = vmatpush1.bf16.msra.mxu0 0
  %3704 = vmatprep.subr.bf16.mxu0 0
  %3705 = vmatpush1.bf16.msra.mxu0 0
  %3706 = vmatprep.subr.bf16.mxu0 0
  %3707 = vmatpush1.bf16.msra.mxu0 0
  %3708 = vmatprep.subr.bf16.mxu0 0
  %3709 = vmatpush1.bf16.msra.mxu0 0
  %3710 = vmatprep.subr.bf16.mxu0 0
  %3711 = vmatpush1.bf16.msra.mxu0 0
  %3712 = vmatprep.subr.bf16.mxu0 0
  %3713 = vmatpush1.bf16.msra.mxu0 0
  %3714 = vmatprep.mubr.bf16.mxu0 0
  %3715 = vmatmul.mubr.bf16.gmra.mrb[0].mxu0 %v3680
  %v3716 = vpop.f32.mrb[0].mxu0
  %v3717 = vadd.f32 %v3662, %v3716
  %v3718 = vpop.f32.mrb[0].mxu0
  %v3719 = vpop.f32.mrb[0].mxu0
  %v3720 = vpop.f32.mrb[0].mxu0
  %3721 = vdwg.mxu0
  %v3722 = vpack.c.bf16 %v3638, %v3638
  %v3723 = vld [vmem:[%s7] sm:$0xf]
  %v3724 = vld [vmem:[%s7 + $0x4] sm:$0xf]
  %v3725 = vld [vmem:[%s7 + $0x8] sm:$0xf]
  %v3726 = vld [vmem:[%s7 + $0xc] sm:$0xf]
  %v3727 = vld [vmem:[%s8] sm:$0x1]
  %v3729 = vlaneseq
  %v3730 = vshrl.u32 %v3729, 7
  %v3731 = vsub.s32 0, %v3730
  %v3732 = vrot.slane %v3727, %v3731
  %v3738 = vunpack.c.l.b16 %v3723
  %v3739 = vunpack.c.l.b16 %v3724
  %v3740 = vunpack.c.l.b16 %v3725
  %v3741 = vunpack.c.l.b16 %v3726
  %v3742 = vpack.c.b16 %v3739, %v3738
  %v3743 = vpack.c.b16 %v3741, %v3740
  %v3747 = vsel %vm1773, %v3722, 0
  %3749 = vmatprep.subr.bf16.mxu0 0
  %3750 = vmatpush1.bf16.msra.mxu0 %v3742
  %3751 = vmatprep.subr.bf16.mxu0 0
  %3752 = vmatpush1.bf16.msra.mxu0 %v3743
  %3753 = vmatprep.subr.bf16.mxu0 0
  %3754 = vmatpush1.bf16.msra.mxu0 0
  %3755 = vmatprep.subr.bf16.mxu0 0
  %3756 = vmatpush1.bf16.msra.mxu0 0
  %3757 = vmatprep.subr.bf16.mxu0 0
  %3758 = vmatpush1.bf16.msra.mxu0 0
  %3759 = vmatprep.subr.bf16.mxu0 0
  %3760 = vmatpush1.bf16.msra.mxu0 0
  %3761 = vmatprep.subr.bf16.mxu0 0
  %3762 = vmatpush1.bf16.msra.mxu0 0
  %3763 = vmatprep.subr.bf16.mxu0 0
  %3764 = vmatpush1.bf16.msra.mxu0 0
  %3765 = vmatprep.subr.bf16.mxu0 0
  %3766 = vmatpush1.bf16.msra.mxu0 0
  %3767 = vmatprep.subr.bf16.mxu0 0
  %3768 = vmatpush1.bf16.msra.mxu0 0
  %3769 = vmatprep.subr.bf16.mxu0 0
  %3770 = vmatpush1.bf16.msra.mxu0 0
  %3771 = vmatprep.subr.bf16.mxu0 0
  %3772 = vmatpush1.bf16.msra.mxu0 0
  %3773 = vmatprep.subr.bf16.mxu0 0
  %3774 = vmatpush1.bf16.msra.mxu0 0
  %3775 = vmatprep.subr.bf16.mxu0 0
  %3776 = vmatpush1.bf16.msra.mxu0 0
  %3777 = vmatprep.subr.bf16.mxu0 0
  %3778 = vmatpush1.bf16.msra.mxu0 0
  %3779 = vmatprep.subr.bf16.mxu0 0
  %3780 = vmatpush1.bf16.msra.mxu0 0
  %3781 = vmatprep.mubr.bf16.mxu0 0
  %3782 = vmatmul.mubr.bf16.gmra.mrb[0].mxu0 %v3747
  %v3783 = vpop.f32.mrb[0].mxu0
  %v3784 = vadd.f32 %v3732, %v3783
  %v3785 = vpop.f32.mrb[0].mxu0
  %v3786 = vpop.f32.mrb[0].mxu0
  %v3787 = vpop.f32.mrb[0].mxu0
  %3788 = vdwg.mxu0
  %v3789 = vadd.f32 %v3649, %v3717
  %v3790 = vxor.u32 %v3789, 2147483648
  %v3791 = vmul.f32 %v3790, 1.442695
  %v3792 = vpow.pop %v3791
  %v3793 = vadd.f32 %v3792, 1.0
  %v3794 = vrcp.pop %v3793
  %v3795 = vmul.f32 1.0, %v3794
  %3797 = vrot.lane.b32.xlu0 %v3717, 64
  %v3798 = vpop.permute.xlu0 %3797
  %v3800 = vmul.f32 %v3795, %v3798
  %3802 = vrot.lane.b32.xlu0 %v3800, 64
  %v3803 = vpop.permute.xlu0 %3802
  %v3805 = vadd.f32 %v3649, %v3803
  %v3806 = vtanh.pop %v3805
  %v3807 = vsub.f32 1.0, %v3795
  %3809 = vrot.lane.b32.xlu0 %v3806, 96
  %v3810 = vpop.permute.xlu0 %3809
  %v3812 = vmul.f32 %v3807, %v3810
  %v3813 = vmul.f32 %v3795, %v3602
  %v3814 = vadd.f32 %v3812, %v3813
  %3816 = vrot.lane.b32.xlu0 %v3784, 96
  %v3817 = vpop.permute.xlu0 %3816
  %v3819 = vadd.f32 %v3650, %v3817
  %v3820 = vxor.u32 %v3819, 2147483648
  %v3821 = vmul.f32 %v3820, 1.442695
  %v3822 = vpow.pop %v3821
  %v3823 = vadd.f32 %v3822, 1.0
  %v3824 = vrcp.pop %v3823
  %v3825 = vmul.f32 1.0, %v3824
  %v3826 = vadd.f32 %v3651, %v3817
  %v3827 = vxor.u32 %v3826, 2147483648
  %v3828 = vmul.f32 %v3827, 1.442695
  %v3829 = vpow.pop %v3828
  %v3830 = vadd.f32 %v3829, 1.0
  %v3831 = vrcp.pop %v3830
  %v3832 = vmul.f32 1.0, %v3831
  %3833 = vrot.lane.b32.xlu0 %v3784, 32
  %v3834 = vpop.permute.xlu0 %3833
  %v3836 = vmul.f32 %v3825, %v3834
  %3838 = vrot.lane.b32.xlu0 %v3836, 64
  %v3839 = vpop.permute.xlu0 %3838
  %v3841 = vadd.f32 %v3651, %v3839
  %v3842 = vtanh.pop %v3841
  %v3843 = vsub.f32 1.0, %v3832
  %3845 = vrot.lane.b32.xlu0 %v3842, 96
  %v3846 = vpop.permute.xlu0 %3845
  %v3848 = vmul.f32 %v3843, %v3846
  %v3849 = vmul.f32 %v3832, %v3638
  %v3850 = vadd.f32 %v3848, %v3849
  %3852 = vrot.lane.b32.xlu0 %v3814, 96
  %v3853 = vpop.permute.xlu0 %3852
  %3855 = vst.msk [vmem:[#allocation3 + $0x48] sm:$0xff] %vm1773, %v3853
  %3857 = vrot.lane.b32.xlu0 %v3850, 32
  %v3858 = vpop.permute.xlu0 %3857
  %3860 = vst.msk [vmem:[#allocation3 + $0x30] sm:$0xff] %vm1951, %v3858
  %v3861 = vld [vmem:[#allocation2 + $0xa0] sm:$0xff]
  %v3862 = vld [vmem:[#allocation2 + $0x50] sm:$0xff]
  %v3863 = vld [vmem:[#allocation2 + $0x58] sm:$0xff]
  %v3864 = vpack.c.bf16 %v3814, %v3814
  %v3865 = vld [vmem:[%s5] sm:$0xf]
  %v3866 = vld [vmem:[%s5 + $0x4] sm:$0xf]
  %v3867 = vld [vmem:[%s5 + $0x8] sm:$0xf]
  %v3868 = vld [vmem:[%s5 + $0xc] sm:$0xf]
  %v3869 = vld [vmem:[%s6] sm:$0x1]
  %v3871 = vlaneseq
  %v3872 = vshrl.u32 %v3871, 7
  %v3873 = vsub.s32 0, %v3872
  %v3874 = vrot.slane %v3869, %v3873
  %3877 = vrot.lane.b32.xlu0 %v3864, 96
  %v3878 = vpop.permute.xlu0 %3877
  %v3883 = vunpack.c.l.b16 %v3865
  %v3884 = vunpack.c.l.b16 %v3866
  %v3885 = vunpack.c.l.b16 %v3867
  %v3886 = vunpack.c.l.b16 %v3868
  %v3887 = vpack.c.b16 %v3884, %v3883
  %v3888 = vpack.c.b16 %v3886, %v3885
  %v3892 = vsel %vm1773, %v3878, 0
  %3894 = vmatprep.subr.bf16.mxu0 0
  %3895 = vmatpush1.bf16.msra.mxu0 %v3887
  %3896 = vmatprep.subr.bf16.mxu0 0
  %3897 = vmatpush1.bf16.msra.mxu0 %v3888
  %3898 = vmatprep.subr.bf16.mxu0 0
  %3899 = vmatpush1.bf16.msra.mxu0 0
  %3900 = vmatprep.subr.bf16.mxu0 0
  %3901 = vmatpush1.bf16.msra.mxu0 0
  %3902 = vmatprep.subr.bf16.mxu0 0
  %3903 = vmatpush1.bf16.msra.mxu0 0
  %3904 = vmatprep.subr.bf16.mxu0 0
  %3905 = vmatpush1.bf16.msra.mxu0 0
  %3906 = vmatprep.subr.bf16.mxu0 0
  %3907 = vmatpush1.bf16.msra.mxu0 0
  %3908 = vmatprep.subr.bf16.mxu0 0
  %3909 = vmatpush1.bf16.msra.mxu0 0
  %3910 = vmatprep.subr.bf16.mxu0 0
  %3911 = vmatpush1.bf16.msra.mxu0 0
  %3912 = vmatprep.subr.bf16.mxu0 0
  %3913 = vmatpush1.bf16.msra.mxu0 0
  %3914 = vmatprep.subr.bf16.mxu0 0
  %3915 = vmatpush1.bf16.msra.mxu0 0
  %3916 = vmatprep.subr.bf16.mxu0 0
  %3917 = vmatpush1.bf16.msra.mxu0 0
  %3918 = vmatprep.subr.bf16.mxu0 0
  %3919 = vmatpush1.bf16.msra.mxu0 0
  %3920 = vmatprep.subr.bf16.mxu0 0
  %3921 = vmatpush1.bf16.msra.mxu0 0
  %3922 = vmatprep.subr.bf16.mxu0 0
  %3923 = vmatpush1.bf16.msra.mxu0 0
  %3924 = vmatprep.subr.bf16.mxu0 0
  %3925 = vmatpush1.bf16.msra.mxu0 0
  %3926 = vmatprep.mubr.bf16.mxu0 0
  %3927 = vmatmul.mubr.bf16.gmra.mrb[0].mxu0 %v3892
  %v3928 = vpop.f32.mrb[0].mxu0
  %v3929 = vadd.f32 %v3874, %v3928
  %v3930 = vpop.f32.mrb[0].mxu0
  %v3931 = vpop.f32.mrb[0].mxu0
  %v3932 = vpop.f32.mrb[0].mxu0
  %3933 = vdwg.mxu0
  %v3934 = vpack.c.bf16 %v3850, %v3850
  %v3935 = vld [vmem:[%s7] sm:$0xf]
  %v3936 = vld [vmem:[%s7 + $0x4] sm:$0xf]
  %v3937 = vld [vmem:[%s7 + $0x8] sm:$0xf]
  %v3938 = vld [vmem:[%s7 + $0xc] sm:$0xf]
  %v3939 = vld [vmem:[%s8] sm:$0x1]
  %v3941 = vlaneseq
  %v3942 = vshrl.u32 %v3941, 7
  %v3943 = vsub.s32 0, %v3942
  %v3944 = vrot.slane %v3939, %v3943
  %v3950 = vunpack.c.l.b16 %v3935
  %v3951 = vunpack.c.l.b16 %v3936
  %v3952 = vunpack.c.l.b16 %v3937
  %v3953 = vunpack.c.l.b16 %v3938
  %v3954 = vpack.c.b16 %v3951, %v3950
  %v3955 = vpack.c.b16 %v3953, %v3952
  %v3959 = vsel %vm1773, %v3934, 0
  %3961 = vmatprep.subr.bf16.mxu0 0
  %3962 = vmatpush1.bf16.msra.mxu0 %v3954
  %3963 = vmatprep.subr.bf16.mxu0 0
  %3964 = vmatpush1.bf16.msra.mxu0 %v3955
  %3965 = vmatprep.subr.bf16.mxu0 0
  %3966 = vmatpush1.bf16.msra.mxu0 0
  %3967 = vmatprep.subr.bf16.mxu0 0
  %3968 = vmatpush1.bf16.msra.mxu0 0
  %3969 = vmatprep.subr.bf16.mxu0 0
  %3970 = vmatpush1.bf16.msra.mxu0 0
  %3971 = vmatprep.subr.bf16.mxu0 0
  %3972 = vmatpush1.bf16.msra.mxu0 0
  %3973 = vmatprep.subr.bf16.mxu0 0
  %3974 = vmatpush1.bf16.msra.mxu0 0
  %3975 = vmatprep.subr.bf16.mxu0 0
  %3976 = vmatpush1.bf16.msra.mxu0 0
  %3977 = vmatprep.subr.bf16.mxu0 0
  %3978 = vmatpush1.bf16.msra.mxu0 0
  %3979 = vmatprep.subr.bf16.mxu0 0
  %3980 = vmatpush1.bf16.msra.mxu0 0
  %3981 = vmatprep.subr.bf16.mxu0 0
  %3982 = vmatpush1.bf16.msra.mxu0 0
  %3983 = vmatprep.subr.bf16.mxu0 0
  %3984 = vmatpush1.bf16.msra.mxu0 0
  %3985 = vmatprep.subr.bf16.mxu0 0
  %3986 = vmatpush1.bf16.msra.mxu0 0
  %3987 = vmatprep.subr.bf16.mxu0 0
  %3988 = vmatpush1.bf16.msra.mxu0 0
  %3989 = vmatprep.subr.bf16.mxu0 0
  %3990 = vmatpush1.bf16.msra.mxu0 0
  %3991 = vmatprep.subr.bf16.mxu0 0
  %3992 = vmatpush1.bf16.msra.mxu0 0
  %3993 = vmatprep.mubr.bf16.mxu0 0
  %3994 = vmatmul.mubr.bf16.gmra.mrb[0].mxu0 %v3959
  %v3995 = vpop.f32.mrb[0].mxu0
  %v3996 = vadd.f32 %v3944, %v3995
  %v3997 = vpop.f32.mrb[0].mxu0
  %v3998 = vpop.f32.mrb[0].mxu0
  %v3999 = vpop.f32.mrb[0].mxu0
  %4000 = vdwg.mxu0
  %v4001 = vadd.f32 %v3861, %v3929
  %v4002 = vxor.u32 %v4001, 2147483648
  %v4003 = vmul.f32 %v4002, 1.442695
  %v4004 = vpow.pop %v4003
  %v4005 = vadd.f32 %v4004, 1.0
  %v4006 = vrcp.pop %v4005
  %v4007 = vmul.f32 1.0, %v4006
  %4009 = vrot.lane.b32.xlu0 %v3929, 64
  %v4010 = vpop.permute.xlu0 %4009
  %v4012 = vmul.f32 %v4007, %v4010
  %4014 = vrot.lane.b32.xlu0 %v4012, 64
  %v4015 = vpop.permute.xlu0 %4014
  %v4017 = vadd.f32 %v3861, %v4015
  %v4018 = vtanh.pop %v4017
  %v4019 = vsub.f32 1.0, %v4007
  %4021 = vrot.lane.b32.xlu0 %v4018, 96
  %v4022 = vpop.permute.xlu0 %4021
  %v4024 = vmul.f32 %v4019, %v4022
  %v4025 = vmul.f32 %v4007, %v3814
  %v4026 = vadd.f32 %v4024, %v4025
  %4028 = vrot.lane.b32.xlu0 %v3996, 96
  %v4029 = vpop.permute.xlu0 %4028
  %v4031 = vadd.f32 %v3862, %v4029
  %v4032 = vxor.u32 %v4031, 2147483648
  %v4033 = vmul.f32 %v4032, 1.442695
  %v4034 = vpow.pop %v4033
  %v4035 = vadd.f32 %v4034, 1.0
  %v4036 = vrcp.pop %v4035
  %v4037 = vmul.f32 1.0, %v4036
  %v4038 = vadd.f32 %v3863, %v4029
  %v4039 = vxor.u32 %v4038, 2147483648
  %v4040 = vmul.f32 %v4039, 1.442695
  %v4041 = vpow.pop %v4040
  %v4042 = vadd.f32 %v4041, 1.0
  %v4043 = vrcp.pop %v4042
  %v4044 = vmul.f32 1.0, %v4043
  %4045 = vrot.lane.b32.xlu0 %v3996, 32
  %v4046 = vpop.permute.xlu0 %4045
  %v4048 = vmul.f32 %v4037, %v4046
  %4050 = vrot.lane.b32.xlu0 %v4048, 64
  %v4051 = vpop.permute.xlu0 %4050
  %v4053 = vadd.f32 %v3863, %v4051
  %v4054 = vtanh.pop %v4053
  %v4055 = vsub.f32 1.0, %v4044
  %4057 = vrot.lane.b32.xlu0 %v4054, 96
  %v4058 = vpop.permute.xlu0 %4057
  %v4060 = vmul.f32 %v4055, %v4058
  %v4061 = vmul.f32 %v4044, %v3850
  %v4062 = vadd.f32 %v4060, %v4061
  %4064 = vrot.lane.b32.xlu0 %v4026, 96
  %v4065 = vpop.permute.xlu0 %4064
  %4067 = vst.msk [vmem:[#allocation3 + $0x50] sm:$0xff] %vm1773, %v4065
  %4069 = vrot.lane.b32.xlu0 %v4062, 32
  %v4070 = vpop.permute.xlu0 %4069
  %4072 = vst.msk [vmem:[#allocation3 + $0x28] sm:$0xff] %vm1951, %v4070
  %v4073 = vld [vmem:[#allocation2 + $0xb0] sm:$0xff]
  %v4074 = vld [vmem:[#allocation2 + $0x40] sm:$0xff]
  %v4075 = vld [vmem:[#allocation2 + $0x48] sm:$0xff]
  %v4076 = vpack.c.bf16 %v4026, %v4026
  %v4077 = vld [vmem:[%s5] sm:$0xf]
  %v4078 = vld [vmem:[%s5 + $0x4] sm:$0xf]
  %v4079 = vld [vmem:[%s5 + $0x8] sm:$0xf]
  %v4080 = vld [vmem:[%s5 + $0xc] sm:$0xf]
  %v4081 = vld [vmem:[%s6] sm:$0x1]
  %v4083 = vlaneseq
  %v4084 = vshrl.u32 %v4083, 7
  %v4085 = vsub.s32 0, %v4084
  %v4086 = vrot.slane %v4081, %v4085
  %4089 = vrot.lane.b32.xlu0 %v4076, 96
  %v4090 = vpop.permute.xlu0 %4089
  %v4095 = vunpack.c.l.b16 %v4077
  %v4096 = vunpack.c.l.b16 %v4078
  %v4097 = vunpack.c.l.b16 %v4079
  %v4098 = vunpack.c.l.b16 %v4080
  %v4099 = vpack.c.b16 %v4096, %v4095
  %v4100 = vpack.c.b16 %v4098, %v4097
  %v4104 = vsel %vm1773, %v4090, 0
  %4106 = vmatprep.subr.bf16.mxu0 0
  %4107 = vmatpush1.bf16.msra.mxu0 %v4099
  %4108 = vmatprep.subr.bf16.mxu0 0
  %4109 = vmatpush1.bf16.msra.mxu0 %v4100
  %4110 = vmatprep.subr.bf16.mxu0 0
  %4111 = vmatpush1.bf16.msra.mxu0 0
  %4112 = vmatprep.subr.bf16.mxu0 0
  %4113 = vmatpush1.bf16.msra.mxu0 0
  %4114 = vmatprep.subr.bf16.mxu0 0
  %4115 = vmatpush1.bf16.msra.mxu0 0
  %4116 = vmatprep.subr.bf16.mxu0 0
  %4117 = vmatpush1.bf16.msra.mxu0 0
  %4118 = vmatprep.subr.bf16.mxu0 0
  %4119 = vmatpush1.bf16.msra.mxu0 0
  %4120 = vmatprep.subr.bf16.mxu0 0
  %4121 = vmatpush1.bf16.msra.mxu0 0
  %4122 = vmatprep.subr.bf16.mxu0 0
  %4123 = vmatpush1.bf16.msra.mxu0 0
  %4124 = vmatprep.subr.bf16.mxu0 0
  %4125 = vmatpush1.bf16.msra.mxu0 0
  %4126 = vmatprep.subr.bf16.mxu0 0
  %4127 = vmatpush1.bf16.msra.mxu0 0
  %4128 = vmatprep.subr.bf16.mxu0 0
  %4129 = vmatpush1.bf16.msra.mxu0 0
  %4130 = vmatprep.subr.bf16.mxu0 0
  %4131 = vmatpush1.bf16.msra.mxu0 0
  %4132 = vmatprep.subr.bf16.mxu0 0
  %4133 = vmatpush1.bf16.msra.mxu0 0
  %4134 = vmatprep.subr.bf16.mxu0 0
  %4135 = vmatpush1.bf16.msra.mxu0 0
  %4136 = vmatprep.subr.bf16.mxu0 0
  %4137 = vmatpush1.bf16.msra.mxu0 0
  %4138 = vmatprep.mubr.bf16.mxu0 0
  %4139 = vmatmul.mubr.bf16.gmra.mrb[0].mxu0 %v4104
  %v4140 = vpop.f32.mrb[0].mxu0
  %v4141 = vadd.f32 %v4086, %v4140
  %v4142 = vpop.f32.mrb[0].mxu0
  %v4143 = vpop.f32.mrb[0].mxu0
  %v4144 = vpop.f32.mrb[0].mxu0
  %4145 = vdwg.mxu0
  %v4146 = vpack.c.bf16 %v4062, %v4062
  %v4147 = vld [vmem:[%s7] sm:$0xf]
  %v4148 = vld [vmem:[%s7 + $0x4] sm:$0xf]
  %v4149 = vld [vmem:[%s7 + $0x8] sm:$0xf]
  %v4150 = vld [vmem:[%s7 + $0xc] sm:$0xf]
  %v4151 = vld [vmem:[%s8] sm:$0x1]
  %v4153 = vlaneseq
  %v4154 = vshrl.u32 %v4153, 7
  %v4155 = vsub.s32 0, %v4154
  %v4156 = vrot.slane %v4151, %v4155
  %v4162 = vunpack.c.l.b16 %v4147
  %v4163 = vunpack.c.l.b16 %v4148
  %v4164 = vunpack.c.l.b16 %v4149
  %v4165 = vunpack.c.l.b16 %v4150
  %v4166 = vpack.c.b16 %v4163, %v4162
  %v4167 = vpack.c.b16 %v4165, %v4164
  %v4171 = vsel %vm1773, %v4146, 0
  %4173 = vmatprep.subr.bf16.mxu0 0
  %4174 = vmatpush1.bf16.msra.mxu0 %v4166
  %4175 = vmatprep.subr.bf16.mxu0 0
  %4176 = vmatpush1.bf16.msra.mxu0 %v4167
  %4177 = vmatprep.subr.bf16.mxu0 0
  %4178 = vmatpush1.bf16.msra.mxu0 0
  %4179 = vmatprep.subr.bf16.mxu0 0
  %4180 = vmatpush1.bf16.msra.mxu0 0
  %4181 = vmatprep.subr.bf16.mxu0 0
  %4182 = vmatpush1.bf16.msra.mxu0 0
  %4183 = vmatprep.subr.bf16.mxu0 0
  %4184 = vmatpush1.bf16.msra.mxu0 0
  %4185 = vmatprep.subr.bf16.mxu0 0
  %4186 = vmatpush1.bf16.msra.mxu0 0
  %4187 = vmatprep.subr.bf16.mxu0 0
  %4188 = vmatpush1.bf16.msra.mxu0 0
  %4189 = vmatprep.subr.bf16.mxu0 0
  %4190 = vmatpush1.bf16.msra.mxu0 0
  %4191 = vmatprep.subr.bf16.mxu0 0
  %4192 = vmatpush1.bf16.msra.mxu0 0
  %4193 = vmatprep.subr.bf16.mxu0 0
  %4194 = vmatpush1.bf16.msra.mxu0 0
  %4195 = vmatprep.subr.bf16.mxu0 0
  %4196 = vmatpush1.bf16.msra.mxu0 0
  %4197 = vmatprep.subr.bf16.mxu0 0
  %4198 = vmatpush1.bf16.msra.mxu0 0
  %4199 = vmatprep.subr.bf16.mxu0 0
  %4200 = vmatpush1.bf16.msra.mxu0 0
  %4201 = vmatprep.subr.bf16.mxu0 0
  %4202 = vmatpush1.bf16.msra.mxu0 0
  %4203 = vmatprep.subr.bf16.mxu0 0
  %4204 = vmatpush1.bf16.msra.mxu0 0
  %4205 = vmatprep.mubr.bf16.mxu0 0
  %4206 = vmatmul.mubr.bf16.gmra.mrb[0].mxu0 %v4171
  %v4207 = vpop.f32.mrb[0].mxu0
  %v4208 = vadd.f32 %v4156, %v4207
  %v4209 = vpop.f32.mrb[0].mxu0
  %v4210 = vpop.f32.mrb[0].mxu0
  %v4211 = vpop.f32.mrb[0].mxu0
  %4212 = vdwg.mxu0
  %v4213 = vadd.f32 %v4073, %v4141
  %v4214 = vxor.u32 %v4213, 2147483648
  %v4215 = vmul.f32 %v4214, 1.442695
  %v4216 = vpow.pop %v4215
  %v4217 = vadd.f32 %v4216, 1.0
  %v4218 = vrcp.pop %v4217
  %v4219 = vmul.f32 1.0, %v4218
  %4221 = vrot.lane.b32.xlu0 %v4141, 64
  %v4222 = vpop.permute.xlu0 %4221
  %v4224 = vmul.f32 %v4219, %v4222
  %4226 = vrot.lane.b32.xlu0 %v4224, 64
  %v4227 = vpop.permute.xlu0 %4226
  %v4229 = vadd.f32 %v4073, %v4227
  %v4230 = vtanh.pop %v4229
  %v4231 = vsub.f32 1.0, %v4219
  %4233 = vrot.lane.b32.xlu0 %v4230, 96
  %v4234 = vpop.permute.xlu0 %4233
  %v4236 = vmul.f32 %v4231, %v4234
  %v4237 = vmul.f32 %v4219, %v4026
  %v4238 = vadd.f32 %v4236, %v4237
  %4240 = vrot.lane.b32.xlu0 %v4208, 96
  %v4241 = vpop.permute.xlu0 %4240
  %v4243 = vadd.f32 %v4074, %v4241
  %v4244 = vxor.u32 %v4243, 2147483648
  %v4245 = vmul.f32 %v4244, 1.442695
  %v4246 = vpow.pop %v4245
  %v4247 = vadd.f32 %v4246, 1.0
  %v4248 = vrcp.pop %v4247
  %v4249 = vmul.f32 1.0, %v4248
  %v4250 = vadd.f32 %v4075, %v4241
  %v4251 = vxor.u32 %v4250, 2147483648
  %v4252 = vmul.f32 %v4251, 1.442695
  %v4253 = vpow.pop %v4252
  %v4254 = vadd.f32 %v4253, 1.0
  %v4255 = vrcp.pop %v4254
  %v4256 = vmul.f32 1.0, %v4255
  %4257 = vrot.lane.b32.xlu0 %v4208, 32
  %v4258 = vpop.permute.xlu0 %4257
  %v4260 = vmul.f32 %v4249, %v4258
  %4262 = vrot.lane.b32.xlu0 %v4260, 64
  %v4263 = vpop.permute.xlu0 %4262
  %v4265 = vadd.f32 %v4075, %v4263
  %v4266 = vtanh.pop %v4265
  %v4267 = vsub.f32 1.0, %v4256
  %4269 = vrot.lane.b32.xlu0 %v4266, 96
  %v4270 = vpop.permute.xlu0 %4269
  %v4272 = vmul.f32 %v4267, %v4270
  %v4273 = vmul.f32 %v4256, %v4062
  %v4274 = vadd.f32 %v4272, %v4273
  %4276 = vrot.lane.b32.xlu0 %v4238, 96
  %v4277 = vpop.permute.xlu0 %4276
  %4279 = vst.msk [vmem:[#allocation3 + $0x58] sm:$0xff] %vm1773, %v4277
  %4281 = vrot.lane.b32.xlu0 %v4274, 32
  %v4282 = vpop.permute.xlu0 %4281
  %4284 = vst.msk [vmem:[#allocation3 + $0x20] sm:$0xff] %vm1951, %v4282
  %v4285 = vld [vmem:[#allocation2 + $0xc0] sm:$0xff]
  %v4286 = vld [vmem:[#allocation2 + $0x30] sm:$0xff]
  %v4287 = vld [vmem:[#allocation2 + $0x38] sm:$0xff]
  %v4288 = vpack.c.bf16 %v4238, %v4238
  %v4289 = vld [vmem:[%s5] sm:$0xf]
  %v4290 = vld [vmem:[%s5 + $0x4] sm:$0xf]
  %v4291 = vld [vmem:[%s5 + $0x8] sm:$0xf]
  %v4292 = vld [vmem:[%s5 + $0xc] sm:$0xf]
  %v4293 = vld [vmem:[%s6] sm:$0x1]
  %v4295 = vlaneseq
  %v4296 = vshrl.u32 %v4295, 7
  %v4297 = vsub.s32 0, %v4296
  %v4298 = vrot.slane %v4293, %v4297
  %4301 = vrot.lane.b32.xlu0 %v4288, 96
  %v4302 = vpop.permute.xlu0 %4301
  %v4307 = vunpack.c.l.b16 %v4289
  %v4308 = vunpack.c.l.b16 %v4290
  %v4309 = vunpack.c.l.b16 %v4291
  %v4310 = vunpack.c.l.b16 %v4292
  %v4311 = vpack.c.b16 %v4308, %v4307
  %v4312 = vpack.c.b16 %v4310, %v4309
  %v4316 = vsel %vm1773, %v4302, 0
  %4318 = vmatprep.subr.bf16.mxu0 0
  %4319 = vmatpush1.bf16.msra.mxu0 %v4311
  %4320 = vmatprep.subr.bf16.mxu0 0
  %4321 = vmatpush1.bf16.msra.mxu0 %v4312
  %4322 = vmatprep.subr.bf16.mxu0 0
  %4323 = vmatpush1.bf16.msra.mxu0 0
  %4324 = vmatprep.subr.bf16.mxu0 0
  %4325 = vmatpush1.bf16.msra.mxu0 0
  %4326 = vmatprep.subr.bf16.mxu0 0
  %4327 = vmatpush1.bf16.msra.mxu0 0
  %4328 = vmatprep.subr.bf16.mxu0 0
  %4329 = vmatpush1.bf16.msra.mxu0 0
  %4330 = vmatprep.subr.bf16.mxu0 0
  %4331 = vmatpush1.bf16.msra.mxu0 0
  %4332 = vmatprep.subr.bf16.mxu0 0
  %4333 = vmatpush1.bf16.msra.mxu0 0
  %4334 = vmatprep.subr.bf16.mxu0 0
  %4335 = vmatpush1.bf16.msra.mxu0 0
  %4336 = vmatprep.subr.bf16.mxu0 0
  %4337 = vmatpush1.bf16.msra.mxu0 0
  %4338 = vmatprep.subr.bf16.mxu0 0
  %4339 = vmatpush1.bf16.msra.mxu0 0
  %4340 = vmatprep.subr.bf16.mxu0 0
  %4341 = vmatpush1.bf16.msra.mxu0 0
  %4342 = vmatprep.subr.bf16.mxu0 0
  %4343 = vmatpush1.bf16.msra.mxu0 0
  %4344 = vmatprep.subr.bf16.mxu0 0
  %4345 = vmatpush1.bf16.msra.mxu0 0
  %4346 = vmatprep.subr.bf16.mxu0 0
  %4347 = vmatpush1.bf16.msra.mxu0 0
  %4348 = vmatprep.subr.bf16.mxu0 0
  %4349 = vmatpush1.bf16.msra.mxu0 0
  %4350 = vmatprep.mubr.bf16.mxu0 0
  %4351 = vmatmul.mubr.bf16.gmra.mrb[0].mxu0 %v4316
  %v4352 = vpop.f32.mrb[0].mxu0
  %v4353 = vadd.f32 %v4298, %v4352
  %v4354 = vpop.f32.mrb[0].mxu0
  %v4355 = vpop.f32.mrb[0].mxu0
  %v4356 = vpop.f32.mrb[0].mxu0
  %4357 = vdwg.mxu0
  %v4358 = vpack.c.bf16 %v4274, %v4274
  %v4359 = vld [vmem:[%s7] sm:$0xf]
  %v4360 = vld [vmem:[%s7 + $0x4] sm:$0xf]
  %v4361 = vld [vmem:[%s7 + $0x8] sm:$0xf]
  %v4362 = vld [vmem:[%s7 + $0xc] sm:$0xf]
  %v4363 = vld [vmem:[%s8] sm:$0x1]
  %v4365 = vlaneseq
  %v4366 = vshrl.u32 %v4365, 7
  %v4367 = vsub.s32 0, %v4366
  %v4368 = vrot.slane %v4363, %v4367
  %v4374 = vunpack.c.l.b16 %v4359
  %v4375 = vunpack.c.l.b16 %v4360
  %v4376 = vunpack.c.l.b16 %v4361
  %v4377 = vunpack.c.l.b16 %v4362
  %v4378 = vpack.c.b16 %v4375, %v4374
  %v4379 = vpack.c.b16 %v4377, %v4376
  %v4383 = vsel %vm1773, %v4358, 0
  %4385 = vmatprep.subr.bf16.mxu0 0
  %4386 = vmatpush1.bf16.msra.mxu0 %v4378
  %4387 = vmatprep.subr.bf16.mxu0 0
  %4388 = vmatpush1.bf16.msra.mxu0 %v4379
  %4389 = vmatprep.subr.bf16.mxu0 0
  %4390 = vmatpush1.bf16.msra.mxu0 0
  %4391 = vmatprep.subr.bf16.mxu0 0
  %4392 = vmatpush1.bf16.msra.mxu0 0
  %4393 = vmatprep.subr.bf16.mxu0 0
  %4394 = vmatpush1.bf16.msra.mxu0 0
  %4395 = vmatprep.subr.bf16.mxu0 0
  %4396 = vmatpush1.bf16.msra.mxu0 0
  %4397 = vmatprep.subr.bf16.mxu0 0
  %4398 = vmatpush1.bf16.msra.mxu0 0
  %4399 = vmatprep.subr.bf16.mxu0 0
  %4400 = vmatpush1.bf16.msra.mxu0 0
  %4401 = vmatprep.subr.bf16.mxu0 0
  %4402 = vmatpush1.bf16.msra.mxu0 0
  %4403 = vmatprep.subr.bf16.mxu0 0
  %4404 = vmatpush1.bf16.msra.mxu0 0
  %4405 = vmatprep.subr.bf16.mxu0 0
  %4406 = vmatpush1.bf16.msra.mxu0 0
  %4407 = vmatprep.subr.bf16.mxu0 0
  %4408 = vmatpush1.bf16.msra.mxu0 0
  %4409 = vmatprep.subr.bf16.mxu0 0
  %4410 = vmatpush1.bf16.msra.mxu0 0
  %4411 = vmatprep.subr.bf16.mxu0 0
  %4412 = vmatpush1.bf16.msra.mxu0 0
  %4413 = vmatprep.subr.bf16.mxu0 0
  %4414 = vmatpush1.bf16.msra.mxu0 0
  %4415 = vmatprep.subr.bf16.mxu0 0
  %4416 = vmatpush1.bf16.msra.mxu0 0
  %4417 = vmatprep.mubr.bf16.mxu0 0
  %4418 = vmatmul.mubr.bf16.gmra.mrb[0].mxu0 %v4383
  %v4419 = vpop.f32.mrb[0].mxu0
  %v4420 = vadd.f32 %v4368, %v4419
  %v4421 = vpop.f32.mrb[0].mxu0
  %v4422 = vpop.f32.mrb[0].mxu0
  %v4423 = vpop.f32.mrb[0].mxu0
  %4424 = vdwg.mxu0
  %v4425 = vadd.f32 %v4285, %v4353
  %v4426 = vxor.u32 %v4425, 2147483648
  %v4427 = vmul.f32 %v4426, 1.442695
  %v4428 = vpow.pop %v4427
  %v4429 = vadd.f32 %v4428, 1.0
  %v4430 = vrcp.pop %v4429
  %v4431 = vmul.f32 1.0, %v4430
  %4433 = vrot.lane.b32.xlu0 %v4353, 64
  %v4434 = vpop.permute.xlu0 %4433
  %v4436 = vmul.f32 %v4431, %v4434
  %4438 = vrot.lane.b32.xlu0 %v4436, 64
  %v4439 = vpop.permute.xlu0 %4438
  %v4441 = vadd.f32 %v4285, %v4439
  %v4442 = vtanh.pop %v4441
  %v4443 = vsub.f32 1.0, %v4431
  %4445 = vrot.lane.b32.xlu0 %v4442, 96
  %v4446 = vpop.permute.xlu0 %4445
  %v4448 = vmul.f32 %v4443, %v4446
  %v4449 = vmul.f32 %v4431, %v4238
  %v4450 = vadd.f32 %v4448, %v4449
  %4452 = vrot.lane.b32.xlu0 %v4420, 96
  %v4453 = vpop.permute.xlu0 %4452
  %v4455 = vadd.f32 %v4286, %v4453
  %v4456 = vxor.u32 %v4455, 2147483648
  %v4457 = vmul.f32 %v4456, 1.442695
  %v4458 = vpow.pop %v4457
  %v4459 = vadd.f32 %v4458, 1.0
  %v4460 = vrcp.pop %v4459
  %v4461 = vmul.f32 1.0, %v4460
  %v4462 = vadd.f32 %v4287, %v4453
  %v4463 = vxor.u32 %v4462, 2147483648
  %v4464 = vmul.f32 %v4463, 1.442695
  %v4465 = vpow.pop %v4464
  %v4466 = vadd.f32 %v4465, 1.0
  %v4467 = vrcp.pop %v4466
  %v4468 = vmul.f32 1.0, %v4467
  %4469 = vrot.lane.b32.xlu0 %v4420, 32
  %v4470 = vpop.permute.xlu0 %4469
  %v4472 = vmul.f32 %v4461, %v4470
  %4474 = vrot.lane.b32.xlu0 %v4472, 64
  %v4475 = vpop.permute.xlu0 %4474
  %v4477 = vadd.f32 %v4287, %v4475
  %v4478 = vtanh.pop %v4477
  %v4479 = vsub.f32 1.0, %v4468
  %4481 = vrot.lane.b32.xlu0 %v4478, 96
  %v4482 = vpop.permute.xlu0 %4481
  %v4484 = vmul.f32 %v4479, %v4482
  %v4485 = vmul.f32 %v4468, %v4274
  %v4486 = vadd.f32 %v4484, %v4485
  %4488 = vrot.lane.b32.xlu0 %v4450, 96
  %v4489 = vpop.permute.xlu0 %4488
  %4491 = vst.msk [vmem:[#allocation3 + $0x60] sm:$0xff] %vm1773, %v4489
  %4493 = vrot.lane.b32.xlu0 %v4486, 32
  %v4494 = vpop.permute.xlu0 %4493
  %4496 = vst.msk [vmem:[#allocation3 + $0x18] sm:$0xff] %vm1951, %v4494
  %v4497 = vld [vmem:[#allocation2 + $0xd0] sm:$0xff]
  %v4498 = vld [vmem:[#allocation2 + $0x20] sm:$0xff]
  %v4499 = vld [vmem:[#allocation2 + $0x28] sm:$0xff]
  %v4500 = vpack.c.bf16 %v4450, %v4450
  %v4501 = vld [vmem:[%s5] sm:$0xf]
  %v4502 = vld [vmem:[%s5 + $0x4] sm:$0xf]
  %v4503 = vld [vmem:[%s5 + $0x8] sm:$0xf]
  %v4504 = vld [vmem:[%s5 + $0xc] sm:$0xf]
  %v4505 = vld [vmem:[%s6] sm:$0x1]
  %v4507 = vlaneseq
  %v4508 = vshrl.u32 %v4507, 7
  %v4509 = vsub.s32 0, %v4508
  %v4510 = vrot.slane %v4505, %v4509
  %4513 = vrot.lane.b32.xlu0 %v4500, 96
  %v4514 = vpop.permute.xlu0 %4513
  %v4519 = vunpack.c.l.b16 %v4501
  %v4520 = vunpack.c.l.b16 %v4502
  %v4521 = vunpack.c.l.b16 %v4503
  %v4522 = vunpack.c.l.b16 %v4504
  %v4523 = vpack.c.b16 %v4520, %v4519
  %v4524 = vpack.c.b16 %v4522, %v4521
  %v4528 = vsel %vm1773, %v4514, 0
  %4530 = vmatprep.subr.bf16.mxu0 0
  %4531 = vmatpush1.bf16.msra.mxu0 %v4523
  %4532 = vmatprep.subr.bf16.mxu0 0
  %4533 = vmatpush1.bf16.msra.mxu0 %v4524
  %4534 = vmatprep.subr.bf16.mxu0 0
  %4535 = vmatpush1.bf16.msra.mxu0 0
  %4536 = vmatprep.subr.bf16.mxu0 0
  %4537 = vmatpush1.bf16.msra.mxu0 0
  %4538 = vmatprep.subr.bf16.mxu0 0
  %4539 = vmatpush1.bf16.msra.mxu0 0
  %4540 = vmatprep.subr.bf16.mxu0 0
  %4541 = vmatpush1.bf16.msra.mxu0 0
  %4542 = vmatprep.subr.bf16.mxu0 0
  %4543 = vmatpush1.bf16.msra.mxu0 0
  %4544 = vmatprep.subr.bf16.mxu0 0
  %4545 = vmatpush1.bf16.msra.mxu0 0
  %4546 = vmatprep.subr.bf16.mxu0 0
  %4547 = vmatpush1.bf16.msra.mxu0 0
  %4548 = vmatprep.subr.bf16.mxu0 0
  %4549 = vmatpush1.bf16.msra.mxu0 0
  %4550 = vmatprep.subr.bf16.mxu0 0
  %4551 = vmatpush1.bf16.msra.mxu0 0
  %4552 = vmatprep.subr.bf16.mxu0 0
  %4553 = vmatpush1.bf16.msra.mxu0 0
  %4554 = vmatprep.subr.bf16.mxu0 0
  %4555 = vmatpush1.bf16.msra.mxu0 0
  %4556 = vmatprep.subr.bf16.mxu0 0
  %4557 = vmatpush1.bf16.msra.mxu0 0
  %4558 = vmatprep.subr.bf16.mxu0 0
  %4559 = vmatpush1.bf16.msra.mxu0 0
  %4560 = vmatprep.subr.bf16.mxu0 0
  %4561 = vmatpush1.bf16.msra.mxu0 0
  %4562 = vmatprep.mubr.bf16.mxu0 0
  %4563 = vmatmul.mubr.bf16.gmra.mrb[0].mxu0 %v4528
  %v4564 = vpop.f32.mrb[0].mxu0
  %v4565 = vadd.f32 %v4510, %v4564
  %v4566 = vpop.f32.mrb[0].mxu0
  %v4567 = vpop.f32.mrb[0].mxu0
  %v4568 = vpop.f32.mrb[0].mxu0
  %4569 = vdwg.mxu0
  %v4570 = vpack.c.bf16 %v4486, %v4486
  %v4571 = vld [vmem:[%s7] sm:$0xf]
  %v4572 = vld [vmem:[%s7 + $0x4] sm:$0xf]
  %v4573 = vld [vmem:[%s7 + $0x8] sm:$0xf]
  %v4574 = vld [vmem:[%s7 + $0xc] sm:$0xf]
  %v4575 = vld [vmem:[%s8] sm:$0x1]
  %v4577 = vlaneseq
  %v4578 = vshrl.u32 %v4577, 7
  %v4579 = vsub.s32 0, %v4578
  %v4580 = vrot.slane %v4575, %v4579
  %v4586 = vunpack.c.l.b16 %v4571
  %v4587 = vunpack.c.l.b16 %v4572
  %v4588 = vunpack.c.l.b16 %v4573
  %v4589 = vunpack.c.l.b16 %v4574
  %v4590 = vpack.c.b16 %v4587, %v4586
  %v4591 = vpack.c.b16 %v4589, %v4588
  %v4595 = vsel %vm1773, %v4570, 0
  %4597 = vmatprep.subr.bf16.mxu0 0
  %4598 = vmatpush1.bf16.msra.mxu0 %v4590
  %4599 = vmatprep.subr.bf16.mxu0 0
  %4600 = vmatpush1.bf16.msra.mxu0 %v4591
  %4601 = vmatprep.subr.bf16.mxu0 0
  %4602 = vmatpush1.bf16.msra.mxu0 0
  %4603 = vmatprep.subr.bf16.mxu0 0
  %4604 = vmatpush1.bf16.msra.mxu0 0
  %4605 = vmatprep.subr.bf16.mxu0 0
  %4606 = vmatpush1.bf16.msra.mxu0 0
  %4607 = vmatprep.subr.bf16.mxu0 0
  %4608 = vmatpush1.bf16.msra.mxu0 0
  %4609 = vmatprep.subr.bf16.mxu0 0
  %4610 = vmatpush1.bf16.msra.mxu0 0
  %4611 = vmatprep.subr.bf16.mxu0 0
  %4612 = vmatpush1.bf16.msra.mxu0 0
  %4613 = vmatprep.subr.bf16.mxu0 0
  %4614 = vmatpush1.bf16.msra.mxu0 0
  %4615 = vmatprep.subr.bf16.mxu0 0
  %4616 = vmatpush1.bf16.msra.mxu0 0
  %4617 = vmatprep.subr.bf16.mxu0 0
  %4618 = vmatpush1.bf16.msra.mxu0 0
  %4619 = vmatprep.subr.bf16.mxu0 0
  %4620 = vmatpush1.bf16.msra.mxu0 0
  %4621 = vmatprep.subr.bf16.mxu0 0
  %4622 = vmatpush1.bf16.msra.mxu0 0
  %4623 = vmatprep.subr.bf16.mxu0 0
  %4624 = vmatpush1.bf16.msra.mxu0 0
  %4625 = vmatprep.subr.bf16.mxu0 0
  %4626 = vmatpush1.bf16.msra.mxu0 0
  %4627 = vmatprep.subr.bf16.mxu0 0
  %4628 = vmatpush1.bf16.msra.mxu0 0
  %4629 = vmatprep.mubr.bf16.mxu0 0
  %4630 = vmatmul.mubr.bf16.gmra.mrb[0].mxu0 %v4595
  %v4631 = vpop.f32.mrb[0].mxu0
  %v4632 = vadd.f32 %v4580, %v4631
  %v4633 = vpop.f32.mrb[0].mxu0
  %v4634 = vpop.f32.mrb[0].mxu0
  %v4635 = vpop.f32.mrb[0].mxu0
  %4636 = vdwg.mxu0
  %v4637 = vadd.f32 %v4497, %v4565
  %v4638 = vxor.u32 %v4637, 2147483648
  %v4639 = vmul.f32 %v4638, 1.442695
  %v4640 = vpow.pop %v4639
  %v4641 = vadd.f32 %v4640, 1.0
  %v4642 = vrcp.pop %v4641
  %v4643 = vmul.f32 1.0, %v4642
  %4645 = vrot.lane.b32.xlu0 %v4565, 64
  %v4646 = vpop.permute.xlu0 %4645
  %v4648 = vmul.f32 %v4643, %v4646
  %4650 = vrot.lane.b32.xlu0 %v4648, 64
  %v4651 = vpop.permute.xlu0 %4650
  %v4653 = vadd.f32 %v4497, %v4651
  %v4654 = vtanh.pop %v4653
  %v4655 = vsub.f32 1.0, %v4643
  %4657 = vrot.lane.b32.xlu0 %v4654, 96
  %v4658 = vpop.permute.xlu0 %4657
  %v4660 = vmul.f32 %v4655, %v4658
  %v4661 = vmul.f32 %v4643, %v4450
  %v4662 = vadd.f32 %v4660, %v4661
  %4664 = vrot.lane.b32.xlu0 %v4632, 96
  %v4665 = vpop.permute.xlu0 %4664
  %v4667 = vadd.f32 %v4498, %v4665
  %v4668 = vxor.u32 %v4667, 2147483648
  %v4669 = vmul.f32 %v4668, 1.442695
  %v4670 = vpow.pop %v4669
  %v4671 = vadd.f32 %v4670, 1.0
  %v4672 = vrcp.pop %v4671
  %v4673 = vmul.f32 1.0, %v4672
  %v4674 = vadd.f32 %v4499, %v4665
  %v4675 = vxor.u32 %v4674, 2147483648
  %v4676 = vmul.f32 %v4675, 1.442695
  %v4677 = vpow.pop %v4676
  %v4678 = vadd.f32 %v4677, 1.0
  %v4679 = vrcp.pop %v4678
  %v4680 = vmul.f32 1.0, %v4679
  %4681 = vrot.lane.b32.xlu0 %v4632, 32
  %v4682 = vpop.permute.xlu0 %4681
  %v4684 = vmul.f32 %v4673, %v4682
  %4686 = vrot.lane.b32.xlu0 %v4684, 64
  %v4687 = vpop.permute.xlu0 %4686
  %v4689 = vadd.f32 %v4499, %v4687
  %v4690 = vtanh.pop %v4689
  %v4691 = vsub.f32 1.0, %v4680
  %4693 = vrot.lane.b32.xlu0 %v4690, 96
  %v4694 = vpop.permute.xlu0 %4693
  %v4696 = vmul.f32 %v4691, %v4694
  %v4697 = vmul.f32 %v4680, %v4486
  %v4698 = vadd.f32 %v4696, %v4697
  %4700 = vrot.lane.b32.xlu0 %v4662, 96
  %v4701 = vpop.permute.xlu0 %4700
  %4703 = vst.msk [vmem:[#allocation3 + $0x68] sm:$0xff] %vm1773, %v4701
  %4705 = vrot.lane.b32.xlu0 %v4698, 32
  %v4706 = vpop.permute.xlu0 %4705
  %4708 = vst.msk [vmem:[#allocation3 + $0x10] sm:$0xff] %vm1951, %v4706
  %v4709 = vld [vmem:[#allocation2 + $0xe0] sm:$0xff]
  %v4710 = vld [vmem:[#allocation2 + $0x10] sm:$0xff]
  %v4711 = vld [vmem:[#allocation2 + $0x18] sm:$0xff]
  %v4712 = vpack.c.bf16 %v4662, %v4662
  %v4713 = vld [vmem:[%s5] sm:$0xf]
  %v4714 = vld [vmem:[%s5 + $0x4] sm:$0xf]
  %v4715 = vld [vmem:[%s5 + $0x8] sm:$0xf]
  %v4716 = vld [vmem:[%s5 + $0xc] sm:$0xf]
  %v4717 = vld [vmem:[%s6] sm:$0x1]
  %v4719 = vlaneseq
  %v4720 = vshrl.u32 %v4719, 7
  %v4721 = vsub.s32 0, %v4720
  %v4722 = vrot.slane %v4717, %v4721
  %4725 = vrot.lane.b32.xlu0 %v4712, 96
  %v4726 = vpop.permute.xlu0 %4725
  %v4731 = vunpack.c.l.b16 %v4713
  %v4732 = vunpack.c.l.b16 %v4714
  %v4733 = vunpack.c.l.b16 %v4715
  %v4734 = vunpack.c.l.b16 %v4716
  %v4735 = vpack.c.b16 %v4732, %v4731
  %v4736 = vpack.c.b16 %v4734, %v4733
  %v4740 = vsel %vm1773, %v4726, 0
  %4742 = vmatprep.subr.bf16.mxu0 0
  %4743 = vmatpush1.bf16.msra.mxu0 %v4735
  %4744 = vmatprep.subr.bf16.mxu0 0
  %4745 = vmatpush1.bf16.msra.mxu0 %v4736
  %4746 = vmatprep.subr.bf16.mxu0 0
  %4747 = vmatpush1.bf16.msra.mxu0 0
  %4748 = vmatprep.subr.bf16.mxu0 0
  %4749 = vmatpush1.bf16.msra.mxu0 0
  %4750 = vmatprep.subr.bf16.mxu0 0
  %4751 = vmatpush1.bf16.msra.mxu0 0
  %4752 = vmatprep.subr.bf16.mxu0 0
  %4753 = vmatpush1.bf16.msra.mxu0 0
  %4754 = vmatprep.subr.bf16.mxu0 0
  %4755 = vmatpush1.bf16.msra.mxu0 0
  %4756 = vmatprep.subr.bf16.mxu0 0
  %4757 = vmatpush1.bf16.msra.mxu0 0
  %4758 = vmatprep.subr.bf16.mxu0 0
  %4759 = vmatpush1.bf16.msra.mxu0 0
  %4760 = vmatprep.subr.bf16.mxu0 0
  %4761 = vmatpush1.bf16.msra.mxu0 0
  %4762 = vmatprep.subr.bf16.mxu0 0
  %4763 = vmatpush1.bf16.msra.mxu0 0
  %4764 = vmatprep.subr.bf16.mxu0 0
  %4765 = vmatpush1.bf16.msra.mxu0 0
  %4766 = vmatprep.subr.bf16.mxu0 0
  %4767 = vmatpush1.bf16.msra.mxu0 0
  %4768 = vmatprep.subr.bf16.mxu0 0
  %4769 = vmatpush1.bf16.msra.mxu0 0
  %4770 = vmatprep.subr.bf16.mxu0 0
  %4771 = vmatpush1.bf16.msra.mxu0 0
  %4772 = vmatprep.subr.bf16.mxu0 0
  %4773 = vmatpush1.bf16.msra.mxu0 0
  %4774 = vmatprep.mubr.bf16.mxu0 0
  %4775 = vmatmul.mubr.bf16.gmra.mrb[0].mxu0 %v4740
  %v4776 = vpop.f32.mrb[0].mxu0
  %v4777 = vadd.f32 %v4722, %v4776
  %v4778 = vpop.f32.mrb[0].mxu0
  %v4779 = vpop.f32.mrb[0].mxu0
  %v4780 = vpop.f32.mrb[0].mxu0
  %4781 = vdwg.mxu0
  %v4782 = vpack.c.bf16 %v4698, %v4698
  %v4783 = vld [vmem:[%s7] sm:$0xf]
  %v4784 = vld [vmem:[%s7 + $0x4] sm:$0xf]
  %v4785 = vld [vmem:[%s7 + $0x8] sm:$0xf]
  %v4786 = vld [vmem:[%s7 + $0xc] sm:$0xf]
  %v4787 = vld [vmem:[%s8] sm:$0x1]
  %v4789 = vlaneseq
  %v4790 = vshrl.u32 %v4789, 7
  %v4791 = vsub.s32 0, %v4790
  %v4792 = vrot.slane %v4787, %v4791
  %v4798 = vunpack.c.l.b16 %v4783
  %v4799 = vunpack.c.l.b16 %v4784
  %v4800 = vunpack.c.l.b16 %v4785
  %v4801 = vunpack.c.l.b16 %v4786
  %v4802 = vpack.c.b16 %v4799, %v4798
  %v4803 = vpack.c.b16 %v4801, %v4800
  %v4807 = vsel %vm1773, %v4782, 0
  %4809 = vmatprep.subr.bf16.mxu0 0
  %4810 = vmatpush1.bf16.msra.mxu0 %v4802
  %4811 = vmatprep.subr.bf16.mxu0 0
  %4812 = vmatpush1.bf16.msra.mxu0 %v4803
  %4813 = vmatprep.subr.bf16.mxu0 0
  %4814 = vmatpush1.bf16.msra.mxu0 0
  %4815 = vmatprep.subr.bf16.mxu0 0
  %4816 = vmatpush1.bf16.msra.mxu0 0
  %4817 = vmatprep.subr.bf16.mxu0 0
  %4818 = vmatpush1.bf16.msra.mxu0 0
  %4819 = vmatprep.subr.bf16.mxu0 0
  %4820 = vmatpush1.bf16.msra.mxu0 0
  %4821 = vmatprep.subr.bf16.mxu0 0
  %4822 = vmatpush1.bf16.msra.mxu0 0
  %4823 = vmatprep.subr.bf16.mxu0 0
  %4824 = vmatpush1.bf16.msra.mxu0 0
  %4825 = vmatprep.subr.bf16.mxu0 0
  %4826 = vmatpush1.bf16.msra.mxu0 0
  %4827 = vmatprep.subr.bf16.mxu0 0
  %4828 = vmatpush1.bf16.msra.mxu0 0
  %4829 = vmatprep.subr.bf16.mxu0 0
  %4830 = vmatpush1.bf16.msra.mxu0 0
  %4831 = vmatprep.subr.bf16.mxu0 0
  %4832 = vmatpush1.bf16.msra.mxu0 0
  %4833 = vmatprep.subr.bf16.mxu0 0
  %4834 = vmatpush1.bf16.msra.mxu0 0
  %4835 = vmatprep.subr.bf16.mxu0 0
  %4836 = vmatpush1.bf16.msra.mxu0 0
  %4837 = vmatprep.subr.bf16.mxu0 0
  %4838 = vmatpush1.bf16.msra.mxu0 0
  %4839 = vmatprep.subr.bf16.mxu0 0
  %4840 = vmatpush1.bf16.msra.mxu0 0
  %4841 = vmatprep.mubr.bf16.mxu0 0
  %4842 = vmatmul.mubr.bf16.gmra.mrb[0].mxu0 %v4807
  %v4843 = vpop.f32.mrb[0].mxu0
  %v4844 = vadd.f32 %v4792, %v4843
  %v4845 = vpop.f32.mrb[0].mxu0
  %v4846 = vpop.f32.mrb[0].mxu0
  %v4847 = vpop.f32.mrb[0].mxu0
  %4848 = vdwg.mxu0
  %v4849 = vadd.f32 %v4709, %v4777
  %v4850 = vxor.u32 %v4849, 2147483648
  %v4851 = vmul.f32 %v4850, 1.442695
  %v4852 = vpow.pop %v4851
  %v4853 = vadd.f32 %v4852, 1.0
  %v4854 = vrcp.pop %v4853
  %v4855 = vmul.f32 1.0, %v4854
  %4857 = vrot.lane.b32.xlu0 %v4777, 64
  %v4858 = vpop.permute.xlu0 %4857
  %v4860 = vmul.f32 %v4855, %v4858
  %4862 = vrot.lane.b32.xlu0 %v4860, 64
  %v4863 = vpop.permute.xlu0 %4862
  %v4865 = vadd.f32 %v4709, %v4863
  %v4866 = vtanh.pop %v4865
  %v4867 = vsub.f32 1.0, %v4855
  %4869 = vrot.lane.b32.xlu0 %v4866, 96
  %v4870 = vpop.permute.xlu0 %4869
  %v4872 = vmul.f32 %v4867, %v4870
  %v4873 = vmul.f32 %v4855, %v4662
  %v4874 = vadd.f32 %v4872, %v4873
  %4876 = vrot.lane.b32.xlu0 %v4844, 96
  %v4877 = vpop.permute.xlu0 %4876
  %v4879 = vadd.f32 %v4710, %v4877
  %v4880 = vxor.u32 %v4879, 2147483648
  %v4881 = vmul.f32 %v4880, 1.442695
  %v4882 = vpow.pop %v4881
  %v4883 = vadd.f32 %v4882, 1.0
  %v4884 = vrcp.pop %v4883
  %v4885 = vmul.f32 1.0, %v4884
  %v4886 = vadd.f32 %v4711, %v4877
  %v4887 = vxor.u32 %v4886, 2147483648
  %v4888 = vmul.f32 %v4887, 1.442695
  %v4889 = vpow.pop %v4888
  %v4890 = vadd.f32 %v4889, 1.0
  %v4891 = vrcp.pop %v4890
  %v4892 = vmul.f32 1.0, %v4891
  %4893 = vrot.lane.b32.xlu0 %v4844, 32
  %v4894 = vpop.permute.xlu0 %4893
  %v4896 = vmul.f32 %v4885, %v4894
  %4898 = vrot.lane.b32.xlu0 %v4896, 64
  %v4899 = vpop.permute.xlu0 %4898
  %v4901 = vadd.f32 %v4711, %v4899
  %v4902 = vtanh.pop %v4901
  %v4903 = vsub.f32 1.0, %v4892
  %4905 = vrot.lane.b32.xlu0 %v4902, 96
  %v4906 = vpop.permute.xlu0 %4905
  %v4908 = vmul.f32 %v4903, %v4906
  %v4909 = vmul.f32 %v4892, %v4698
  %v4910 = vadd.f32 %v4908, %v4909
  %4912 = vrot.lane.b32.xlu0 %v4874, 96
  %v4913 = vpop.permute.xlu0 %4912
  %4915 = vst.msk [vmem:[#allocation3 + $0x70] sm:$0xff] %vm1773, %v4913
  %4917 = vrot.lane.b32.xlu0 %v4910, 32
  %v4918 = vpop.permute.xlu0 %4917
  %4920 = vst.msk [vmem:[#allocation3 + $0x8] sm:$0xff] %vm1951, %v4918
  %v4921 = vld [vmem:[#allocation2 + $0xf0] sm:$0xff]
  %v4922 = vld [vmem:[#allocation2] sm:$0xff]
  %v4923 = vld [vmem:[#allocation2 + $0x8] sm:$0xff]
  %v4924 = vpack.c.bf16 %v4874, %v4874
  %v4925 = vld [vmem:[%s5] sm:$0xf]
  %v4926 = vld [vmem:[%s5 + $0x4] sm:$0xf]
  %v4927 = vld [vmem:[%s5 + $0x8] sm:$0xf]
  %v4928 = vld [vmem:[%s5 + $0xc] sm:$0xf]
  %v4929 = vld [vmem:[%s6] sm:$0x1]
  %v4931 = vlaneseq
  %v4932 = vshrl.u32 %v4931, 7
  %v4933 = vsub.s32 0, %v4932
  %v4934 = vrot.slane %v4929, %v4933
  %4937 = vrot.lane.b32.xlu0 %v4924, 96
  %v4938 = vpop.permute.xlu0 %4937
  %v4943 = vunpack.c.l.b16 %v4925
  %v4944 = vunpack.c.l.b16 %v4926
  %v4945 = vunpack.c.l.b16 %v4927
  %v4946 = vunpack.c.l.b16 %v4928
  %v4947 = vpack.c.b16 %v4944, %v4943
  %v4948 = vpack.c.b16 %v4946, %v4945
  %v4952 = vsel %vm1773, %v4938, 0
  %4954 = vmatprep.subr.bf16.mxu0 0
  %4955 = vmatpush1.bf16.msra.mxu0 %v4947
  %4956 = vmatprep.subr.bf16.mxu0 0
  %4957 = vmatpush1.bf16.msra.mxu0 %v4948
  %4958 = vmatprep.subr.bf16.mxu0 0
  %4959 = vmatpush1.bf16.msra.mxu0 0
  %4960 = vmatprep.subr.bf16.mxu0 0
  %4961 = vmatpush1.bf16.msra.mxu0 0
  %4962 = vmatprep.subr.bf16.mxu0 0
  %4963 = vmatpush1.bf16.msra.mxu0 0
  %4964 = vmatprep.subr.bf16.mxu0 0
  %4965 = vmatpush1.bf16.msra.mxu0 0
  %4966 = vmatprep.subr.bf16.mxu0 0
  %4967 = vmatpush1.bf16.msra.mxu0 0
  %4968 = vmatprep.subr.bf16.mxu0 0
  %4969 = vmatpush1.bf16.msra.mxu0 0
  %4970 = vmatprep.subr.bf16.mxu0 0
  %4971 = vmatpush1.bf16.msra.mxu0 0
  %4972 = vmatprep.subr.bf16.mxu0 0
  %4973 = vmatpush1.bf16.msra.mxu0 0
  %4974 = vmatprep.subr.bf16.mxu0 0
  %4975 = vmatpush1.bf16.msra.mxu0 0
  %4976 = vmatprep.subr.bf16.mxu0 0
  %4977 = vmatpush1.bf16.msra.mxu0 0
  %4978 = vmatprep.subr.bf16.mxu0 0
  %4979 = vmatpush1.bf16.msra.mxu0 0
  %4980 = vmatprep.subr.bf16.mxu0 0
  %4981 = vmatpush1.bf16.msra.mxu0 0
  %4982 = vmatprep.subr.bf16.mxu0 0
  %4983 = vmatpush1.bf16.msra.mxu0 0
  %4984 = vmatprep.subr.bf16.mxu0 0
  %4985 = vmatpush1.bf16.msra.mxu0 0
  %4986 = vmatprep.mubr.bf16.mxu0 0
  %4987 = vmatmul.mubr.bf16.gmra.mrb[0].mxu0 %v4952
  %v4988 = vpop.f32.mrb[0].mxu0
  %v4989 = vadd.f32 %v4934, %v4988
  %v4990 = vpop.f32.mrb[0].mxu0
  %v4991 = vpop.f32.mrb[0].mxu0
  %v4992 = vpop.f32.mrb[0].mxu0
  %4993 = vdwg.mxu0
  %v4994 = vpack.c.bf16 %v4910, %v4910
  %v4995 = vld [vmem:[%s7] sm:$0xf]
  %v4996 = vld [vmem:[%s7 + $0x4] sm:$0xf]
  %v4997 = vld [vmem:[%s7 + $0x8] sm:$0xf]
  %v4998 = vld [vmem:[%s7 + $0xc] sm:$0xf]
  %v4999 = vld [vmem:[%s8] sm:$0x1]
  %v5001 = vlaneseq
  %v5002 = vshrl.u32 %v5001, 7
  %v5003 = vsub.s32 0, %v5002
  %v5004 = vrot.slane %v4999, %v5003
  %v5010 = vunpack.c.l.b16 %v4995
  %v5011 = vunpack.c.l.b16 %v4996
  %v5012 = vunpack.c.l.b16 %v4997
  %v5013 = vunpack.c.l.b16 %v4998
  %v5014 = vpack.c.b16 %v5011, %v5010
  %v5015 = vpack.c.b16 %v5013, %v5012
  %v5019 = vsel %vm1773, %v4994, 0
  %5021 = vmatprep.subr.bf16.mxu0 0
  %5022 = vmatpush1.bf16.msra.mxu0 %v5014
  %5023 = vmatprep.subr.bf16.mxu0 0
  %5024 = vmatpush1.bf16.msra.mxu0 %v5015
  %5025 = vmatprep.subr.bf16.mxu0 0
  %5026 = vmatpush1.bf16.msra.mxu0 0
  %5027 = vmatprep.subr.bf16.mxu0 0
  %5028 = vmatpush1.bf16.msra.mxu0 0
  %5029 = vmatprep.subr.bf16.mxu0 0
  %5030 = vmatpush1.bf16.msra.mxu0 0
  %5031 = vmatprep.subr.bf16.mxu0 0
  %5032 = vmatpush1.bf16.msra.mxu0 0
  %5033 = vmatprep.subr.bf16.mxu0 0
  %5034 = vmatpush1.bf16.msra.mxu0 0
  %5035 = vmatprep.subr.bf16.mxu0 0
  %5036 = vmatpush1.bf16.msra.mxu0 0
  %5037 = vmatprep.subr.bf16.mxu0 0
  %5038 = vmatpush1.bf16.msra.mxu0 0
  %5039 = vmatprep.subr.bf16.mxu0 0
  %5040 = vmatpush1.bf16.msra.mxu0 0
  %5041 = vmatprep.subr.bf16.mxu0 0
  %5042 = vmatpush1.bf16.msra.mxu0 0
  %5043 = vmatprep.subr.bf16.mxu0 0
  %5044 = vmatpush1.bf16.msra.mxu0 0
  %5045 = vmatprep.subr.bf16.mxu0 0
  %5046 = vmatpush1.bf16.msra.mxu0 0
  %5047 = vmatprep.subr.bf16.mxu0 0
  %5048 = vmatpush1.bf16.msra.mxu0 0
  %5049 = vmatprep.subr.bf16.mxu0 0
  %5050 = vmatpush1.bf16.msra.mxu0 0
  %5051 = vmatprep.subr.bf16.mxu0 0
  %5052 = vmatpush1.bf16.msra.mxu0 0
  %5053 = vmatprep.mubr.bf16.mxu0 0
  %5054 = vmatmul.mubr.bf16.gmra.mrb[0].mxu0 %v5019
  %v5055 = vpop.f32.mrb[0].mxu0
  %v5056 = vadd.f32 %v5004, %v5055
  %v5057 = vpop.f32.mrb[0].mxu0
  %v5058 = vpop.f32.mrb[0].mxu0
  %v5059 = vpop.f32.mrb[0].mxu0
  %5060 = vdwg.mxu0
  %v5061 = vadd.f32 %v4921, %v4989
  %v5062 = vxor.u32 %v5061, 2147483648
  %v5063 = vmul.f32 %v5062, 1.442695
  %v5064 = vpow.pop %v5063
  %v5065 = vadd.f32 %v5064, 1.0
  %v5066 = vrcp.pop %v5065
  %v5067 = vmul.f32 1.0, %v5066
  %5069 = vrot.lane.b32.xlu0 %v4989, 64
  %v5070 = vpop.permute.xlu0 %5069
  %v5072 = vmul.f32 %v5067, %v5070
  %5074 = vrot.lane.b32.xlu0 %v5072, 64
  %v5075 = vpop.permute.xlu0 %5074
  %v5077 = vadd.f32 %v4921, %v5075
  %v5078 = vtanh.pop %v5077
  %v5079 = vsub.f32 1.0, %v5067
  %5081 = vrot.lane.b32.xlu0 %v5078, 96
  %v5082 = vpop.permute.xlu0 %5081
  %v5084 = vmul.f32 %v5079, %v5082
  %v5085 = vmul.f32 %v5067, %v4874
  %v5086 = vadd.f32 %v5084, %v5085
  %5088 = vrot.lane.b32.xlu0 %v5056, 96
  %v5089 = vpop.permute.xlu0 %5088
  %v5091 = vadd.f32 %v4922, %v5089
  %v5092 = vxor.u32 %v5091, 2147483648
  %v5093 = vmul.f32 %v5092, 1.442695
  %v5094 = vpow.pop %v5093
  %v5095 = vadd.f32 %v5094, 1.0
  %v5096 = vrcp.pop %v5095
  %v5097 = vmul.f32 1.0, %v5096
  %v5098 = vadd.f32 %v4923, %v5089
  %v5099 = vxor.u32 %v5098, 2147483648
  %v5100 = vmul.f32 %v5099, 1.442695
  %v5101 = vpow.pop %v5100
  %v5102 = vadd.f32 %v5101, 1.0
  %v5103 = vrcp.pop %v5102
  %v5104 = vmul.f32 1.0, %v5103
  %5105 = vrot.lane.b32.xlu0 %v5056, 32
  %v5106 = vpop.permute.xlu0 %5105
  %v5108 = vmul.f32 %v5097, %v5106
  %5110 = vrot.lane.b32.xlu0 %v5108, 64
  %v5111 = vpop.permute.xlu0 %5110
  %v5113 = vadd.f32 %v4923, %v5111
  %v5114 = vtanh.pop %v5113
  %v5115 = vsub.f32 1.0, %v5104
  %5117 = vrot.lane.b32.xlu0 %v5114, 96
  %v5118 = vpop.permute.xlu0 %5117
  %v5120 = vmul.f32 %v5115, %v5118
  %v5121 = vmul.f32 %v5104, %v4910
  %v5122 = vadd.f32 %v5120, %v5121
  %5124 = vrot.lane.b32.xlu0 %v5086, 96
  %v5125 = vpop.permute.xlu0 %5124
  %5127 = vst.msk [vmem:[#allocation3 + $0x78] sm:$0xff] %vm1773, %v5125
  %5129 = vrot.lane.b32.xlu0 %v5122, 32
  %v5130 = vpop.permute.xlu0 %5129
  %5132 = vst.msk [vmem:[#allocation3] sm:$0xff] %vm1951, %v5130
  %v5133 = vld [vmem:[#allocation3] sm:$0xff]
  %v5134 = vld [vmem:[#allocation3 + $0x8] sm:$0xff]
  %v5135 = vld [vmem:[#allocation3 + $0x10] sm:$0xff]
  %v5136 = vld [vmem:[#allocation3 + $0x18] sm:$0xff]
  %v5137 = vld [vmem:[#allocation3 + $0x20] sm:$0xff]
  %v5138 = vld [vmem:[#allocation3 + $0x28] sm:$0xff]
  %v5139 = vld [vmem:[#allocation3 + $0x30] sm:$0xff]
  %v5140 = vld [vmem:[#allocation3 + $0x38] sm:$0xff]
  %v5141 = vld [vmem:[#allocation3 + $0x40] sm:$0xff]
  %v5142 = vld [vmem:[#allocation3 + $0x48] sm:$0xff]
  %v5143 = vld [vmem:[#allocation3 + $0x50] sm:$0xff]
  %v5144 = vld [vmem:[#allocation3 + $0x58] sm:$0xff]
  %v5145 = vld [vmem:[#allocation3 + $0x60] sm:$0xff]
  %v5146 = vld [vmem:[#allocation3 + $0x68] sm:$0xff]
  %v5147 = vld [vmem:[#allocation3 + $0x70] sm:$0xff]
  %v5148 = vld [vmem:[#allocation3 + $0x78] sm:$0xff]
  %v5149 = vpack.c.bf16 %v5134, %v5133
  %v5150 = vpack.c.bf16 %v5136, %v5135
  %v5151 = vpack.c.bf16 %v5138, %v5137
  %v5152 = vpack.c.bf16 %v5140, %v5139
  %v5153 = vpack.c.bf16 %v5142, %v5141
  %v5154 = vpack.c.bf16 %v5144, %v5143
  %v5155 = vpack.c.bf16 %v5146, %v5145
  %v5156 = vpack.c.bf16 %v5148, %v5147
  %v5157 = vld [vmem:[%s9] sm:$0xff]
  %v5158 = vld [vmem:[%s9 + $0x8] sm:$0xff]
  %v5159 = vld [vmem:[%s9 + $0x10] sm:$0xff]
  %v5160 = vld [vmem:[%s9 + $0x18] sm:$0xff]
  %v5161 = vld [vmem:[%s9 + $0x20] sm:$0xff]
  %v5162 = vld [vmem:[%s9 + $0x28] sm:$0xff]
  %v5163 = vld [vmem:[%s9 + $0x30] sm:$0xff]
  %v5164 = vld [vmem:[%s9 + $0x38] sm:$0xff]
  %v5165 = vld [vmem:[%s10] sm:$0x3]
  %v5167 = vlaneseq
  %v5168 = vshrl.u32 %v5167, 7
  %v5169 = vsub.s32 0, %v5168
  %v5170 = vrot.slane %v5165, %v5169
  %v5171 = vlaneseq
  %v5172 = vshrl.u32 %v5171, 7
  %v5173 = vsub.s32 1, %v5172
  %v5174 = vrot.slane %v5165, %v5173
  %v5185 = vunpack.c.l.b16 %v5157
  %v5186 = vunpack.c.h.b16 %v5157
  %v5187 = vunpack.c.l.b16 %v5158
  %v5188 = vunpack.c.h.b16 %v5158
  %v5189 = vunpack.c.l.b16 %v5159
  %v5190 = vunpack.c.h.b16 %v5159
  %v5191 = vunpack.c.l.b16 %v5160
  %v5192 = vunpack.c.h.b16 %v5160
  %v5193 = vunpack.c.l.b16 %v5161
  %v5194 = vunpack.c.h.b16 %v5161
  %v5195 = vunpack.c.l.b16 %v5162
  %v5196 = vunpack.c.h.b16 %v5162
  %v5197 = vunpack.c.l.b16 %v5163
  %v5198 = vunpack.c.h.b16 %v5163
  %v5199 = vunpack.c.l.b16 %v5164
  %v5200 = vunpack.c.h.b16 %v5164
  %v5201 = vpack.c.b16 %v5187, %v5185
  %v5202 = vpack.c.b16 %v5188, %v5186
  %v5203 = vpack.c.b16 %v5191, %v5189
  %v5204 = vpack.c.b16 %v5192, %v5190
  %v5205 = vpack.c.b16 %v5195, %v5193
  %v5206 = vpack.c.b16 %v5196, %v5194
  %v5207 = vpack.c.b16 %v5199, %v5197
  %v5208 = vpack.c.b16 %v5200, %v5198
  %v5218 = vsel %vm1715, %v5149, 0
  %v5221 = vsel %vm1715, %v5150, 0
  %v5224 = vsel %vm1715, %v5151, 0
  %v5227 = vsel %vm1715, %v5152, 0
  %v5230 = vsel %vm1715, %v5153, 0
  %v5233 = vsel %vm1715, %v5154, 0
  %v5236 = vsel %vm1715, %v5155, 0
  %v5239 = vsel %vm1715, %v5156, 0
  %5241 = vmatprep.subr.bf16.mxu0 %v5202
  %5242 = vmatpush1.bf16.msra.mxu0 %v5201
  %5243 = vmatprep.subr.bf16.mxu0 %v5204
  %5244 = vmatpush1.bf16.msra.mxu0 %v5203
  %5245 = vmatprep.subr.bf16.mxu0 %v5206
  %5246 = vmatpush1.bf16.msra.mxu0 %v5205
  %5247 = vmatprep.subr.bf16.mxu0 %v5208
  %5248 = vmatpush1.bf16.msra.mxu0 %v5207
  %5249 = vmatprep.subr.bf16.mxu0 0
  %5250 = vmatpush1.bf16.msra.mxu0 0
  %5251 = vmatprep.subr.bf16.mxu0 0
  %5252 = vmatpush1.bf16.msra.mxu0 0
  %5253 = vmatprep.subr.bf16.mxu0 0
  %5254 = vmatpush1.bf16.msra.mxu0 0
  %5255 = vmatprep.subr.bf16.mxu0 0
  %5256 = vmatpush1.bf16.msra.mxu0 0
  %5257 = vmatprep.subr.bf16.mxu0 0
  %5258 = vmatpush1.bf16.msra.mxu0 0
  %5259 = vmatprep.subr.bf16.mxu0 0
  %5260 = vmatpush1.bf16.msra.mxu0 0
  %5261 = vmatprep.subr.bf16.mxu0 0
  %5262 = vmatpush1.bf16.msra.mxu0 0
  %5263 = vmatprep.subr.bf16.mxu0 0
  %5264 = vmatpush1.bf16.msra.mxu0 0
  %5265 = vmatprep.subr.bf16.mxu0 0
  %5266 = vmatpush1.bf16.msra.mxu0 0
  %5267 = vmatprep.subr.bf16.mxu0 0
  %5268 = vmatpush1.bf16.msra.mxu0 0
  %5269 = vmatprep.subr.bf16.mxu0 0
  %5270 = vmatpush1.bf16.msra.mxu0 0
  %5271 = vmatprep.subr.bf16.mxu0 0
  %5272 = vmatpush1.bf16.msra.mxu0 0
  %5273 = vmatprep.mubr.bf16.mxu0 0
  %5274 = vmatmul.mubr.bf16.gmra.mrb[0].mxu0 %v5218
  %v5275 = vpop.f32.mrb[0].mxu0
  %v5276 = vadd.f32 %v5170, %v5275
  %v5277 = vpop.f32.mrb[0].mxu0
  %v5278 = vadd.f32 %v5174, %v5277
  %v5279 = vpop.f32.mrb[0].mxu0
  %v5280 = vadd.f32 %v5170, %v5279
  %v5281 = vpop.f32.mrb[0].mxu0
  %v5282 = vadd.f32 %v5174, %v5281
  %5283 = vmatprep.mubr.bf16.mxu0 0
  %5284 = vmatmul.mubr.bf16.gmra.mrb[0].mxu0 %v5221
  %v5285 = vpop.f32.mrb[0].mxu0
  %v5286 = vadd.f32 %v5170, %v5285
  %v5287 = vpop.f32.mrb[0].mxu0
  %v5288 = vadd.f32 %v5174, %v5287
  %v5289 = vpop.f32.mrb[0].mxu0
  %v5290 = vadd.f32 %v5170, %v5289
  %v5291 = vpop.f32.mrb[0].mxu0
  %v5292 = vadd.f32 %v5174, %v5291
  %5293 = vmatprep.mubr.bf16.mxu0 0
  %5294 = vmatmul.mubr.bf16.gmra.mrb[0].mxu0 %v5224
  %v5295 = vpop.f32.mrb[0].mxu0
  %v5296 = vadd.f32 %v5170, %v5295
  %v5297 = vpop.f32.mrb[0].mxu0
  %v5298 = vadd.f32 %v5174, %v5297
  %v5299 = vpop.f32.mrb[0].mxu0
  %v5300 = vadd.f32 %v5170, %v5299
  %v5301 = vpop.f32.mrb[0].mxu0
  %v5302 = vadd.f32 %v5174, %v5301
  %5303 = vmatprep.mubr.bf16.mxu0 0
  %5304 = vmatmul.mubr.bf16.gmra.mrb[0].mxu0 %v5227
  %v5305 = vpop.f32.mrb[0].mxu0
  %v5306 = vadd.f32 %v5170, %v5305
  %v5307 = vpop.f32.mrb[0].mxu0
  %v5308 = vadd.f32 %v5174, %v5307
  %v5309 = vpop.f32.mrb[0].mxu0
  %v5310 = vadd.f32 %v5170, %v5309
  %v5311 = vpop.f32.mrb[0].mxu0
  %v5312 = vadd.f32 %v5174, %v5311
  %5313 = vmatprep.mubr.bf16.mxu0 0
  %5314 = vmatmul.mubr.bf16.gmra.mrb[0].mxu0 %v5230
  %v5315 = vpop.f32.mrb[0].mxu0
  %v5316 = vadd.f32 %v5170, %v5315
  %v5317 = vpop.f32.mrb[0].mxu0
  %v5318 = vadd.f32 %v5174, %v5317
  %v5319 = vpop.f32.mrb[0].mxu0
  %v5320 = vadd.f32 %v5170, %v5319
  %v5321 = vpop.f32.mrb[0].mxu0
  %v5322 = vadd.f32 %v5174, %v5321
  %5323 = vmatprep.mubr.bf16.mxu0 0
  %5324 = vmatmul.mubr.bf16.gmra.mrb[0].mxu0 %v5233
  %v5325 = vpop.f32.mrb[0].mxu0
  %v5326 = vadd.f32 %v5170, %v5325
  %v5327 = vpop.f32.mrb[0].mxu0
  %v5328 = vadd.f32 %v5174, %v5327
  %v5329 = vpop.f32.mrb[0].mxu0
  %v5330 = vadd.f32 %v5170, %v5329
  %v5331 = vpop.f32.mrb[0].mxu0
  %v5332 = vadd.f32 %v5174, %v5331
  %5333 = vmatprep.mubr.bf16.mxu0 0
  %5334 = vmatmul.mubr.bf16.gmra.mrb[0].mxu0 %v5236
  %v5335 = vpop.f32.mrb[0].mxu0
  %v5336 = vadd.f32 %v5170, %v5335
  %v5337 = vpop.f32.mrb[0].mxu0
  %v5338 = vadd.f32 %v5174, %v5337
  %v5339 = vpop.f32.mrb[0].mxu0
  %v5340 = vadd.f32 %v5170, %v5339
  %v5341 = vpop.f32.mrb[0].mxu0
  %v5342 = vadd.f32 %v5174, %v5341
  %5343 = vmatprep.mubr.bf16.mxu0 0
  %5344 = vmatmul.mubr.bf16.gmra.mrb[0].mxu0 %v5239
  %v5345 = vpop.f32.mrb[0].mxu0
  %v5346 = vadd.f32 %v5170, %v5345
  %v5347 = vpop.f32.mrb[0].mxu0
  %v5348 = vadd.f32 %v5174, %v5347
  %v5349 = vpop.f32.mrb[0].mxu0
  %v5350 = vadd.f32 %v5170, %v5349
  %v5351 = vpop.f32.mrb[0].mxu0
  %v5352 = vadd.f32 %v5174, %v5351
  %5353 = vdwg.mxu0
  %5354 = vst [vmem:[#allocation2] sm:$0xff] %v5276
  %5355 = vst.msk [vmem:[#allocation2 + $0x8] sm:$0xff] %vm1715, %v5278
  %5356 = vst [vmem:[#allocation2 + $0x10] sm:$0xff] %v5280
  %5357 = vst.msk [vmem:[#allocation2 + $0x18] sm:$0xff] %vm1715, %v5282
  %5358 = vst [vmem:[#allocation2 + $0x20] sm:$0xff] %v5286
  %5359 = vst.msk [vmem:[#allocation2 + $0x28] sm:$0xff] %vm1715, %v5288
  %5360 = vst [vmem:[#allocation2 + $0x30] sm:$0xff] %v5290
  %5361 = vst.msk [vmem:[#allocation2 + $0x38] sm:$0xff] %vm1715, %v5292
  %5362 = vst [vmem:[#allocation2 + $0x40] sm:$0xff] %v5296
  %5363 = vst.msk [vmem:[#allocation2 + $0x48] sm:$0xff] %vm1715, %v5298
  %5364 = vst [vmem:[#allocation2 + $0x50] sm:$0xff] %v5300
  %5365 = vst.msk [vmem:[#allocation2 + $0x58] sm:$0xff] %vm1715, %v5302
  %5366 = vst [vmem:[#allocation2 + $0x60] sm:$0xff] %v5306
  %5367 = vst.msk [vmem:[#allocation2 + $0x68] sm:$0xff] %vm1715, %v5308
  %5368 = vst [vmem:[#allocation2 + $0x70] sm:$0xff] %v5310
  %5369 = vst.msk [vmem:[#allocation2 + $0x78] sm:$0xff] %vm1715, %v5312
  %5370 = vst [vmem:[#allocation2 + $0x80] sm:$0xff] %v5316
  %5371 = vst.msk [vmem:[#allocation2 + $0x88] sm:$0xff] %vm1715, %v5318
  %5372 = vst [vmem:[#allocation2 + $0x90] sm:$0xff] %v5320
  %5373 = vst.msk [vmem:[#allocation2 + $0x98] sm:$0xff] %vm1715, %v5322
  %5374 = vst [vmem:[#allocation2 + $0xa0] sm:$0xff] %v5326
  %5375 = vst.msk [vmem:[#allocation2 + $0xa8] sm:$0xff] %vm1715, %v5328
  %5376 = vst [vmem:[#allocation2 + $0xb0] sm:$0xff] %v5330
  %5377 = vst.msk [vmem:[#allocation2 + $0xb8] sm:$0xff] %vm1715, %v5332
  %5378 = vst [vmem:[#allocation2 + $0xc0] sm:$0xff] %v5336
  %5379 = vst.msk [vmem:[#allocation2 + $0xc8] sm:$0xff] %vm1715, %v5338
  %5380 = vst [vmem:[#allocation2 + $0xd0] sm:$0xff] %v5340
  %5381 = vst.msk [vmem:[#allocation2 + $0xd8] sm:$0xff] %vm1715, %v5342
  %5382 = vst [vmem:[#allocation2 + $0xe0] sm:$0xff] %v5346
  %5383 = vst.msk [vmem:[#allocation2 + $0xe8] sm:$0xff] %vm1715, %v5348
  %5384 = vst [vmem:[#allocation2 + $0xf0] sm:$0xff] %v5350
  %5385 = vst.msk [vmem:[#allocation2 + $0xf8] sm:$0xff] %vm1715, %v5352
  %v5386 = vld [vmem:[#allocation2] sm:$0xff]
  %v5387 = vld [vmem:[#allocation2 + $0xf0] sm:$0xff]
  %v5388 = vld [vmem:[#allocation2 + $0xf8] sm:$0xff]
  %v5389 = vld [vmem:[%s11] sm:$0xf]
  %v5390 = vld [vmem:[%s11 + $0x4] sm:$0xf]
  %v5391 = vld [vmem:[%s11 + $0x8] sm:$0xf]
  %v5392 = vld [vmem:[%s11 + $0xc] sm:$0xf]
  %v5393 = vld [vmem:[%s12] sm:$0x1]
  %v5395 = vlaneseq
  %v5396 = vshrl.u32 %v5395, 7
  %v5397 = vsub.s32 0, %v5396
  %v5398 = vrot.slane %v5393, %v5397
  %v5404 = vunpack.c.l.b16 %v5389
  %v5405 = vunpack.c.l.b16 %v5390
  %v5406 = vunpack.c.l.b16 %v5391
  %v5407 = vunpack.c.l.b16 %v5392
  %v5408 = vpack.c.b16 %v5405, %v5404
  %v5409 = vpack.c.b16 %v5407, %v5406
  %5412 = vmatprep.subr.bf16.mxu0 0
  %5413 = vmatpush1.bf16.msra.mxu0 %v5408
  %5414 = vmatprep.subr.bf16.mxu0 0
  %5415 = vmatpush1.bf16.msra.mxu0 %v5409
  %5416 = vmatprep.subr.bf16.mxu0 0
  %5417 = vmatpush1.bf16.msra.mxu0 0
  %5418 = vmatprep.subr.bf16.mxu0 0
  %5419 = vmatpush1.bf16.msra.mxu0 0
  %5420 = vmatprep.subr.bf16.mxu0 0
  %5421 = vmatpush1.bf16.msra.mxu0 0
  %5422 = vmatprep.subr.bf16.mxu0 0
  %5423 = vmatpush1.bf16.msra.mxu0 0
  %5424 = vmatprep.subr.bf16.mxu0 0
  %5425 = vmatpush1.bf16.msra.mxu0 0
  %5426 = vmatprep.subr.bf16.mxu0 0
  %5427 = vmatpush1.bf16.msra.mxu0 0
  %5428 = vmatprep.subr.bf16.mxu0 0
  %5429 = vmatpush1.bf16.msra.mxu0 0
  %5430 = vmatprep.subr.bf16.mxu0 0
  %5431 = vmatpush1.bf16.msra.mxu0 0
  %5432 = vmatprep.subr.bf16.mxu0 0
  %5433 = vmatpush1.bf16.msra.mxu0 0
  %5434 = vmatprep.subr.bf16.mxu0 0
  %5435 = vmatpush1.bf16.msra.mxu0 0
  %5436 = vmatprep.subr.bf16.mxu0 0
  %5437 = vmatpush1.bf16.msra.mxu0 0
  %5438 = vmatprep.subr.bf16.mxu0 0
  %5439 = vmatpush1.bf16.msra.mxu0 0
  %5440 = vmatprep.subr.bf16.mxu0 0
  %5441 = vmatpush1.bf16.msra.mxu0 0
  %5442 = vmatprep.subr.bf16.mxu0 0
  %5443 = vmatpush1.bf16.msra.mxu0 0
  %5444 = vmatprep.mubr.bf16.mxu0 0
  %5445 = vmatmul.mubr.bf16.gmra.mrb[0].mxu0 %v1775
  %v5446 = vpop.f32.mrb[0].mxu0
  %v5447 = vadd.f32 %v5398, %v5446
  %v5448 = vpop.f32.mrb[0].mxu0
  %v5449 = vpop.f32.mrb[0].mxu0
  %v5450 = vpop.f32.mrb[0].mxu0
  %5451 = vdwg.mxu0
  %v5452 = vld [vmem:[%s13] sm:$0xf]
  %v5453 = vld [vmem:[%s13 + $0x4] sm:$0xf]
  %v5454 = vld [vmem:[%s13 + $0x8] sm:$0xf]
  %v5455 = vld [vmem:[%s13 + $0xc] sm:$0xf]
  %v5456 = vld [vmem:[%s14] sm:$0x1]
  %v5458 = vlaneseq
  %v5459 = vshrl.u32 %v5458, 7
  %v5460 = vsub.s32 0, %v5459
  %v5461 = vrot.slane %v5456, %v5460
  %v5467 = vunpack.c.l.b16 %v5452
  %v5468 = vunpack.c.l.b16 %v5453
  %v5469 = vunpack.c.l.b16 %v5454
  %v5470 = vunpack.c.l.b16 %v5455
  %v5471 = vpack.c.b16 %v5468, %v5467
  %v5472 = vpack.c.b16 %v5470, %v5469
  %5475 = vmatprep.subr.bf16.mxu0 0
  %5476 = vmatpush1.bf16.msra.mxu0 %v5471
  %5477 = vmatprep.subr.bf16.mxu0 0
  %5478 = vmatpush1.bf16.msra.mxu0 %v5472
  %5479 = vmatprep.subr.bf16.mxu0 0
  %5480 = vmatpush1.bf16.msra.mxu0 0
  %5481 = vmatprep.subr.bf16.mxu0 0
  %5482 = vmatpush1.bf16.msra.mxu0 0
  %5483 = vmatprep.subr.bf16.mxu0 0
  %5484 = vmatpush1.bf16.msra.mxu0 0
  %5485 = vmatprep.subr.bf16.mxu0 0
  %5486 = vmatpush1.bf16.msra.mxu0 0
  %5487 = vmatprep.subr.bf16.mxu0 0
  %5488 = vmatpush1.bf16.msra.mxu0 0
  %5489 = vmatprep.subr.bf16.mxu0 0
  %5490 = vmatpush1.bf16.msra.mxu0 0
  %5491 = vmatprep.subr.bf16.mxu0 0
  %5492 = vmatpush1.bf16.msra.mxu0 0
  %5493 = vmatprep.subr.bf16.mxu0 0
  %5494 = vmatpush1.bf16.msra.mxu0 0
  %5495 = vmatprep.subr.bf16.mxu0 0
  %5496 = vmatpush1.bf16.msra.mxu0 0
  %5497 = vmatprep.subr.bf16.mxu0 0
  %5498 = vmatpush1.bf16.msra.mxu0 0
  %5499 = vmatprep.subr.bf16.mxu0 0
  %5500 = vmatpush1.bf16.msra.mxu0 0
  %5501 = vmatprep.subr.bf16.mxu0 0
  %5502 = vmatpush1.bf16.msra.mxu0 0
  %5503 = vmatprep.subr.bf16.mxu0 0
  %5504 = vmatpush1.bf16.msra.mxu0 0
  %5505 = vmatprep.subr.bf16.mxu0 0
  %5506 = vmatpush1.bf16.msra.mxu0 0
  %5507 = vmatprep.mubr.bf16.mxu0 0
  %5508 = vmatmul.mubr.bf16.gmra.mrb[0].mxu0 %v1775
  %v5509 = vpop.f32.mrb[0].mxu0
  %v5510 = vadd.f32 %v5461, %v5509
  %v5511 = vpop.f32.mrb[0].mxu0
  %v5512 = vpop.f32.mrb[0].mxu0
  %v5513 = vpop.f32.mrb[0].mxu0
  %5514 = vdwg.mxu0
  %v5515 = vadd.f32 %v5386, %v5447
  %v5516 = vxor.u32 %v5515, 2147483648
  %v5517 = vmul.f32 %v5516, 1.442695
  %v5518 = vpow.pop %v5517
  %v5519 = vadd.f32 %v5518, 1.0
  %v5520 = vrcp.pop %v5519
  %v5521 = vmul.f32 1.0, %v5520
  %5523 = vrot.lane.b32.xlu0 %v5447, 64
  %v5524 = vpop.permute.xlu0 %5523
  %v5526 = vmul.f32 %v5521, %v5524
  %5528 = vrot.lane.b32.xlu0 %v5526, 64
  %v5529 = vpop.permute.xlu0 %5528
  %v5531 = vadd.f32 %v5386, %v5529
  %v5532 = vtanh.pop %v5531
  %v5533 = vsub.f32 1.0, %v5521
  %5535 = vrot.lane.b32.xlu0 %v5532, 96
  %v5536 = vpop.permute.xlu0 %5535
  %v5538 = vmul.f32 %v5533, %v5536
  %v5539 = vmul.f32 %v5521, 0.0
  %v5540 = vadd.f32 %v5538, %v5539
  %5542 = vrot.lane.b32.xlu0 %v5510, 96
  %v5543 = vpop.permute.xlu0 %5542
  %v5545 = vadd.f32 %v5387, %v5543
  %v5546 = vxor.u32 %v5545, 2147483648
  %v5547 = vmul.f32 %v5546, 1.442695
  %v5548 = vpow.pop %v5547
  %v5549 = vadd.f32 %v5548, 1.0
  %v5550 = vrcp.pop %v5549
  %v5551 = vmul.f32 1.0, %v5550
  %v5552 = vadd.f32 %v5388, %v5543
  %v5553 = vxor.u32 %v5552, 2147483648
  %v5554 = vmul.f32 %v5553, 1.442695
  %v5555 = vpow.pop %v5554
  %v5556 = vadd.f32 %v5555, 1.0
  %v5557 = vrcp.pop %v5556
  %v5558 = vmul.f32 1.0, %v5557
  %5559 = vrot.lane.b32.xlu0 %v5510, 32
  %v5560 = vpop.permute.xlu0 %5559
  %v5562 = vmul.f32 %v5551, %v5560
  %5564 = vrot.lane.b32.xlu0 %v5562, 64
  %v5565 = vpop.permute.xlu0 %5564
  %v5567 = vadd.f32 %v5388, %v5565
  %v5568 = vtanh.pop %v5567
  %v5569 = vsub.f32 1.0, %v5558
  %5571 = vrot.lane.b32.xlu0 %v5568, 96
  %v5572 = vpop.permute.xlu0 %5571
  %v5574 = vmul.f32 %v5569, %v5572
  %v5575 = vmul.f32 %v5558, 0.0
  %v5576 = vadd.f32 %v5574, %v5575
  %v5577 = vld [vmem:[#allocation2 + $0x10] sm:$0xff]
  %v5578 = vld [vmem:[#allocation2 + $0xe0] sm:$0xff]
  %v5579 = vld [vmem:[#allocation2 + $0xe8] sm:$0xff]
  %v5580 = vpack.c.bf16 %v5540, %v5540
  %5582 = vrot.lane.b32.xlu0 %v5580, 96
  %v5583 = vpop.permute.xlu0 %5582
  %v5585 = vsel %vm1773, %v5583, 0
  %5587 = vmatprep.subr.bf16.mxu0 0
  %5588 = vmatpush1.bf16.msra.mxu0 %v5408
  %5589 = vmatprep.subr.bf16.mxu0 0
  %5590 = vmatpush1.bf16.msra.mxu0 %v5409
  %5591 = vmatprep.subr.bf16.mxu0 0
  %5592 = vmatpush1.bf16.msra.mxu0 0
  %5593 = vmatprep.subr.bf16.mxu0 0
  %5594 = vmatpush1.bf16.msra.mxu0 0
  %5595 = vmatprep.subr.bf16.mxu0 0
  %5596 = vmatpush1.bf16.msra.mxu0 0
  %5597 = vmatprep.subr.bf16.mxu0 0
  %5598 = vmatpush1.bf16.msra.mxu0 0
  %5599 = vmatprep.subr.bf16.mxu0 0
  %5600 = vmatpush1.bf16.msra.mxu0 0
  %5601 = vmatprep.subr.bf16.mxu0 0
  %5602 = vmatpush1.bf16.msra.mxu0 0
  %5603 = vmatprep.subr.bf16.mxu0 0
  %5604 = vmatpush1.bf16.msra.mxu0 0
  %5605 = vmatprep.subr.bf16.mxu0 0
  %5606 = vmatpush1.bf16.msra.mxu0 0
  %5607 = vmatprep.subr.bf16.mxu0 0
  %5608 = vmatpush1.bf16.msra.mxu0 0
  %5609 = vmatprep.subr.bf16.mxu0 0
  %5610 = vmatpush1.bf16.msra.mxu0 0
  %5611 = vmatprep.subr.bf16.mxu0 0
  %5612 = vmatpush1.bf16.msra.mxu0 0
  %5613 = vmatprep.subr.bf16.mxu0 0
  %5614 = vmatpush1.bf16.msra.mxu0 0
  %5615 = vmatprep.subr.bf16.mxu0 0
  %5616 = vmatpush1.bf16.msra.mxu0 0
  %5617 = vmatprep.subr.bf16.mxu0 0
  %5618 = vmatpush1.bf16.msra.mxu0 0
  %5619 = vmatprep.mubr.bf16.mxu0 0
  %5620 = vmatmul.mubr.bf16.gmra.mrb[0].mxu0 %v5585
  %v5621 = vpop.f32.mrb[0].mxu0
  %v5622 = vadd.f32 %v5398, %v5621
  %v5623 = vpop.f32.mrb[0].mxu0
  %v5624 = vpop.f32.mrb[0].mxu0
  %v5625 = vpop.f32.mrb[0].mxu0
  %5626 = vdwg.mxu0
  %v5627 = vpack.c.bf16 %v5576, %v5576
  %v5629 = vsel %vm1773, %v5627, 0
  %5631 = vmatprep.subr.bf16.mxu0 0
  %5632 = vmatpush1.bf16.msra.mxu0 %v5471
  %5633 = vmatprep.subr.bf16.mxu0 0
  %5634 = vmatpush1.bf16.msra.mxu0 %v5472
  %5635 = vmatprep.subr.bf16.mxu0 0
  %5636 = vmatpush1.bf16.msra.mxu0 0
  %5637 = vmatprep.subr.bf16.mxu0 0
  %5638 = vmatpush1.bf16.msra.mxu0 0
  %5639 = vmatprep.subr.bf16.mxu0 0
  %5640 = vmatpush1.bf16.msra.mxu0 0
  %5641 = vmatprep.subr.bf16.mxu0 0
  %5642 = vmatpush1.bf16.msra.mxu0 0
  %5643 = vmatprep.subr.bf16.mxu0 0
  %5644 = vmatpush1.bf16.msra.mxu0 0
  %5645 = vmatprep.subr.bf16.mxu0 0
  %5646 = vmatpush1.bf16.msra.mxu0 0
  %5647 = vmatprep.subr.bf16.mxu0 0
  %5648 = vmatpush1.bf16.msra.mxu0 0
  %5649 = vmatprep.subr.bf16.mxu0 0
  %5650 = vmatpush1.bf16.msra.mxu0 0
  %5651 = vmatprep.subr.bf16.mxu0 0
  %5652 = vmatpush1.bf16.msra.mxu0 0
  %5653 = vmatprep.subr.bf16.mxu0 0
  %5654 = vmatpush1.bf16.msra.mxu0 0
  %5655 = vmatprep.subr.bf16.mxu0 0
  %5656 = vmatpush1.bf16.msra.mxu0 0
  %5657 = vmatprep.subr.bf16.mxu0 0
  %5658 = vmatpush1.bf16.msra.mxu0 0
  %5659 = vmatprep.subr.bf16.mxu0 0
  %5660 = vmatpush1.bf16.msra.mxu0 0
  %5661 = vmatprep.subr.bf16.mxu0 0
  %5662 = vmatpush1.bf16.msra.mxu0 0
  %5663 = vmatprep.mubr.bf16.mxu0 0
  %5664 = vmatmul.mubr.bf16.gmra.mrb[0].mxu0 %v5629
  %v5665 = vpop.f32.mrb[0].mxu0
  %v5666 = vadd.f32 %v5461, %v5665
  %v5667 = vpop.f32.mrb[0].mxu0
  %v5668 = vpop.f32.mrb[0].mxu0
  %v5669 = vpop.f32.mrb[0].mxu0
  %5670 = vdwg.mxu0
  %v5671 = vadd.f32 %v5577, %v5622
  %v5672 = vxor.u32 %v5671, 2147483648
  %v5673 = vmul.f32 %v5672, 1.442695
  %v5674 = vpow.pop %v5673
  %v5675 = vadd.f32 %v5674, 1.0
  %v5676 = vrcp.pop %v5675
  %v5677 = vmul.f32 1.0, %v5676
  %5679 = vrot.lane.b32.xlu0 %v5622, 64
  %v5680 = vpop.permute.xlu0 %5679
  %v5682 = vmul.f32 %v5677, %v5680
  %5684 = vrot.lane.b32.xlu0 %v5682, 64
  %v5685 = vpop.permute.xlu0 %5684
  %v5687 = vadd.f32 %v5577, %v5685
  %v5688 = vtanh.pop %v5687
  %v5689 = vsub.f32 1.0, %v5677
  %5691 = vrot.lane.b32.xlu0 %v5688, 96
  %v5692 = vpop.permute.xlu0 %5691
  %v5694 = vmul.f32 %v5689, %v5692
  %v5695 = vmul.f32 %v5677, %v5540
  %v5696 = vadd.f32 %v5694, %v5695
  %5698 = vrot.lane.b32.xlu0 %v5666, 96
  %v5699 = vpop.permute.xlu0 %5698
  %v5701 = vadd.f32 %v5578, %v5699
  %v5702 = vxor.u32 %v5701, 2147483648
  %v5703 = vmul.f32 %v5702, 1.442695
  %v5704 = vpow.pop %v5703
  %v5705 = vadd.f32 %v5704, 1.0
  %v5706 = vrcp.pop %v5705
  %v5707 = vmul.f32 1.0, %v5706
  %v5708 = vadd.f32 %v5579, %v5699
  %v5709 = vxor.u32 %v5708, 2147483648
  %v5710 = vmul.f32 %v5709, 1.442695
  %v5711 = vpow.pop %v5710
  %v5712 = vadd.f32 %v5711, 1.0
  %v5713 = vrcp.pop %v5712
  %v5714 = vmul.f32 1.0, %v5713
  %5715 = vrot.lane.b32.xlu0 %v5666, 32
  %v5716 = vpop.permute.xlu0 %5715
  %v5718 = vmul.f32 %v5707, %v5716
  %5720 = vrot.lane.b32.xlu0 %v5718, 64
  %v5721 = vpop.permute.xlu0 %5720
  %v5723 = vadd.f32 %v5579, %v5721
  %v5724 = vtanh.pop %v5723
  %v5725 = vsub.f32 1.0, %v5714
  %5727 = vrot.lane.b32.xlu0 %v5724, 96
  %v5728 = vpop.permute.xlu0 %5727
  %v5730 = vmul.f32 %v5725, %v5728
  %v5731 = vmul.f32 %v5714, %v5576
  %v5732 = vadd.f32 %v5730, %v5731
  %v5733 = vld [vmem:[#allocation2 + $0x20] sm:$0xff]
  %v5734 = vld [vmem:[#allocation2 + $0xd0] sm:$0xff]
  %v5735 = vld [vmem:[#allocation2 + $0xd8] sm:$0xff]
  %v5736 = vpack.c.bf16 %v5696, %v5696
  %5738 = vrot.lane.b32.xlu0 %v5736, 96
  %v5739 = vpop.permute.xlu0 %5738
  %v5741 = vsel %vm1773, %v5739, 0
  %5743 = vmatprep.subr.bf16.mxu0 0
  %5744 = vmatpush1.bf16.msra.mxu0 %v5408
  %5745 = vmatprep.subr.bf16.mxu0 0
  %5746 = vmatpush1.bf16.msra.mxu0 %v5409
  %5747 = vmatprep.subr.bf16.mxu0 0
  %5748 = vmatpush1.bf16.msra.mxu0 0
  %5749 = vmatprep.subr.bf16.mxu0 0
  %5750 = vmatpush1.bf16.msra.mxu0 0
  %5751 = vmatprep.subr.bf16.mxu0 0
  %5752 = vmatpush1.bf16.msra.mxu0 0
  %5753 = vmatprep.subr.bf16.mxu0 0
  %5754 = vmatpush1.bf16.msra.mxu0 0
  %5755 = vmatprep.subr.bf16.mxu0 0
  %5756 = vmatpush1.bf16.msra.mxu0 0
  %5757 = vmatprep.subr.bf16.mxu0 0
  %5758 = vmatpush1.bf16.msra.mxu0 0
  %5759 = vmatprep.subr.bf16.mxu0 0
  %5760 = vmatpush1.bf16.msra.mxu0 0
  %5761 = vmatprep.subr.bf16.mxu0 0
  %5762 = vmatpush1.bf16.msra.mxu0 0
  %5763 = vmatprep.subr.bf16.mxu0 0
  %5764 = vmatpush1.bf16.msra.mxu0 0
  %5765 = vmatprep.subr.bf16.mxu0 0
  %5766 = vmatpush1.bf16.msra.mxu0 0
  %5767 = vmatprep.subr.bf16.mxu0 0
  %5768 = vmatpush1.bf16.msra.mxu0 0
  %5769 = vmatprep.subr.bf16.mxu0 0
  %5770 = vmatpush1.bf16.msra.mxu0 0
  %5771 = vmatprep.subr.bf16.mxu0 0
  %5772 = vmatpush1.bf16.msra.mxu0 0
  %5773 = vmatprep.subr.bf16.mxu0 0
  %5774 = vmatpush1.bf16.msra.mxu0 0
  %5775 = vmatprep.mubr.bf16.mxu0 0
  %5776 = vmatmul.mubr.bf16.gmra.mrb[0].mxu0 %v5741
  %v5777 = vpop.f32.mrb[0].mxu0
  %v5778 = vadd.f32 %v5398, %v5777
  %v5779 = vpop.f32.mrb[0].mxu0
  %v5780 = vpop.f32.mrb[0].mxu0
  %v5781 = vpop.f32.mrb[0].mxu0
  %5782 = vdwg.mxu0
  %v5783 = vpack.c.bf16 %v5732, %v5732
  %v5785 = vsel %vm1773, %v5783, 0
  %5787 = vmatprep.subr.bf16.mxu0 0
  %5788 = vmatpush1.bf16.msra.mxu0 %v5471
  %5789 = vmatprep.subr.bf16.mxu0 0
  %5790 = vmatpush1.bf16.msra.mxu0 %v5472
  %5791 = vmatprep.subr.bf16.mxu0 0
  %5792 = vmatpush1.bf16.msra.mxu0 0
  %5793 = vmatprep.subr.bf16.mxu0 0
  %5794 = vmatpush1.bf16.msra.mxu0 0
  %5795 = vmatprep.subr.bf16.mxu0 0
  %5796 = vmatpush1.bf16.msra.mxu0 0
  %5797 = vmatprep.subr.bf16.mxu0 0
  %5798 = vmatpush1.bf16.msra.mxu0 0
  %5799 = vmatprep.subr.bf16.mxu0 0
  %5800 = vmatpush1.bf16.msra.mxu0 0
  %5801 = vmatprep.subr.bf16.mxu0 0
  %5802 = vmatpush1.bf16.msra.mxu0 0
  %5803 = vmatprep.subr.bf16.mxu0 0
  %5804 = vmatpush1.bf16.msra.mxu0 0
  %5805 = vmatprep.subr.bf16.mxu0 0
  %5806 = vmatpush1.bf16.msra.mxu0 0
  %5807 = vmatprep.subr.bf16.mxu0 0
  %5808 = vmatpush1.bf16.msra.mxu0 0
  %5809 = vmatprep.subr.bf16.mxu0 0
  %5810 = vmatpush1.bf16.msra.mxu0 0
  %5811 = vmatprep.subr.bf16.mxu0 0
  %5812 = vmatpush1.bf16.msra.mxu0 0
  %5813 = vmatprep.subr.bf16.mxu0 0
  %5814 = vmatpush1.bf16.msra.mxu0 0
  %5815 = vmatprep.subr.bf16.mxu0 0
  %5816 = vmatpush1.bf16.msra.mxu0 0
  %5817 = vmatprep.subr.bf16.mxu0 0
  %5818 = vmatpush1.bf16.msra.mxu0 0
  %5819 = vmatprep.mubr.bf16.mxu0 0
  %5820 = vmatmul.mubr.bf16.gmra.mrb[0].mxu0 %v5785
  %v5821 = vpop.f32.mrb[0].mxu0
  %v5822 = vadd.f32 %v5461, %v5821
  %v5823 = vpop.f32.mrb[0].mxu0
  %v5824 = vpop.f32.mrb[0].mxu0
  %v5825 = vpop.f32.mrb[0].mxu0
  %5826 = vdwg.mxu0
  %v5827 = vadd.f32 %v5733, %v5778
  %v5828 = vxor.u32 %v5827, 2147483648
  %v5829 = vmul.f32 %v5828, 1.442695
  %v5830 = vpow.pop %v5829
  %v5831 = vadd.f32 %v5830, 1.0
  %v5832 = vrcp.pop %v5831
  %v5833 = vmul.f32 1.0, %v5832
  %5835 = vrot.lane.b32.xlu0 %v5778, 64
  %v5836 = vpop.permute.xlu0 %5835
  %v5838 = vmul.f32 %v5833, %v5836
  %5840 = vrot.lane.b32.xlu0 %v5838, 64
  %v5841 = vpop.permute.xlu0 %5840
  %v5843 = vadd.f32 %v5733, %v5841
  %v5844 = vtanh.pop %v5843
  %v5845 = vsub.f32 1.0, %v5833
  %5847 = vrot.lane.b32.xlu0 %v5844, 96
  %v5848 = vpop.permute.xlu0 %5847
  %v5850 = vmul.f32 %v5845, %v5848
  %v5851 = vmul.f32 %v5833, %v5696
  %v5852 = vadd.f32 %v5850, %v5851
  %5854 = vrot.lane.b32.xlu0 %v5822, 96
  %v5855 = vpop.permute.xlu0 %5854
  %v5857 = vadd.f32 %v5734, %v5855
  %v5858 = vxor.u32 %v5857, 2147483648
  %v5859 = vmul.f32 %v5858, 1.442695
  %v5860 = vpow.pop %v5859
  %v5861 = vadd.f32 %v5860, 1.0
  %v5862 = vrcp.pop %v5861
  %v5863 = vmul.f32 1.0, %v5862
  %v5864 = vadd.f32 %v5735, %v5855
  %v5865 = vxor.u32 %v5864, 2147483648
  %v5866 = vmul.f32 %v5865, 1.442695
  %v5867 = vpow.pop %v5866
  %v5868 = vadd.f32 %v5867, 1.0
  %v5869 = vrcp.pop %v5868
  %v5870 = vmul.f32 1.0, %v5869
  %5871 = vrot.lane.b32.xlu0 %v5822, 32
  %v5872 = vpop.permute.xlu0 %5871
  %v5874 = vmul.f32 %v5863, %v5872
  %5876 = vrot.lane.b32.xlu0 %v5874, 64
  %v5877 = vpop.permute.xlu0 %5876
  %v5879 = vadd.f32 %v5735, %v5877
  %v5880 = vtanh.pop %v5879
  %v5881 = vsub.f32 1.0, %v5870
  %5883 = vrot.lane.b32.xlu0 %v5880, 96
  %v5884 = vpop.permute.xlu0 %5883
  %v5886 = vmul.f32 %v5881, %v5884
  %v5887 = vmul.f32 %v5870, %v5732
  %v5888 = vadd.f32 %v5886, %v5887
  %v5889 = vld [vmem:[#allocation2 + $0x30] sm:$0xff]
  %v5890 = vld [vmem:[#allocation2 + $0xc0] sm:$0xff]
  %v5891 = vld [vmem:[#allocation2 + $0xc8] sm:$0xff]
  %v5892 = vpack.c.bf16 %v5852, %v5852
  %5894 = vrot.lane.b32.xlu0 %v5892, 96
  %v5895 = vpop.permute.xlu0 %5894
  %v5897 = vsel %vm1773, %v5895, 0
  %5899 = vmatprep.subr.bf16.mxu0 0
  %5900 = vmatpush1.bf16.msra.mxu0 %v5408
  %5901 = vmatprep.subr.bf16.mxu0 0
  %5902 = vmatpush1.bf16.msra.mxu0 %v5409
  %5903 = vmatprep.subr.bf16.mxu0 0
  %5904 = vmatpush1.bf16.msra.mxu0 0
  %5905 = vmatprep.subr.bf16.mxu0 0
  %5906 = vmatpush1.bf16.msra.mxu0 0
  %5907 = vmatprep.subr.bf16.mxu0 0
  %5908 = vmatpush1.bf16.msra.mxu0 0
  %5909 = vmatprep.subr.bf16.mxu0 0
  %5910 = vmatpush1.bf16.msra.mxu0 0
  %5911 = vmatprep.subr.bf16.mxu0 0
  %5912 = vmatpush1.bf16.msra.mxu0 0
  %5913 = vmatprep.subr.bf16.mxu0 0
  %5914 = vmatpush1.bf16.msra.mxu0 0
  %5915 = vmatprep.subr.bf16.mxu0 0
  %5916 = vmatpush1.bf16.msra.mxu0 0
  %5917 = vmatprep.subr.bf16.mxu0 0
  %5918 = vmatpush1.bf16.msra.mxu0 0
  %5919 = vmatprep.subr.bf16.mxu0 0
  %5920 = vmatpush1.bf16.msra.mxu0 0
  %5921 = vmatprep.subr.bf16.mxu0 0
  %5922 = vmatpush1.bf16.msra.mxu0 0
  %5923 = vmatprep.subr.bf16.mxu0 0
  %5924 = vmatpush1.bf16.msra.mxu0 0
  %5925 = vmatprep.subr.bf16.mxu0 0
  %5926 = vmatpush1.bf16.msra.mxu0 0
  %5927 = vmatprep.subr.bf16.mxu0 0
  %5928 = vmatpush1.bf16.msra.mxu0 0
  %5929 = vmatprep.subr.bf16.mxu0 0
  %5930 = vmatpush1.bf16.msra.mxu0 0
  %5931 = vmatprep.mubr.bf16.mxu0 0
  %5932 = vmatmul.mubr.bf16.gmra.mrb[0].mxu0 %v5897
  %v5933 = vpop.f32.mrb[0].mxu0
  %v5934 = vadd.f32 %v5398, %v5933
  %v5935 = vpop.f32.mrb[0].mxu0
  %v5936 = vpop.f32.mrb[0].mxu0
  %v5937 = vpop.f32.mrb[0].mxu0
  %5938 = vdwg.mxu0
  %v5939 = vpack.c.bf16 %v5888, %v5888
  %v5941 = vsel %vm1773, %v5939, 0
  %5943 = vmatprep.subr.bf16.mxu0 0
  %5944 = vmatpush1.bf16.msra.mxu0 %v5471
  %5945 = vmatprep.subr.bf16.mxu0 0
  %5946 = vmatpush1.bf16.msra.mxu0 %v5472
  %5947 = vmatprep.subr.bf16.mxu0 0
  %5948 = vmatpush1.bf16.msra.mxu0 0
  %5949 = vmatprep.subr.bf16.mxu0 0
  %5950 = vmatpush1.bf16.msra.mxu0 0
  %5951 = vmatprep.subr.bf16.mxu0 0
  %5952 = vmatpush1.bf16.msra.mxu0 0
  %5953 = vmatprep.subr.bf16.mxu0 0
  %5954 = vmatpush1.bf16.msra.mxu0 0
  %5955 = vmatprep.subr.bf16.mxu0 0
  %5956 = vmatpush1.bf16.msra.mxu0 0
  %5957 = vmatprep.subr.bf16.mxu0 0
  %5958 = vmatpush1.bf16.msra.mxu0 0
  %5959 = vmatprep.subr.bf16.mxu0 0
  %5960 = vmatpush1.bf16.msra.mxu0 0
  %5961 = vmatprep.subr.bf16.mxu0 0
  %5962 = vmatpush1.bf16.msra.mxu0 0
  %5963 = vmatprep.subr.bf16.mxu0 0
  %5964 = vmatpush1.bf16.msra.mxu0 0
  %5965 = vmatprep.subr.bf16.mxu0 0
  %5966 = vmatpush1.bf16.msra.mxu0 0
  %5967 = vmatprep.subr.bf16.mxu0 0
  %5968 = vmatpush1.bf16.msra.mxu0 0
  %5969 = vmatprep.subr.bf16.mxu0 0
  %5970 = vmatpush1.bf16.msra.mxu0 0
  %5971 = vmatprep.subr.bf16.mxu0 0
  %5972 = vmatpush1.bf16.msra.mxu0 0
  %5973 = vmatprep.subr.bf16.mxu0 0
  %5974 = vmatpush1.bf16.msra.mxu0 0
  %5975 = vmatprep.mubr.bf16.mxu0 0
  %5976 = vmatmul.mubr.bf16.gmra.mrb[0].mxu0 %v5941
  %v5977 = vpop.f32.mrb[0].mxu0
  %v5978 = vadd.f32 %v5461, %v5977
  %v5979 = vpop.f32.mrb[0].mxu0
  %v5980 = vpop.f32.mrb[0].mxu0
  %v5981 = vpop.f32.mrb[0].mxu0
  %5982 = vdwg.mxu0
  %v5983 = vadd.f32 %v5889, %v5934
  %v5984 = vxor.u32 %v5983, 2147483648
  %v5985 = vmul.f32 %v5984, 1.442695
  %v5986 = vpow.pop %v5985
  %v5987 = vadd.f32 %v5986, 1.0
  %v5988 = vrcp.pop %v5987
  %v5989 = vmul.f32 1.0, %v5988
  %5991 = vrot.lane.b32.xlu0 %v5934, 64
  %v5992 = vpop.permute.xlu0 %5991
  %v5994 = vmul.f32 %v5989, %v5992
  %5996 = vrot.lane.b32.xlu0 %v5994, 64
  %v5997 = vpop.permute.xlu0 %5996
  %v5999 = vadd.f32 %v5889, %v5997
  %v6000 = vtanh.pop %v5999
  %v6001 = vsub.f32 1.0, %v5989
  %6003 = vrot.lane.b32.xlu0 %v6000, 96
  %v6004 = vpop.permute.xlu0 %6003
  %v6006 = vmul.f32 %v6001, %v6004
  %v6007 = vmul.f32 %v5989, %v5852
  %v6008 = vadd.f32 %v6006, %v6007
  %6010 = vrot.lane.b32.xlu0 %v5978, 96
  %v6011 = vpop.permute.xlu0 %6010
  %v6013 = vadd.f32 %v5890, %v6011
  %v6014 = vxor.u32 %v6013, 2147483648
  %v6015 = vmul.f32 %v6014, 1.442695
  %v6016 = vpow.pop %v6015
  %v6017 = vadd.f32 %v6016, 1.0
  %v6018 = vrcp.pop %v6017
  %v6019 = vmul.f32 1.0, %v6018
  %v6020 = vadd.f32 %v5891, %v6011
  %v6021 = vxor.u32 %v6020, 2147483648
  %v6022 = vmul.f32 %v6021, 1.442695
  %v6023 = vpow.pop %v6022
  %v6024 = vadd.f32 %v6023, 1.0
  %v6025 = vrcp.pop %v6024
  %v6026 = vmul.f32 1.0, %v6025
  %6027 = vrot.lane.b32.xlu0 %v5978, 32
  %v6028 = vpop.permute.xlu0 %6027
  %v6030 = vmul.f32 %v6019, %v6028
  %6032 = vrot.lane.b32.xlu0 %v6030, 64
  %v6033 = vpop.permute.xlu0 %6032
  %v6035 = vadd.f32 %v5891, %v6033
  %v6036 = vtanh.pop %v6035
  %v6037 = vsub.f32 1.0, %v6026
  %6039 = vrot.lane.b32.xlu0 %v6036, 96
  %v6040 = vpop.permute.xlu0 %6039
  %v6042 = vmul.f32 %v6037, %v6040
  %v6043 = vmul.f32 %v6026, %v5888
  %v6044 = vadd.f32 %v6042, %v6043
  %v6045 = vld [vmem:[#allocation2 + $0x40] sm:$0xff]
  %v6046 = vld [vmem:[#allocation2 + $0xb0] sm:$0xff]
  %v6047 = vld [vmem:[#allocation2 + $0xb8] sm:$0xff]
  %v6048 = vpack.c.bf16 %v6008, %v6008
  %6050 = vrot.lane.b32.xlu0 %v6048, 96
  %v6051 = vpop.permute.xlu0 %6050
  %v6053 = vsel %vm1773, %v6051, 0
  %6055 = vmatprep.subr.bf16.mxu0 0
  %6056 = vmatpush1.bf16.msra.mxu0 %v5408
  %6057 = vmatprep.subr.bf16.mxu0 0
  %6058 = vmatpush1.bf16.msra.mxu0 %v5409
  %6059 = vmatprep.subr.bf16.mxu0 0
  %6060 = vmatpush1.bf16.msra.mxu0 0
  %6061 = vmatprep.subr.bf16.mxu0 0
  %6062 = vmatpush1.bf16.msra.mxu0 0
  %6063 = vmatprep.subr.bf16.mxu0 0
  %6064 = vmatpush1.bf16.msra.mxu0 0
  %6065 = vmatprep.subr.bf16.mxu0 0
  %6066 = vmatpush1.bf16.msra.mxu0 0
  %6067 = vmatprep.subr.bf16.mxu0 0
  %6068 = vmatpush1.bf16.msra.mxu0 0
  %6069 = vmatprep.subr.bf16.mxu0 0
  %6070 = vmatpush1.bf16.msra.mxu0 0
  %6071 = vmatprep.subr.bf16.mxu0 0
  %6072 = vmatpush1.bf16.msra.mxu0 0
  %6073 = vmatprep.subr.bf16.mxu0 0
  %6074 = vmatpush1.bf16.msra.mxu0 0
  %6075 = vmatprep.subr.bf16.mxu0 0
  %6076 = vmatpush1.bf16.msra.mxu0 0
  %6077 = vmatprep.subr.bf16.mxu0 0
  %6078 = vmatpush1.bf16.msra.mxu0 0
  %6079 = vmatprep.subr.bf16.mxu0 0
  %6080 = vmatpush1.bf16.msra.mxu0 0
  %6081 = vmatprep.subr.bf16.mxu0 0
  %6082 = vmatpush1.bf16.msra.mxu0 0
  %6083 = vmatprep.subr.bf16.mxu0 0
  %6084 = vmatpush1.bf16.msra.mxu0 0
  %6085 = vmatprep.subr.bf16.mxu0 0
  %6086 = vmatpush1.bf16.msra.mxu0 0
  %6087 = vmatprep.mubr.bf16.mxu0 0
  %6088 = vmatmul.mubr.bf16.gmra.mrb[0].mxu0 %v6053
  %v6089 = vpop.f32.mrb[0].mxu0
  %v6090 = vadd.f32 %v5398, %v6089
  %v6091 = vpop.f32.mrb[0].mxu0
  %v6092 = vpop.f32.mrb[0].mxu0
  %v6093 = vpop.f32.mrb[0].mxu0
  %6094 = vdwg.mxu0
  %v6095 = vpack.c.bf16 %v6044, %v6044
  %v6097 = vsel %vm1773, %v6095, 0
  %6099 = vmatprep.subr.bf16.mxu0 0
  %6100 = vmatpush1.bf16.msra.mxu0 %v5471
  %6101 = vmatprep.subr.bf16.mxu0 0
  %6102 = vmatpush1.bf16.msra.mxu0 %v5472
  %6103 = vmatprep.subr.bf16.mxu0 0
  %6104 = vmatpush1.bf16.msra.mxu0 0
  %6105 = vmatprep.subr.bf16.mxu0 0
  %6106 = vmatpush1.bf16.msra.mxu0 0
  %6107 = vmatprep.subr.bf16.mxu0 0
  %6108 = vmatpush1.bf16.msra.mxu0 0
  %6109 = vmatprep.subr.bf16.mxu0 0
  %6110 = vmatpush1.bf16.msra.mxu0 0
  %6111 = vmatprep.subr.bf16.mxu0 0
  %6112 = vmatpush1.bf16.msra.mxu0 0
  %6113 = vmatprep.subr.bf16.mxu0 0
  %6114 = vmatpush1.bf16.msra.mxu0 0
  %6115 = vmatprep.subr.bf16.mxu0 0
  %6116 = vmatpush1.bf16.msra.mxu0 0
  %6117 = vmatprep.subr.bf16.mxu0 0
  %6118 = vmatpush1.bf16.msra.mxu0 0
  %6119 = vmatprep.subr.bf16.mxu0 0
  %6120 = vmatpush1.bf16.msra.mxu0 0
  %6121 = vmatprep.subr.bf16.mxu0 0
  %6122 = vmatpush1.bf16.msra.mxu0 0
  %6123 = vmatprep.subr.bf16.mxu0 0
  %6124 = vmatpush1.bf16.msra.mxu0 0
  %6125 = vmatprep.subr.bf16.mxu0 0
  %6126 = vmatpush1.bf16.msra.mxu0 0
  %6127 = vmatprep.subr.bf16.mxu0 0
  %6128 = vmatpush1.bf16.msra.mxu0 0
  %6129 = vmatprep.subr.bf16.mxu0 0
  %6130 = vmatpush1.bf16.msra.mxu0 0
  %6131 = vmatprep.mubr.bf16.mxu0 0
  %6132 = vmatmul.mubr.bf16.gmra.mrb[0].mxu0 %v6097
  %v6133 = vpop.f32.mrb[0].mxu0
  %v6134 = vadd.f32 %v5461, %v6133
  %v6135 = vpop.f32.mrb[0].mxu0
  %v6136 = vpop.f32.mrb[0].mxu0
  %v6137 = vpop.f32.mrb[0].mxu0
  %6138 = vdwg.mxu0
  %v6139 = vadd.f32 %v6045, %v6090
  %v6140 = vxor.u32 %v6139, 2147483648
  %v6141 = vmul.f32 %v6140, 1.442695
  %v6142 = vpow.pop %v6141
  %v6143 = vadd.f32 %v6142, 1.0
  %v6144 = vrcp.pop %v6143
  %v6145 = vmul.f32 1.0, %v6144
  %6147 = vrot.lane.b32.xlu0 %v6090, 64
  %v6148 = vpop.permute.xlu0 %6147
  %v6150 = vmul.f32 %v6145, %v6148
  %6152 = vrot.lane.b32.xlu0 %v6150, 64
  %v6153 = vpop.permute.xlu0 %6152
  %v6155 = vadd.f32 %v6045, %v6153
  %v6156 = vtanh.pop %v6155
  %v6157 = vsub.f32 1.0, %v6145
  %6159 = vrot.lane.b32.xlu0 %v6156, 96
  %v6160 = vpop.permute.xlu0 %6159
  %v6162 = vmul.f32 %v6157, %v6160
  %v6163 = vmul.f32 %v6145, %v6008
  %v6164 = vadd.f32 %v6162, %v6163
  %6166 = vrot.lane.b32.xlu0 %v6134, 96
  %v6167 = vpop.permute.xlu0 %6166
  %v6169 = vadd.f32 %v6046, %v6167
  %v6170 = vxor.u32 %v6169, 2147483648
  %v6171 = vmul.f32 %v6170, 1.442695
  %v6172 = vpow.pop %v6171
  %v6173 = vadd.f32 %v6172, 1.0
  %v6174 = vrcp.pop %v6173
  %v6175 = vmul.f32 1.0, %v6174
  %v6176 = vadd.f32 %v6047, %v6167
  %v6177 = vxor.u32 %v6176, 2147483648
  %v6178 = vmul.f32 %v6177, 1.442695
  %v6179 = vpow.pop %v6178
  %v6180 = vadd.f32 %v6179, 1.0
  %v6181 = vrcp.pop %v6180
  %v6182 = vmul.f32 1.0, %v6181
  %6183 = vrot.lane.b32.xlu0 %v6134, 32
  %v6184 = vpop.permute.xlu0 %6183
  %v6186 = vmul.f32 %v6175, %v6184
  %6188 = vrot.lane.b32.xlu0 %v6186, 64
  %v6189 = vpop.permute.xlu0 %6188
  %v6191 = vadd.f32 %v6047, %v6189
  %v6192 = vtanh.pop %v6191
  %v6193 = vsub.f32 1.0, %v6182
  %6195 = vrot.lane.b32.xlu0 %v6192, 96
  %v6196 = vpop.permute.xlu0 %6195
  %v6198 = vmul.f32 %v6193, %v6196
  %v6199 = vmul.f32 %v6182, %v6044
  %v6200 = vadd.f32 %v6198, %v6199
  %v6201 = vld [vmem:[#allocation2 + $0x50] sm:$0xff]
  %v6202 = vld [vmem:[#allocation2 + $0xa0] sm:$0xff]
  %v6203 = vld [vmem:[#allocation2 + $0xa8] sm:$0xff]
  %v6204 = vpack.c.bf16 %v6164, %v6164
  %6206 = vrot.lane.b32.xlu0 %v6204, 96
  %v6207 = vpop.permute.xlu0 %6206
  %v6209 = vsel %vm1773, %v6207, 0
  %6211 = vmatprep.subr.bf16.mxu0 0
  %6212 = vmatpush1.bf16.msra.mxu0 %v5408
  %6213 = vmatprep.subr.bf16.mxu0 0
  %6214 = vmatpush1.bf16.msra.mxu0 %v5409
  %6215 = vmatprep.subr.bf16.mxu0 0
  %6216 = vmatpush1.bf16.msra.mxu0 0
  %6217 = vmatprep.subr.bf16.mxu0 0
  %6218 = vmatpush1.bf16.msra.mxu0 0
  %6219 = vmatprep.subr.bf16.mxu0 0
  %6220 = vmatpush1.bf16.msra.mxu0 0
  %6221 = vmatprep.subr.bf16.mxu0 0
  %6222 = vmatpush1.bf16.msra.mxu0 0
  %6223 = vmatprep.subr.bf16.mxu0 0
  %6224 = vmatpush1.bf16.msra.mxu0 0
  %6225 = vmatprep.subr.bf16.mxu0 0
  %6226 = vmatpush1.bf16.msra.mxu0 0
  %6227 = vmatprep.subr.bf16.mxu0 0
  %6228 = vmatpush1.bf16.msra.mxu0 0
  %6229 = vmatprep.subr.bf16.mxu0 0
  %6230 = vmatpush1.bf16.msra.mxu0 0
  %6231 = vmatprep.subr.bf16.mxu0 0
  %6232 = vmatpush1.bf16.msra.mxu0 0
  %6233 = vmatprep.subr.bf16.mxu0 0
  %6234 = vmatpush1.bf16.msra.mxu0 0
  %6235 = vmatprep.subr.bf16.mxu0 0
  %6236 = vmatpush1.bf16.msra.mxu0 0
  %6237 = vmatprep.subr.bf16.mxu0 0
  %6238 = vmatpush1.bf16.msra.mxu0 0
  %6239 = vmatprep.subr.bf16.mxu0 0
  %6240 = vmatpush1.bf16.msra.mxu0 0
  %6241 = vmatprep.subr.bf16.mxu0 0
  %6242 = vmatpush1.bf16.msra.mxu0 0
  %6243 = vmatprep.mubr.bf16.mxu0 0
  %6244 = vmatmul.mubr.bf16.gmra.mrb[0].mxu0 %v6209
  %v6245 = vpop.f32.mrb[0].mxu0
  %v6246 = vadd.f32 %v5398, %v6245
  %v6247 = vpop.f32.mrb[0].mxu0
  %v6248 = vpop.f32.mrb[0].mxu0
  %v6249 = vpop.f32.mrb[0].mxu0
  %6250 = vdwg.mxu0
  %v6251 = vpack.c.bf16 %v6200, %v6200
  %v6253 = vsel %vm1773, %v6251, 0
  %6255 = vmatprep.subr.bf16.mxu0 0
  %6256 = vmatpush1.bf16.msra.mxu0 %v5471
  %6257 = vmatprep.subr.bf16.mxu0 0
  %6258 = vmatpush1.bf16.msra.mxu0 %v5472
  %6259 = vmatprep.subr.bf16.mxu0 0
  %6260 = vmatpush1.bf16.msra.mxu0 0
  %6261 = vmatprep.subr.bf16.mxu0 0
  %6262 = vmatpush1.bf16.msra.mxu0 0
  %6263 = vmatprep.subr.bf16.mxu0 0
  %6264 = vmatpush1.bf16.msra.mxu0 0
  %6265 = vmatprep.subr.bf16.mxu0 0
  %6266 = vmatpush1.bf16.msra.mxu0 0
  %6267 = vmatprep.subr.bf16.mxu0 0
  %6268 = vmatpush1.bf16.msra.mxu0 0
  %6269 = vmatprep.subr.bf16.mxu0 0
  %6270 = vmatpush1.bf16.msra.mxu0 0
  %6271 = vmatprep.subr.bf16.mxu0 0
  %6272 = vmatpush1.bf16.msra.mxu0 0
  %6273 = vmatprep.subr.bf16.mxu0 0
  %6274 = vmatpush1.bf16.msra.mxu0 0
  %6275 = vmatprep.subr.bf16.mxu0 0
  %6276 = vmatpush1.bf16.msra.mxu0 0
  %6277 = vmatprep.subr.bf16.mxu0 0
  %6278 = vmatpush1.bf16.msra.mxu0 0
  %6279 = vmatprep.subr.bf16.mxu0 0
  %6280 = vmatpush1.bf16.msra.mxu0 0
  %6281 = vmatprep.subr.bf16.mxu0 0
  %6282 = vmatpush1.bf16.msra.mxu0 0
  %6283 = vmatprep.subr.bf16.mxu0 0
  %6284 = vmatpush1.bf16.msra.mxu0 0
  %6285 = vmatprep.subr.bf16.mxu0 0
  %6286 = vmatpush1.bf16.msra.mxu0 0
  %6287 = vmatprep.mubr.bf16.mxu0 0
  %6288 = vmatmul.mubr.bf16.gmra.mrb[0].mxu0 %v6253
  %v6289 = vpop.f32.mrb[0].mxu0
  %v6290 = vadd.f32 %v5461, %v6289
  %v6291 = vpop.f32.mrb[0].mxu0
  %v6292 = vpop.f32.mrb[0].mxu0
  %v6293 = vpop.f32.mrb[0].mxu0
  %6294 = vdwg.mxu0
  %v6295 = vadd.f32 %v6201, %v6246
  %v6296 = vxor.u32 %v6295, 2147483648
  %v6297 = vmul.f32 %v6296, 1.442695
  %v6298 = vpow.pop %v6297
  %v6299 = vadd.f32 %v6298, 1.0
  %v6300 = vrcp.pop %v6299
  %v6301 = vmul.f32 1.0, %v6300
  %6303 = vrot.lane.b32.xlu0 %v6246, 64
  %v6304 = vpop.permute.xlu0 %6303
  %v6306 = vmul.f32 %v6301, %v6304
  %6308 = vrot.lane.b32.xlu0 %v6306, 64
  %v6309 = vpop.permute.xlu0 %6308
  %v6311 = vadd.f32 %v6201, %v6309
  %v6312 = vtanh.pop %v6311
  %v6313 = vsub.f32 1.0, %v6301
  %6315 = vrot.lane.b32.xlu0 %v6312, 96
  %v6316 = vpop.permute.xlu0 %6315
  %v6318 = vmul.f32 %v6313, %v6316
  %v6319 = vmul.f32 %v6301, %v6164
  %v6320 = vadd.f32 %v6318, %v6319
  %6322 = vrot.lane.b32.xlu0 %v6290, 96
  %v6323 = vpop.permute.xlu0 %6322
  %v6325 = vadd.f32 %v6202, %v6323
  %v6326 = vxor.u32 %v6325, 2147483648
  %v6327 = vmul.f32 %v6326, 1.442695
  %v6328 = vpow.pop %v6327
  %v6329 = vadd.f32 %v6328, 1.0
  %v6330 = vrcp.pop %v6329
  %v6331 = vmul.f32 1.0, %v6330
  %v6332 = vadd.f32 %v6203, %v6323
  %v6333 = vxor.u32 %v6332, 2147483648
  %v6334 = vmul.f32 %v6333, 1.442695
  %v6335 = vpow.pop %v6334
  %v6336 = vadd.f32 %v6335, 1.0
  %v6337 = vrcp.pop %v6336
  %v6338 = vmul.f32 1.0, %v6337
  %6339 = vrot.lane.b32.xlu0 %v6290, 32
  %v6340 = vpop.permute.xlu0 %6339
  %v6342 = vmul.f32 %v6331, %v6340
  %6344 = vrot.lane.b32.xlu0 %v6342, 64
  %v6345 = vpop.permute.xlu0 %6344
  %v6347 = vadd.f32 %v6203, %v6345
  %v6348 = vtanh.pop %v6347
  %v6349 = vsub.f32 1.0, %v6338
  %6351 = vrot.lane.b32.xlu0 %v6348, 96
  %v6352 = vpop.permute.xlu0 %6351
  %v6354 = vmul.f32 %v6349, %v6352
  %v6355 = vmul.f32 %v6338, %v6200
  %v6356 = vadd.f32 %v6354, %v6355
  %v6357 = vld [vmem:[#allocation2 + $0x60] sm:$0xff]
  %v6358 = vld [vmem:[#allocation2 + $0x90] sm:$0xff]
  %v6359 = vld [vmem:[#allocation2 + $0x98] sm:$0xff]
  %v6360 = vpack.c.bf16 %v6320, %v6320
  %6362 = vrot.lane.b32.xlu0 %v6360, 96
  %v6363 = vpop.permute.xlu0 %6362
  %v6365 = vsel %vm1773, %v6363, 0
  %6367 = vmatprep.subr.bf16.mxu0 0
  %6368 = vmatpush1.bf16.msra.mxu0 %v5408
  %6369 = vmatprep.subr.bf16.mxu0 0
  %6370 = vmatpush1.bf16.msra.mxu0 %v5409
  %6371 = vmatprep.subr.bf16.mxu0 0
  %6372 = vmatpush1.bf16.msra.mxu0 0
  %6373 = vmatprep.subr.bf16.mxu0 0
  %6374 = vmatpush1.bf16.msra.mxu0 0
  %6375 = vmatprep.subr.bf16.mxu0 0
  %6376 = vmatpush1.bf16.msra.mxu0 0
  %6377 = vmatprep.subr.bf16.mxu0 0
  %6378 = vmatpush1.bf16.msra.mxu0 0
  %6379 = vmatprep.subr.bf16.mxu0 0
  %6380 = vmatpush1.bf16.msra.mxu0 0
  %6381 = vmatprep.subr.bf16.mxu0 0
  %6382 = vmatpush1.bf16.msra.mxu0 0
  %6383 = vmatprep.subr.bf16.mxu0 0
  %6384 = vmatpush1.bf16.msra.mxu0 0
  %6385 = vmatprep.subr.bf16.mxu0 0
  %6386 = vmatpush1.bf16.msra.mxu0 0
  %6387 = vmatprep.subr.bf16.mxu0 0
  %6388 = vmatpush1.bf16.msra.mxu0 0
  %6389 = vmatprep.subr.bf16.mxu0 0
  %6390 = vmatpush1.bf16.msra.mxu0 0
  %6391 = vmatprep.subr.bf16.mxu0 0
  %6392 = vmatpush1.bf16.msra.mxu0 0
  %6393 = vmatprep.subr.bf16.mxu0 0
  %6394 = vmatpush1.bf16.msra.mxu0 0
  %6395 = vmatprep.subr.bf16.mxu0 0
  %6396 = vmatpush1.bf16.msra.mxu0 0
  %6397 = vmatprep.subr.bf16.mxu0 0
  %6398 = vmatpush1.bf16.msra.mxu0 0
  %6399 = vmatprep.mubr.bf16.mxu0 0
  %6400 = vmatmul.mubr.bf16.gmra.mrb[0].mxu0 %v6365
  %v6401 = vpop.f32.mrb[0].mxu0
  %v6402 = vadd.f32 %v5398, %v6401
  %v6403 = vpop.f32.mrb[0].mxu0
  %v6404 = vpop.f32.mrb[0].mxu0
  %v6405 = vpop.f32.mrb[0].mxu0
  %6406 = vdwg.mxu0
  %v6407 = vpack.c.bf16 %v6356, %v6356
  %v6409 = vsel %vm1773, %v6407, 0
  %6411 = vmatprep.subr.bf16.mxu0 0
  %6412 = vmatpush1.bf16.msra.mxu0 %v5471
  %6413 = vmatprep.subr.bf16.mxu0 0
  %6414 = vmatpush1.bf16.msra.mxu0 %v5472
  %6415 = vmatprep.subr.bf16.mxu0 0
  %6416 = vmatpush1.bf16.msra.mxu0 0
  %6417 = vmatprep.subr.bf16.mxu0 0
  %6418 = vmatpush1.bf16.msra.mxu0 0
  %6419 = vmatprep.subr.bf16.mxu0 0
  %6420 = vmatpush1.bf16.msra.mxu0 0
  %6421 = vmatprep.subr.bf16.mxu0 0
  %6422 = vmatpush1.bf16.msra.mxu0 0
  %6423 = vmatprep.subr.bf16.mxu0 0
  %6424 = vmatpush1.bf16.msra.mxu0 0
  %6425 = vmatprep.subr.bf16.mxu0 0
  %6426 = vmatpush1.bf16.msra.mxu0 0
  %6427 = vmatprep.subr.bf16.mxu0 0
  %6428 = vmatpush1.bf16.msra.mxu0 0
  %6429 = vmatprep.subr.bf16.mxu0 0
  %6430 = vmatpush1.bf16.msra.mxu0 0
  %6431 = vmatprep.subr.bf16.mxu0 0
  %6432 = vmatpush1.bf16.msra.mxu0 0
  %6433 = vmatprep.subr.bf16.mxu0 0
  %6434 = vmatpush1.bf16.msra.mxu0 0
  %6435 = vmatprep.subr.bf16.mxu0 0
  %6436 = vmatpush1.bf16.msra.mxu0 0
  %6437 = vmatprep.subr.bf16.mxu0 0
  %6438 = vmatpush1.bf16.msra.mxu0 0
  %6439 = vmatprep.subr.bf16.mxu0 0
  %6440 = vmatpush1.bf16.msra.mxu0 0
  %6441 = vmatprep.subr.bf16.mxu0 0
  %6442 = vmatpush1.bf16.msra.mxu0 0
  %6443 = vmatprep.mubr.bf16.mxu0 0
  %6444 = vmatmul.mubr.bf16.gmra.mrb[0].mxu0 %v6409
  %v6445 = vpop.f32.mrb[0].mxu0
  %v6446 = vadd.f32 %v5461, %v6445
  %v6447 = vpop.f32.mrb[0].mxu0
  %v6448 = vpop.f32.mrb[0].mxu0
  %v6449 = vpop.f32.mrb[0].mxu0
  %6450 = vdwg.mxu0
  %v6451 = vadd.f32 %v6357, %v6402
  %v6452 = vxor.u32 %v6451, 2147483648
  %v6453 = vmul.f32 %v6452, 1.442695
  %v6454 = vpow.pop %v6453
  %v6455 = vadd.f32 %v6454, 1.0
  %v6456 = vrcp.pop %v6455
  %v6457 = vmul.f32 1.0, %v6456
  %6459 = vrot.lane.b32.xlu0 %v6402, 64
  %v6460 = vpop.permute.xlu0 %6459
  %v6462 = vmul.f32 %v6457, %v6460
  %6464 = vrot.lane.b32.xlu0 %v6462, 64
  %v6465 = vpop.permute.xlu0 %6464
  %v6467 = vadd.f32 %v6357, %v6465
  %v6468 = vtanh.pop %v6467
  %v6469 = vsub.f32 1.0, %v6457
  %6471 = vrot.lane.b32.xlu0 %v6468, 96
  %v6472 = vpop.permute.xlu0 %6471
  %v6474 = vmul.f32 %v6469, %v6472
  %v6475 = vmul.f32 %v6457, %v6320
  %v6476 = vadd.f32 %v6474, %v6475
  %6478 = vrot.lane.b32.xlu0 %v6446, 96
  %v6479 = vpop.permute.xlu0 %6478
  %v6481 = vadd.f32 %v6358, %v6479
  %v6482 = vxor.u32 %v6481, 2147483648
  %v6483 = vmul.f32 %v6482, 1.442695
  %v6484 = vpow.pop %v6483
  %v6485 = vadd.f32 %v6484, 1.0
  %v6486 = vrcp.pop %v6485
  %v6487 = vmul.f32 1.0, %v6486
  %v6488 = vadd.f32 %v6359, %v6479
  %v6489 = vxor.u32 %v6488, 2147483648
  %v6490 = vmul.f32 %v6489, 1.442695
  %v6491 = vpow.pop %v6490
  %v6492 = vadd.f32 %v6491, 1.0
  %v6493 = vrcp.pop %v6492
  %v6494 = vmul.f32 1.0, %v6493
  %6495 = vrot.lane.b32.xlu0 %v6446, 32
  %v6496 = vpop.permute.xlu0 %6495
  %v6498 = vmul.f32 %v6487, %v6496
  %6500 = vrot.lane.b32.xlu0 %v6498, 64
  %v6501 = vpop.permute.xlu0 %6500
  %v6503 = vadd.f32 %v6359, %v6501
  %v6504 = vtanh.pop %v6503
  %v6505 = vsub.f32 1.0, %v6494
  %6507 = vrot.lane.b32.xlu0 %v6504, 96
  %v6508 = vpop.permute.xlu0 %6507
  %v6510 = vmul.f32 %v6505, %v6508
  %v6511 = vmul.f32 %v6494, %v6356
  %v6512 = vadd.f32 %v6510, %v6511
  %v6513 = vld [vmem:[#allocation2 + $0x70] sm:$0xff]
  %v6514 = vld [vmem:[#allocation2 + $0x80] sm:$0xff]
  %v6515 = vld [vmem:[#allocation2 + $0x88] sm:$0xff]
  %v6516 = vpack.c.bf16 %v6476, %v6476
  %6518 = vrot.lane.b32.xlu0 %v6516, 96
  %v6519 = vpop.permute.xlu0 %6518
  %v6521 = vsel %vm1773, %v6519, 0
  %6523 = vmatprep.subr.bf16.mxu0 0
  %6524 = vmatpush1.bf16.msra.mxu0 %v5408
  %6525 = vmatprep.subr.bf16.mxu0 0
  %6526 = vmatpush1.bf16.msra.mxu0 %v5409
  %6527 = vmatprep.subr.bf16.mxu0 0
  %6528 = vmatpush1.bf16.msra.mxu0 0
  %6529 = vmatprep.subr.bf16.mxu0 0
  %6530 = vmatpush1.bf16.msra.mxu0 0
  %6531 = vmatprep.subr.bf16.mxu0 0
  %6532 = vmatpush1.bf16.msra.mxu0 0
  %6533 = vmatprep.subr.bf16.mxu0 0
  %6534 = vmatpush1.bf16.msra.mxu0 0
  %6535 = vmatprep.subr.bf16.mxu0 0
  %6536 = vmatpush1.bf16.msra.mxu0 0
  %6537 = vmatprep.subr.bf16.mxu0 0
  %6538 = vmatpush1.bf16.msra.mxu0 0
  %6539 = vmatprep.subr.bf16.mxu0 0
  %6540 = vmatpush1.bf16.msra.mxu0 0
  %6541 = vmatprep.subr.bf16.mxu0 0
  %6542 = vmatpush1.bf16.msra.mxu0 0
  %6543 = vmatprep.subr.bf16.mxu0 0
  %6544 = vmatpush1.bf16.msra.mxu0 0
  %6545 = vmatprep.subr.bf16.mxu0 0
  %6546 = vmatpush1.bf16.msra.mxu0 0
  %6547 = vmatprep.subr.bf16.mxu0 0
  %6548 = vmatpush1.bf16.msra.mxu0 0
  %6549 = vmatprep.subr.bf16.mxu0 0
  %6550 = vmatpush1.bf16.msra.mxu0 0
  %6551 = vmatprep.subr.bf16.mxu0 0
  %6552 = vmatpush1.bf16.msra.mxu0 0
  %6553 = vmatprep.subr.bf16.mxu0 0
  %6554 = vmatpush1.bf16.msra.mxu0 0
  %6555 = vmatprep.mubr.bf16.mxu0 0
  %6556 = vmatmul.mubr.bf16.gmra.mrb[0].mxu0 %v6521
  %v6557 = vpop.f32.mrb[0].mxu0
  %v6558 = vadd.f32 %v5398, %v6557
  %v6559 = vpop.f32.mrb[0].mxu0
  %v6560 = vpop.f32.mrb[0].mxu0
  %v6561 = vpop.f32.mrb[0].mxu0
  %6562 = vdwg.mxu0
  %v6563 = vpack.c.bf16 %v6512, %v6512
  %v6565 = vsel %vm1773, %v6563, 0
  %6567 = vmatprep.subr.bf16.mxu0 0
  %6568 = vmatpush1.bf16.msra.mxu0 %v5471
  %6569 = vmatprep.subr.bf16.mxu0 0
  %6570 = vmatpush1.bf16.msra.mxu0 %v5472
  %6571 = vmatprep.subr.bf16.mxu0 0
  %6572 = vmatpush1.bf16.msra.mxu0 0
  %6573 = vmatprep.subr.bf16.mxu0 0
  %6574 = vmatpush1.bf16.msra.mxu0 0
  %6575 = vmatprep.subr.bf16.mxu0 0
  %6576 = vmatpush1.bf16.msra.mxu0 0
  %6577 = vmatprep.subr.bf16.mxu0 0
  %6578 = vmatpush1.bf16.msra.mxu0 0
  %6579 = vmatprep.subr.bf16.mxu0 0
  %6580 = vmatpush1.bf16.msra.mxu0 0
  %6581 = vmatprep.subr.bf16.mxu0 0
  %6582 = vmatpush1.bf16.msra.mxu0 0
  %6583 = vmatprep.subr.bf16.mxu0 0
  %6584 = vmatpush1.bf16.msra.mxu0 0
  %6585 = vmatprep.subr.bf16.mxu0 0
  %6586 = vmatpush1.bf16.msra.mxu0 0
  %6587 = vmatprep.subr.bf16.mxu0 0
  %6588 = vmatpush1.bf16.msra.mxu0 0
  %6589 = vmatprep.subr.bf16.mxu0 0
  %6590 = vmatpush1.bf16.msra.mxu0 0
  %6591 = vmatprep.subr.bf16.mxu0 0
  %6592 = vmatpush1.bf16.msra.mxu0 0
  %6593 = vmatprep.subr.bf16.mxu0 0
  %6594 = vmatpush1.bf16.msra.mxu0 0
  %6595 = vmatprep.subr.bf16.mxu0 0
  %6596 = vmatpush1.bf16.msra.mxu0 0
  %6597 = vmatprep.subr.bf16.mxu0 0
  %6598 = vmatpush1.bf16.msra.mxu0 0
  %6599 = vmatprep.mubr.bf16.mxu0 0
  %6600 = vmatmul.mubr.bf16.gmra.mrb[0].mxu0 %v6565
  %v6601 = vpop.f32.mrb[0].mxu0
  %v6602 = vadd.f32 %v5461, %v6601
  %v6603 = vpop.f32.mrb[0].mxu0
  %v6604 = vpop.f32.mrb[0].mxu0
  %v6605 = vpop.f32.mrb[0].mxu0
  %6606 = vdwg.mxu0
  %v6607 = vadd.f32 %v6513, %v6558
  %v6608 = vxor.u32 %v6607, 2147483648
  %v6609 = vmul.f32 %v6608, 1.442695
  %v6610 = vpow.pop %v6609
  %v6611 = vadd.f32 %v6610, 1.0
  %v6612 = vrcp.pop %v6611
  %v6613 = vmul.f32 1.0, %v6612
  %6615 = vrot.lane.b32.xlu0 %v6558, 64
  %v6616 = vpop.permute.xlu0 %6615
  %v6618 = vmul.f32 %v6613, %v6616
  %6620 = vrot.lane.b32.xlu0 %v6618, 64
  %v6621 = vpop.permute.xlu0 %6620
  %v6623 = vadd.f32 %v6513, %v6621
  %v6624 = vtanh.pop %v6623
  %v6625 = vsub.f32 1.0, %v6613
  %6627 = vrot.lane.b32.xlu0 %v6624, 96
  %v6628 = vpop.permute.xlu0 %6627
  %v6630 = vmul.f32 %v6625, %v6628
  %v6631 = vmul.f32 %v6613, %v6476
  %v6632 = vadd.f32 %v6630, %v6631
  %6634 = vrot.lane.b32.xlu0 %v6602, 96
  %v6635 = vpop.permute.xlu0 %6634
  %v6637 = vadd.f32 %v6514, %v6635
  %v6638 = vxor.u32 %v6637, 2147483648
  %v6639 = vmul.f32 %v6638, 1.442695
  %v6640 = vpow.pop %v6639
  %v6641 = vadd.f32 %v6640, 1.0
  %v6642 = vrcp.pop %v6641
  %v6643 = vmul.f32 1.0, %v6642
  %v6644 = vadd.f32 %v6515, %v6635
  %v6645 = vxor.u32 %v6644, 2147483648
  %v6646 = vmul.f32 %v6645, 1.442695
  %v6647 = vpow.pop %v6646
  %v6648 = vadd.f32 %v6647, 1.0
  %v6649 = vrcp.pop %v6648
  %v6650 = vmul.f32 1.0, %v6649
  %6651 = vrot.lane.b32.xlu0 %v6602, 32
  %v6652 = vpop.permute.xlu0 %6651
  %v6654 = vmul.f32 %v6643, %v6652
  %6656 = vrot.lane.b32.xlu0 %v6654, 64
  %v6657 = vpop.permute.xlu0 %6656
  %v6659 = vadd.f32 %v6515, %v6657
  %v6660 = vtanh.pop %v6659
  %v6661 = vsub.f32 1.0, %v6650
  %6663 = vrot.lane.b32.xlu0 %v6660, 96
  %v6664 = vpop.permute.xlu0 %6663
  %v6666 = vmul.f32 %v6661, %v6664
  %v6667 = vmul.f32 %v6650, %v6512
  %v6668 = vadd.f32 %v6666, %v6667
  %v6669 = vld [vmem:[#allocation2 + $0x80] sm:$0xff]
  %v6670 = vld [vmem:[#allocation2 + $0x70] sm:$0xff]
  %v6671 = vld [vmem:[#allocation2 + $0x78] sm:$0xff]
  %v6672 = vpack.c.bf16 %v6632, %v6632
  %6674 = vrot.lane.b32.xlu0 %v6672, 96
  %v6675 = vpop.permute.xlu0 %6674
  %v6677 = vsel %vm1773, %v6675, 0
  %6679 = vmatprep.subr.bf16.mxu0 0
  %6680 = vmatpush1.bf16.msra.mxu0 %v5408
  %6681 = vmatprep.subr.bf16.mxu0 0
  %6682 = vmatpush1.bf16.msra.mxu0 %v5409
  %6683 = vmatprep.subr.bf16.mxu0 0
  %6684 = vmatpush1.bf16.msra.mxu0 0
  %6685 = vmatprep.subr.bf16.mxu0 0
  %6686 = vmatpush1.bf16.msra.mxu0 0
  %6687 = vmatprep.subr.bf16.mxu0 0
  %6688 = vmatpush1.bf16.msra.mxu0 0
  %6689 = vmatprep.subr.bf16.mxu0 0
  %6690 = vmatpush1.bf16.msra.mxu0 0
  %6691 = vmatprep.subr.bf16.mxu0 0
  %6692 = vmatpush1.bf16.msra.mxu0 0
  %6693 = vmatprep.subr.bf16.mxu0 0
  %6694 = vmatpush1.bf16.msra.mxu0 0
  %6695 = vmatprep.subr.bf16.mxu0 0
  %6696 = vmatpush1.bf16.msra.mxu0 0
  %6697 = vmatprep.subr.bf16.mxu0 0
  %6698 = vmatpush1.bf16.msra.mxu0 0
  %6699 = vmatprep.subr.bf16.mxu0 0
  %6700 = vmatpush1.bf16.msra.mxu0 0
  %6701 = vmatprep.subr.bf16.mxu0 0
  %6702 = vmatpush1.bf16.msra.mxu0 0
  %6703 = vmatprep.subr.bf16.mxu0 0
  %6704 = vmatpush1.bf16.msra.mxu0 0
  %6705 = vmatprep.subr.bf16.mxu0 0
  %6706 = vmatpush1.bf16.msra.mxu0 0
  %6707 = vmatprep.subr.bf16.mxu0 0
  %6708 = vmatpush1.bf16.msra.mxu0 0
  %6709 = vmatprep.subr.bf16.mxu0 0
  %6710 = vmatpush1.bf16.msra.mxu0 0
  %6711 = vmatprep.mubr.bf16.mxu0 0
  %6712 = vmatmul.mubr.bf16.gmra.mrb[0].mxu0 %v6677
  %v6713 = vpop.f32.mrb[0].mxu0
  %v6714 = vadd.f32 %v5398, %v6713
  %v6715 = vpop.f32.mrb[0].mxu0
  %v6716 = vpop.f32.mrb[0].mxu0
  %v6717 = vpop.f32.mrb[0].mxu0
  %6718 = vdwg.mxu0
  %v6719 = vpack.c.bf16 %v6668, %v6668
  %v6721 = vsel %vm1773, %v6719, 0
  %6723 = vmatprep.subr.bf16.mxu0 0
  %6724 = vmatpush1.bf16.msra.mxu0 %v5471
  %6725 = vmatprep.subr.bf16.mxu0 0
  %6726 = vmatpush1.bf16.msra.mxu0 %v5472
  %6727 = vmatprep.subr.bf16.mxu0 0
  %6728 = vmatpush1.bf16.msra.mxu0 0
  %6729 = vmatprep.subr.bf16.mxu0 0
  %6730 = vmatpush1.bf16.msra.mxu0 0
  %6731 = vmatprep.subr.bf16.mxu0 0
  %6732 = vmatpush1.bf16.msra.mxu0 0
  %6733 = vmatprep.subr.bf16.mxu0 0
  %6734 = vmatpush1.bf16.msra.mxu0 0
  %6735 = vmatprep.subr.bf16.mxu0 0
  %6736 = vmatpush1.bf16.msra.mxu0 0
  %6737 = vmatprep.subr.bf16.mxu0 0
  %6738 = vmatpush1.bf16.msra.mxu0 0
  %6739 = vmatprep.subr.bf16.mxu0 0
  %6740 = vmatpush1.bf16.msra.mxu0 0
  %6741 = vmatprep.subr.bf16.mxu0 0
  %6742 = vmatpush1.bf16.msra.mxu0 0
  %6743 = vmatprep.subr.bf16.mxu0 0
  %6744 = vmatpush1.bf16.msra.mxu0 0
  %6745 = vmatprep.subr.bf16.mxu0 0
  %6746 = vmatpush1.bf16.msra.mxu0 0
  %6747 = vmatprep.subr.bf16.mxu0 0
  %6748 = vmatpush1.bf16.msra.mxu0 0
  %6749 = vmatprep.subr.bf16.mxu0 0
  %6750 = vmatpush1.bf16.msra.mxu0 0
  %6751 = vmatprep.subr.bf16.mxu0 0
  %6752 = vmatpush1.bf16.msra.mxu0 0
  %6753 = vmatprep.subr.bf16.mxu0 0
  %6754 = vmatpush1.bf16.msra.mxu0 0
  %6755 = vmatprep.mubr.bf16.mxu0 0
  %6756 = vmatmul.mubr.bf16.gmra.mrb[0].mxu0 %v6721
  %v6757 = vpop.f32.mrb[0].mxu0
  %v6758 = vadd.f32 %v5461, %v6757
  %v6759 = vpop.f32.mrb[0].mxu0
  %v6760 = vpop.f32.mrb[0].mxu0
  %v6761 = vpop.f32.mrb[0].mxu0
  %6762 = vdwg.mxu0
  %v6763 = vadd.f32 %v6669, %v6714
  %v6764 = vxor.u32 %v6763, 2147483648
  %v6765 = vmul.f32 %v6764, 1.442695
  %v6766 = vpow.pop %v6765
  %v6767 = vadd.f32 %v6766, 1.0
  %v6768 = vrcp.pop %v6767
  %v6769 = vmul.f32 1.0, %v6768
  %6771 = vrot.lane.b32.xlu0 %v6714, 64
  %v6772 = vpop.permute.xlu0 %6771
  %v6774 = vmul.f32 %v6769, %v6772
  %6776 = vrot.lane.b32.xlu0 %v6774, 64
  %v6777 = vpop.permute.xlu0 %6776
  %v6779 = vadd.f32 %v6669, %v6777
  %v6780 = vtanh.pop %v6779
  %v6781 = vsub.f32 1.0, %v6769
  %6783 = vrot.lane.b32.xlu0 %v6780, 96
  %v6784 = vpop.permute.xlu0 %6783
  %v6786 = vmul.f32 %v6781, %v6784
  %v6787 = vmul.f32 %v6769, %v6632
  %v6788 = vadd.f32 %v6786, %v6787
  %6790 = vrot.lane.b32.xlu0 %v6758, 96
  %v6791 = vpop.permute.xlu0 %6790
  %v6793 = vadd.f32 %v6670, %v6791
  %v6794 = vxor.u32 %v6793, 2147483648
  %v6795 = vmul.f32 %v6794, 1.442695
  %v6796 = vpow.pop %v6795
  %v6797 = vadd.f32 %v6796, 1.0
  %v6798 = vrcp.pop %v6797
  %v6799 = vmul.f32 1.0, %v6798
  %v6800 = vadd.f32 %v6671, %v6791
  %v6801 = vxor.u32 %v6800, 2147483648
  %v6802 = vmul.f32 %v6801, 1.442695
  %v6803 = vpow.pop %v6802
  %v6804 = vadd.f32 %v6803, 1.0
  %v6805 = vrcp.pop %v6804
  %v6806 = vmul.f32 1.0, %v6805
  %6807 = vrot.lane.b32.xlu0 %v6758, 32
  %v6808 = vpop.permute.xlu0 %6807
  %v6810 = vmul.f32 %v6799, %v6808
  %6812 = vrot.lane.b32.xlu0 %v6810, 64
  %v6813 = vpop.permute.xlu0 %6812
  %v6815 = vadd.f32 %v6671, %v6813
  %v6816 = vtanh.pop %v6815
  %v6817 = vsub.f32 1.0, %v6806
  %6819 = vrot.lane.b32.xlu0 %v6816, 96
  %v6820 = vpop.permute.xlu0 %6819
  %v6822 = vmul.f32 %v6817, %v6820
  %v6823 = vmul.f32 %v6806, %v6668
  %v6824 = vadd.f32 %v6822, %v6823
  %v6825 = vld [vmem:[#allocation2 + $0x90] sm:$0xff]
  %v6826 = vld [vmem:[#allocation2 + $0x60] sm:$0xff]
  %v6827 = vld [vmem:[#allocation2 + $0x68] sm:$0xff]
  %v6828 = vpack.c.bf16 %v6788, %v6788
  %6830 = vrot.lane.b32.xlu0 %v6828, 96
  %v6831 = vpop.permute.xlu0 %6830
  %v6833 = vsel %vm1773, %v6831, 0
  %6835 = vmatprep.subr.bf16.mxu0 0
  %6836 = vmatpush1.bf16.msra.mxu0 %v5408
  %6837 = vmatprep.subr.bf16.mxu0 0
  %6838 = vmatpush1.bf16.msra.mxu0 %v5409
  %6839 = vmatprep.subr.bf16.mxu0 0
  %6840 = vmatpush1.bf16.msra.mxu0 0
  %6841 = vmatprep.subr.bf16.mxu0 0
  %6842 = vmatpush1.bf16.msra.mxu0 0
  %6843 = vmatprep.subr.bf16.mxu0 0
  %6844 = vmatpush1.bf16.msra.mxu0 0
  %6845 = vmatprep.subr.bf16.mxu0 0
  %6846 = vmatpush1.bf16.msra.mxu0 0
  %6847 = vmatprep.subr.bf16.mxu0 0
  %6848 = vmatpush1.bf16.msra.mxu0 0
  %6849 = vmatprep.subr.bf16.mxu0 0
  %6850 = vmatpush1.bf16.msra.mxu0 0
  %6851 = vmatprep.subr.bf16.mxu0 0
  %6852 = vmatpush1.bf16.msra.mxu0 0
  %6853 = vmatprep.subr.bf16.mxu0 0
  %6854 = vmatpush1.bf16.msra.mxu0 0
  %6855 = vmatprep.subr.bf16.mxu0 0
  %6856 = vmatpush1.bf16.msra.mxu0 0
  %6857 = vmatprep.subr.bf16.mxu0 0
  %6858 = vmatpush1.bf16.msra.mxu0 0
  %6859 = vmatprep.subr.bf16.mxu0 0
  %6860 = vmatpush1.bf16.msra.mxu0 0
  %6861 = vmatprep.subr.bf16.mxu0 0
  %6862 = vmatpush1.bf16.msra.mxu0 0
  %6863 = vmatprep.subr.bf16.mxu0 0
  %6864 = vmatpush1.bf16.msra.mxu0 0
  %6865 = vmatprep.subr.bf16.mxu0 0
  %6866 = vmatpush1.bf16.msra.mxu0 0
  %6867 = vmatprep.mubr.bf16.mxu0 0
  %6868 = vmatmul.mubr.bf16.gmra.mrb[0].mxu0 %v6833
  %v6869 = vpop.f32.mrb[0].mxu0
  %v6870 = vadd.f32 %v5398, %v6869
  %v6871 = vpop.f32.mrb[0].mxu0
  %v6872 = vpop.f32.mrb[0].mxu0
  %v6873 = vpop.f32.mrb[0].mxu0
  %6874 = vdwg.mxu0
  %v6875 = vpack.c.bf16 %v6824, %v6824
  %v6877 = vsel %vm1773, %v6875, 0
  %6879 = vmatprep.subr.bf16.mxu0 0
  %6880 = vmatpush1.bf16.msra.mxu0 %v5471
  %6881 = vmatprep.subr.bf16.mxu0 0
  %6882 = vmatpush1.bf16.msra.mxu0 %v5472
  %6883 = vmatprep.subr.bf16.mxu0 0
  %6884 = vmatpush1.bf16.msra.mxu0 0
  %6885 = vmatprep.subr.bf16.mxu0 0
  %6886 = vmatpush1.bf16.msra.mxu0 0
  %6887 = vmatprep.subr.bf16.mxu0 0
  %6888 = vmatpush1.bf16.msra.mxu0 0
  %6889 = vmatprep.subr.bf16.mxu0 0
  %6890 = vmatpush1.bf16.msra.mxu0 0
  %6891 = vmatprep.subr.bf16.mxu0 0
  %6892 = vmatpush1.bf16.msra.mxu0 0
  %6893 = vmatprep.subr.bf16.mxu0 0
  %6894 = vmatpush1.bf16.msra.mxu0 0
  %6895 = vmatprep.subr.bf16.mxu0 0
  %6896 = vmatpush1.bf16.msra.mxu0 0
  %6897 = vmatprep.subr.bf16.mxu0 0
  %6898 = vmatpush1.bf16.msra.mxu0 0
  %6899 = vmatprep.subr.bf16.mxu0 0
  %6900 = vmatpush1.bf16.msra.mxu0 0
  %6901 = vmatprep.subr.bf16.mxu0 0
  %6902 = vmatpush1.bf16.msra.mxu0 0
  %6903 = vmatprep.subr.bf16.mxu0 0
  %6904 = vmatpush1.bf16.msra.mxu0 0
  %6905 = vmatprep.subr.bf16.mxu0 0
  %6906 = vmatpush1.bf16.msra.mxu0 0
  %6907 = vmatprep.subr.bf16.mxu0 0
  %6908 = vmatpush1.bf16.msra.mxu0 0
  %6909 = vmatprep.subr.bf16.mxu0 0
  %6910 = vmatpush1.bf16.msra.mxu0 0
  %6911 = vmatprep.mubr.bf16.mxu0 0
  %6912 = vmatmul.mubr.bf16.gmra.mrb[0].mxu0 %v6877
  %v6913 = vpop.f32.mrb[0].mxu0
  %v6914 = vadd.f32 %v5461, %v6913
  %v6915 = vpop.f32.mrb[0].mxu0
  %v6916 = vpop.f32.mrb[0].mxu0
  %v6917 = vpop.f32.mrb[0].mxu0
  %6918 = vdwg.mxu0
  %v6919 = vadd.f32 %v6825, %v6870
  %v6920 = vxor.u32 %v6919, 2147483648
  %v6921 = vmul.f32 %v6920, 1.442695
  %v6922 = vpow.pop %v6921
  %v6923 = vadd.f32 %v6922, 1.0
  %v6924 = vrcp.pop %v6923
  %v6925 = vmul.f32 1.0, %v6924
  %6927 = vrot.lane.b32.xlu0 %v6870, 64
  %v6928 = vpop.permute.xlu0 %6927
  %v6930 = vmul.f32 %v6925, %v6928
  %6932 = vrot.lane.b32.xlu0 %v6930, 64
  %v6933 = vpop.permute.xlu0 %6932
  %v6935 = vadd.f32 %v6825, %v6933
  %v6936 = vtanh.pop %v6935
  %v6937 = vsub.f32 1.0, %v6925
  %6939 = vrot.lane.b32.xlu0 %v6936, 96
  %v6940 = vpop.permute.xlu0 %6939
  %v6942 = vmul.f32 %v6937, %v6940
  %v6943 = vmul.f32 %v6925, %v6788
  %v6944 = vadd.f32 %v6942, %v6943
  %6946 = vrot.lane.b32.xlu0 %v6914, 96
  %v6947 = vpop.permute.xlu0 %6946
  %v6949 = vadd.f32 %v6826, %v6947
  %v6950 = vxor.u32 %v6949, 2147483648
  %v6951 = vmul.f32 %v6950, 1.442695
  %v6952 = vpow.pop %v6951
  %v6953 = vadd.f32 %v6952, 1.0
  %v6954 = vrcp.pop %v6953
  %v6955 = vmul.f32 1.0, %v6954
  %v6956 = vadd.f32 %v6827, %v6947
  %v6957 = vxor.u32 %v6956, 2147483648
  %v6958 = vmul.f32 %v6957, 1.442695
  %v6959 = vpow.pop %v6958
  %v6960 = vadd.f32 %v6959, 1.0
  %v6961 = vrcp.pop %v6960
  %v6962 = vmul.f32 1.0, %v6961
  %6963 = vrot.lane.b32.xlu0 %v6914, 32
  %v6964 = vpop.permute.xlu0 %6963
  %v6966 = vmul.f32 %v6955, %v6964
  %6968 = vrot.lane.b32.xlu0 %v6966, 64
  %v6969 = vpop.permute.xlu0 %6968
  %v6971 = vadd.f32 %v6827, %v6969
  %v6972 = vtanh.pop %v6971
  %v6973 = vsub.f32 1.0, %v6962
  %6975 = vrot.lane.b32.xlu0 %v6972, 96
  %v6976 = vpop.permute.xlu0 %6975
  %v6978 = vmul.f32 %v6973, %v6976
  %v6979 = vmul.f32 %v6962, %v6824
  %v6980 = vadd.f32 %v6978, %v6979
  %v6981 = vld [vmem:[#allocation2 + $0xa0] sm:$0xff]
  %v6982 = vld [vmem:[#allocation2 + $0x50] sm:$0xff]
  %v6983 = vld [vmem:[#allocation2 + $0x58] sm:$0xff]
  %v6984 = vpack.c.bf16 %v6944, %v6944
  %6986 = vrot.lane.b32.xlu0 %v6984, 96
  %v6987 = vpop.permute.xlu0 %6986
  %v6989 = vsel %vm1773, %v6987, 0
  %6991 = vmatprep.subr.bf16.mxu0 0
  %6992 = vmatpush1.bf16.msra.mxu0 %v5408
  %6993 = vmatprep.subr.bf16.mxu0 0
  %6994 = vmatpush1.bf16.msra.mxu0 %v5409
  %6995 = vmatprep.subr.bf16.mxu0 0
  %6996 = vmatpush1.bf16.msra.mxu0 0
  %6997 = vmatprep.subr.bf16.mxu0 0
  %6998 = vmatpush1.bf16.msra.mxu0 0
  %6999 = vmatprep.subr.bf16.mxu0 0
  %7000 = vmatpush1.bf16.msra.mxu0 0
  %7001 = vmatprep.subr.bf16.mxu0 0
  %7002 = vmatpush1.bf16.msra.mxu0 0
  %7003 = vmatprep.subr.bf16.mxu0 0
  %7004 = vmatpush1.bf16.msra.mxu0 0
  %7005 = vmatprep.subr.bf16.mxu0 0
  %7006 = vmatpush1.bf16.msra.mxu0 0
  %7007 = vmatprep.subr.bf16.mxu0 0
  %7008 = vmatpush1.bf16.msra.mxu0 0
  %7009 = vmatprep.subr.bf16.mxu0 0
  %7010 = vmatpush1.bf16.msra.mxu0 0
  %7011 = vmatprep.subr.bf16.mxu0 0
  %7012 = vmatpush1.bf16.msra.mxu0 0
  %7013 = vmatprep.subr.bf16.mxu0 0
  %7014 = vmatpush1.bf16.msra.mxu0 0
  %7015 = vmatprep.subr.bf16.mxu0 0
  %7016 = vmatpush1.bf16.msra.mxu0 0
  %7017 = vmatprep.subr.bf16.mxu0 0
  %7018 = vmatpush1.bf16.msra.mxu0 0
  %7019 = vmatprep.subr.bf16.mxu0 0
  %7020 = vmatpush1.bf16.msra.mxu0 0
  %7021 = vmatprep.subr.bf16.mxu0 0
  %7022 = vmatpush1.bf16.msra.mxu0 0
  %7023 = vmatprep.mubr.bf16.mxu0 0
  %7024 = vmatmul.mubr.bf16.gmra.mrb[0].mxu0 %v6989
  %v7025 = vpop.f32.mrb[0].mxu0
  %v7026 = vadd.f32 %v5398, %v7025
  %v7027 = vpop.f32.mrb[0].mxu0
  %v7028 = vpop.f32.mrb[0].mxu0
  %v7029 = vpop.f32.mrb[0].mxu0
  %7030 = vdwg.mxu0
  %v7031 = vpack.c.bf16 %v6980, %v6980
  %v7033 = vsel %vm1773, %v7031, 0
  %7035 = vmatprep.subr.bf16.mxu0 0
  %7036 = vmatpush1.bf16.msra.mxu0 %v5471
  %7037 = vmatprep.subr.bf16.mxu0 0
  %7038 = vmatpush1.bf16.msra.mxu0 %v5472
  %7039 = vmatprep.subr.bf16.mxu0 0
  %7040 = vmatpush1.bf16.msra.mxu0 0
  %7041 = vmatprep.subr.bf16.mxu0 0
  %7042 = vmatpush1.bf16.msra.mxu0 0
  %7043 = vmatprep.subr.bf16.mxu0 0
  %7044 = vmatpush1.bf16.msra.mxu0 0
  %7045 = vmatprep.subr.bf16.mxu0 0
  %7046 = vmatpush1.bf16.msra.mxu0 0
  %7047 = vmatprep.subr.bf16.mxu0 0
  %7048 = vmatpush1.bf16.msra.mxu0 0
  %7049 = vmatprep.subr.bf16.mxu0 0
  %7050 = vmatpush1.bf16.msra.mxu0 0
  %7051 = vmatprep.subr.bf16.mxu0 0
  %7052 = vmatpush1.bf16.msra.mxu0 0
  %7053 = vmatprep.subr.bf16.mxu0 0
  %7054 = vmatpush1.bf16.msra.mxu0 0
  %7055 = vmatprep.subr.bf16.mxu0 0
  %7056 = vmatpush1.bf16.msra.mxu0 0
  %7057 = vmatprep.subr.bf16.mxu0 0
  %7058 = vmatpush1.bf16.msra.mxu0 0
  %7059 = vmatprep.subr.bf16.mxu0 0
  %7060 = vmatpush1.bf16.msra.mxu0 0
  %7061 = vmatprep.subr.bf16.mxu0 0
  %7062 = vmatpush1.bf16.msra.mxu0 0
  %7063 = vmatprep.subr.bf16.mxu0 0
  %7064 = vmatpush1.bf16.msra.mxu0 0
  %7065 = vmatprep.subr.bf16.mxu0 0
  %7066 = vmatpush1.bf16.msra.mxu0 0
  %7067 = vmatprep.mubr.bf16.mxu0 0
  %7068 = vmatmul.mubr.bf16.gmra.mrb[0].mxu0 %v7033
  %v7069 = vpop.f32.mrb[0].mxu0
  %v7070 = vadd.f32 %v5461, %v7069
  %v7071 = vpop.f32.mrb[0].mxu0
  %v7072 = vpop.f32.mrb[0].mxu0
  %v7073 = vpop.f32.mrb[0].mxu0
  %7074 = vdwg.mxu0
  %v7075 = vadd.f32 %v6981, %v7026
  %v7076 = vxor.u32 %v7075, 2147483648
  %v7077 = vmul.f32 %v7076, 1.442695
  %v7078 = vpow.pop %v7077
  %v7079 = vadd.f32 %v7078, 1.0
  %v7080 = vrcp.pop %v7079
  %v7081 = vmul.f32 1.0, %v7080
  %7083 = vrot.lane.b32.xlu0 %v7026, 64
  %v7084 = vpop.permute.xlu0 %7083
  %v7086 = vmul.f32 %v7081, %v7084
  %7088 = vrot.lane.b32.xlu0 %v7086, 64
  %v7089 = vpop.permute.xlu0 %7088
  %v7091 = vadd.f32 %v6981, %v7089
  %v7092 = vtanh.pop %v7091
  %v7093 = vsub.f32 1.0, %v7081
  %7095 = vrot.lane.b32.xlu0 %v7092, 96
  %v7096 = vpop.permute.xlu0 %7095
  %v7098 = vmul.f32 %v7093, %v7096
  %v7099 = vmul.f32 %v7081, %v6944
  %v7100 = vadd.f32 %v7098, %v7099
  %7102 = vrot.lane.b32.xlu0 %v7070, 96
  %v7103 = vpop.permute.xlu0 %7102
  %v7105 = vadd.f32 %v6982, %v7103
  %v7106 = vxor.u32 %v7105, 2147483648
  %v7107 = vmul.f32 %v7106, 1.442695
  %v7108 = vpow.pop %v7107
  %v7109 = vadd.f32 %v7108, 1.0
  %v7110 = vrcp.pop %v7109
  %v7111 = vmul.f32 1.0, %v7110
  %v7112 = vadd.f32 %v6983, %v7103
  %v7113 = vxor.u32 %v7112, 2147483648
  %v7114 = vmul.f32 %v7113, 1.442695
  %v7115 = vpow.pop %v7114
  %v7116 = vadd.f32 %v7115, 1.0
  %v7117 = vrcp.pop %v7116
  %v7118 = vmul.f32 1.0, %v7117
  %7119 = vrot.lane.b32.xlu0 %v7070, 32
  %v7120 = vpop.permute.xlu0 %7119
  %v7122 = vmul.f32 %v7111, %v7120
  %7124 = vrot.lane.b32.xlu0 %v7122, 64
  %v7125 = vpop.permute.xlu0 %7124
  %v7127 = vadd.f32 %v6983, %v7125
  %v7128 = vtanh.pop %v7127
  %v7129 = vsub.f32 1.0, %v7118
  %7131 = vrot.lane.b32.xlu0 %v7128, 96
  %v7132 = vpop.permute.xlu0 %7131
  %v7134 = vmul.f32 %v7129, %v7132
  %v7135 = vmul.f32 %v7118, %v6980
  %v7136 = vadd.f32 %v7134, %v7135
  %v7137 = vld [vmem:[#allocation2 + $0xb0] sm:$0xff]
  %v7138 = vld [vmem:[#allocation2 + $0x40] sm:$0xff]
  %v7139 = vld [vmem:[#allocation2 + $0x48] sm:$0xff]
  %v7140 = vpack.c.bf16 %v7100, %v7100
  %7142 = vrot.lane.b32.xlu0 %v7140, 96
  %v7143 = vpop.permute.xlu0 %7142
  %v7145 = vsel %vm1773, %v7143, 0
  %7147 = vmatprep.subr.bf16.mxu0 0
  %7148 = vmatpush1.bf16.msra.mxu0 %v5408
  %7149 = vmatprep.subr.bf16.mxu0 0
  %7150 = vmatpush1.bf16.msra.mxu0 %v5409
  %7151 = vmatprep.subr.bf16.mxu0 0
  %7152 = vmatpush1.bf16.msra.mxu0 0
  %7153 = vmatprep.subr.bf16.mxu0 0
  %7154 = vmatpush1.bf16.msra.mxu0 0
  %7155 = vmatprep.subr.bf16.mxu0 0
  %7156 = vmatpush1.bf16.msra.mxu0 0
  %7157 = vmatprep.subr.bf16.mxu0 0
  %7158 = vmatpush1.bf16.msra.mxu0 0
  %7159 = vmatprep.subr.bf16.mxu0 0
  %7160 = vmatpush1.bf16.msra.mxu0 0
  %7161 = vmatprep.subr.bf16.mxu0 0
  %7162 = vmatpush1.bf16.msra.mxu0 0
  %7163 = vmatprep.subr.bf16.mxu0 0
  %7164 = vmatpush1.bf16.msra.mxu0 0
  %7165 = vmatprep.subr.bf16.mxu0 0
  %7166 = vmatpush1.bf16.msra.mxu0 0
  %7167 = vmatprep.subr.bf16.mxu0 0
  %7168 = vmatpush1.bf16.msra.mxu0 0
  %7169 = vmatprep.subr.bf16.mxu0 0
  %7170 = vmatpush1.bf16.msra.mxu0 0
  %7171 = vmatprep.subr.bf16.mxu0 0
  %7172 = vmatpush1.bf16.msra.mxu0 0
  %7173 = vmatprep.subr.bf16.mxu0 0
  %7174 = vmatpush1.bf16.msra.mxu0 0
  %7175 = vmatprep.subr.bf16.mxu0 0
  %7176 = vmatpush1.bf16.msra.mxu0 0
  %7177 = vmatprep.subr.bf16.mxu0 0
  %7178 = vmatpush1.bf16.msra.mxu0 0
  %7179 = vmatprep.mubr.bf16.mxu0 0
  %7180 = vmatmul.mubr.bf16.gmra.mrb[0].mxu0 %v7145
  %v7181 = vpop.f32.mrb[0].mxu0
  %v7182 = vadd.f32 %v5398, %v7181
  %v7183 = vpop.f32.mrb[0].mxu0
  %v7184 = vpop.f32.mrb[0].mxu0
  %v7185 = vpop.f32.mrb[0].mxu0
  %7186 = vdwg.mxu0
  %v7187 = vpack.c.bf16 %v7136, %v7136
  %v7189 = vsel %vm1773, %v7187, 0
  %7191 = vmatprep.subr.bf16.mxu0 0
  %7192 = vmatpush1.bf16.msra.mxu0 %v5471
  %7193 = vmatprep.subr.bf16.mxu0 0
  %7194 = vmatpush1.bf16.msra.mxu0 %v5472
  %7195 = vmatprep.subr.bf16.mxu0 0
  %7196 = vmatpush1.bf16.msra.mxu0 0
  %7197 = vmatprep.subr.bf16.mxu0 0
  %7198 = vmatpush1.bf16.msra.mxu0 0
  %7199 = vmatprep.subr.bf16.mxu0 0
  %7200 = vmatpush1.bf16.msra.mxu0 0
  %7201 = vmatprep.subr.bf16.mxu0 0
  %7202 = vmatpush1.bf16.msra.mxu0 0
  %7203 = vmatprep.subr.bf16.mxu0 0
  %7204 = vmatpush1.bf16.msra.mxu0 0
  %7205 = vmatprep.subr.bf16.mxu0 0
  %7206 = vmatpush1.bf16.msra.mxu0 0
  %7207 = vmatprep.subr.bf16.mxu0 0
  %7208 = vmatpush1.bf16.msra.mxu0 0
  %7209 = vmatprep.subr.bf16.mxu0 0
  %7210 = vmatpush1.bf16.msra.mxu0 0
  %7211 = vmatprep.subr.bf16.mxu0 0
  %7212 = vmatpush1.bf16.msra.mxu0 0
  %7213 = vmatprep.subr.bf16.mxu0 0
  %7214 = vmatpush1.bf16.msra.mxu0 0
  %7215 = vmatprep.subr.bf16.mxu0 0
  %7216 = vmatpush1.bf16.msra.mxu0 0
  %7217 = vmatprep.subr.bf16.mxu0 0
  %7218 = vmatpush1.bf16.msra.mxu0 0
  %7219 = vmatprep.subr.bf16.mxu0 0
  %7220 = vmatpush1.bf16.msra.mxu0 0
  %7221 = vmatprep.subr.bf16.mxu0 0
  %7222 = vmatpush1.bf16.msra.mxu0 0
  %7223 = vmatprep.mubr.bf16.mxu0 0
  %7224 = vmatmul.mubr.bf16.gmra.mrb[0].mxu0 %v7189
  %v7225 = vpop.f32.mrb[0].mxu0
  %v7226 = vadd.f32 %v5461, %v7225
  %v7227 = vpop.f32.mrb[0].mxu0
  %v7228 = vpop.f32.mrb[0].mxu0
  %v7229 = vpop.f32.mrb[0].mxu0
  %7230 = vdwg.mxu0
  %v7231 = vadd.f32 %v7137, %v7182
  %v7232 = vxor.u32 %v7231, 2147483648
  %v7233 = vmul.f32 %v7232, 1.442695
  %v7234 = vpow.pop %v7233
  %v7235 = vadd.f32 %v7234, 1.0
  %v7236 = vrcp.pop %v7235
  %v7237 = vmul.f32 1.0, %v7236
  %7239 = vrot.lane.b32.xlu0 %v7182, 64
  %v7240 = vpop.permute.xlu0 %7239
  %v7242 = vmul.f32 %v7237, %v7240
  %7244 = vrot.lane.b32.xlu0 %v7242, 64
  %v7245 = vpop.permute.xlu0 %7244
  %v7247 = vadd.f32 %v7137, %v7245
  %v7248 = vtanh.pop %v7247
  %v7249 = vsub.f32 1.0, %v7237
  %7251 = vrot.lane.b32.xlu0 %v7248, 96
  %v7252 = vpop.permute.xlu0 %7251
  %v7254 = vmul.f32 %v7249, %v7252
  %v7255 = vmul.f32 %v7237, %v7100
  %v7256 = vadd.f32 %v7254, %v7255
  %7258 = vrot.lane.b32.xlu0 %v7226, 96
  %v7259 = vpop.permute.xlu0 %7258
  %v7261 = vadd.f32 %v7138, %v7259
  %v7262 = vxor.u32 %v7261, 2147483648
  %v7263 = vmul.f32 %v7262, 1.442695
  %v7264 = vpow.pop %v7263
  %v7265 = vadd.f32 %v7264, 1.0
  %v7266 = vrcp.pop %v7265
  %v7267 = vmul.f32 1.0, %v7266
  %v7268 = vadd.f32 %v7139, %v7259
  %v7269 = vxor.u32 %v7268, 2147483648
  %v7270 = vmul.f32 %v7269, 1.442695
  %v7271 = vpow.pop %v7270
  %v7272 = vadd.f32 %v7271, 1.0
  %v7273 = vrcp.pop %v7272
  %v7274 = vmul.f32 1.0, %v7273
  %7275 = vrot.lane.b32.xlu0 %v7226, 32
  %v7276 = vpop.permute.xlu0 %7275
  %v7278 = vmul.f32 %v7267, %v7276
  %7280 = vrot.lane.b32.xlu0 %v7278, 64
  %v7281 = vpop.permute.xlu0 %7280
  %v7283 = vadd.f32 %v7139, %v7281
  %v7284 = vtanh.pop %v7283
  %v7285 = vsub.f32 1.0, %v7274
  %7287 = vrot.lane.b32.xlu0 %v7284, 96
  %v7288 = vpop.permute.xlu0 %7287
  %v7290 = vmul.f32 %v7285, %v7288
  %v7291 = vmul.f32 %v7274, %v7136
  %v7292 = vadd.f32 %v7290, %v7291
  %v7293 = vld [vmem:[#allocation2 + $0xc0] sm:$0xff]
  %v7294 = vld [vmem:[#allocation2 + $0x30] sm:$0xff]
  %v7295 = vld [vmem:[#allocation2 + $0x38] sm:$0xff]
  %v7296 = vpack.c.bf16 %v7256, %v7256
  %7298 = vrot.lane.b32.xlu0 %v7296, 96
  %v7299 = vpop.permute.xlu0 %7298
  %v7301 = vsel %vm1773, %v7299, 0
  %7303 = vmatprep.subr.bf16.mxu0 0
  %7304 = vmatpush1.bf16.msra.mxu0 %v5408
  %7305 = vmatprep.subr.bf16.mxu0 0
  %7306 = vmatpush1.bf16.msra.mxu0 %v5409
  %7307 = vmatprep.subr.bf16.mxu0 0
  %7308 = vmatpush1.bf16.msra.mxu0 0
  %7309 = vmatprep.subr.bf16.mxu0 0
  %7310 = vmatpush1.bf16.msra.mxu0 0
  %7311 = vmatprep.subr.bf16.mxu0 0
  %7312 = vmatpush1.bf16.msra.mxu0 0
  %7313 = vmatprep.subr.bf16.mxu0 0
  %7314 = vmatpush1.bf16.msra.mxu0 0
  %7315 = vmatprep.subr.bf16.mxu0 0
  %7316 = vmatpush1.bf16.msra.mxu0 0
  %7317 = vmatprep.subr.bf16.mxu0 0
  %7318 = vmatpush1.bf16.msra.mxu0 0
  %7319 = vmatprep.subr.bf16.mxu0 0
  %7320 = vmatpush1.bf16.msra.mxu0 0
  %7321 = vmatprep.subr.bf16.mxu0 0
  %7322 = vmatpush1.bf16.msra.mxu0 0
  %7323 = vmatprep.subr.bf16.mxu0 0
  %7324 = vmatpush1.bf16.msra.mxu0 0
  %7325 = vmatprep.subr.bf16.mxu0 0
  %7326 = vmatpush1.bf16.msra.mxu0 0
  %7327 = vmatprep.subr.bf16.mxu0 0
  %7328 = vmatpush1.bf16.msra.mxu0 0
  %7329 = vmatprep.subr.bf16.mxu0 0
  %7330 = vmatpush1.bf16.msra.mxu0 0
  %7331 = vmatprep.subr.bf16.mxu0 0
  %7332 = vmatpush1.bf16.msra.mxu0 0
  %7333 = vmatprep.subr.bf16.mxu0 0
  %7334 = vmatpush1.bf16.msra.mxu0 0
  %7335 = vmatprep.mubr.bf16.mxu0 0
  %7336 = vmatmul.mubr.bf16.gmra.mrb[0].mxu0 %v7301
  %v7337 = vpop.f32.mrb[0].mxu0
  %v7338 = vadd.f32 %v5398, %v7337
  %v7339 = vpop.f32.mrb[0].mxu0
  %v7340 = vpop.f32.mrb[0].mxu0
  %v7341 = vpop.f32.mrb[0].mxu0
  %7342 = vdwg.mxu0
  %v7343 = vpack.c.bf16 %v7292, %v7292
  %v7345 = vsel %vm1773, %v7343, 0
  %7347 = vmatprep.subr.bf16.mxu0 0
  %7348 = vmatpush1.bf16.msra.mxu0 %v5471
  %7349 = vmatprep.subr.bf16.mxu0 0
  %7350 = vmatpush1.bf16.msra.mxu0 %v5472
  %7351 = vmatprep.subr.bf16.mxu0 0
  %7352 = vmatpush1.bf16.msra.mxu0 0
  %7353 = vmatprep.subr.bf16.mxu0 0
  %7354 = vmatpush1.bf16.msra.mxu0 0
  %7355 = vmatprep.subr.bf16.mxu0 0
  %7356 = vmatpush1.bf16.msra.mxu0 0
  %7357 = vmatprep.subr.bf16.mxu0 0
  %7358 = vmatpush1.bf16.msra.mxu0 0
  %7359 = vmatprep.subr.bf16.mxu0 0
  %7360 = vmatpush1.bf16.msra.mxu0 0
  %7361 = vmatprep.subr.bf16.mxu0 0
  %7362 = vmatpush1.bf16.msra.mxu0 0
  %7363 = vmatprep.subr.bf16.mxu0 0
  %7364 = vmatpush1.bf16.msra.mxu0 0
  %7365 = vmatprep.subr.bf16.mxu0 0
  %7366 = vmatpush1.bf16.msra.mxu0 0
  %7367 = vmatprep.subr.bf16.mxu0 0
  %7368 = vmatpush1.bf16.msra.mxu0 0
  %7369 = vmatprep.subr.bf16.mxu0 0
  %7370 = vmatpush1.bf16.msra.mxu0 0
  %7371 = vmatprep.subr.bf16.mxu0 0
  %7372 = vmatpush1.bf16.msra.mxu0 0
  %7373 = vmatprep.subr.bf16.mxu0 0
  %7374 = vmatpush1.bf16.msra.mxu0 0
  %7375 = vmatprep.subr.bf16.mxu0 0
  %7376 = vmatpush1.bf16.msra.mxu0 0
  %7377 = vmatprep.subr.bf16.mxu0 0
  %7378 = vmatpush1.bf16.msra.mxu0 0
  %7379 = vmatprep.mubr.bf16.mxu0 0
  %7380 = vmatmul.mubr.bf16.gmra.mrb[0].mxu0 %v7345
  %v7381 = vpop.f32.mrb[0].mxu0
  %v7382 = vadd.f32 %v5461, %v7381
  %v7383 = vpop.f32.mrb[0].mxu0
  %v7384 = vpop.f32.mrb[0].mxu0
  %v7385 = vpop.f32.mrb[0].mxu0
  %7386 = vdwg.mxu0
  %v7387 = vadd.f32 %v7293, %v7338
  %v7388 = vxor.u32 %v7387, 2147483648
  %v7389 = vmul.f32 %v7388, 1.442695
  %v7390 = vpow.pop %v7389
  %v7391 = vadd.f32 %v7390, 1.0
  %v7392 = vrcp.pop %v7391
  %v7393 = vmul.f32 1.0, %v7392
  %7395 = vrot.lane.b32.xlu0 %v7338, 64
  %v7396 = vpop.permute.xlu0 %7395
  %v7398 = vmul.f32 %v7393, %v7396
  %7400 = vrot.lane.b32.xlu0 %v7398, 64
  %v7401 = vpop.permute.xlu0 %7400
  %v7403 = vadd.f32 %v7293, %v7401
  %v7404 = vtanh.pop %v7403
  %v7405 = vsub.f32 1.0, %v7393
  %7407 = vrot.lane.b32.xlu0 %v7404, 96
  %v7408 = vpop.permute.xlu0 %7407
  %v7410 = vmul.f32 %v7405, %v7408
  %v7411 = vmul.f32 %v7393, %v7256
  %v7412 = vadd.f32 %v7410, %v7411
  %7414 = vrot.lane.b32.xlu0 %v7382, 96
  %v7415 = vpop.permute.xlu0 %7414
  %v7417 = vadd.f32 %v7294, %v7415
  %v7418 = vxor.u32 %v7417, 2147483648
  %v7419 = vmul.f32 %v7418, 1.442695
  %v7420 = vpow.pop %v7419
  %v7421 = vadd.f32 %v7420, 1.0
  %v7422 = vrcp.pop %v7421
  %v7423 = vmul.f32 1.0, %v7422
  %v7424 = vadd.f32 %v7295, %v7415
  %v7425 = vxor.u32 %v7424, 2147483648
  %v7426 = vmul.f32 %v7425, 1.442695
  %v7427 = vpow.pop %v7426
  %v7428 = vadd.f32 %v7427, 1.0
  %v7429 = vrcp.pop %v7428
  %v7430 = vmul.f32 1.0, %v7429
  %7431 = vrot.lane.b32.xlu0 %v7382, 32
  %v7432 = vpop.permute.xlu0 %7431
  %v7434 = vmul.f32 %v7423, %v7432
  %7436 = vrot.lane.b32.xlu0 %v7434, 64
  %v7437 = vpop.permute.xlu0 %7436
  %v7439 = vadd.f32 %v7295, %v7437
  %v7440 = vtanh.pop %v7439
  %v7441 = vsub.f32 1.0, %v7430
  %7443 = vrot.lane.b32.xlu0 %v7440, 96
  %v7444 = vpop.permute.xlu0 %7443
  %v7446 = vmul.f32 %v7441, %v7444
  %v7447 = vmul.f32 %v7430, %v7292
  %v7448 = vadd.f32 %v7446, %v7447
  %v7449 = vld [vmem:[#allocation2 + $0xd0] sm:$0xff]
  %v7450 = vld [vmem:[#allocation2 + $0x20] sm:$0xff]
  %v7451 = vld [vmem:[#allocation2 + $0x28] sm:$0xff]
  %v7452 = vpack.c.bf16 %v7412, %v7412
  %7454 = vrot.lane.b32.xlu0 %v7452, 96
  %v7455 = vpop.permute.xlu0 %7454
  %v7457 = vsel %vm1773, %v7455, 0
  %7459 = vmatprep.subr.bf16.mxu0 0
  %7460 = vmatpush1.bf16.msra.mxu0 %v5408
  %7461 = vmatprep.subr.bf16.mxu0 0
  %7462 = vmatpush1.bf16.msra.mxu0 %v5409
  %7463 = vmatprep.subr.bf16.mxu0 0
  %7464 = vmatpush1.bf16.msra.mxu0 0
  %7465 = vmatprep.subr.bf16.mxu0 0
  %7466 = vmatpush1.bf16.msra.mxu0 0
  %7467 = vmatprep.subr.bf16.mxu0 0
  %7468 = vmatpush1.bf16.msra.mxu0 0
  %7469 = vmatprep.subr.bf16.mxu0 0
  %7470 = vmatpush1.bf16.msra.mxu0 0
  %7471 = vmatprep.subr.bf16.mxu0 0
  %7472 = vmatpush1.bf16.msra.mxu0 0
  %7473 = vmatprep.subr.bf16.mxu0 0
  %7474 = vmatpush1.bf16.msra.mxu0 0
  %7475 = vmatprep.subr.bf16.mxu0 0
  %7476 = vmatpush1.bf16.msra.mxu0 0
  %7477 = vmatprep.subr.bf16.mxu0 0
  %7478 = vmatpush1.bf16.msra.mxu0 0
  %7479 = vmatprep.subr.bf16.mxu0 0
  %7480 = vmatpush1.bf16.msra.mxu0 0
  %7481 = vmatprep.subr.bf16.mxu0 0
  %7482 = vmatpush1.bf16.msra.mxu0 0
  %7483 = vmatprep.subr.bf16.mxu0 0
  %7484 = vmatpush1.bf16.msra.mxu0 0
  %7485 = vmatprep.subr.bf16.mxu0 0
  %7486 = vmatpush1.bf16.msra.mxu0 0
  %7487 = vmatprep.subr.bf16.mxu0 0
  %7488 = vmatpush1.bf16.msra.mxu0 0
  %7489 = vmatprep.subr.bf16.mxu0 0
  %7490 = vmatpush1.bf16.msra.mxu0 0
  %7491 = vmatprep.mubr.bf16.mxu0 0
  %7492 = vmatmul.mubr.bf16.gmra.mrb[0].mxu0 %v7457
  %v7493 = vpop.f32.mrb[0].mxu0
  %v7494 = vadd.f32 %v5398, %v7493
  %v7495 = vpop.f32.mrb[0].mxu0
  %v7496 = vpop.f32.mrb[0].mxu0
  %v7497 = vpop.f32.mrb[0].mxu0
  %7498 = vdwg.mxu0
  %v7499 = vpack.c.bf16 %v7448, %v7448
  %v7501 = vsel %vm1773, %v7499, 0
  %7503 = vmatprep.subr.bf16.mxu0 0
  %7504 = vmatpush1.bf16.msra.mxu0 %v5471
  %7505 = vmatprep.subr.bf16.mxu0 0
  %7506 = vmatpush1.bf16.msra.mxu0 %v5472
  %7507 = vmatprep.subr.bf16.mxu0 0
  %7508 = vmatpush1.bf16.msra.mxu0 0
  %7509 = vmatprep.subr.bf16.mxu0 0
  %7510 = vmatpush1.bf16.msra.mxu0 0
  %7511 = vmatprep.subr.bf16.mxu0 0
  %7512 = vmatpush1.bf16.msra.mxu0 0
  %7513 = vmatprep.subr.bf16.mxu0 0
  %7514 = vmatpush1.bf16.msra.mxu0 0
  %7515 = vmatprep.subr.bf16.mxu0 0
  %7516 = vmatpush1.bf16.msra.mxu0 0
  %7517 = vmatprep.subr.bf16.mxu0 0
  %7518 = vmatpush1.bf16.msra.mxu0 0
  %7519 = vmatprep.subr.bf16.mxu0 0
  %7520 = vmatpush1.bf16.msra.mxu0 0
  %7521 = vmatprep.subr.bf16.mxu0 0
  %7522 = vmatpush1.bf16.msra.mxu0 0
  %7523 = vmatprep.subr.bf16.mxu0 0
  %7524 = vmatpush1.bf16.msra.mxu0 0
  %7525 = vmatprep.subr.bf16.mxu0 0
  %7526 = vmatpush1.bf16.msra.mxu0 0
  %7527 = vmatprep.subr.bf16.mxu0 0
  %7528 = vmatpush1.bf16.msra.mxu0 0
  %7529 = vmatprep.subr.bf16.mxu0 0
  %7530 = vmatpush1.bf16.msra.mxu0 0
  %7531 = vmatprep.subr.bf16.mxu0 0
  %7532 = vmatpush1.bf16.msra.mxu0 0
  %7533 = vmatprep.subr.bf16.mxu0 0
  %7534 = vmatpush1.bf16.msra.mxu0 0
  %7535 = vmatprep.mubr.bf16.mxu0 0
  %7536 = vmatmul.mubr.bf16.gmra.mrb[0].mxu0 %v7501
  %v7537 = vpop.f32.mrb[0].mxu0
  %v7538 = vadd.f32 %v5461, %v7537
  %v7539 = vpop.f32.mrb[0].mxu0
  %v7540 = vpop.f32.mrb[0].mxu0
  %v7541 = vpop.f32.mrb[0].mxu0
  %7542 = vdwg.mxu0
  %v7543 = vadd.f32 %v7449, %v7494
  %v7544 = vxor.u32 %v7543, 2147483648
  %v7545 = vmul.f32 %v7544, 1.442695
  %v7546 = vpow.pop %v7545
  %v7547 = vadd.f32 %v7546, 1.0
  %v7548 = vrcp.pop %v7547
  %v7549 = vmul.f32 1.0, %v7548
  %7551 = vrot.lane.b32.xlu0 %v7494, 64
  %v7552 = vpop.permute.xlu0 %7551
  %v7554 = vmul.f32 %v7549, %v7552
  %7556 = vrot.lane.b32.xlu0 %v7554, 64
  %v7557 = vpop.permute.xlu0 %7556
  %v7559 = vadd.f32 %v7449, %v7557
  %v7560 = vtanh.pop %v7559
  %v7561 = vsub.f32 1.0, %v7549
  %7563 = vrot.lane.b32.xlu0 %v7560, 96
  %v7564 = vpop.permute.xlu0 %7563
  %v7566 = vmul.f32 %v7561, %v7564
  %v7567 = vmul.f32 %v7549, %v7412
  %v7568 = vadd.f32 %v7566, %v7567
  %7570 = vrot.lane.b32.xlu0 %v7538, 96
  %v7571 = vpop.permute.xlu0 %7570
  %v7573 = vadd.f32 %v7450, %v7571
  %v7574 = vxor.u32 %v7573, 2147483648
  %v7575 = vmul.f32 %v7574, 1.442695
  %v7576 = vpow.pop %v7575
  %v7577 = vadd.f32 %v7576, 1.0
  %v7578 = vrcp.pop %v7577
  %v7579 = vmul.f32 1.0, %v7578
  %v7580 = vadd.f32 %v7451, %v7571
  %v7581 = vxor.u32 %v7580, 2147483648
  %v7582 = vmul.f32 %v7581, 1.442695
  %v7583 = vpow.pop %v7582
  %v7584 = vadd.f32 %v7583, 1.0
  %v7585 = vrcp.pop %v7584
  %v7586 = vmul.f32 1.0, %v7585
  %7587 = vrot.lane.b32.xlu0 %v7538, 32
  %v7588 = vpop.permute.xlu0 %7587
  %v7590 = vmul.f32 %v7579, %v7588
  %7592 = vrot.lane.b32.xlu0 %v7590, 64
  %v7593 = vpop.permute.xlu0 %7592
  %v7595 = vadd.f32 %v7451, %v7593
  %v7596 = vtanh.pop %v7595
  %v7597 = vsub.f32 1.0, %v7586
  %7599 = vrot.lane.b32.xlu0 %v7596, 96
  %v7600 = vpop.permute.xlu0 %7599
  %v7602 = vmul.f32 %v7597, %v7600
  %v7603 = vmul.f32 %v7586, %v7448
  %v7604 = vadd.f32 %v7602, %v7603
  %v7605 = vld [vmem:[#allocation2 + $0xe0] sm:$0xff]
  %v7606 = vld [vmem:[#allocation2 + $0x10] sm:$0xff]
  %v7607 = vld [vmem:[#allocation2 + $0x18] sm:$0xff]
  %v7608 = vpack.c.bf16 %v7568, %v7568
  %7610 = vrot.lane.b32.xlu0 %v7608, 96
  %v7611 = vpop.permute.xlu0 %7610
  %v7613 = vsel %vm1773, %v7611, 0
  %7615 = vmatprep.subr.bf16.mxu0 0
  %7616 = vmatpush1.bf16.msra.mxu0 %v5408
  %7617 = vmatprep.subr.bf16.mxu0 0
  %7618 = vmatpush1.bf16.msra.mxu0 %v5409
  %7619 = vmatprep.subr.bf16.mxu0 0
  %7620 = vmatpush1.bf16.msra.mxu0 0
  %7621 = vmatprep.subr.bf16.mxu0 0
  %7622 = vmatpush1.bf16.msra.mxu0 0
  %7623 = vmatprep.subr.bf16.mxu0 0
  %7624 = vmatpush1.bf16.msra.mxu0 0
  %7625 = vmatprep.subr.bf16.mxu0 0
  %7626 = vmatpush1.bf16.msra.mxu0 0
  %7627 = vmatprep.subr.bf16.mxu0 0
  %7628 = vmatpush1.bf16.msra.mxu0 0
  %7629 = vmatprep.subr.bf16.mxu0 0
  %7630 = vmatpush1.bf16.msra.mxu0 0
  %7631 = vmatprep.subr.bf16.mxu0 0
  %7632 = vmatpush1.bf16.msra.mxu0 0
  %7633 = vmatprep.subr.bf16.mxu0 0
  %7634 = vmatpush1.bf16.msra.mxu0 0
  %7635 = vmatprep.subr.bf16.mxu0 0
  %7636 = vmatpush1.bf16.msra.mxu0 0
  %7637 = vmatprep.subr.bf16.mxu0 0
  %7638 = vmatpush1.bf16.msra.mxu0 0
  %7639 = vmatprep.subr.bf16.mxu0 0
  %7640 = vmatpush1.bf16.msra.mxu0 0
  %7641 = vmatprep.subr.bf16.mxu0 0
  %7642 = vmatpush1.bf16.msra.mxu0 0
  %7643 = vmatprep.subr.bf16.mxu0 0
  %7644 = vmatpush1.bf16.msra.mxu0 0
  %7645 = vmatprep.subr.bf16.mxu0 0
  %7646 = vmatpush1.bf16.msra.mxu0 0
  %7647 = vmatprep.mubr.bf16.mxu0 0
  %7648 = vmatmul.mubr.bf16.gmra.mrb[0].mxu0 %v7613
  %v7649 = vpop.f32.mrb[0].mxu0
  %v7650 = vadd.f32 %v5398, %v7649
  %v7651 = vpop.f32.mrb[0].mxu0
  %v7652 = vpop.f32.mrb[0].mxu0
  %v7653 = vpop.f32.mrb[0].mxu0
  %7654 = vdwg.mxu0
  %v7655 = vpack.c.bf16 %v7604, %v7604
  %v7657 = vsel %vm1773, %v7655, 0
  %7659 = vmatprep.subr.bf16.mxu0 0
  %7660 = vmatpush1.bf16.msra.mxu0 %v5471
  %7661 = vmatprep.subr.bf16.mxu0 0
  %7662 = vmatpush1.bf16.msra.mxu0 %v5472
  %7663 = vmatprep.subr.bf16.mxu0 0
  %7664 = vmatpush1.bf16.msra.mxu0 0
  %7665 = vmatprep.subr.bf16.mxu0 0
  %7666 = vmatpush1.bf16.msra.mxu0 0
  %7667 = vmatprep.subr.bf16.mxu0 0
  %7668 = vmatpush1.bf16.msra.mxu0 0
  %7669 = vmatprep.subr.bf16.mxu0 0
  %7670 = vmatpush1.bf16.msra.mxu0 0
  %7671 = vmatprep.subr.bf16.mxu0 0
  %7672 = vmatpush1.bf16.msra.mxu0 0
  %7673 = vmatprep.subr.bf16.mxu0 0
  %7674 = vmatpush1.bf16.msra.mxu0 0
  %7675 = vmatprep.subr.bf16.mxu0 0
  %7676 = vmatpush1.bf16.msra.mxu0 0
  %7677 = vmatprep.subr.bf16.mxu0 0
  %7678 = vmatpush1.bf16.msra.mxu0 0
  %7679 = vmatprep.subr.bf16.mxu0 0
  %7680 = vmatpush1.bf16.msra.mxu0 0
  %7681 = vmatprep.subr.bf16.mxu0 0
  %7682 = vmatpush1.bf16.msra.mxu0 0
  %7683 = vmatprep.subr.bf16.mxu0 0
  %7684 = vmatpush1.bf16.msra.mxu0 0
  %7685 = vmatprep.subr.bf16.mxu0 0
  %7686 = vmatpush1.bf16.msra.mxu0 0
  %7687 = vmatprep.subr.bf16.mxu0 0
  %7688 = vmatpush1.bf16.msra.mxu0 0
  %7689 = vmatprep.subr.bf16.mxu0 0
  %7690 = vmatpush1.bf16.msra.mxu0 0
  %7691 = vmatprep.mubr.bf16.mxu0 0
  %7692 = vmatmul.mubr.bf16.gmra.mrb[0].mxu0 %v7657
  %v7693 = vpop.f32.mrb[0].mxu0
  %v7694 = vadd.f32 %v5461, %v7693
  %v7695 = vpop.f32.mrb[0].mxu0
  %v7696 = vpop.f32.mrb[0].mxu0
  %v7697 = vpop.f32.mrb[0].mxu0
  %7698 = vdwg.mxu0
  %v7699 = vadd.f32 %v7605, %v7650
  %v7700 = vxor.u32 %v7699, 2147483648
  %v7701 = vmul.f32 %v7700, 1.442695
  %v7702 = vpow.pop %v7701
  %v7703 = vadd.f32 %v7702, 1.0
  %v7704 = vrcp.pop %v7703
  %v7705 = vmul.f32 1.0, %v7704
  %7707 = vrot.lane.b32.xlu0 %v7650, 64
  %v7708 = vpop.permute.xlu0 %7707
  %v7710 = vmul.f32 %v7705, %v7708
  %7712 = vrot.lane.b32.xlu0 %v7710, 64
  %v7713 = vpop.permute.xlu0 %7712
  %v7715 = vadd.f32 %v7605, %v7713
  %v7716 = vtanh.pop %v7715
  %v7717 = vsub.f32 1.0, %v7705
  %7719 = vrot.lane.b32.xlu0 %v7716, 96
  %v7720 = vpop.permute.xlu0 %7719
  %v7722 = vmul.f32 %v7717, %v7720
  %v7723 = vmul.f32 %v7705, %v7568
  %v7724 = vadd.f32 %v7722, %v7723
  %7726 = vrot.lane.b32.xlu0 %v7694, 96
  %v7727 = vpop.permute.xlu0 %7726
  %v7729 = vadd.f32 %v7606, %v7727
  %v7730 = vxor.u32 %v7729, 2147483648
  %v7731 = vmul.f32 %v7730, 1.442695
  %v7732 = vpow.pop %v7731
  %v7733 = vadd.f32 %v7732, 1.0
  %v7734 = vrcp.pop %v7733
  %v7735 = vmul.f32 1.0, %v7734
  %v7736 = vadd.f32 %v7607, %v7727
  %v7737 = vxor.u32 %v7736, 2147483648
  %v7738 = vmul.f32 %v7737, 1.442695
  %v7739 = vpow.pop %v7738
  %v7740 = vadd.f32 %v7739, 1.0
  %v7741 = vrcp.pop %v7740
  %v7742 = vmul.f32 1.0, %v7741
  %7743 = vrot.lane.b32.xlu0 %v7694, 32
  %v7744 = vpop.permute.xlu0 %7743
  %v7746 = vmul.f32 %v7735, %v7744
  %7748 = vrot.lane.b32.xlu0 %v7746, 64
  %v7749 = vpop.permute.xlu0 %7748
  %v7751 = vadd.f32 %v7607, %v7749
  %v7752 = vtanh.pop %v7751
  %v7753 = vsub.f32 1.0, %v7742
  %7755 = vrot.lane.b32.xlu0 %v7752, 96
  %v7756 = vpop.permute.xlu0 %7755
  %v7758 = vmul.f32 %v7753, %v7756
  %v7759 = vmul.f32 %v7742, %v7604
  %v7760 = vadd.f32 %v7758, %v7759
  %v7761 = vld [vmem:[#allocation2 + $0xf0] sm:$0xff]
  %v7762 = vld [vmem:[#allocation2] sm:$0xff]
  %v7763 = vld [vmem:[#allocation2 + $0x8] sm:$0xff]
  %v7764 = vpack.c.bf16 %v7724, %v7724
  %7766 = vrot.lane.b32.xlu0 %v7764, 96
  %v7767 = vpop.permute.xlu0 %7766
  %v7769 = vsel %vm1773, %v7767, 0
  %7771 = vmatprep.subr.bf16.mxu0 0
  %7772 = vmatpush1.bf16.msra.mxu0 %v5408
  %7773 = vmatprep.subr.bf16.mxu0 0
  %7774 = vmatpush1.bf16.msra.mxu0 %v5409
  %7775 = vmatprep.subr.bf16.mxu0 0
  %7776 = vmatpush1.bf16.msra.mxu0 0
  %7777 = vmatprep.subr.bf16.mxu0 0
  %7778 = vmatpush1.bf16.msra.mxu0 0
  %7779 = vmatprep.subr.bf16.mxu0 0
  %7780 = vmatpush1.bf16.msra.mxu0 0
  %7781 = vmatprep.subr.bf16.mxu0 0
  %7782 = vmatpush1.bf16.msra.mxu0 0
  %7783 = vmatprep.subr.bf16.mxu0 0
  %7784 = vmatpush1.bf16.msra.mxu0 0
  %7785 = vmatprep.subr.bf16.mxu0 0
  %7786 = vmatpush1.bf16.msra.mxu0 0
  %7787 = vmatprep.subr.bf16.mxu0 0
  %7788 = vmatpush1.bf16.msra.mxu0 0
  %7789 = vmatprep.subr.bf16.mxu0 0
  %7790 = vmatpush1.bf16.msra.mxu0 0
  %7791 = vmatprep.subr.bf16.mxu0 0
  %7792 = vmatpush1.bf16.msra.mxu0 0
  %7793 = vmatprep.subr.bf16.mxu0 0
  %7794 = vmatpush1.bf16.msra.mxu0 0
  %7795 = vmatprep.subr.bf16.mxu0 0
  %7796 = vmatpush1.bf16.msra.mxu0 0
  %7797 = vmatprep.subr.bf16.mxu0 0
  %7798 = vmatpush1.bf16.msra.mxu0 0
  %7799 = vmatprep.subr.bf16.mxu0 0
  %7800 = vmatpush1.bf16.msra.mxu0 0
  %7801 = vmatprep.subr.bf16.mxu0 0
  %7802 = vmatpush1.bf16.msra.mxu0 0
  %7803 = vmatprep.mubr.bf16.mxu0 0
  %7804 = vmatmul.mubr.bf16.gmra.mrb[0].mxu0 %v7769
  %v7805 = vpop.f32.mrb[0].mxu0
  %v7806 = vadd.f32 %v5398, %v7805
  %v7807 = vpop.f32.mrb[0].mxu0
  %v7808 = vpop.f32.mrb[0].mxu0
  %v7809 = vpop.f32.mrb[0].mxu0
  %7810 = vdwg.mxu0
  %v7811 = vpack.c.bf16 %v7760, %v7760
  %v7813 = vsel %vm1773, %v7811, 0
  %7815 = vmatprep.subr.bf16.mxu0 0
  %7816 = vmatpush1.bf16.msra.mxu0 %v5471
  %7817 = vmatprep.subr.bf16.mxu0 0
  %7818 = vmatpush1.bf16.msra.mxu0 %v5472
  %7819 = vmatprep.subr.bf16.mxu0 0
  %7820 = vmatpush1.bf16.msra.mxu0 0
  %7821 = vmatprep.subr.bf16.mxu0 0
  %7822 = vmatpush1.bf16.msra.mxu0 0
  %7823 = vmatprep.subr.bf16.mxu0 0
  %7824 = vmatpush1.bf16.msra.mxu0 0
  %7825 = vmatprep.subr.bf16.mxu0 0
  %7826 = vmatpush1.bf16.msra.mxu0 0
  %7827 = vmatprep.subr.bf16.mxu0 0
  %7828 = vmatpush1.bf16.msra.mxu0 0
  %7829 = vmatprep.subr.bf16.mxu0 0
  %7830 = vmatpush1.bf16.msra.mxu0 0
  %7831 = vmatprep.subr.bf16.mxu0 0
  %7832 = vmatpush1.bf16.msra.mxu0 0
  %7833 = vmatprep.subr.bf16.mxu0 0
  %7834 = vmatpush1.bf16.msra.mxu0 0
  %7835 = vmatprep.subr.bf16.mxu0 0
  %7836 = vmatpush1.bf16.msra.mxu0 0
  %7837 = vmatprep.subr.bf16.mxu0 0
  %7838 = vmatpush1.bf16.msra.mxu0 0
  %7839 = vmatprep.subr.bf16.mxu0 0
  %7840 = vmatpush1.bf16.msra.mxu0 0
  %7841 = vmatprep.subr.bf16.mxu0 0
  %7842 = vmatpush1.bf16.msra.mxu0 0
  %7843 = vmatprep.subr.bf16.mxu0 0
  %7844 = vmatpush1.bf16.msra.mxu0 0
  %7845 = vmatprep.subr.bf16.mxu0 0
  %7846 = vmatpush1.bf16.msra.mxu0 0
  %7847 = vmatprep.mubr.bf16.mxu0 0
  %7848 = vmatmul.mubr.bf16.gmra.mrb[0].mxu0 %v7813
  %v7849 = vpop.f32.mrb[0].mxu0
  %v7850 = vadd.f32 %v5461, %v7849
  %v7851 = vpop.f32.mrb[0].mxu0
  %v7852 = vpop.f32.mrb[0].mxu0
  %v7853 = vpop.f32.mrb[0].mxu0
  %7854 = vdwg.mxu0
  %v7855 = vadd.f32 %v7761, %v7806
  %v7856 = vxor.u32 %v7855, 2147483648
  %v7857 = vmul.f32 %v7856, 1.442695
  %v7858 = vpow.pop %v7857
  %v7859 = vadd.f32 %v7858, 1.0
  %v7860 = vrcp.pop %v7859
  %v7861 = vmul.f32 1.0, %v7860
  %7863 = vrot.lane.b32.xlu0 %v7806, 64
  %v7864 = vpop.permute.xlu0 %7863
  %v7866 = vmul.f32 %v7861, %v7864
  %7868 = vrot.lane.b32.xlu0 %v7866, 64
  %v7869 = vpop.permute.xlu0 %7868
  %v7871 = vadd.f32 %v7761, %v7869
  %v7872 = vtanh.pop %v7871
  %v7873 = vsub.f32 1.0, %v7861
  %7875 = vrot.lane.b32.xlu0 %v7872, 96
  %v7876 = vpop.permute.xlu0 %7875
  %v7878 = vmul.f32 %v7873, %v7876
  %v7879 = vmul.f32 %v7861, %v7724
  %v7880 = vadd.f32 %v7878, %v7879
  %7882 = vrot.lane.b32.xlu0 %v7850, 96
  %v7883 = vpop.permute.xlu0 %7882
  %v7885 = vadd.f32 %v7762, %v7883
  %v7886 = vxor.u32 %v7885, 2147483648
  %v7887 = vmul.f32 %v7886, 1.442695
  %v7888 = vpow.pop %v7887
  %v7889 = vadd.f32 %v7888, 1.0
  %v7890 = vrcp.pop %v7889
  %v7891 = vmul.f32 1.0, %v7890
  %v7892 = vadd.f32 %v7763, %v7883
  %v7893 = vxor.u32 %v7892, 2147483648
  %v7894 = vmul.f32 %v7893, 1.442695
  %v7895 = vpow.pop %v7894
  %v7896 = vadd.f32 %v7895, 1.0
  %v7897 = vrcp.pop %v7896
  %v7898 = vmul.f32 1.0, %v7897
  %7899 = vrot.lane.b32.xlu0 %v7850, 32
  %v7900 = vpop.permute.xlu0 %7899
  %v7902 = vmul.f32 %v7891, %v7900
  %7904 = vrot.lane.b32.xlu0 %v7902, 64
  %v7905 = vpop.permute.xlu0 %7904
  %v7907 = vadd.f32 %v7763, %v7905
  %v7908 = vtanh.pop %v7907
  %v7909 = vsub.f32 1.0, %v7898
  %7911 = vrot.lane.b32.xlu0 %v7908, 96
  %v7912 = vpop.permute.xlu0 %7911
  %v7914 = vmul.f32 %v7909, %v7912
  %v7915 = vmul.f32 %v7898, %v7760
  %v7916 = vadd.f32 %v7914, %v7915
  %7918 = vrot.lane.b32.xlu0 %v7880, 32
  %v7919 = vpop.permute.xlu0 %7918
  %7922 = vrot.lane.b32.xlu0 %v7916, 96
  %v7923 = vpop.permute.xlu0 %7922
  %v7925 = vsel %vm1773, %v5125, %v5130
  %v7926 = vsel %vm1715, %v7925, %v7919
  %vm7927 = vcmask 785408
  %v7928 = vsel %vm7927, %v7926, %v7923
  %v7929 = vpack.c.bf16 %v7928, %v7928
  %v7930 = vld [vmem:[%s15] sm:$0xf]
  %v7931 = vld [vmem:[%s15 + $0x4] sm:$0xf]
  %v7932 = vld [vmem:[%s15 + $0x8] sm:$0xf]
  %v7933 = vld [vmem:[%s15 + $0xc] sm:$0xf]
  %v7934 = vld [vmem:[%s15 + $0x10] sm:$0xf]
  %v7935 = vld [vmem:[%s15 + $0x14] sm:$0xf]
  %v7936 = vld [vmem:[%s15 + $0x18] sm:$0xf]
  %v7937 = vld [vmem:[%s15 + $0x1c] sm:$0xf]
  %v7938 = vld [vmem:[%s15 + $0x20] sm:$0xf]
  %v7939 = vld [vmem:[%s15 + $0x24] sm:$0xf]
  %v7940 = vld [vmem:[%s15 + $0x28] sm:$0xf]
  %v7941 = vld [vmem:[%s15 + $0x2c] sm:$0xf]
  %v7942 = vld [vmem:[%s15 + $0x30] sm:$0xf]
  %v7943 = vld [vmem:[%s15 + $0x34] sm:$0xf]
  %v7944 = vld [vmem:[%s15 + $0x38] sm:$0xf]
  %v7945 = vld [vmem:[%s15 + $0x3c] sm:$0xf]
  %v7946 = vld [vmem:[%s16] sm:$0x1]
  %v7948 = vlaneseq
  %v7949 = vshrl.u32 %v7948, 7
  %v7950 = vsub.s32 0, %v7949
  %v7951 = vrot.slane %v7946, %v7950
  %v7969 = vunpack.c.l.b16 %v7930
  %v7970 = vunpack.c.l.b16 %v7931
  %v7971 = vunpack.c.l.b16 %v7932
  %v7972 = vunpack.c.l.b16 %v7933
  %v7973 = vunpack.c.l.b16 %v7934
  %v7974 = vunpack.c.l.b16 %v7935
  %v7975 = vunpack.c.l.b16 %v7936
  %v7976 = vunpack.c.l.b16 %v7937
  %v7977 = vunpack.c.l.b16 %v7938
  %v7978 = vunpack.c.l.b16 %v7939
  %v7979 = vunpack.c.l.b16 %v7940
  %v7980 = vunpack.c.l.b16 %v7941
  %v7981 = vunpack.c.l.b16 %v7942
  %v7982 = vunpack.c.l.b16 %v7943
  %v7983 = vunpack.c.l.b16 %v7944
  %v7984 = vunpack.c.l.b16 %v7945
  %v7985 = vpack.c.b16 %v7970, %v7969
  %v7986 = vpack.c.b16 %v7972, %v7971
  %v7987 = vpack.c.b16 %v7974, %v7973
  %v7988 = vpack.c.b16 %v7976, %v7975
  %v7989 = vpack.c.b16 %v7978, %v7977
  %v7990 = vpack.c.b16 %v7980, %v7979
  %v7991 = vpack.c.b16 %v7982, %v7981
  %v7992 = vpack.c.b16 %v7984, %v7983
  %8001 = vmatprep.subr.bf16.mxu0 0
  %8002 = vmatpush1.bf16.msra.mxu0 %v7985
  %8003 = vmatprep.subr.bf16.mxu0 0
  %8004 = vmatpush1.bf16.msra.mxu0 %v7986
  %8005 = vmatprep.subr.bf16.mxu0 0
  %8006 = vmatpush1.bf16.msra.mxu0 %v7987
  %8007 = vmatprep.subr.bf16.mxu0 0
  %8008 = vmatpush1.bf16.msra.mxu0 %v7988
  %8009 = vmatprep.subr.bf16.mxu0 0
  %8010 = vmatpush1.bf16.msra.mxu0 %v7989
  %8011 = vmatprep.subr.bf16.mxu0 0
  %8012 = vmatpush1.bf16.msra.mxu0 %v7990
  %8013 = vmatprep.subr.bf16.mxu0 0
  %8014 = vmatpush1.bf16.msra.mxu0 %v7991
  %8015 = vmatprep.subr.bf16.mxu0 0
  %8016 = vmatpush1.bf16.msra.mxu0 %v7992
  %8017 = vmatprep.subr.bf16.mxu0 0
  %8018 = vmatpush1.bf16.msra.mxu0 0
  %8019 = vmatprep.subr.bf16.mxu0 0
  %8020 = vmatpush1.bf16.msra.mxu0 0
  %8021 = vmatprep.subr.bf16.mxu0 0
  %8022 = vmatpush1.bf16.msra.mxu0 0
  %8023 = vmatprep.subr.bf16.mxu0 0
  %8024 = vmatpush1.bf16.msra.mxu0 0
  %8025 = vmatprep.subr.bf16.mxu0 0
  %8026 = vmatpush1.bf16.msra.mxu0 0
  %8027 = vmatprep.subr.bf16.mxu0 0
  %8028 = vmatpush1.bf16.msra.mxu0 0
  %8029 = vmatprep.subr.bf16.mxu0 0
  %8030 = vmatpush1.bf16.msra.mxu0 0
  %8031 = vmatprep.subr.bf16.mxu0 0
  %8032 = vmatpush1.bf16.msra.mxu0 0
  %8033 = vmatprep.mubr.bf16.mxu0 0
  %8034 = vmatmul.mubr.bf16.gmra.mrb[0].mxu0 %v7929
  %v8035 = vpop.f32.mrb[0].mxu0
  %v8036 = vadd.f32 %v7951, %v8035
  %v8037 = vpop.f32.mrb[0].mxu0
  %v8038 = vpop.f32.mrb[0].mxu0
  %v8039 = vpop.f32.mrb[0].mxu0
  %8040 = vdwg.mxu0
  %vm8041 = vcmask 23552
  %8042 = vst.msk [vmem:[%s17] sm:$0xff] %vm8041, %v8036
  // Predicated region
  $region70: #{rnn_forward.1} parent=0 // pred_check
    _
  $region71: #{rnn_forward.1} parent=0 // pred_check_branch
    %8044 = sbr.rel (0) target = $region73
  $region72: #{rnn_forward.1} parent=0 // pred_region
    _
  $region73: #{rnn_forward.1} parent=0 // pred_fallthru
    _
  // Predicated region
  $region74: #{rnn_forward.1} parent=0 // pred_check
    _
  $region75: #{rnn_forward.1} parent=0 // pred_check_branch
    %8046 = sbr.rel (0) target = $region77
  $region76: #{rnn_forward.1} parent=0 // pred_region
    _
  $region77: #{rnn_forward.1} parent=0 // pred_fallthru
    _

</llo_original>
